<compile_context>
chip_gen: v5e
topology: v5e:2x2
jax: 0.10.0
libtpu: 0.0.40
codegen_flags: <defaults>
</compile_context>

<pallas_src>
import functools

import jax
import jax.numpy as jnp
from jax.experimental import pallas as pl
from jax.experimental.pallas import tpu as pltpu


# ---------------------------------------------------------------------------
# Generation-aware defaults (trace-time host queries, cheap & safe).
# ---------------------------------------------------------------------------
def _device_kind():
    try:
        return jax.devices()[0].device_kind.lower()
    except Exception:  # no TPU visible at trace time; use conservative defaults
        return ""


def _is_v7x():
    return "v7" in _device_kind()


def _vmem_limit_bytes():
    # v7x: 64 MiB physical per TC -> stay well under.  v5e/v6e: 128 MiB.
    return (40 if _is_v7x() else 80) * 1024 * 1024


def _pick_tile(dim, preferred, align):
    """Largest divisor of `dim` that is a multiple of `align` and <= preferred.

    Falls back to the full dimension (a full-extent block is always legal).
    """
    best = None
    upper = min(preferred, dim)
    t = align
    while t <= upper:
        if dim % t == 0:
            best = t
        t += align
    return best if best is not None else dim


def _batch_align(dtype):
    """Dtype-aware sublane alignment for the batch tile."""
    itemsize = jnp.dtype(dtype).itemsize
    if itemsize >= 4:
        return 8
    if itemsize == 2:
        return 16
    return 32


def _default_batch_tile(B, dtype):
    align = _batch_align(dtype)
    if _is_v7x():
        # Keep >= 2 parallel batch tiles so both v7x TensorCores get work.
        target = max(B // 2, align)
    else:
        # Single TensorCore (v5e/v6e): tb=B streams W1 from HBM exactly once.
        target = B
    return _pick_tile(B, target, align)


# ---------------------------------------------------------------------------
# Kernel A: encoder_hidden (D streamed as reduction) + encoder_output
#           + decoder_hidden.  Produces h3 of shape (B, F).
# ---------------------------------------------------------------------------
def _encode_kernel(x_ref, w1_ref, b1_ref, w2_ref, b2_ref, w3_ref, b3_ref,
                   h_ref, acc_ref):
    k = pl.program_id(1)

    @pl.when(k == 0)
    def _():
        acc_ref[...] = jnp.zeros_like(acc_ref)

    # Layer-1 partial product: (tb, td) @ (td, F), accumulated in f32.
    acc_ref[...] += jnp.dot(x_ref[...], w1_ref[...],
                            preferred_element_type=jnp.float32)

    # Epilogue on the last reduction step: bias + ReLU for layer 1 (must NOT
    # be applied per K step), then the two small (F, F) layers.
    @pl.when(k == pl.num_programs(1) - 1)
    def _():
        cdt = w2_ref.dtype  # bf16 or f32 operands for the small matmuls
        h1 = jnp.maximum(acc_ref[...] + b1_ref[...].astype(jnp.float32), 0.0)
        h2 = jnp.dot(h1.astype(cdt), w2_ref[...],
                     preferred_element_type=jnp.float32)
        h2 = jnp.maximum(h2 + b2_ref[...].astype(jnp.float32), 0.0)
        h3 = jnp.dot(h2.astype(cdt), w3_ref[...],
                     preferred_element_type=jnp.float32)
        h3 = jnp.maximum(h3 + b3_ref[...].astype(jnp.float32), 0.0)
        h_ref[...] = h3.astype(h_ref.dtype)


def _encode(x, w1, b1, w2, b2, w3, b3, *, tb, td, vmem_limit):
    B, D = x.shape
    F = w1.shape[1]
    const = lambda shape: pl.BlockSpec(shape, lambda i, k: (0, 0))
    return pl.pallas_call(
        _encode_kernel,
        out_shape=jax.ShapeDtypeStruct((B, F), x.dtype),
        grid_spec=pltpu.PrefetchScalarGridSpec(
            num_scalar_prefetch=0,
            grid=(B // tb, D // td),                          # reduction last
            in_specs=[
                pl.BlockSpec((tb, td), lambda i, k: (i, k)),  # x tile (streamed)
                pl.BlockSpec((td, F), lambda i, k: (k, 0)),   # w1 tile (streamed)
                const((1, F)),                                # b1 (resident)
                const((F, F)),                                # w2 (resident)
                const((1, F)),                                # b2 (resident)
                const((F, F)),                                # w3 (resident)
                const((1, F)),                                # b3 (resident)
            ],
            out_specs=pl.BlockSpec((tb, F), lambda i, k: (i, 0)),
            scratch_shapes=[pltpu.VMEM((tb, F), jnp.float32)],
        ),
        compiler_params=pltpu.CompilerParams(
            dimension_semantics=("parallel", "arbitrary"),
            vmem_limit_bytes=vmem_limit,
        ),
    )(x, w1, b1, w2, b2, w3, b3)


# ---------------------------------------------------------------------------
# Kernel B: decoder_output.  Grid is (D//td, B//tb): the W4 column tile index
# only changes on the OUTER axis, so W4 is streamed from HBM exactly once;
# the tiny (tb, F) h tile is re-fetched per inner step (negligible bytes).
# Output stores are lane-dense (tb, td).
# ---------------------------------------------------------------------------
def _decode_kernel(h_ref, w4_ref, b4_ref, o_ref):
    y = jnp.dot(h_ref[...], w4_ref[...], preferred_element_type=jnp.float32)
    y = jnp.maximum(y + b4_ref[...].astype(jnp.float32), 0.0)
    o_ref[...] = y.astype(o_ref.dtype)


def _decode(h, w4, b4, out_dtype, *, tb, td, vmem_limit):
    B, F = h.shape
    D = w4.shape[1]
    return pl.pallas_call(
        _decode_kernel,
        out_shape=jax.ShapeDtypeStruct((B, D), out_dtype),
        grid_spec=pltpu.PrefetchScalarGridSpec(
            num_scalar_prefetch=0,
            grid=(D // td, B // tb),                          # D outer, B inner
            in_specs=[
                pl.BlockSpec((tb, F), lambda j, i: (i, 0)),   # h3 (per batch tile)
                pl.BlockSpec((F, td), lambda j, i: (0, j)),   # w4 column tile (outer)
                pl.BlockSpec((1, td), lambda j, i: (0, j)),   # b4 column tile (outer)
            ],
            out_specs=pl.BlockSpec((tb, td), lambda j, i: (i, j)),  # lane-dense
        ),
        compiler_params=pltpu.CompilerParams(
            dimension_semantics=("parallel", "parallel"),
            vmem_limit_bytes=vmem_limit,
        ),
    )(h, w4, b4)


# ---------------------------------------------------------------------------
# Public forward
# ---------------------------------------------------------------------------
@functools.partial(jax.jit, static_argnames=("tb", "td"))
def ae_forward(x, params, *, tb=None, td=None):
    """AE forward pass with two Pallas kernels.

    x: (B, D); params: weights pre-transposed to (in, out), biases (1, out).
    """
    B, D = x.shape
    if tb is None:
        tb = _default_batch_tile(B, x.dtype)      # generation/dtype aware
    if td is None:
        td = _pick_tile(D, 3584, 128)             # large lane-aligned D tile
    assert B % tb == 0 and D % td == 0, "tiles must divide (B, D)"
    vmem_limit = _vmem_limit_bytes()

    h = _encode(x, params["w1"], params["b1"], params["w2"], params["b2"],
                params["w3"], params["b3"], tb=tb, td=td, vmem_limit=vmem_limit)
    return _decode(h, params["w4"], params["b4"], x.dtype,
                   tb=tb, td=td, vmem_limit=vmem_limit)


def init_params(key, input_shape, feats, dtype=jnp.float32):
    """PyTorch nn.Linear-style init (uniform +/- 1/sqrt(fan_in)).

    Weights stored already transposed to (in, out), biases as (1, out).
    """
    def linear(k, fan_in, fan_out):
        kw, kb = jax.random.split(k)
        bound = 1.0 / jnp.sqrt(fan_in)
        w = jax.random.uniform(kw, (fan_in, fan_out), dtype, -bound, bound)
        b = jax.random.uniform(kb, (1, fan_out), dtype, -bound, bound)
        return w, b

    k1, k2, k3, k4 = jax.random.split(key, 4)
    w1, b1 = linear(k1, input_shape, feats)   # encoder_hidden_layer
    w2, b2 = linear(k2, feats, feats)         # encoder_output_layer
    w3, b3 = linear(k3, feats, feats)         # decoder_hidden_layer
    w4, b4 = linear(k4, feats, input_shape)   # decoder_output_layer
    return {"w1": w1, "b1": b1, "w2": w2, "b2": b2,
            "w3": w3, "b3": b3, "w4": w4, "b4": b4}


def ae_reference(x, p):
    """Pure-JAX reference mirroring the kernel's dtype handling exactly."""
    f32 = jnp.float32
    cdt = p["w1"].dtype
    h = jnp.dot(x, p["w1"], preferred_element_type=f32)
    h = jnp.maximum(h + p["b1"].astype(f32), 0.0)
    h = jnp.dot(h.astype(cdt), p["w2"], preferred_element_type=f32)
    h = jnp.maximum(h + p["b2"].astype(f32), 0.0)
    h = jnp.dot(h.astype(cdt), p["w3"], preferred_element_type=f32)
    h = jnp.maximum(h + p["b3"].astype(f32), 0.0)
    h = h.astype(x.dtype)                       # kernel A stores h3 in x.dtype
    y = jnp.dot(h, p["w4"], preferred_element_type=f32)
    y = jnp.maximum(y + p["b4"].astype(f32), 0.0)
    return y.astype(x.dtype)


if __name__ == "__main__":
    # Small shapes consistent with the module (real model: D=50176, F=128).
    B, INPUT_SHAPE, FEATS = 256, 2048, 128

    key = jax.random.PRNGKey(0)
    kx, kp = jax.random.split(key)
    x = jax.random.normal(kx, (B, INPUT_SHAPE), jnp.float32)
    params = init_params(kp, INPUT_SHAPE, FEATS)

    # f32: exact PyTorch forward semantics.
    out = jax.block_until_ready(ae_forward(x, params))
    ref = ae_reference(x, params)
    assert out.shape == (B, INPUT_SHAPE)
    assert jnp.allclose(out, ref, atol=5e-3, rtol=5e-3), "f32 mismatch vs reference"

    # bf16 operands with f32 accumulation (bandwidth / MXU win on v5e/v6e).
    xb = x.astype(jnp.bfloat16)
    pb = jax.tree.map(lambda a: a.astype(jnp.bfloat16), params)
    outb = jax.block_until_ready(ae_forward(xb, pb))
    refb = ae_reference(xb, pb)
    assert jnp.allclose(outb.astype(jnp.float32), refb.astype(jnp.float32),
                        atol=5e-2, rtol=5e-2), "bf16 mismatch vs reference"

    # Exercise an explicit multi-tile configuration (smaller tb/td) as well,
    # so the streamed-reduction and swapped-decode grids run with >1 steps.
    out2 = jax.block_until_ready(ae_forward(x, params, tb=128, td=512))
    assert jnp.allclose(out2, ref, atol=5e-3, rtol=5e-3), "tiled mismatch vs reference"

    print("KERNEL_OK")
</pallas_src>

<mosaic_0001>
module attributes {stable_mosaic.version = 11 : i64} {
  func.func @_encode_kernel(%arg0: i32, %arg1: i32, %arg2: memref<256x2048xf32, #tpu.memory_space<vmem>>, %arg3: memref<2048x128xf32, #tpu.memory_space<vmem>>, %arg4: memref<1x128xf32, #tpu.memory_space<vmem>>, %arg5: memref<128x128xf32, #tpu.memory_space<vmem>>, %arg6: memref<1x128xf32, #tpu.memory_space<vmem>>, %arg7: memref<128x128xf32, #tpu.memory_space<vmem>>, %arg8: memref<1x128xf32, #tpu.memory_space<vmem>>, %arg9: memref<256x128xf32, #tpu.memory_space<vmem>>, %arg10: memref<256x128xf32, #tpu.memory_space<vmem>>) attributes {dimension_semantics = [#tpu.dimension_semantics<parallel>, #tpu.dimension_semantics<arbitrary>], iteration_bounds = array<i64: 1, 1>, scalar_prefetch = 0 : i64, scratch_operands = 1 : i64, tpu.core_type = #tpu.core_type<tc>, window_params = [{transform_indices = @transform_0, window_bounds = array<i64: 256, 2048>}, {transform_indices = @transform_1, window_bounds = array<i64: 2048, 128>}, {pipeline_mode = #tpu.pipeline_mode<synchronous>, transform_indices = @transform_2, window_bounds = array<i64: 1, 128>}, {pipeline_mode = #tpu.pipeline_mode<synchronous>, transform_indices = @transform_3, window_bounds = array<i64: 128, 128>}, {pipeline_mode = #tpu.pipeline_mode<synchronous>, transform_indices = @transform_4, window_bounds = array<i64: 1, 128>}, {pipeline_mode = #tpu.pipeline_mode<synchronous>, transform_indices = @transform_5, window_bounds = array<i64: 128, 128>}, {pipeline_mode = #tpu.pipeline_mode<synchronous>, transform_indices = @transform_6, window_bounds = array<i64: 1, 128>}, {transform_indices = @transform_7, window_bounds = array<i64: 256, 128>}]} {
    %c0_i32 = arith.constant 0 : i32
    %0 = arith.cmpi eq, %arg1, %c0_i32 : i32
    %1 = arith.extui %0 : i1 to i32
    %c0_i32_0 = arith.constant 0 : i32
    %2 = arith.cmpi ne, %1, %c0_i32_0 : i32
    scf.if %2 {
      %cst_10 = arith.constant 0.000000e+00 : f32
      %12 = vector.broadcast %cst_10 : f32 to vector<256x128xf32>
      %c0_11 = arith.constant 0 : index
      %c0_12 = arith.constant 0 : index
      %13 = vector.load %arg10[%c0_11, %c0_12] : memref<256x128xf32, #tpu.memory_space<vmem>>, vector<256x128xf32>
      tpu.vector_store %arg10[%c0_11, %c0_12], %12 {strides = array<i32>} : memref<256x128xf32, #tpu.memory_space<vmem>>, vector<256x128xf32>,
    } else {
    }
    %c0 = arith.constant 0 : index
    %c0_1 = arith.constant 0 : index
    %3 = vector.load %arg10[%c0, %c0_1] : memref<256x128xf32, #tpu.memory_space<vmem>>, vector<256x128xf32>
    %c0_2 = arith.constant 0 : index
    %c0_3 = arith.constant 0 : index
    %4 = vector.load %arg2[%c0_2, %c0_3] : memref<256x2048xf32, #tpu.memory_space<vmem>>, vector<256x2048xf32>
    %c0_4 = arith.constant 0 : index
    %c0_5 = arith.constant 0 : index
    %5 = vector.load %arg3[%c0_4, %c0_5] : memref<2048x128xf32, #tpu.memory_space<vmem>>, vector<2048x128xf32>
    %cst = arith.constant dense<0.000000e+00> : vector<256x128xf32>
    %6 = tpu.matmul %4, %5, %cst {dimension_numbers = #tpu.dot_dimension_numbers<[1], [0], [0], [1], [0, 0, 1, 1], [], []>} : vector<256x2048xf32>, vector<2048x128xf32>, vector<256x128xf32> -> vector<256x128xf32>
    %7 = arith.addf %3, %6 : vector<256x128xf32>
    %c0_6 = arith.constant 0 : index
    %c0_7 = arith.constant 0 : index
    %8 = vector.load %arg10[%c0_6, %c0_7] : memref<256x128xf32, #tpu.memory_space<vmem>>, vector<256x128xf32>
    tpu.vector_store %arg10[%c0_6, %c0_7], %7 {strides = array<i32>} : memref<256x128xf32, #tpu.memory_space<vmem>>, vector<256x128xf32>,
    %c0_i32_8 = arith.constant 0 : i32
    %9 = arith.cmpi eq, %arg1, %c0_i32_8 : i32
    %10 = arith.extui %9 : i1 to i32
    %c0_i32_9 = arith.constant 0 : i32
    %11 = arith.cmpi ne, %10, %c0_i32_9 : i32
    scf.if %11 {
      %c0_10 = arith.constant 0 : index
      %c0_11 = arith.constant 0 : index
      %12 = vector.load %arg10[%c0_10, %c0_11] : memref<256x128xf32, #tpu.memory_space<vmem>>, vector<256x128xf32>
      %c0_12 = arith.constant 0 : index
      %c0_13 = arith.constant 0 : index
      %13 = vector.load %arg4[%c0_12, %c0_13] : memref<1x128xf32, #tpu.memory_space<vmem>>, vector<1x128xf32>
      %14 = vector.broadcast %13 : vector<1x128xf32> to vector<256x128xf32>
      %15 = arith.addf %12, %14 : vector<256x128xf32>
      %cst_14 = arith.constant 0.000000e+00 : f32
      %16 = vector.broadcast %cst_14 : f32 to vector<256x128xf32>
      %17 = arith.maximumf %15, %16 : vector<256x128xf32>
      %c0_15 = arith.constant 0 : index
      %c0_16 = arith.constant 0 : index
      %18 = vector.load %arg5[%c0_15, %c0_16] : memref<128x128xf32, #tpu.memory_space<vmem>>, vector<128x128xf32>
      %cst_17 = arith.constant dense<0.000000e+00> : vector<256x128xf32>
      %19 = tpu.matmul %17, %18, %cst_17 {dimension_numbers = #tpu.dot_dimension_numbers<[1], [0], [0], [1], [0, 0, 1, 1], [], []>} : vector<256x128xf32>, vector<128x128xf32>, vector<256x128xf32> -> vector<256x128xf32>
      %c0_18 = arith.constant 0 : index
      %c0_19 = arith.constant 0 : index
      %20 = vector.load %arg6[%c0_18, %c0_19] : memref<1x128xf32, #tpu.memory_space<vmem>>, vector<1x128xf32>
      %21 = vector.broadcast %20 : vector<1x128xf32> to vector<256x128xf32>
      %22 = arith.addf %19, %21 : vector<256x128xf32>
      %cst_20 = arith.constant 0.000000e+00 : f32
      %23 = vector.broadcast %cst_20 : f32 to vector<256x128xf32>
      %24 = arith.maximumf %22, %23 : vector<256x128xf32>
      %c0_21 = arith.constant 0 : index
      %c0_22 = arith.constant 0 : index
      %25 = vector.load %arg7[%c0_21, %c0_22] : memref<128x128xf32, #tpu.memory_space<vmem>>, vector<128x128xf32>
      %cst_23 = arith.constant dense<0.000000e+00> : vector<256x128xf32>
      %26 = tpu.matmul %24, %25, %cst_23 {dimension_numbers = #tpu.dot_dimension_numbers<[1], [0], [0], [1], [0, 0, 1, 1], [], []>} : vector<256x128xf32>, vector<128x128xf32>, vector<256x128xf32> -> vector<256x128xf32>
      %c0_24 = arith.constant 0 : index
      %c0_25 = arith.constant 0 : index
      %27 = vector.load %arg8[%c0_24, %c0_25] : memref<1x128xf32, #tpu.memory_space<vmem>>, vector<1x128xf32>
      %28 = vector.broadcast %27 : vector<1x128xf32> to vector<256x128xf32>
      %29 = arith.addf %26, %28 : vector<256x128xf32>
      %cst_26 = arith.constant 0.000000e+00 : f32
      %30 = vector.broadcast %cst_26 : f32 to vector<256x128xf32>
      %31 = arith.maximumf %29, %30 : vector<256x128xf32>
      %c0_27 = arith.constant 0 : index
      %c0_28 = arith.constant 0 : index
      %32 = vector.load %arg9[%c0_27, %c0_28] : memref<256x128xf32, #tpu.memory_space<vmem>>, vector<256x128xf32>
      tpu.vector_store %arg9[%c0_27, %c0_28], %31 {strides = array<i32>} : memref<256x128xf32, #tpu.memory_space<vmem>>, vector<256x128xf32>,
    } else {
    }
    return
  }
  func.func @transform_0(%arg0: i32, %arg1: i32) -> (i32, i32) {
    %c0_i32 = arith.constant 0 : i32
    return %arg0, %arg1 : i32, i32
  }
  func.func @transform_1(%arg0: i32, %arg1: i32) -> (i32, i32) {
    %c0_i32 = arith.constant 0 : i32
    %c0_i32_0 = arith.constant 0 : i32
    return %arg1, %c0_i32 : i32, i32
  }
  func.func @transform_2(%arg0: i32, %arg1: i32) -> (i32, i32) {
    %c0_i32 = arith.constant 0 : i32
    %c0_i32_0 = arith.constant 0 : i32
    %c0_i32_1 = arith.constant 0 : i32
    return %c0_i32, %c0_i32_0 : i32, i32
  }
  func.func @transform_3(%arg0: i32, %arg1: i32) -> (i32, i32) {
    %c0_i32 = arith.constant 0 : i32
    %c0_i32_0 = arith.constant 0 : i32
    %c0_i32_1 = arith.constant 0 : i32
    return %c0_i32, %c0_i32_0 : i32, i32
  }
  func.func @transform_4(%arg0: i32, %arg1: i32) -> (i32, i32) {
    %c0_i32 = arith.constant 0 : i32
    %c0_i32_0 = arith.constant 0 : i32
    %c0_i32_1 = arith.constant 0 : i32
    return %c0_i32, %c0_i32_0 : i32, i32
  }
  func.func @transform_5(%arg0: i32, %arg1: i32) -> (i32, i32) {
    %c0_i32 = arith.constant 0 : i32
    %c0_i32_0 = arith.constant 0 : i32
    %c0_i32_1 = arith.constant 0 : i32
    return %c0_i32, %c0_i32_0 : i32, i32
  }
  func.func @transform_6(%arg0: i32, %arg1: i32) -> (i32, i32) {
    %c0_i32 = arith.constant 0 : i32
    %c0_i32_0 = arith.constant 0 : i32
    %c0_i32_1 = arith.constant 0 : i32
    return %c0_i32, %c0_i32_0 : i32, i32
  }
  func.func @transform_7(%arg0: i32, %arg1: i32) -> (i32, i32) {
    %c0_i32 = arith.constant 0 : i32
    %c0_i32_0 = arith.constant 0 : i32
    return %arg0, %c0_i32 : i32, i32
  }
}

module attributes {stable_mosaic.version = 11 : i64} {
  func.func @_decode_kernel(%arg0: i32, %arg1: i32, %arg2: memref<256x128xf32, #tpu.memory_space<vmem>>, %arg3: memref<128x2048xf32, #tpu.memory_space<vmem>>, %arg4: memref<1x2048xf32, #tpu.memory_space<vmem>>, %arg5: memref<256x2048xf32, #tpu.memory_space<vmem>>) attributes {dimension_semantics = [#tpu.dimension_semantics<parallel>, #tpu.dimension_semantics<parallel>], iteration_bounds = array<i64: 1, 1>, scalar_prefetch = 0 : i64, scratch_operands = 0 : i64, tpu.core_type = #tpu.core_type<tc>, window_params = [{transform_indices = @transform_0, window_bounds = array<i64: 256, 128>}, {transform_indices = @transform_1, window_bounds = array<i64: 128, 2048>}, {transform_indices = @transform_2, window_bounds = array<i64: 1, 2048>}, {transform_indices = @transform_3, window_bounds = array<i64: 256, 2048>}]} {
    %c0 = arith.constant 0 : index
    %c0_0 = arith.constant 0 : index
    %0 = vector.load %arg2[%c0, %c0_0] : memref<256x128xf32, #tpu.memory_space<vmem>>, vector<256x128xf32>
    %c0_1 = arith.constant 0 : index
    %c0_2 = arith.constant 0 : index
    %1 = vector.load %arg3[%c0_1, %c0_2] : memref<128x2048xf32, #tpu.memory_space<vmem>>, vector<128x2048xf32>
    %cst = arith.constant dense<0.000000e+00> : vector<256x2048xf32>
    %2 = tpu.matmul %0, %1, %cst {dimension_numbers = #tpu.dot_dimension_numbers<[1], [0], [0], [1], [0, 0, 1, 1], [], []>} : vector<256x128xf32>, vector<128x2048xf32>, vector<256x2048xf32> -> vector<256x2048xf32>
    %c0_3 = arith.constant 0 : index
    %c0_4 = arith.constant 0 : index
    %3 = vector.load %arg4[%c0_3, %c0_4] : memref<1x2048xf32, #tpu.memory_space<vmem>>, vector<1x2048xf32>
    %4 = vector.broadcast %3 : vector<1x2048xf32> to vector<256x2048xf32>
    %5 = arith.addf %2, %4 : vector<256x2048xf32>
    %cst_5 = arith.constant 0.000000e+00 : f32
    %6 = vector.broadcast %cst_5 : f32 to vector<256x2048xf32>
    %7 = arith.maximumf %5, %6 : vector<256x2048xf32>
    %c0_6 = arith.constant 0 : index
    %c0_7 = arith.constant 0 : index
    %8 = vector.load %arg5[%c0_6, %c0_7] : memref<256x2048xf32, #tpu.memory_space<vmem>>, vector<256x2048xf32>
    tpu.vector_store %arg5[%c0_6, %c0_7], %7 {strides = array<i32>} : memref<256x2048xf32, #tpu.memory_space<vmem>>, vector<256x2048xf32>,
    return
  }
  func.func @transform_0(%arg0: i32, %arg1: i32) -> (i32, i32) {
    %c0_i32 = arith.constant 0 : i32
    %c0_i32_0 = arith.constant 0 : i32
    return %arg1, %c0_i32 : i32, i32
  }
  func.func @transform_1(%arg0: i32, %arg1: i32) -> (i32, i32) {
    %c0_i32 = arith.constant 0 : i32
    %c0_i32_0 = arith.constant 0 : i32
    return %c0_i32, %arg0 : i32, i32
  }
  func.func @transform_2(%arg0: i32, %arg1: i32) -> (i32, i32) {
    %c0_i32 = arith.constant 0 : i32
    %c0_i32_0 = arith.constant 0 : i32
    return %c0_i32, %arg0 : i32, i32
  }
  func.func @transform_3(%arg0: i32, %arg1: i32) -> (i32, i32) {
    %c0_i32 = arith.constant 0 : i32
    return %arg1, %arg0 : i32, i32
  }
}

</mosaic_0001>

<llo_original>
// kernel: ae_forward.2
$region0: #{ae_forward.2}
  #allocation0 [shape = 'u32[]', space=smem, size = 0x4, offset = 0x4, fixed_abs, tag = 'smem constant byte address 0x4 - core index']
  #allocation1 [shape = 'u32[72,128]{1,0:T(1,128)}', space=vmem, size = 0x9000, scoped, tag = 'internal scratch']
  #allocation2 [shape = 'f32[256,128]{1,0:T(8,128)}', space=vmem, size = 0x20000, scoped, tag = 'scratch operand']
  %s0 = inlined_call_operand.hbm [shape: f32[256,2048], index: 0, kind: input, shape index: {}]
  %s1 = inlined_call_operand.hbm [shape: f32[2048,128], index: 1, kind: input, shape index: {}]
  %s2 = inlined_call_operand.hbm [shape: f32[1,128], index: 2, kind: input, shape index: {}]
  %s3 = inlined_call_operand.hbm [shape: f32[128,128], index: 3, kind: input, shape index: {}]
  %s4 = inlined_call_operand.hbm [shape: f32[1,128], index: 4, kind: input, shape index: {}]
  %s5 = inlined_call_operand.hbm [shape: f32[128,128], index: 5, kind: input, shape index: {}]
  %s6 = inlined_call_operand.hbm [shape: f32[1,128], index: 6, kind: input, shape index: {}]
  %s7 = inlined_call_operand.vmem [shape: f32[256,128], index: 7, kind: output, shape index: {}]
  %s8 = sld [smem:[#allocation0]]
  $region74: #{ae_forward.2} parent=0
    _
  %s10 = ssub.s32 1, %s8
  %s11 = scalar_select 0, %s10, %s8
  $region1: #{ae_forward.2} parent=0
    #allocation3 [shape = 'u8[2097152]{0}', space=vmem, size = 0x200000, scoped, tag = 'input window, operand 0, single buffered']
    #allocation4 [shape = 's32[1]{0}', space=sflag, size = 0x4, scoped, tag = 'scoped memory for ae_forward.2']
    #allocation5 [shape = 'u8[1048576]{0}', space=vmem, size = 0x100000, scoped, tag = 'input window, operand 1, single buffered']
    #allocation6 [shape = 's32[1]{0}', space=sflag, size = 0x4, scoped, tag = 'scoped memory for ae_forward.2']
    #allocation7 [shape = 'u8[512]{0}', space=vmem, size = 0x400, scoped, tag = 'input window, operand 2, single buffered']
    #allocation8 [shape = 'u8[65536]{0}', space=vmem, size = 0x10000, scoped, tag = 'input window, operand 3, single buffered']
    #allocation9 [shape = 's32[1]{0}', space=sflag, size = 0x4, scoped, tag = 'scoped memory for ae_forward.2']
    #allocation10 [shape = 'u8[512]{0}', space=vmem, size = 0x400, scoped, tag = 'input window, operand 4, single buffered']
    #allocation11 [shape = 'u8[65536]{0}', space=vmem, size = 0x10000, scoped, tag = 'input window, operand 5, single buffered']
    #allocation12 [shape = 's32[1]{0}', space=sflag, size = 0x4, scoped, tag = 'scoped memory for ae_forward.2']
    #allocation13 [shape = 'u8[512]{0}', space=vmem, size = 0x400, scoped, tag = 'input window, operand 6, single buffered']
    %12 = vsyncpa [#allocation4], 0
    %13 = vsyncpa [#allocation6], 0
    %14 = vsyncpa [#allocation9], 0
    %15 = vsyncpa [#allocation12], 0
    // Predicated region
    $region2: #{ae_forward.2} parent=1 // pred_check
      _
    $region3: #{ae_forward.2} parent=1 // pred_check_branch
      %17 = sbr.rel (0) target = $region5
    $region4: #{ae_forward.2} parent=1 // pred_region
      %19 = vsyncadd [#allocation4], 0
      %s20 = sshll.u32 %s0, 4
      %s21 = int_to_ptr.hbm [resolvable:$true] %s20
      %s22 = sshll.u32 [#allocation3], 4
      %s23 = int_to_ptr.vmem [resolvable:$true] %s22
      %28 = dma.hbm_to_vmem [thread:$0]  %s21, 65536, %s23, [#allocation4], 2048, 2048, 128
    $region5: #{ae_forward.2} parent=1 // pred_fallthru
      _
    // Predicated region
    $region6: #{ae_forward.2} parent=1 // pred_check
      _
    $region7: #{ae_forward.2} parent=1 // pred_check_branch
      %30 = sbr.rel (0) target = $region9
    $region8: #{ae_forward.2} parent=1 // pred_region
      %32 = vsyncadd [#allocation6], 0
      %s33 = sshll.u32 %s1, 4
      %s34 = int_to_ptr.hbm [resolvable:$true] %s33
      %s35 = sshll.u32 [#allocation5], 4
      %s36 = int_to_ptr.vmem [resolvable:$true] %s35
      %41 = dma.hbm_to_vmem [thread:$0]  %s34, 32768, %s36, [#allocation6], 128, 128, 8
    $region9: #{ae_forward.2} parent=1 // pred_fallthru
      _
    // Predicated region
    $region10: #{ae_forward.2} parent=1 // pred_check
      _
    $region11: #{ae_forward.2} parent=1 // pred_check_branch
      %43 = sbr.rel (0) target = $region13
    $region12: #{ae_forward.2} parent=1 // pred_region
      %45 = vsyncadd [#allocation6], 0
      %s47 = sshll.u32 %s2, 4
      %s48 = int_to_ptr.hbm [resolvable:$true] %s47
      %s49 = sshll.u32 [#allocation7], 4
      %s50 = int_to_ptr.vmem [resolvable:$true] %s49
      %52 = dma.hbm_to_vmem [thread:$0]  %s48, 16, %s50, [#allocation6]
    $region13: #{ae_forward.2} parent=1 // pred_fallthru
      _
    // Predicated region
    $region14: #{ae_forward.2} parent=1 // pred_check
      _
    $region15: #{ae_forward.2} parent=1 // pred_check_branch
      %54 = sbr.rel (0) target = $region17
    $region16: #{ae_forward.2} parent=1 // pred_region
      %56 = vsyncadd [#allocation9], 0
      %s57 = sshll.u32 %s3, 4
      %s58 = int_to_ptr.hbm [resolvable:$true] %s57
      %s59 = sshll.u32 [#allocation8], 4
      %s60 = int_to_ptr.vmem [resolvable:$true] %s59
      %65 = dma.hbm_to_vmem [thread:$0]  %s58, 2048, %s60, [#allocation9], 128, 128, 8
    $region17: #{ae_forward.2} parent=1 // pred_fallthru
      _
    // Predicated region
    $region18: #{ae_forward.2} parent=1 // pred_check
      _
    $region19: #{ae_forward.2} parent=1 // pred_check_branch
      %67 = sbr.rel (0) target = $region21
    $region20: #{ae_forward.2} parent=1 // pred_region
      %69 = vsyncadd [#allocation9], 0
      %s71 = sshll.u32 %s4, 4
      %s72 = int_to_ptr.hbm [resolvable:$true] %s71
      %s73 = sshll.u32 [#allocation10], 4
      %s74 = int_to_ptr.vmem [resolvable:$true] %s73
      %76 = dma.hbm_to_vmem [thread:$0]  %s72, 16, %s74, [#allocation9]
    $region21: #{ae_forward.2} parent=1 // pred_fallthru
      _
    // Predicated region
    $region22: #{ae_forward.2} parent=1 // pred_check
      _
    $region23: #{ae_forward.2} parent=1 // pred_check_branch
      %78 = sbr.rel (0) target = $region25
    $region24: #{ae_forward.2} parent=1 // pred_region
      %80 = vsyncadd [#allocation12], 0
      %s81 = sshll.u32 %s5, 4
      %s82 = int_to_ptr.hbm [resolvable:$true] %s81
      %s83 = sshll.u32 [#allocation11], 4
      %s84 = int_to_ptr.vmem [resolvable:$true] %s83
      %89 = dma.hbm_to_vmem [thread:$0]  %s82, 2048, %s84, [#allocation12], 128, 128, 8
    $region25: #{ae_forward.2} parent=1 // pred_fallthru
      _
    // Predicated region
    $region26: #{ae_forward.2} parent=1 // pred_check
      _
    $region27: #{ae_forward.2} parent=1 // pred_check_branch
      %91 = sbr.rel (0) target = $region29
    $region28: #{ae_forward.2} parent=1 // pred_region
      %93 = vsyncadd [#allocation12], 0
      %s95 = sshll.u32 %s6, 4
      %s96 = int_to_ptr.hbm [resolvable:$true] %s95
      %s97 = sshll.u32 [#allocation13], 4
      %s98 = int_to_ptr.vmem [resolvable:$true] %s97
      %100 = dma.hbm_to_vmem [thread:$0]  %s96, 16, %s98, [#allocation12]
    $region29: #{ae_forward.2} parent=1 // pred_fallthru
      _
    // Predicated region
    $region30: #{ae_forward.2} parent=1 // pred_check
      _
    $region31: #{ae_forward.2} parent=1 // pred_check_branch
      %102 = sbr.rel (0) target = $region33
    $region32: #{ae_forward.2} parent=1 // pred_region
      %104 = dma.done [#allocation4], 65536
    $region33: #{ae_forward.2} parent=1 // pred_fallthru
      _
    // Predicated region
    $region34: #{ae_forward.2} parent=1 // pred_check
      _
    $region35: #{ae_forward.2} parent=1 // pred_check_branch
      %106 = sbr.rel (0) target = $region37
    $region36: #{ae_forward.2} parent=1 // pred_region
      %108 = dma.done [#allocation6], 32768
    $region37: #{ae_forward.2} parent=1 // pred_fallthru
      _
    // Predicated region
    $region38: #{ae_forward.2} parent=1 // pred_check
      _
    $region39: #{ae_forward.2} parent=1 // pred_check_branch
      %110 = sbr.rel (0) target = $region41
    $region40: #{ae_forward.2} parent=1 // pred_region
      %112 = dma.done [#allocation6], 16
    $region41: #{ae_forward.2} parent=1 // pred_fallthru
      _
    // Predicated region
    $region42: #{ae_forward.2} parent=1 // pred_check
      _
    $region43: #{ae_forward.2} parent=1 // pred_check_branch
      %114 = sbr.rel (0) target = $region45
    $region44: #{ae_forward.2} parent=1 // pred_region
      %116 = dma.done [#allocation9], 2048
    $region45: #{ae_forward.2} parent=1 // pred_fallthru
      _
    // Predicated region
    $region46: #{ae_forward.2} parent=1 // pred_check
      _
    $region47: #{ae_forward.2} parent=1 // pred_check_branch
      %118 = sbr.rel (0) target = $region49
    $region48: #{ae_forward.2} parent=1 // pred_region
      %120 = dma.done [#allocation9], 16
    $region49: #{ae_forward.2} parent=1 // pred_fallthru
      _
    // Predicated region
    $region50: #{ae_forward.2} parent=1 // pred_check
      _
    $region51: #{ae_forward.2} parent=1 // pred_check_branch
      %122 = sbr.rel (0) target = $region53
    $region52: #{ae_forward.2} parent=1 // pred_region
      %124 = dma.done [#allocation12], 2048
    $region53: #{ae_forward.2} parent=1 // pred_fallthru
      _
    // Predicated region
    $region54: #{ae_forward.2} parent=1 // pred_check
      _
    $region55: #{ae_forward.2} parent=1 // pred_check_branch
      %126 = sbr.rel (0) target = $region57
    $region56: #{ae_forward.2} parent=1 // pred_region
      %128 = dma.done [#allocation12], 16
    $region57: #{ae_forward.2} parent=1 // pred_fallthru
      _
    %p129 = scmp.eq.s32.totalorder 0, 0
    // Predicated region
    $region58: #{ae_forward.2} parent=1 // pred_check
      %p130 = pneg %p129
    $region59: #{ae_forward.2} parent=1 // pred_check_branch
      %132 = sbr.rel (%p130) target = $region61
    $region60: #{ae_forward.2} parent=1 // pred_region
      %133 = vst [vmem:[#allocation2] sm:$0xff] 0.0
      %134 = vst [vmem:[#allocation2 + $0x8] sm:$0xff] 0.0
      %135 = vst [vmem:[#allocation2 + $0x10] sm:$0xff] 0.0
      %136 = vst [vmem:[#allocation2 + $0x18] sm:$0xff] 0.0
      %137 = vst [vmem:[#allocation2 + $0x20] sm:$0xff] 0.0
      %138 = vst [vmem:[#allocation2 + $0x28] sm:$0xff] 0.0
      %139 = vst [vmem:[#allocation2 + $0x30] sm:$0xff] 0.0
      %140 = vst [vmem:[#allocation2 + $0x38] sm:$0xff] 0.0
      %141 = vst [vmem:[#allocation2 + $0x40] sm:$0xff] 0.0
      %142 = vst [vmem:[#allocation2 + $0x48] sm:$0xff] 0.0
      %143 = vst [vmem:[#allocation2 + $0x50] sm:$0xff] 0.0
      %144 = vst [vmem:[#allocation2 + $0x58] sm:$0xff] 0.0
      %145 = vst [vmem:[#allocation2 + $0x60] sm:$0xff] 0.0
      %146 = vst [vmem:[#allocation2 + $0x68] sm:$0xff] 0.0
      %147 = vst [vmem:[#allocation2 + $0x70] sm:$0xff] 0.0
      %148 = vst [vmem:[#allocation2 + $0x78] sm:$0xff] 0.0
      %149 = vst [vmem:[#allocation2 + $0x80] sm:$0xff] 0.0
      %150 = vst [vmem:[#allocation2 + $0x88] sm:$0xff] 0.0
      %151 = vst [vmem:[#allocation2 + $0x90] sm:$0xff] 0.0
      %152 = vst [vmem:[#allocation2 + $0x98] sm:$0xff] 0.0
      %153 = vst [vmem:[#allocation2 + $0xa0] sm:$0xff] 0.0
      %154 = vst [vmem:[#allocation2 + $0xa8] sm:$0xff] 0.0
      %155 = vst [vmem:[#allocation2 + $0xb0] sm:$0xff] 0.0
      %156 = vst [vmem:[#allocation2 + $0xb8] sm:$0xff] 0.0
      %157 = vst [vmem:[#allocation2 + $0xc0] sm:$0xff] 0.0
      %158 = vst [vmem:[#allocation2 + $0xc8] sm:$0xff] 0.0
      %159 = vst [vmem:[#allocation2 + $0xd0] sm:$0xff] 0.0
      %160 = vst [vmem:[#allocation2 + $0xd8] sm:$0xff] 0.0
      %161 = vst [vmem:[#allocation2 + $0xe0] sm:$0xff] 0.0
      %162 = vst [vmem:[#allocation2 + $0xe8] sm:$0xff] 0.0
      %163 = vst [vmem:[#allocation2 + $0xf0] sm:$0xff] 0.0
      %164 = vst [vmem:[#allocation2 + $0xf8] sm:$0xff] 0.0
    $region61: #{ae_forward.2} parent=1 // pred_fallthru
      _
    %v165 = vld [vmem:[#allocation2] sm:$0xff]
    %v166 = vld [vmem:[#allocation2 + $0x8] sm:$0xff]
    %v167 = vld [vmem:[#allocation2 + $0x10] sm:$0xff]
    %v168 = vld [vmem:[#allocation2 + $0x18] sm:$0xff]
    %v169 = vld [vmem:[#allocation2 + $0x20] sm:$0xff]
    %v170 = vld [vmem:[#allocation2 + $0x28] sm:$0xff]
    %v171 = vld [vmem:[#allocation2 + $0x30] sm:$0xff]
    %v172 = vld [vmem:[#allocation2 + $0x38] sm:$0xff]
    %v173 = vld [vmem:[#allocation2 + $0x40] sm:$0xff]
    %v174 = vld [vmem:[#allocation2 + $0x48] sm:$0xff]
    %v175 = vld [vmem:[#allocation2 + $0x50] sm:$0xff]
    %v176 = vld [vmem:[#allocation2 + $0x58] sm:$0xff]
    %v177 = vld [vmem:[#allocation2 + $0x60] sm:$0xff]
    %v178 = vld [vmem:[#allocation2 + $0x68] sm:$0xff]
    %v179 = vld [vmem:[#allocation2 + $0x70] sm:$0xff]
    %v180 = vld [vmem:[#allocation2 + $0x78] sm:$0xff]
    %v181 = vld [vmem:[#allocation2 + $0x80] sm:$0xff]
    %v182 = vld [vmem:[#allocation2 + $0x88] sm:$0xff]
    %v183 = vld [vmem:[#allocation2 + $0x90] sm:$0xff]
    %v184 = vld [vmem:[#allocation2 + $0x98] sm:$0xff]
    %v185 = vld [vmem:[#allocation2 + $0xa0] sm:$0xff]
    %v186 = vld [vmem:[#allocation2 + $0xa8] sm:$0xff]
    %v187 = vld [vmem:[#allocation2 + $0xb0] sm:$0xff]
    %v188 = vld [vmem:[#allocation2 + $0xb8] sm:$0xff]
    %v189 = vld [vmem:[#allocation2 + $0xc0] sm:$0xff]
    %v190 = vld [vmem:[#allocation2 + $0xc8] sm:$0xff]
    %v191 = vld [vmem:[#allocation2 + $0xd0] sm:$0xff]
    %v192 = vld [vmem:[#allocation2 + $0xd8] sm:$0xff]
    %v193 = vld [vmem:[#allocation2 + $0xe0] sm:$0xff]
    %v194 = vld [vmem:[#allocation2 + $0xe8] sm:$0xff]
    %v195 = vld [vmem:[#allocation2 + $0xf0] sm:$0xff]
    %v196 = vld [vmem:[#allocation2 + $0xf8] sm:$0xff]
    %v197 = vld [vmem:[#allocation3] sm:$0xff]
    %v198 = vld [vmem:[#allocation3 + $0x8] sm:$0xff]
    %v199 = vld [vmem:[#allocation3 + $0x10] sm:$0xff]
    %v200 = vld [vmem:[#allocation3 + $0x18] sm:$0xff]
    %v201 = vld [vmem:[#allocation3 + $0x20] sm:$0xff]
    %v202 = vld [vmem:[#allocation3 + $0x28] sm:$0xff]
    %v203 = vld [vmem:[#allocation3 + $0x30] sm:$0xff]
    %v204 = vld [vmem:[#allocation3 + $0x38] sm:$0xff]
    %v205 = vld [vmem:[#allocation3 + $0x40] sm:$0xff]
    %v206 = vld [vmem:[#allocation3 + $0x48] sm:$0xff]
    %v207 = vld [vmem:[#allocation3 + $0x50] sm:$0xff]
    %v208 = vld [vmem:[#allocation3 + $0x58] sm:$0xff]
    %v209 = vld [vmem:[#allocation3 + $0x60] sm:$0xff]
    %v210 = vld [vmem:[#allocation3 + $0x68] sm:$0xff]
    %v211 = vld [vmem:[#allocation3 + $0x70] sm:$0xff]
    %v212 = vld [vmem:[#allocation3 + $0x78] sm:$0xff]
    %v213 = vld [vmem:[#allocation3 + $0x80] sm:$0xff]
    %v214 = vld [vmem:[#allocation3 + $0x88] sm:$0xff]
    %v215 = vld [vmem:[#allocation3 + $0x90] sm:$0xff]
    %v216 = vld [vmem:[#allocation3 + $0x98] sm:$0xff]
    %v217 = vld [vmem:[#allocation3 + $0xa0] sm:$0xff]
    %v218 = vld [vmem:[#allocation3 + $0xa8] sm:$0xff]
    %v219 = vld [vmem:[#allocation3 + $0xb0] sm:$0xff]
    %v220 = vld [vmem:[#allocation3 + $0xb8] sm:$0xff]
    %v221 = vld [vmem:[#allocation3 + $0xc0] sm:$0xff]
    %v222 = vld [vmem:[#allocation3 + $0xc8] sm:$0xff]
    %v223 = vld [vmem:[#allocation3 + $0xd0] sm:$0xff]
    %v224 = vld [vmem:[#allocation3 + $0xd8] sm:$0xff]
    %v225 = vld [vmem:[#allocation3 + $0xe0] sm:$0xff]
    %v226 = vld [vmem:[#allocation3 + $0xe8] sm:$0xff]
    %v227 = vld [vmem:[#allocation3 + $0xf0] sm:$0xff]
    %v228 = vld [vmem:[#allocation3 + $0xf8] sm:$0xff]
    %v229 = vld [vmem:[#allocation3 + $0x100] sm:$0xff]
    %v230 = vld [vmem:[#allocation3 + $0x108] sm:$0xff]
    %v231 = vld [vmem:[#allocation3 + $0x110] sm:$0xff]
    %v232 = vld [vmem:[#allocation3 + $0x118] sm:$0xff]
    %v233 = vld [vmem:[#allocation3 + $0x120] sm:$0xff]
    %v234 = vld [vmem:[#allocation3 + $0x128] sm:$0xff]
    %v235 = vld [vmem:[#allocation3 + $0x130] sm:$0xff]
    %v236 = vld [vmem:[#allocation3 + $0x138] sm:$0xff]
    %v237 = vld [vmem:[#allocation3 + $0x140] sm:$0xff]
    %v238 = vld [vmem:[#allocation3 + $0x148] sm:$0xff]
    %v239 = vld [vmem:[#allocation3 + $0x150] sm:$0xff]
    %v240 = vld [vmem:[#allocation3 + $0x158] sm:$0xff]
    %v241 = vld [vmem:[#allocation3 + $0x160] sm:$0xff]
    %v242 = vld [vmem:[#allocation3 + $0x168] sm:$0xff]
    %v243 = vld [vmem:[#allocation3 + $0x170] sm:$0xff]
    %v244 = vld [vmem:[#allocation3 + $0x178] sm:$0xff]
    %v245 = vld [vmem:[#allocation3 + $0x180] sm:$0xff]
    %v246 = vld [vmem:[#allocation3 + $0x188] sm:$0xff]
    %v247 = vld [vmem:[#allocation3 + $0x190] sm:$0xff]
    %v248 = vld [vmem:[#allocation3 + $0x198] sm:$0xff]
    %v249 = vld [vmem:[#allocation3 + $0x1a0] sm:$0xff]
    %v250 = vld [vmem:[#allocation3 + $0x1a8] sm:$0xff]
    %v251 = vld [vmem:[#allocation3 + $0x1b0] sm:$0xff]
    %v252 = vld [vmem:[#allocation3 + $0x1b8] sm:$0xff]
    %v253 = vld [vmem:[#allocation3 + $0x1c0] sm:$0xff]
    %v254 = vld [vmem:[#allocation3 + $0x1c8] sm:$0xff]
    %v255 = vld [vmem:[#allocation3 + $0x1d0] sm:$0xff]
    %v256 = vld [vmem:[#allocation3 + $0x1d8] sm:$0xff]
    %v257 = vld [vmem:[#allocation3 + $0x1e0] sm:$0xff]
    %v258 = vld [vmem:[#allocation3 + $0x1e8] sm:$0xff]
    %v259 = vld [vmem:[#allocation3 + $0x1f0] sm:$0xff]
    %v260 = vld [vmem:[#allocation3 + $0x1f8] sm:$0xff]
    %v261 = vld [vmem:[#allocation3 + $0x200] sm:$0xff]
    %v262 = vld [vmem:[#allocation3 + $0x208] sm:$0xff]
    %v263 = vld [vmem:[#allocation3 + $0x210] sm:$0xff]
    %v264 = vld [vmem:[#allocation3 + $0x218] sm:$0xff]
    %v265 = vld [vmem:[#allocation3 + $0x220] sm:$0xff]
    %v266 = vld [vmem:[#allocation3 + $0x228] sm:$0xff]
    %v267 = vld [vmem:[#allocation3 + $0x230] sm:$0xff]
    %v268 = vld [vmem:[#allocation3 + $0x238] sm:$0xff]
    %v269 = vld [vmem:[#allocation3 + $0x240] sm:$0xff]
    %v270 = vld [vmem:[#allocation3 + $0x248] sm:$0xff]
    %v271 = vld [vmem:[#allocation3 + $0x250] sm:$0xff]
    %v272 = vld [vmem:[#allocation3 + $0x258] sm:$0xff]
    %v273 = vld [vmem:[#allocation3 + $0x260] sm:$0xff]
    %v274 = vld [vmem:[#allocation3 + $0x268] sm:$0xff]
    %v275 = vld [vmem:[#allocation3 + $0x270] sm:$0xff]
    %v276 = vld [vmem:[#allocation3 + $0x278] sm:$0xff]
    %v277 = vld [vmem:[#allocation3 + $0x280] sm:$0xff]
    %v278 = vld [vmem:[#allocation3 + $0x288] sm:$0xff]
    %v279 = vld [vmem:[#allocation3 + $0x290] sm:$0xff]
    %v280 = vld [vmem:[#allocation3 + $0x298] sm:$0xff]
    %v281 = vld [vmem:[#allocation3 + $0x2a0] sm:$0xff]
    %v282 = vld [vmem:[#allocation3 + $0x2a8] sm:$0xff]
    %v283 = vld [vmem:[#allocation3 + $0x2b0] sm:$0xff]
    %v284 = vld [vmem:[#allocation3 + $0x2b8] sm:$0xff]
    %v285 = vld [vmem:[#allocation3 + $0x2c0] sm:$0xff]
    %v286 = vld [vmem:[#allocation3 + $0x2c8] sm:$0xff]
    %v287 = vld [vmem:[#allocation3 + $0x2d0] sm:$0xff]
    %v288 = vld [vmem:[#allocation3 + $0x2d8] sm:$0xff]
    %v289 = vld [vmem:[#allocation3 + $0x2e0] sm:$0xff]
    %v290 = vld [vmem:[#allocation3 + $0x2e8] sm:$0xff]
    %v291 = vld [vmem:[#allocation3 + $0x2f0] sm:$0xff]
    %v292 = vld [vmem:[#allocation3 + $0x2f8] sm:$0xff]
    %v293 = vld [vmem:[#allocation3 + $0x300] sm:$0xff]
    %v294 = vld [vmem:[#allocation3 + $0x308] sm:$0xff]
    %v295 = vld [vmem:[#allocation3 + $0x310] sm:$0xff]
    %v296 = vld [vmem:[#allocation3 + $0x318] sm:$0xff]
    %v297 = vld [vmem:[#allocation3 + $0x320] sm:$0xff]
    %v298 = vld [vmem:[#allocation3 + $0x328] sm:$0xff]
    %v299 = vld [vmem:[#allocation3 + $0x330] sm:$0xff]
    %v300 = vld [vmem:[#allocation3 + $0x338] sm:$0xff]
    %v301 = vld [vmem:[#allocation3 + $0x340] sm:$0xff]
    %v302 = vld [vmem:[#allocation3 + $0x348] sm:$0xff]
    %v303 = vld [vmem:[#allocation3 + $0x350] sm:$0xff]
    %v304 = vld [vmem:[#allocation3 + $0x358] sm:$0xff]
    %v305 = vld [vmem:[#allocation3 + $0x360] sm:$0xff]
    %v306 = vld [vmem:[#allocation3 + $0x368] sm:$0xff]
    %v307 = vld [vmem:[#allocation3 + $0x370] sm:$0xff]
    %v308 = vld [vmem:[#allocation3 + $0x378] sm:$0xff]
    %v309 = vld [vmem:[#allocation3 + $0x380] sm:$0xff]
    %v310 = vld [vmem:[#allocation3 + $0x388] sm:$0xff]
    %v311 = vld [vmem:[#allocation3 + $0x390] sm:$0xff]
    %v312 = vld [vmem:[#allocation3 + $0x398] sm:$0xff]
    %v313 = vld [vmem:[#allocation3 + $0x3a0] sm:$0xff]
    %v314 = vld [vmem:[#allocation3 + $0x3a8] sm:$0xff]
    %v315 = vld [vmem:[#allocation3 + $0x3b0] sm:$0xff]
    %v316 = vld [vmem:[#allocation3 + $0x3b8] sm:$0xff]
    %v317 = vld [vmem:[#allocation3 + $0x3c0] sm:$0xff]
    %v318 = vld [vmem:[#allocation3 + $0x3c8] sm:$0xff]
    %v319 = vld [vmem:[#allocation3 + $0x3d0] sm:$0xff]
    %v320 = vld [vmem:[#allocation3 + $0x3d8] sm:$0xff]
    %v321 = vld [vmem:[#allocation3 + $0x3e0] sm:$0xff]
    %v322 = vld [vmem:[#allocation3 + $0x3e8] sm:$0xff]
    %v323 = vld [vmem:[#allocation3 + $0x3f0] sm:$0xff]
    %v324 = vld [vmem:[#allocation3 + $0x3f8] sm:$0xff]
    %v325 = vld [vmem:[#allocation3 + $0x400] sm:$0xff]
    %v326 = vld [vmem:[#allocation3 + $0x408] sm:$0xff]
    %v327 = vld [vmem:[#allocation3 + $0x410] sm:$0xff]
    %v328 = vld [vmem:[#allocation3 + $0x418] sm:$0xff]
    %v329 = vld [vmem:[#allocation3 + $0x420] sm:$0xff]
    %v330 = vld [vmem:[#allocation3 + $0x428] sm:$0xff]
    %v331 = vld [vmem:[#allocation3 + $0x430] sm:$0xff]
    %v332 = vld [vmem:[#allocation3 + $0x438] sm:$0xff]
    %v333 = vld [vmem:[#allocation3 + $0x440] sm:$0xff]
    %v334 = vld [vmem:[#allocation3 + $0x448] sm:$0xff]
    %v335 = vld [vmem:[#allocation3 + $0x450] sm:$0xff]
    %v336 = vld [vmem:[#allocation3 + $0x458] sm:$0xff]
    %v337 = vld [vmem:[#allocation3 + $0x460] sm:$0xff]
    %v338 = vld [vmem:[#allocation3 + $0x468] sm:$0xff]
    %v339 = vld [vmem:[#allocation3 + $0x470] sm:$0xff]
    %v340 = vld [vmem:[#allocation3 + $0x478] sm:$0xff]
    %v341 = vld [vmem:[#allocation3 + $0x480] sm:$0xff]
    %v342 = vld [vmem:[#allocation3 + $0x488] sm:$0xff]
    %v343 = vld [vmem:[#allocation3 + $0x490] sm:$0xff]
    %v344 = vld [vmem:[#allocation3 + $0x498] sm:$0xff]
    %v345 = vld [vmem:[#allocation3 + $0x4a0] sm:$0xff]
    %v346 = vld [vmem:[#allocation3 + $0x4a8] sm:$0xff]
    %v347 = vld [vmem:[#allocation3 + $0x4b0] sm:$0xff]
    %v348 = vld [vmem:[#allocation3 + $0x4b8] sm:$0xff]
    %v349 = vld [vmem:[#allocation3 + $0x4c0] sm:$0xff]
    %v350 = vld [vmem:[#allocation3 + $0x4c8] sm:$0xff]
    %v351 = vld [vmem:[#allocation3 + $0x4d0] sm:$0xff]
    %v352 = vld [vmem:[#allocation3 + $0x4d8] sm:$0xff]
    %v353 = vld [vmem:[#allocation3 + $0x4e0] sm:$0xff]
    %v354 = vld [vmem:[#allocation3 + $0x4e8] sm:$0xff]
    %v355 = vld [vmem:[#allocation3 + $0x4f0] sm:$0xff]
    %v356 = vld [vmem:[#allocation3 + $0x4f8] sm:$0xff]
    %v357 = vld [vmem:[#allocation3 + $0x500] sm:$0xff]
    %v358 = vld [vmem:[#allocation3 + $0x508] sm:$0xff]
    %v359 = vld [vmem:[#allocation3 + $0x510] sm:$0xff]
    %v360 = vld [vmem:[#allocation3 + $0x518] sm:$0xff]
    %v361 = vld [vmem:[#allocation3 + $0x520] sm:$0xff]
    %v362 = vld [vmem:[#allocation3 + $0x528] sm:$0xff]
    %v363 = vld [vmem:[#allocation3 + $0x530] sm:$0xff]
    %v364 = vld [vmem:[#allocation3 + $0x538] sm:$0xff]
    %v365 = vld [vmem:[#allocation3 + $0x540] sm:$0xff]
    %v366 = vld [vmem:[#allocation3 + $0x548] sm:$0xff]
    %v367 = vld [vmem:[#allocation3 + $0x550] sm:$0xff]
    %v368 = vld [vmem:[#allocation3 + $0x558] sm:$0xff]
    %v369 = vld [vmem:[#allocation3 + $0x560] sm:$0xff]
    %v370 = vld [vmem:[#allocation3 + $0x568] sm:$0xff]
    %v371 = vld [vmem:[#allocation3 + $0x570] sm:$0xff]
    %v372 = vld [vmem:[#allocation3 + $0x578] sm:$0xff]
    %v373 = vld [vmem:[#allocation3 + $0x580] sm:$0xff]
    %v374 = vld [vmem:[#allocation3 + $0x588] sm:$0xff]
    %v375 = vld [vmem:[#allocation3 + $0x590] sm:$0xff]
    %v376 = vld [vmem:[#allocation3 + $0x598] sm:$0xff]
    %v377 = vld [vmem:[#allocation3 + $0x5a0] sm:$0xff]
    %v378 = vld [vmem:[#allocation3 + $0x5a8] sm:$0xff]
    %v379 = vld [vmem:[#allocation3 + $0x5b0] sm:$0xff]
    %v380 = vld [vmem:[#allocation3 + $0x5b8] sm:$0xff]
    %v381 = vld [vmem:[#allocation3 + $0x5c0] sm:$0xff]
    %v382 = vld [vmem:[#allocation3 + $0x5c8] sm:$0xff]
    %v383 = vld [vmem:[#allocation3 + $0x5d0] sm:$0xff]
    %v384 = vld [vmem:[#allocation3 + $0x5d8] sm:$0xff]
    %v385 = vld [vmem:[#allocation3 + $0x5e0] sm:$0xff]
    %v386 = vld [vmem:[#allocation3 + $0x5e8] sm:$0xff]
    %v387 = vld [vmem:[#allocation3 + $0x5f0] sm:$0xff]
    %v388 = vld [vmem:[#allocation3 + $0x5f8] sm:$0xff]
    %v389 = vld [vmem:[#allocation3 + $0x600] sm:$0xff]
    %v390 = vld [vmem:[#allocation3 + $0x608] sm:$0xff]
    %v391 = vld [vmem:[#allocation3 + $0x610] sm:$0xff]
    %v392 = vld [vmem:[#allocation3 + $0x618] sm:$0xff]
    %v393 = vld [vmem:[#allocation3 + $0x620] sm:$0xff]
    %v394 = vld [vmem:[#allocation3 + $0x628] sm:$0xff]
    %v395 = vld [vmem:[#allocation3 + $0x630] sm:$0xff]
    %v396 = vld [vmem:[#allocation3 + $0x638] sm:$0xff]
    %v397 = vld [vmem:[#allocation3 + $0x640] sm:$0xff]
    %v398 = vld [vmem:[#allocation3 + $0x648] sm:$0xff]
    %v399 = vld [vmem:[#allocation3 + $0x650] sm:$0xff]
    %v400 = vld [vmem:[#allocation3 + $0x658] sm:$0xff]
    %v401 = vld [vmem:[#allocation3 + $0x660] sm:$0xff]
    %v402 = vld [vmem:[#allocation3 + $0x668] sm:$0xff]
    %v403 = vld [vmem:[#allocation3 + $0x670] sm:$0xff]
    %v404 = vld [vmem:[#allocation3 + $0x678] sm:$0xff]
    %v405 = vld [vmem:[#allocation3 + $0x680] sm:$0xff]
    %v406 = vld [vmem:[#allocation3 + $0x688] sm:$0xff]
    %v407 = vld [vmem:[#allocation3 + $0x690] sm:$0xff]
    %v408 = vld [vmem:[#allocation3 + $0x698] sm:$0xff]
    %v409 = vld [vmem:[#allocation3 + $0x6a0] sm:$0xff]
    %v410 = vld [vmem:[#allocation3 + $0x6a8] sm:$0xff]
    %v411 = vld [vmem:[#allocation3 + $0x6b0] sm:$0xff]
    %v412 = vld [vmem:[#allocation3 + $0x6b8] sm:$0xff]
    %v413 = vld [vmem:[#allocation3 + $0x6c0] sm:$0xff]
    %v414 = vld [vmem:[#allocation3 + $0x6c8] sm:$0xff]
    %v415 = vld [vmem:[#allocation3 + $0x6d0] sm:$0xff]
    %v416 = vld [vmem:[#allocation3 + $0x6d8] sm:$0xff]
    %v417 = vld [vmem:[#allocation3 + $0x6e0] sm:$0xff]
    %v418 = vld [vmem:[#allocation3 + $0x6e8] sm:$0xff]
    %v419 = vld [vmem:[#allocation3 + $0x6f0] sm:$0xff]
    %v420 = vld [vmem:[#allocation3 + $0x6f8] sm:$0xff]
    %v421 = vld [vmem:[#allocation3 + $0x700] sm:$0xff]
    %v422 = vld [vmem:[#allocation3 + $0x708] sm:$0xff]
    %v423 = vld [vmem:[#allocation3 + $0x710] sm:$0xff]
    %v424 = vld [vmem:[#allocation3 + $0x718] sm:$0xff]
    %v425 = vld [vmem:[#allocation3 + $0x720] sm:$0xff]
    %v426 = vld [vmem:[#allocation3 + $0x728] sm:$0xff]
    %v427 = vld [vmem:[#allocation3 + $0x730] sm:$0xff]
    %v428 = vld [vmem:[#allocation3 + $0x738] sm:$0xff]
    %v429 = vld [vmem:[#allocation3 + $0x740] sm:$0xff]
    %v430 = vld [vmem:[#allocation3 + $0x748] sm:$0xff]
    %v431 = vld [vmem:[#allocation3 + $0x750] sm:$0xff]
    %v432 = vld [vmem:[#allocation3 + $0x758] sm:$0xff]
    %v433 = vld [vmem:[#allocation3 + $0x760] sm:$0xff]
    %v434 = vld [vmem:[#allocation3 + $0x768] sm:$0xff]
    %v435 = vld [vmem:[#allocation3 + $0x770] sm:$0xff]
    %v436 = vld [vmem:[#allocation3 + $0x778] sm:$0xff]
    %v437 = vld [vmem:[#allocation3 + $0x780] sm:$0xff]
    %v438 = vld [vmem:[#allocation3 + $0x788] sm:$0xff]
    %v439 = vld [vmem:[#allocation3 + $0x790] sm:$0xff]
    %v440 = vld [vmem:[#allocation3 + $0x798] sm:$0xff]
    %v441 = vld [vmem:[#allocation3 + $0x7a0] sm:$0xff]
    %v442 = vld [vmem:[#allocation3 + $0x7a8] sm:$0xff]
    %v443 = vld [vmem:[#allocation3 + $0x7b0] sm:$0xff]
    %v444 = vld [vmem:[#allocation3 + $0x7b8] sm:$0xff]
    %v445 = vld [vmem:[#allocation3 + $0x7c0] sm:$0xff]
    %v446 = vld [vmem:[#allocation3 + $0x7c8] sm:$0xff]
    %v447 = vld [vmem:[#allocation3 + $0x7d0] sm:$0xff]
    %v448 = vld [vmem:[#allocation3 + $0x7d8] sm:$0xff]
    %v449 = vld [vmem:[#allocation3 + $0x7e0] sm:$0xff]
    %v450 = vld [vmem:[#allocation3 + $0x7e8] sm:$0xff]
    %v451 = vld [vmem:[#allocation3 + $0x7f0] sm:$0xff]
    %v452 = vld [vmem:[#allocation3 + $0x7f8] sm:$0xff]
    %v453 = vld [vmem:[#allocation3 + $0x800] sm:$0xff]
    %v454 = vld [vmem:[#allocation3 + $0x808] sm:$0xff]
    %v455 = vld [vmem:[#allocation3 + $0x810] sm:$0xff]
    %v456 = vld [vmem:[#allocation3 + $0x818] sm:$0xff]
    %v457 = vld [vmem:[#allocation3 + $0x820] sm:$0xff]
    %v458 = vld [vmem:[#allocation3 + $0x828] sm:$0xff]
    %v459 = vld [vmem:[#allocation3 + $0x830] sm:$0xff]
    %v460 = vld [vmem:[#allocation3 + $0x838] sm:$0xff]
    %v461 = vld [vmem:[#allocation3 + $0x840] sm:$0xff]
    %v462 = vld [vmem:[#allocation3 + $0x848] sm:$0xff]
    %v463 = vld [vmem:[#allocation3 + $0x850] sm:$0xff]
    %v464 = vld [vmem:[#allocation3 + $0x858] sm:$0xff]
    %v465 = vld [vmem:[#allocation3 + $0x860] sm:$0xff]
    %v466 = vld [vmem:[#allocation3 + $0x868] sm:$0xff]
    %v467 = vld [vmem:[#allocation3 + $0x870] sm:$0xff]
    %v468 = vld [vmem:[#allocation3 + $0x878] sm:$0xff]
    %v469 = vld [vmem:[#allocation3 + $0x880] sm:$0xff]
    %v470 = vld [vmem:[#allocation3 + $0x888] sm:$0xff]
    %v471 = vld [vmem:[#allocation3 + $0x890] sm:$0xff]
    %v472 = vld [vmem:[#allocation3 + $0x898] sm:$0xff]
    %v473 = vld [vmem:[#allocation3 + $0x8a0] sm:$0xff]
    %v474 = vld [vmem:[#allocation3 + $0x8a8] sm:$0xff]
    %v475 = vld [vmem:[#allocation3 + $0x8b0] sm:$0xff]
    %v476 = vld [vmem:[#allocation3 + $0x8b8] sm:$0xff]
    %v477 = vld [vmem:[#allocation3 + $0x8c0] sm:$0xff]
    %v478 = vld [vmem:[#allocation3 + $0x8c8] sm:$0xff]
    %v479 = vld [vmem:[#allocation3 + $0x8d0] sm:$0xff]
    %v480 = vld [vmem:[#allocation3 + $0x8d8] sm:$0xff]
    %v481 = vld [vmem:[#allocation3 + $0x8e0] sm:$0xff]
    %v482 = vld [vmem:[#allocation3 + $0x8e8] sm:$0xff]
    %v483 = vld [vmem:[#allocation3 + $0x8f0] sm:$0xff]
    %v484 = vld [vmem:[#allocation3 + $0x8f8] sm:$0xff]
    %v485 = vld [vmem:[#allocation3 + $0x900] sm:$0xff]
    %v486 = vld [vmem:[#allocation3 + $0x908] sm:$0xff]
    %v487 = vld [vmem:[#allocation3 + $0x910] sm:$0xff]
    %v488 = vld [vmem:[#allocation3 + $0x918] sm:$0xff]
    %v489 = vld [vmem:[#allocation3 + $0x920] sm:$0xff]
    %v490 = vld [vmem:[#allocation3 + $0x928] sm:$0xff]
    %v491 = vld [vmem:[#allocation3 + $0x930] sm:$0xff]
    %v492 = vld [vmem:[#allocation3 + $0x938] sm:$0xff]
    %v493 = vld [vmem:[#allocation3 + $0x940] sm:$0xff]
    %v494 = vld [vmem:[#allocation3 + $0x948] sm:$0xff]
    %v495 = vld [vmem:[#allocation3 + $0x950] sm:$0xff]
    %v496 = vld [vmem:[#allocation3 + $0x958] sm:$0xff]
    %v497 = vld [vmem:[#allocation3 + $0x960] sm:$0xff]
    %v498 = vld [vmem:[#allocation3 + $0x968] sm:$0xff]
    %v499 = vld [vmem:[#allocation3 + $0x970] sm:$0xff]
    %v500 = vld [vmem:[#allocation3 + $0x978] sm:$0xff]
    %v501 = vld [vmem:[#allocation3 + $0x980] sm:$0xff]
    %v502 = vld [vmem:[#allocation3 + $0x988] sm:$0xff]
    %v503 = vld [vmem:[#allocation3 + $0x990] sm:$0xff]
    %v504 = vld [vmem:[#allocation3 + $0x998] sm:$0xff]
    %v505 = vld [vmem:[#allocation3 + $0x9a0] sm:$0xff]
    %v506 = vld [vmem:[#allocation3 + $0x9a8] sm:$0xff]
    %v507 = vld [vmem:[#allocation3 + $0x9b0] sm:$0xff]
    %v508 = vld [vmem:[#allocation3 + $0x9b8] sm:$0xff]
    %v509 = vld [vmem:[#allocation3 + $0x9c0] sm:$0xff]
    %v510 = vld [vmem:[#allocation3 + $0x9c8] sm:$0xff]
    %v511 = vld [vmem:[#allocation3 + $0x9d0] sm:$0xff]
    %v512 = vld [vmem:[#allocation3 + $0x9d8] sm:$0xff]
    %v513 = vld [vmem:[#allocation3 + $0x9e0] sm:$0xff]
    %v514 = vld [vmem:[#allocation3 + $0x9e8] sm:$0xff]
    %v515 = vld [vmem:[#allocation3 + $0x9f0] sm:$0xff]
    %v516 = vld [vmem:[#allocation3 + $0x9f8] sm:$0xff]
    %v517 = vld [vmem:[#allocation3 + $0xa00] sm:$0xff]
    %v518 = vld [vmem:[#allocation3 + $0xa08] sm:$0xff]
    %v519 = vld [vmem:[#allocation3 + $0xa10] sm:$0xff]
    %v520 = vld [vmem:[#allocation3 + $0xa18] sm:$0xff]
    %v521 = vld [vmem:[#allocation3 + $0xa20] sm:$0xff]
    %v522 = vld [vmem:[#allocation3 + $0xa28] sm:$0xff]
    %v523 = vld [vmem:[#allocation3 + $0xa30] sm:$0xff]
    %v524 = vld [vmem:[#allocation3 + $0xa38] sm:$0xff]
    %v525 = vld [vmem:[#allocation3 + $0xa40] sm:$0xff]
    %v526 = vld [vmem:[#allocation3 + $0xa48] sm:$0xff]
    %v527 = vld [vmem:[#allocation3 + $0xa50] sm:$0xff]
    %v528 = vld [vmem:[#allocation3 + $0xa58] sm:$0xff]
    %v529 = vld [vmem:[#allocation3 + $0xa60] sm:$0xff]
    %v530 = vld [vmem:[#allocation3 + $0xa68] sm:$0xff]
    %v531 = vld [vmem:[#allocation3 + $0xa70] sm:$0xff]
    %v532 = vld [vmem:[#allocation3 + $0xa78] sm:$0xff]
    %v533 = vld [vmem:[#allocation3 + $0xa80] sm:$0xff]
    %v534 = vld [vmem:[#allocation3 + $0xa88] sm:$0xff]
    %v535 = vld [vmem:[#allocation3 + $0xa90] sm:$0xff]
    %v536 = vld [vmem:[#allocation3 + $0xa98] sm:$0xff]
    %v537 = vld [vmem:[#allocation3 + $0xaa0] sm:$0xff]
    %v538 = vld [vmem:[#allocation3 + $0xaa8] sm:$0xff]
    %v539 = vld [vmem:[#allocation3 + $0xab0] sm:$0xff]
    %v540 = vld [vmem:[#allocation3 + $0xab8] sm:$0xff]
    %v541 = vld [vmem:[#allocation3 + $0xac0] sm:$0xff]
    %v542 = vld [vmem:[#allocation3 + $0xac8] sm:$0xff]
    %v543 = vld [vmem:[#allocation3 + $0xad0] sm:$0xff]
    %v544 = vld [vmem:[#allocation3 + $0xad8] sm:$0xff]
    %v545 = vld [vmem:[#allocation3 + $0xae0] sm:$0xff]
    %v546 = vld [vmem:[#allocation3 + $0xae8] sm:$0xff]
    %v547 = vld [vmem:[#allocation3 + $0xaf0] sm:$0xff]
    %v548 = vld [vmem:[#allocation3 + $0xaf8] sm:$0xff]
    %v549 = vld [vmem:[#allocation3 + $0xb00] sm:$0xff]
    %v550 = vld [vmem:[#allocation3 + $0xb08] sm:$0xff]
    %v551 = vld [vmem:[#allocation3 + $0xb10] sm:$0xff]
    %v552 = vld [vmem:[#allocation3 + $0xb18] sm:$0xff]
    %v553 = vld [vmem:[#allocation3 + $0xb20] sm:$0xff]
    %v554 = vld [vmem:[#allocation3 + $0xb28] sm:$0xff]
    %v555 = vld [vmem:[#allocation3 + $0xb30] sm:$0xff]
    %v556 = vld [vmem:[#allocation3 + $0xb38] sm:$0xff]
    %v557 = vld [vmem:[#allocation3 + $0xb40] sm:$0xff]
    %v558 = vld [vmem:[#allocation3 + $0xb48] sm:$0xff]
    %v559 = vld [vmem:[#allocation3 + $0xb50] sm:$0xff]
    %v560 = vld [vmem:[#allocation3 + $0xb58] sm:$0xff]
    %v561 = vld [vmem:[#allocation3 + $0xb60] sm:$0xff]
    %v562 = vld [vmem:[#allocation3 + $0xb68] sm:$0xff]
    %v563 = vld [vmem:[#allocation3 + $0xb70] sm:$0xff]
    %v564 = vld [vmem:[#allocation3 + $0xb78] sm:$0xff]
    %v565 = vld [vmem:[#allocation3 + $0xb80] sm:$0xff]
    %v566 = vld [vmem:[#allocation3 + $0xb88] sm:$0xff]
    %v567 = vld [vmem:[#allocation3 + $0xb90] sm:$0xff]
    %v568 = vld [vmem:[#allocation3 + $0xb98] sm:$0xff]
    %v569 = vld [vmem:[#allocation3 + $0xba0] sm:$0xff]
    %v570 = vld [vmem:[#allocation3 + $0xba8] sm:$0xff]
    %v571 = vld [vmem:[#allocation3 + $0xbb0] sm:$0xff]
    %v572 = vld [vmem:[#allocation3 + $0xbb8] sm:$0xff]
    %v573 = vld [vmem:[#allocation3 + $0xbc0] sm:$0xff]
    %v574 = vld [vmem:[#allocation3 + $0xbc8] sm:$0xff]
    %v575 = vld [vmem:[#allocation3 + $0xbd0] sm:$0xff]
    %v576 = vld [vmem:[#allocation3 + $0xbd8] sm:$0xff]
    %v577 = vld [vmem:[#allocation3 + $0xbe0] sm:$0xff]
    %v578 = vld [vmem:[#allocation3 + $0xbe8] sm:$0xff]
    %v579 = vld [vmem:[#allocation3 + $0xbf0] sm:$0xff]
    %v580 = vld [vmem:[#allocation3 + $0xbf8] sm:$0xff]
    %v581 = vld [vmem:[#allocation3 + $0xc00] sm:$0xff]
    %v582 = vld [vmem:[#allocation3 + $0xc08] sm:$0xff]
    %v583 = vld [vmem:[#allocation3 + $0xc10] sm:$0xff]
    %v584 = vld [vmem:[#allocation3 + $0xc18] sm:$0xff]
    %v585 = vld [vmem:[#allocation3 + $0xc20] sm:$0xff]
    %v586 = vld [vmem:[#allocation3 + $0xc28] sm:$0xff]
    %v587 = vld [vmem:[#allocation3 + $0xc30] sm:$0xff]
    %v588 = vld [vmem:[#allocation3 + $0xc38] sm:$0xff]
    %v589 = vld [vmem:[#allocation3 + $0xc40] sm:$0xff]
    %v590 = vld [vmem:[#allocation3 + $0xc48] sm:$0xff]
    %v591 = vld [vmem:[#allocation3 + $0xc50] sm:$0xff]
    %v592 = vld [vmem:[#allocation3 + $0xc58] sm:$0xff]
    %v593 = vld [vmem:[#allocation3 + $0xc60] sm:$0xff]
    %v594 = vld [vmem:[#allocation3 + $0xc68] sm:$0xff]
    %v595 = vld [vmem:[#allocation3 + $0xc70] sm:$0xff]
    %v596 = vld [vmem:[#allocation3 + $0xc78] sm:$0xff]
    %v597 = vld [vmem:[#allocation3 + $0xc80] sm:$0xff]
    %v598 = vld [vmem:[#allocation3 + $0xc88] sm:$0xff]
    %v599 = vld [vmem:[#allocation3 + $0xc90] sm:$0xff]
    %v600 = vld [vmem:[#allocation3 + $0xc98] sm:$0xff]
    %v601 = vld [vmem:[#allocation3 + $0xca0] sm:$0xff]
    %v602 = vld [vmem:[#allocation3 + $0xca8] sm:$0xff]
    %v603 = vld [vmem:[#allocation3 + $0xcb0] sm:$0xff]
    %v604 = vld [vmem:[#allocation3 + $0xcb8] sm:$0xff]
    %v605 = vld [vmem:[#allocation3 + $0xcc0] sm:$0xff]
    %v606 = vld [vmem:[#allocation3 + $0xcc8] sm:$0xff]
    %v607 = vld [vmem:[#allocation3 + $0xcd0] sm:$0xff]
    %v608 = vld [vmem:[#allocation3 + $0xcd8] sm:$0xff]
    %v609 = vld [vmem:[#allocation3 + $0xce0] sm:$0xff]
    %v610 = vld [vmem:[#allocation3 + $0xce8] sm:$0xff]
    %v611 = vld [vmem:[#allocation3 + $0xcf0] sm:$0xff]
    %v612 = vld [vmem:[#allocation3 + $0xcf8] sm:$0xff]
    %v613 = vld [vmem:[#allocation3 + $0xd00] sm:$0xff]
    %v614 = vld [vmem:[#allocation3 + $0xd08] sm:$0xff]
    %v615 = vld [vmem:[#allocation3 + $0xd10] sm:$0xff]
    %v616 = vld [vmem:[#allocation3 + $0xd18] sm:$0xff]
    %v617 = vld [vmem:[#allocation3 + $0xd20] sm:$0xff]
    %v618 = vld [vmem:[#allocation3 + $0xd28] sm:$0xff]
    %v619 = vld [vmem:[#allocation3 + $0xd30] sm:$0xff]
    %v620 = vld [vmem:[#allocation3 + $0xd38] sm:$0xff]
    %v621 = vld [vmem:[#allocation3 + $0xd40] sm:$0xff]
    %v622 = vld [vmem:[#allocation3 + $0xd48] sm:$0xff]
    %v623 = vld [vmem:[#allocation3 + $0xd50] sm:$0xff]
    %v624 = vld [vmem:[#allocation3 + $0xd58] sm:$0xff]
    %v625 = vld [vmem:[#allocation3 + $0xd60] sm:$0xff]
    %v626 = vld [vmem:[#allocation3 + $0xd68] sm:$0xff]
    %v627 = vld [vmem:[#allocation3 + $0xd70] sm:$0xff]
    %v628 = vld [vmem:[#allocation3 + $0xd78] sm:$0xff]
    %v629 = vld [vmem:[#allocation3 + $0xd80] sm:$0xff]
    %v630 = vld [vmem:[#allocation3 + $0xd88] sm:$0xff]
    %v631 = vld [vmem:[#allocation3 + $0xd90] sm:$0xff]
    %v632 = vld [vmem:[#allocation3 + $0xd98] sm:$0xff]
    %v633 = vld [vmem:[#allocation3 + $0xda0] sm:$0xff]
    %v634 = vld [vmem:[#allocation3 + $0xda8] sm:$0xff]
    %v635 = vld [vmem:[#allocation3 + $0xdb0] sm:$0xff]
    %v636 = vld [vmem:[#allocation3 + $0xdb8] sm:$0xff]
    %v637 = vld [vmem:[#allocation3 + $0xdc0] sm:$0xff]
    %v638 = vld [vmem:[#allocation3 + $0xdc8] sm:$0xff]
    %v639 = vld [vmem:[#allocation3 + $0xdd0] sm:$0xff]
    %v640 = vld [vmem:[#allocation3 + $0xdd8] sm:$0xff]
    %v641 = vld [vmem:[#allocation3 + $0xde0] sm:$0xff]
    %v642 = vld [vmem:[#allocation3 + $0xde8] sm:$0xff]
    %v643 = vld [vmem:[#allocation3 + $0xdf0] sm:$0xff]
    %v644 = vld [vmem:[#allocation3 + $0xdf8] sm:$0xff]
    %v645 = vld [vmem:[#allocation3 + $0xe00] sm:$0xff]
    %v646 = vld [vmem:[#allocation3 + $0xe08] sm:$0xff]
    %v647 = vld [vmem:[#allocation3 + $0xe10] sm:$0xff]
    %v648 = vld [vmem:[#allocation3 + $0xe18] sm:$0xff]
    %v649 = vld [vmem:[#allocation3 + $0xe20] sm:$0xff]
    %v650 = vld [vmem:[#allocation3 + $0xe28] sm:$0xff]
    %v651 = vld [vmem:[#allocation3 + $0xe30] sm:$0xff]
    %v652 = vld [vmem:[#allocation3 + $0xe38] sm:$0xff]
    %v653 = vld [vmem:[#allocation3 + $0xe40] sm:$0xff]
    %v654 = vld [vmem:[#allocation3 + $0xe48] sm:$0xff]
    %v655 = vld [vmem:[#allocation3 + $0xe50] sm:$0xff]
    %v656 = vld [vmem:[#allocation3 + $0xe58] sm:$0xff]
    %v657 = vld [vmem:[#allocation3 + $0xe60] sm:$0xff]
    %v658 = vld [vmem:[#allocation3 + $0xe68] sm:$0xff]
    %v659 = vld [vmem:[#allocation3 + $0xe70] sm:$0xff]
    %v660 = vld [vmem:[#allocation3 + $0xe78] sm:$0xff]
    %v661 = vld [vmem:[#allocation3 + $0xe80] sm:$0xff]
    %v662 = vld [vmem:[#allocation3 + $0xe88] sm:$0xff]
    %v663 = vld [vmem:[#allocation3 + $0xe90] sm:$0xff]
    %v664 = vld [vmem:[#allocation3 + $0xe98] sm:$0xff]
    %v665 = vld [vmem:[#allocation3 + $0xea0] sm:$0xff]
    %v666 = vld [vmem:[#allocation3 + $0xea8] sm:$0xff]
    %v667 = vld [vmem:[#allocation3 + $0xeb0] sm:$0xff]
    %v668 = vld [vmem:[#allocation3 + $0xeb8] sm:$0xff]
    %v669 = vld [vmem:[#allocation3 + $0xec0] sm:$0xff]
    %v670 = vld [vmem:[#allocation3 + $0xec8] sm:$0xff]
    %v671 = vld [vmem:[#allocation3 + $0xed0] sm:$0xff]
    %v672 = vld [vmem:[#allocation3 + $0xed8] sm:$0xff]
    %v673 = vld [vmem:[#allocation3 + $0xee0] sm:$0xff]
    %v674 = vld [vmem:[#allocation3 + $0xee8] sm:$0xff]
    %v675 = vld [vmem:[#allocation3 + $0xef0] sm:$0xff]
    %v676 = vld [vmem:[#allocation3 + $0xef8] sm:$0xff]
    %v677 = vld [vmem:[#allocation3 + $0xf00] sm:$0xff]
    %v678 = vld [vmem:[#allocation3 + $0xf08] sm:$0xff]
    %v679 = vld [vmem:[#allocation3 + $0xf10] sm:$0xff]
    %v680 = vld [vmem:[#allocation3 + $0xf18] sm:$0xff]
    %v681 = vld [vmem:[#allocation3 + $0xf20] sm:$0xff]
    %v682 = vld [vmem:[#allocation3 + $0xf28] sm:$0xff]
    %v683 = vld [vmem:[#allocation3 + $0xf30] sm:$0xff]
    %v684 = vld [vmem:[#allocation3 + $0xf38] sm:$0xff]
    %v685 = vld [vmem:[#allocation3 + $0xf40] sm:$0xff]
    %v686 = vld [vmem:[#allocation3 + $0xf48] sm:$0xff]
    %v687 = vld [vmem:[#allocation3 + $0xf50] sm:$0xff]
    %v688 = vld [vmem:[#allocation3 + $0xf58] sm:$0xff]
    %v689 = vld [vmem:[#allocation3 + $0xf60] sm:$0xff]
    %v690 = vld [vmem:[#allocation3 + $0xf68] sm:$0xff]
    %v691 = vld [vmem:[#allocation3 + $0xf70] sm:$0xff]
    %v692 = vld [vmem:[#allocation3 + $0xf78] sm:$0xff]
    %v693 = vld [vmem:[#allocation3 + $0xf80] sm:$0xff]
    %v694 = vld [vmem:[#allocation3 + $0xf88] sm:$0xff]
    %v695 = vld [vmem:[#allocation3 + $0xf90] sm:$0xff]
    %v696 = vld [vmem:[#allocation3 + $0xf98] sm:$0xff]
    %v697 = vld [vmem:[#allocation3 + $0xfa0] sm:$0xff]
    %v698 = vld [vmem:[#allocation3 + $0xfa8] sm:$0xff]
    %v699 = vld [vmem:[#allocation3 + $0xfb0] sm:$0xff]
    %v700 = vld [vmem:[#allocation3 + $0xfb8] sm:$0xff]
    %v701 = vld [vmem:[#allocation3 + $0xfc0] sm:$0xff]
    %v702 = vld [vmem:[#allocation3 + $0xfc8] sm:$0xff]
    %v703 = vld [vmem:[#allocation3 + $0xfd0] sm:$0xff]
    %v704 = vld [vmem:[#allocation3 + $0xfd8] sm:$0xff]
    %v705 = vld [vmem:[#allocation3 + $0xfe0] sm:$0xff]
    %v706 = vld [vmem:[#allocation3 + $0xfe8] sm:$0xff]
    %v707 = vld [vmem:[#allocation3 + $0xff0] sm:$0xff]
    %v708 = vld [vmem:[#allocation3 + $0xff8] sm:$0xff]
    %v709 = vld [vmem:[#allocation5] sm:$0xff]
    %v710 = vld [vmem:[#allocation5 + $0x8] sm:$0xff]
    %v711 = vld [vmem:[#allocation5 + $0x10] sm:$0xff]
    %v712 = vld [vmem:[#allocation5 + $0x18] sm:$0xff]
    %v713 = vld [vmem:[#allocation5 + $0x20] sm:$0xff]
    %v714 = vld [vmem:[#allocation5 + $0x28] sm:$0xff]
    %v715 = vld [vmem:[#allocation5 + $0x30] sm:$0xff]
    %v716 = vld [vmem:[#allocation5 + $0x38] sm:$0xff]
    %v717 = vld [vmem:[#allocation5 + $0x40] sm:$0xff]
    %v718 = vld [vmem:[#allocation5 + $0x48] sm:$0xff]
    %v719 = vld [vmem:[#allocation5 + $0x50] sm:$0xff]
    %v720 = vld [vmem:[#allocation5 + $0x58] sm:$0xff]
    %v721 = vld [vmem:[#allocation5 + $0x60] sm:$0xff]
    %v722 = vld [vmem:[#allocation5 + $0x68] sm:$0xff]
    %v723 = vld [vmem:[#allocation5 + $0x70] sm:$0xff]
    %v724 = vld [vmem:[#allocation5 + $0x78] sm:$0xff]
    %v725 = vld [vmem:[#allocation5 + $0x80] sm:$0xff]
    %v726 = vld [vmem:[#allocation5 + $0x88] sm:$0xff]
    %v727 = vld [vmem:[#allocation5 + $0x90] sm:$0xff]
    %v728 = vld [vmem:[#allocation5 + $0x98] sm:$0xff]
    %v729 = vld [vmem:[#allocation5 + $0xa0] sm:$0xff]
    %v730 = vld [vmem:[#allocation5 + $0xa8] sm:$0xff]
    %v731 = vld [vmem:[#allocation5 + $0xb0] sm:$0xff]
    %v732 = vld [vmem:[#allocation5 + $0xb8] sm:$0xff]
    %v733 = vld [vmem:[#allocation5 + $0xc0] sm:$0xff]
    %v734 = vld [vmem:[#allocation5 + $0xc8] sm:$0xff]
    %v735 = vld [vmem:[#allocation5 + $0xd0] sm:$0xff]
    %v736 = vld [vmem:[#allocation5 + $0xd8] sm:$0xff]
    %v737 = vld [vmem:[#allocation5 + $0xe0] sm:$0xff]
    %v738 = vld [vmem:[#allocation5 + $0xe8] sm:$0xff]
    %v739 = vld [vmem:[#allocation5 + $0xf0] sm:$0xff]
    %v740 = vld [vmem:[#allocation5 + $0xf8] sm:$0xff]
    %v741 = vld [vmem:[#allocation5 + $0x100] sm:$0xff]
    %v742 = vld [vmem:[#allocation5 + $0x108] sm:$0xff]
    %v743 = vld [vmem:[#allocation5 + $0x110] sm:$0xff]
    %v744 = vld [vmem:[#allocation5 + $0x118] sm:$0xff]
    %v745 = vld [vmem:[#allocation5 + $0x120] sm:$0xff]
    %v746 = vld [vmem:[#allocation5 + $0x128] sm:$0xff]
    %v747 = vld [vmem:[#allocation5 + $0x130] sm:$0xff]
    %v748 = vld [vmem:[#allocation5 + $0x138] sm:$0xff]
    %v749 = vld [vmem:[#allocation5 + $0x140] sm:$0xff]
    %v750 = vld [vmem:[#allocation5 + $0x148] sm:$0xff]
    %v751 = vld [vmem:[#allocation5 + $0x150] sm:$0xff]
    %v752 = vld [vmem:[#allocation5 + $0x158] sm:$0xff]
    %v753 = vld [vmem:[#allocation5 + $0x160] sm:$0xff]
    %v754 = vld [vmem:[#allocation5 + $0x168] sm:$0xff]
    %v755 = vld [vmem:[#allocation5 + $0x170] sm:$0xff]
    %v756 = vld [vmem:[#allocation5 + $0x178] sm:$0xff]
    %v757 = vld [vmem:[#allocation5 + $0x180] sm:$0xff]
    %v758 = vld [vmem:[#allocation5 + $0x188] sm:$0xff]
    %v759 = vld [vmem:[#allocation5 + $0x190] sm:$0xff]
    %v760 = vld [vmem:[#allocation5 + $0x198] sm:$0xff]
    %v761 = vld [vmem:[#allocation5 + $0x1a0] sm:$0xff]
    %v762 = vld [vmem:[#allocation5 + $0x1a8] sm:$0xff]
    %v763 = vld [vmem:[#allocation5 + $0x1b0] sm:$0xff]
    %v764 = vld [vmem:[#allocation5 + $0x1b8] sm:$0xff]
    %v765 = vld [vmem:[#allocation5 + $0x1c0] sm:$0xff]
    %v766 = vld [vmem:[#allocation5 + $0x1c8] sm:$0xff]
    %v767 = vld [vmem:[#allocation5 + $0x1d0] sm:$0xff]
    %v768 = vld [vmem:[#allocation5 + $0x1d8] sm:$0xff]
    %v769 = vld [vmem:[#allocation5 + $0x1e0] sm:$0xff]
    %v770 = vld [vmem:[#allocation5 + $0x1e8] sm:$0xff]
    %v771 = vld [vmem:[#allocation5 + $0x1f0] sm:$0xff]
    %v772 = vld [vmem:[#allocation5 + $0x1f8] sm:$0xff]
    %v773 = vld [vmem:[#allocation5 + $0x200] sm:$0xff]
    %v774 = vld [vmem:[#allocation5 + $0x208] sm:$0xff]
    %v775 = vld [vmem:[#allocation5 + $0x210] sm:$0xff]
    %v776 = vld [vmem:[#allocation5 + $0x218] sm:$0xff]
    %v777 = vld [vmem:[#allocation5 + $0x220] sm:$0xff]
    %v778 = vld [vmem:[#allocation5 + $0x228] sm:$0xff]
    %v779 = vld [vmem:[#allocation5 + $0x230] sm:$0xff]
    %v780 = vld [vmem:[#allocation5 + $0x238] sm:$0xff]
    %v781 = vld [vmem:[#allocation5 + $0x240] sm:$0xff]
    %v782 = vld [vmem:[#allocation5 + $0x248] sm:$0xff]
    %v783 = vld [vmem:[#allocation5 + $0x250] sm:$0xff]
    %v784 = vld [vmem:[#allocation5 + $0x258] sm:$0xff]
    %v785 = vld [vmem:[#allocation5 + $0x260] sm:$0xff]
    %v786 = vld [vmem:[#allocation5 + $0x268] sm:$0xff]
    %v787 = vld [vmem:[#allocation5 + $0x270] sm:$0xff]
    %v788 = vld [vmem:[#allocation5 + $0x278] sm:$0xff]
    %v789 = vld [vmem:[#allocation5 + $0x280] sm:$0xff]
    %v790 = vld [vmem:[#allocation5 + $0x288] sm:$0xff]
    %v791 = vld [vmem:[#allocation5 + $0x290] sm:$0xff]
    %v792 = vld [vmem:[#allocation5 + $0x298] sm:$0xff]
    %v793 = vld [vmem:[#allocation5 + $0x2a0] sm:$0xff]
    %v794 = vld [vmem:[#allocation5 + $0x2a8] sm:$0xff]
    %v795 = vld [vmem:[#allocation5 + $0x2b0] sm:$0xff]
    %v796 = vld [vmem:[#allocation5 + $0x2b8] sm:$0xff]
    %v797 = vld [vmem:[#allocation5 + $0x2c0] sm:$0xff]
    %v798 = vld [vmem:[#allocation5 + $0x2c8] sm:$0xff]
    %v799 = vld [vmem:[#allocation5 + $0x2d0] sm:$0xff]
    %v800 = vld [vmem:[#allocation5 + $0x2d8] sm:$0xff]
    %v801 = vld [vmem:[#allocation5 + $0x2e0] sm:$0xff]
    %v802 = vld [vmem:[#allocation5 + $0x2e8] sm:$0xff]
    %v803 = vld [vmem:[#allocation5 + $0x2f0] sm:$0xff]
    %v804 = vld [vmem:[#allocation5 + $0x2f8] sm:$0xff]
    %v805 = vld [vmem:[#allocation5 + $0x300] sm:$0xff]
    %v806 = vld [vmem:[#allocation5 + $0x308] sm:$0xff]
    %v807 = vld [vmem:[#allocation5 + $0x310] sm:$0xff]
    %v808 = vld [vmem:[#allocation5 + $0x318] sm:$0xff]
    %v809 = vld [vmem:[#allocation5 + $0x320] sm:$0xff]
    %v810 = vld [vmem:[#allocation5 + $0x328] sm:$0xff]
    %v811 = vld [vmem:[#allocation5 + $0x330] sm:$0xff]
    %v812 = vld [vmem:[#allocation5 + $0x338] sm:$0xff]
    %v813 = vld [vmem:[#allocation5 + $0x340] sm:$0xff]
    %v814 = vld [vmem:[#allocation5 + $0x348] sm:$0xff]
    %v815 = vld [vmem:[#allocation5 + $0x350] sm:$0xff]
    %v816 = vld [vmem:[#allocation5 + $0x358] sm:$0xff]
    %v817 = vld [vmem:[#allocation5 + $0x360] sm:$0xff]
    %v818 = vld [vmem:[#allocation5 + $0x368] sm:$0xff]
    %v819 = vld [vmem:[#allocation5 + $0x370] sm:$0xff]
    %v820 = vld [vmem:[#allocation5 + $0x378] sm:$0xff]
    %v821 = vld [vmem:[#allocation5 + $0x380] sm:$0xff]
    %v822 = vld [vmem:[#allocation5 + $0x388] sm:$0xff]
    %v823 = vld [vmem:[#allocation5 + $0x390] sm:$0xff]
    %v824 = vld [vmem:[#allocation5 + $0x398] sm:$0xff]
    %v825 = vld [vmem:[#allocation5 + $0x3a0] sm:$0xff]
    %v826 = vld [vmem:[#allocation5 + $0x3a8] sm:$0xff]
    %v827 = vld [vmem:[#allocation5 + $0x3b0] sm:$0xff]
    %v828 = vld [vmem:[#allocation5 + $0x3b8] sm:$0xff]
    %v829 = vld [vmem:[#allocation5 + $0x3c0] sm:$0xff]
    %v830 = vld [vmem:[#allocation5 + $0x3c8] sm:$0xff]
    %v831 = vld [vmem:[#allocation5 + $0x3d0] sm:$0xff]
    %v832 = vld [vmem:[#allocation5 + $0x3d8] sm:$0xff]
    %v833 = vld [vmem:[#allocation5 + $0x3e0] sm:$0xff]
    %v834 = vld [vmem:[#allocation5 + $0x3e8] sm:$0xff]
    %v835 = vld [vmem:[#allocation5 + $0x3f0] sm:$0xff]
    %v836 = vld [vmem:[#allocation5 + $0x3f8] sm:$0xff]
    %v837 = vld [vmem:[#allocation5 + $0x400] sm:$0xff]
    %v838 = vld [vmem:[#allocation5 + $0x408] sm:$0xff]
    %v839 = vld [vmem:[#allocation5 + $0x410] sm:$0xff]
    %v840 = vld [vmem:[#allocation5 + $0x418] sm:$0xff]
    %v841 = vld [vmem:[#allocation5 + $0x420] sm:$0xff]
    %v842 = vld [vmem:[#allocation5 + $0x428] sm:$0xff]
    %v843 = vld [vmem:[#allocation5 + $0x430] sm:$0xff]
    %v844 = vld [vmem:[#allocation5 + $0x438] sm:$0xff]
    %v845 = vld [vmem:[#allocation5 + $0x440] sm:$0xff]
    %v846 = vld [vmem:[#allocation5 + $0x448] sm:$0xff]
    %v847 = vld [vmem:[#allocation5 + $0x450] sm:$0xff]
    %v848 = vld [vmem:[#allocation5 + $0x458] sm:$0xff]
    %v849 = vld [vmem:[#allocation5 + $0x460] sm:$0xff]
    %v850 = vld [vmem:[#allocation5 + $0x468] sm:$0xff]
    %v851 = vld [vmem:[#allocation5 + $0x470] sm:$0xff]
    %v852 = vld [vmem:[#allocation5 + $0x478] sm:$0xff]
    %v853 = vld [vmem:[#allocation5 + $0x480] sm:$0xff]
    %v854 = vld [vmem:[#allocation5 + $0x488] sm:$0xff]
    %v855 = vld [vmem:[#allocation5 + $0x490] sm:$0xff]
    %v856 = vld [vmem:[#allocation5 + $0x498] sm:$0xff]
    %v857 = vld [vmem:[#allocation5 + $0x4a0] sm:$0xff]
    %v858 = vld [vmem:[#allocation5 + $0x4a8] sm:$0xff]
    %v859 = vld [vmem:[#allocation5 + $0x4b0] sm:$0xff]
    %v860 = vld [vmem:[#allocation5 + $0x4b8] sm:$0xff]
    %v861 = vld [vmem:[#allocation5 + $0x4c0] sm:$0xff]
    %v862 = vld [vmem:[#allocation5 + $0x4c8] sm:$0xff]
    %v863 = vld [vmem:[#allocation5 + $0x4d0] sm:$0xff]
    %v864 = vld [vmem:[#allocation5 + $0x4d8] sm:$0xff]
    %v865 = vld [vmem:[#allocation5 + $0x4e0] sm:$0xff]
    %v866 = vld [vmem:[#allocation5 + $0x4e8] sm:$0xff]
    %v867 = vld [vmem:[#allocation5 + $0x4f0] sm:$0xff]
    %v868 = vld [vmem:[#allocation5 + $0x4f8] sm:$0xff]
    %v869 = vld [vmem:[#allocation5 + $0x500] sm:$0xff]
    %v870 = vld [vmem:[#allocation5 + $0x508] sm:$0xff]
    %v871 = vld [vmem:[#allocation5 + $0x510] sm:$0xff]
    %v872 = vld [vmem:[#allocation5 + $0x518] sm:$0xff]
    %v873 = vld [vmem:[#allocation5 + $0x520] sm:$0xff]
    %v874 = vld [vmem:[#allocation5 + $0x528] sm:$0xff]
    %v875 = vld [vmem:[#allocation5 + $0x530] sm:$0xff]
    %v876 = vld [vmem:[#allocation5 + $0x538] sm:$0xff]
    %v877 = vld [vmem:[#allocation5 + $0x540] sm:$0xff]
    %v878 = vld [vmem:[#allocation5 + $0x548] sm:$0xff]
    %v879 = vld [vmem:[#allocation5 + $0x550] sm:$0xff]
    %v880 = vld [vmem:[#allocation5 + $0x558] sm:$0xff]
    %v881 = vld [vmem:[#allocation5 + $0x560] sm:$0xff]
    %v882 = vld [vmem:[#allocation5 + $0x568] sm:$0xff]
    %v883 = vld [vmem:[#allocation5 + $0x570] sm:$0xff]
    %v884 = vld [vmem:[#allocation5 + $0x578] sm:$0xff]
    %v885 = vld [vmem:[#allocation5 + $0x580] sm:$0xff]
    %v886 = vld [vmem:[#allocation5 + $0x588] sm:$0xff]
    %v887 = vld [vmem:[#allocation5 + $0x590] sm:$0xff]
    %v888 = vld [vmem:[#allocation5 + $0x598] sm:$0xff]
    %v889 = vld [vmem:[#allocation5 + $0x5a0] sm:$0xff]
    %v890 = vld [vmem:[#allocation5 + $0x5a8] sm:$0xff]
    %v891 = vld [vmem:[#allocation5 + $0x5b0] sm:$0xff]
    %v892 = vld [vmem:[#allocation5 + $0x5b8] sm:$0xff]
    %v893 = vld [vmem:[#allocation5 + $0x5c0] sm:$0xff]
    %v894 = vld [vmem:[#allocation5 + $0x5c8] sm:$0xff]
    %v895 = vld [vmem:[#allocation5 + $0x5d0] sm:$0xff]
    %v896 = vld [vmem:[#allocation5 + $0x5d8] sm:$0xff]
    %v897 = vld [vmem:[#allocation5 + $0x5e0] sm:$0xff]
    %v898 = vld [vmem:[#allocation5 + $0x5e8] sm:$0xff]
    %v899 = vld [vmem:[#allocation5 + $0x5f0] sm:$0xff]
    %v900 = vld [vmem:[#allocation5 + $0x5f8] sm:$0xff]
    %v901 = vld [vmem:[#allocation5 + $0x600] sm:$0xff]
    %v902 = vld [vmem:[#allocation5 + $0x608] sm:$0xff]
    %v903 = vld [vmem:[#allocation5 + $0x610] sm:$0xff]
    %v904 = vld [vmem:[#allocation5 + $0x618] sm:$0xff]
    %v905 = vld [vmem:[#allocation5 + $0x620] sm:$0xff]
    %v906 = vld [vmem:[#allocation5 + $0x628] sm:$0xff]
    %v907 = vld [vmem:[#allocation5 + $0x630] sm:$0xff]
    %v908 = vld [vmem:[#allocation5 + $0x638] sm:$0xff]
    %v909 = vld [vmem:[#allocation5 + $0x640] sm:$0xff]
    %v910 = vld [vmem:[#allocation5 + $0x648] sm:$0xff]
    %v911 = vld [vmem:[#allocation5 + $0x650] sm:$0xff]
    %v912 = vld [vmem:[#allocation5 + $0x658] sm:$0xff]
    %v913 = vld [vmem:[#allocation5 + $0x660] sm:$0xff]
    %v914 = vld [vmem:[#allocation5 + $0x668] sm:$0xff]
    %v915 = vld [vmem:[#allocation5 + $0x670] sm:$0xff]
    %v916 = vld [vmem:[#allocation5 + $0x678] sm:$0xff]
    %v917 = vld [vmem:[#allocation5 + $0x680] sm:$0xff]
    %v918 = vld [vmem:[#allocation5 + $0x688] sm:$0xff]
    %v919 = vld [vmem:[#allocation5 + $0x690] sm:$0xff]
    %v920 = vld [vmem:[#allocation5 + $0x698] sm:$0xff]
    %v921 = vld [vmem:[#allocation5 + $0x6a0] sm:$0xff]
    %v922 = vld [vmem:[#allocation5 + $0x6a8] sm:$0xff]
    %v923 = vld [vmem:[#allocation5 + $0x6b0] sm:$0xff]
    %v924 = vld [vmem:[#allocation5 + $0x6b8] sm:$0xff]
    %v925 = vld [vmem:[#allocation5 + $0x6c0] sm:$0xff]
    %v926 = vld [vmem:[#allocation5 + $0x6c8] sm:$0xff]
    %v927 = vld [vmem:[#allocation5 + $0x6d0] sm:$0xff]
    %v928 = vld [vmem:[#allocation5 + $0x6d8] sm:$0xff]
    %v929 = vld [vmem:[#allocation5 + $0x6e0] sm:$0xff]
    %v930 = vld [vmem:[#allocation5 + $0x6e8] sm:$0xff]
    %v931 = vld [vmem:[#allocation5 + $0x6f0] sm:$0xff]
    %v932 = vld [vmem:[#allocation5 + $0x6f8] sm:$0xff]
    %v933 = vld [vmem:[#allocation5 + $0x700] sm:$0xff]
    %v934 = vld [vmem:[#allocation5 + $0x708] sm:$0xff]
    %v935 = vld [vmem:[#allocation5 + $0x710] sm:$0xff]
    %v936 = vld [vmem:[#allocation5 + $0x718] sm:$0xff]
    %v937 = vld [vmem:[#allocation5 + $0x720] sm:$0xff]
    %v938 = vld [vmem:[#allocation5 + $0x728] sm:$0xff]
    %v939 = vld [vmem:[#allocation5 + $0x730] sm:$0xff]
    %v940 = vld [vmem:[#allocation5 + $0x738] sm:$0xff]
    %v941 = vld [vmem:[#allocation5 + $0x740] sm:$0xff]
    %v942 = vld [vmem:[#allocation5 + $0x748] sm:$0xff]
    %v943 = vld [vmem:[#allocation5 + $0x750] sm:$0xff]
    %v944 = vld [vmem:[#allocation5 + $0x758] sm:$0xff]
    %v945 = vld [vmem:[#allocation5 + $0x760] sm:$0xff]
    %v946 = vld [vmem:[#allocation5 + $0x768] sm:$0xff]
    %v947 = vld [vmem:[#allocation5 + $0x770] sm:$0xff]
    %v948 = vld [vmem:[#allocation5 + $0x778] sm:$0xff]
    %v949 = vld [vmem:[#allocation5 + $0x780] sm:$0xff]
    %v950 = vld [vmem:[#allocation5 + $0x788] sm:$0xff]
    %v951 = vld [vmem:[#allocation5 + $0x790] sm:$0xff]
    %v952 = vld [vmem:[#allocation5 + $0x798] sm:$0xff]
    %v953 = vld [vmem:[#allocation5 + $0x7a0] sm:$0xff]
    %v954 = vld [vmem:[#allocation5 + $0x7a8] sm:$0xff]
    %v955 = vld [vmem:[#allocation5 + $0x7b0] sm:$0xff]
    %v956 = vld [vmem:[#allocation5 + $0x7b8] sm:$0xff]
    %v957 = vld [vmem:[#allocation5 + $0x7c0] sm:$0xff]
    %v958 = vld [vmem:[#allocation5 + $0x7c8] sm:$0xff]
    %v959 = vld [vmem:[#allocation5 + $0x7d0] sm:$0xff]
    %v960 = vld [vmem:[#allocation5 + $0x7d8] sm:$0xff]
    %v961 = vld [vmem:[#allocation5 + $0x7e0] sm:$0xff]
    %v962 = vld [vmem:[#allocation5 + $0x7e8] sm:$0xff]
    %v963 = vld [vmem:[#allocation5 + $0x7f0] sm:$0xff]
    %v964 = vld [vmem:[#allocation5 + $0x7f8] sm:$0xff]
    %965 = vmatpush.msra.mxu0 %v724
    %966 = vmatpush.msra.mxu0 %v723
    %967 = vmatpush.msra.mxu0 %v722
    %968 = vmatpush.msra.mxu0 %v721
    %969 = vmatpush.msra.mxu0 %v720
    %970 = vmatpush.msra.mxu0 %v719
    %971 = vmatpush.msra.mxu0 %v718
    %972 = vmatpush.msra.mxu0 %v717
    %973 = vmatpush.msra.mxu0 %v716
    %974 = vmatpush.msra.mxu0 %v715
    %975 = vmatpush.msra.mxu0 %v714
    %976 = vmatpush.msra.mxu0 %v713
    %977 = vmatpush.msra.mxu0 %v712
    %978 = vmatpush.msra.mxu0 %v711
    %979 = vmatpush.msra.mxu0 %v710
    %980 = vmatpush.msra.mxu0 %v709
    %981 = vmatmul.f32.gmra.mxu0 %v197
    %v982 = vpop.f32.mrf.mxu0
    %v983 = vadd.f32 0.0, %v982
    %984 = vmatmul.f32.gmra.mxu0 %v213
    %v985 = vpop.f32.mrf.mxu0
    %v986 = vadd.f32 0.0, %v985
    %987 = vmatmul.f32.gmra.mxu0 %v229
    %v988 = vpop.f32.mrf.mxu0
    %v989 = vadd.f32 0.0, %v988
    %990 = vmatmul.f32.gmra.mxu0 %v245
    %v991 = vpop.f32.mrf.mxu0
    %v992 = vadd.f32 0.0, %v991
    %993 = vmatmul.f32.gmra.mxu0 %v261
    %v994 = vpop.f32.mrf.mxu0
    %v995 = vadd.f32 0.0, %v994
    %996 = vmatmul.f32.gmra.mxu0 %v277
    %v997 = vpop.f32.mrf.mxu0
    %v998 = vadd.f32 0.0, %v997
    %999 = vmatmul.f32.gmra.mxu0 %v293
    %v1000 = vpop.f32.mrf.mxu0
    %v1001 = vadd.f32 0.0, %v1000
    %1002 = vmatmul.f32.gmra.mxu0 %v309
    %v1003 = vpop.f32.mrf.mxu0
    %v1004 = vadd.f32 0.0, %v1003
    %1005 = vmatmul.f32.gmra.mxu0 %v325
    %v1006 = vpop.f32.mrf.mxu0
    %v1007 = vadd.f32 0.0, %v1006
    %1008 = vmatmul.f32.gmra.mxu0 %v341
    %v1009 = vpop.f32.mrf.mxu0
    %v1010 = vadd.f32 0.0, %v1009
    %1011 = vmatmul.f32.gmra.mxu0 %v357
    %v1012 = vpop.f32.mrf.mxu0
    %v1013 = vadd.f32 0.0, %v1012
    %1014 = vmatmul.f32.gmra.mxu0 %v373
    %v1015 = vpop.f32.mrf.mxu0
    %v1016 = vadd.f32 0.0, %v1015
    %1017 = vmatmul.f32.gmra.mxu0 %v389
    %v1018 = vpop.f32.mrf.mxu0
    %v1019 = vadd.f32 0.0, %v1018
    %1020 = vmatmul.f32.gmra.mxu0 %v405
    %v1021 = vpop.f32.mrf.mxu0
    %v1022 = vadd.f32 0.0, %v1021
    %1023 = vmatmul.f32.gmra.mxu0 %v421
    %v1024 = vpop.f32.mrf.mxu0
    %v1025 = vadd.f32 0.0, %v1024
    %1026 = vmatmul.f32.gmra.mxu0 %v437
    %v1027 = vpop.f32.mrf.mxu0
    %v1028 = vadd.f32 0.0, %v1027
    %1029 = vmatmul.f32.gmra.mxu0 %v453
    %v1030 = vpop.f32.mrf.mxu0
    %v1031 = vadd.f32 0.0, %v1030
    %1032 = vmatmul.f32.gmra.mxu0 %v469
    %v1033 = vpop.f32.mrf.mxu0
    %v1034 = vadd.f32 0.0, %v1033
    %1035 = vmatmul.f32.gmra.mxu0 %v485
    %v1036 = vpop.f32.mrf.mxu0
    %v1037 = vadd.f32 0.0, %v1036
    %1038 = vmatmul.f32.gmra.mxu0 %v501
    %v1039 = vpop.f32.mrf.mxu0
    %v1040 = vadd.f32 0.0, %v1039
    %1041 = vmatmul.f32.gmra.mxu0 %v517
    %v1042 = vpop.f32.mrf.mxu0
    %v1043 = vadd.f32 0.0, %v1042
    %1044 = vmatmul.f32.gmra.mxu0 %v533
    %v1045 = vpop.f32.mrf.mxu0
    %v1046 = vadd.f32 0.0, %v1045
    %1047 = vmatmul.f32.gmra.mxu0 %v549
    %v1048 = vpop.f32.mrf.mxu0
    %v1049 = vadd.f32 0.0, %v1048
    %1050 = vmatmul.f32.gmra.mxu0 %v565
    %v1051 = vpop.f32.mrf.mxu0
    %v1052 = vadd.f32 0.0, %v1051
    %1053 = vmatmul.f32.gmra.mxu0 %v581
    %v1054 = vpop.f32.mrf.mxu0
    %v1055 = vadd.f32 0.0, %v1054
    %1056 = vmatmul.f32.gmra.mxu0 %v597
    %v1057 = vpop.f32.mrf.mxu0
    %v1058 = vadd.f32 0.0, %v1057
    %1059 = vmatmul.f32.gmra.mxu0 %v613
    %v1060 = vpop.f32.mrf.mxu0
    %v1061 = vadd.f32 0.0, %v1060
    %1062 = vmatmul.f32.gmra.mxu0 %v629
    %v1063 = vpop.f32.mrf.mxu0
    %v1064 = vadd.f32 0.0, %v1063
    %1065 = vmatmul.f32.gmra.mxu0 %v645
    %v1066 = vpop.f32.mrf.mxu0
    %v1067 = vadd.f32 0.0, %v1066
    %1068 = vmatmul.f32.gmra.mxu0 %v661
    %v1069 = vpop.f32.mrf.mxu0
    %v1070 = vadd.f32 0.0, %v1069
    %1071 = vmatmul.f32.gmra.mxu0 %v677
    %v1072 = vpop.f32.mrf.mxu0
    %v1073 = vadd.f32 0.0, %v1072
    %1074 = vmatmul.f32.gmra.mxu0 %v693
    %v1075 = vpop.f32.mrf.mxu0
    %v1076 = vadd.f32 0.0, %v1075
    %1077 = vdwg.mxu0
    %1078 = vmatpush.msra.mxu0 %v740
    %1079 = vmatpush.msra.mxu0 %v739
    %1080 = vmatpush.msra.mxu0 %v738
    %1081 = vmatpush.msra.mxu0 %v737
    %1082 = vmatpush.msra.mxu0 %v736
    %1083 = vmatpush.msra.mxu0 %v735
    %1084 = vmatpush.msra.mxu0 %v734
    %1085 = vmatpush.msra.mxu0 %v733
    %1086 = vmatpush.msra.mxu0 %v732
    %1087 = vmatpush.msra.mxu0 %v731
    %1088 = vmatpush.msra.mxu0 %v730
    %1089 = vmatpush.msra.mxu0 %v729
    %1090 = vmatpush.msra.mxu0 %v728
    %1091 = vmatpush.msra.mxu0 %v727
    %1092 = vmatpush.msra.mxu0 %v726
    %1093 = vmatpush.msra.mxu0 %v725
    %1094 = vmatmul.f32.gmra.mxu0 %v198
    %v1095 = vpop.f32.mrf.mxu0
    %v1096 = vadd.f32 %v983, %v1095
    %1097 = vmatmul.f32.gmra.mxu0 %v214
    %v1098 = vpop.f32.mrf.mxu0
    %v1099 = vadd.f32 %v986, %v1098
    %1100 = vmatmul.f32.gmra.mxu0 %v230
    %v1101 = vpop.f32.mrf.mxu0
    %v1102 = vadd.f32 %v989, %v1101
    %1103 = vmatmul.f32.gmra.mxu0 %v246
    %v1104 = vpop.f32.mrf.mxu0
    %v1105 = vadd.f32 %v992, %v1104
    %1106 = vmatmul.f32.gmra.mxu0 %v262
    %v1107 = vpop.f32.mrf.mxu0
    %v1108 = vadd.f32 %v995, %v1107
    %1109 = vmatmul.f32.gmra.mxu0 %v278
    %v1110 = vpop.f32.mrf.mxu0
    %v1111 = vadd.f32 %v998, %v1110
    %1112 = vmatmul.f32.gmra.mxu0 %v294
    %v1113 = vpop.f32.mrf.mxu0
    %v1114 = vadd.f32 %v1001, %v1113
    %1115 = vmatmul.f32.gmra.mxu0 %v310
    %v1116 = vpop.f32.mrf.mxu0
    %v1117 = vadd.f32 %v1004, %v1116
    %1118 = vmatmul.f32.gmra.mxu0 %v326
    %v1119 = vpop.f32.mrf.mxu0
    %v1120 = vadd.f32 %v1007, %v1119
    %1121 = vmatmul.f32.gmra.mxu0 %v342
    %v1122 = vpop.f32.mrf.mxu0
    %v1123 = vadd.f32 %v1010, %v1122
    %1124 = vmatmul.f32.gmra.mxu0 %v358
    %v1125 = vpop.f32.mrf.mxu0
    %v1126 = vadd.f32 %v1013, %v1125
    %1127 = vmatmul.f32.gmra.mxu0 %v374
    %v1128 = vpop.f32.mrf.mxu0
    %v1129 = vadd.f32 %v1016, %v1128
    %1130 = vmatmul.f32.gmra.mxu0 %v390
    %v1131 = vpop.f32.mrf.mxu0
    %v1132 = vadd.f32 %v1019, %v1131
    %1133 = vmatmul.f32.gmra.mxu0 %v406
    %v1134 = vpop.f32.mrf.mxu0
    %v1135 = vadd.f32 %v1022, %v1134
    %1136 = vmatmul.f32.gmra.mxu0 %v422
    %v1137 = vpop.f32.mrf.mxu0
    %v1138 = vadd.f32 %v1025, %v1137
    %1139 = vmatmul.f32.gmra.mxu0 %v438
    %v1140 = vpop.f32.mrf.mxu0
    %v1141 = vadd.f32 %v1028, %v1140
    %1142 = vmatmul.f32.gmra.mxu0 %v454
    %v1143 = vpop.f32.mrf.mxu0
    %v1144 = vadd.f32 %v1031, %v1143
    %1145 = vmatmul.f32.gmra.mxu0 %v470
    %v1146 = vpop.f32.mrf.mxu0
    %v1147 = vadd.f32 %v1034, %v1146
    %1148 = vmatmul.f32.gmra.mxu0 %v486
    %v1149 = vpop.f32.mrf.mxu0
    %v1150 = vadd.f32 %v1037, %v1149
    %1151 = vmatmul.f32.gmra.mxu0 %v502
    %v1152 = vpop.f32.mrf.mxu0
    %v1153 = vadd.f32 %v1040, %v1152
    %1154 = vmatmul.f32.gmra.mxu0 %v518
    %v1155 = vpop.f32.mrf.mxu0
    %v1156 = vadd.f32 %v1043, %v1155
    %1157 = vmatmul.f32.gmra.mxu0 %v534
    %v1158 = vpop.f32.mrf.mxu0
    %v1159 = vadd.f32 %v1046, %v1158
    %1160 = vmatmul.f32.gmra.mxu0 %v550
    %v1161 = vpop.f32.mrf.mxu0
    %v1162 = vadd.f32 %v1049, %v1161
    %1163 = vmatmul.f32.gmra.mxu0 %v566
    %v1164 = vpop.f32.mrf.mxu0
    %v1165 = vadd.f32 %v1052, %v1164
    %1166 = vmatmul.f32.gmra.mxu0 %v582
    %v1167 = vpop.f32.mrf.mxu0
    %v1168 = vadd.f32 %v1055, %v1167
    %1169 = vmatmul.f32.gmra.mxu0 %v598
    %v1170 = vpop.f32.mrf.mxu0
    %v1171 = vadd.f32 %v1058, %v1170
    %1172 = vmatmul.f32.gmra.mxu0 %v614
    %v1173 = vpop.f32.mrf.mxu0
    %v1174 = vadd.f32 %v1061, %v1173
    %1175 = vmatmul.f32.gmra.mxu0 %v630
    %v1176 = vpop.f32.mrf.mxu0
    %v1177 = vadd.f32 %v1064, %v1176
    %1178 = vmatmul.f32.gmra.mxu0 %v646
    %v1179 = vpop.f32.mrf.mxu0
    %v1180 = vadd.f32 %v1067, %v1179
    %1181 = vmatmul.f32.gmra.mxu0 %v662
    %v1182 = vpop.f32.mrf.mxu0
    %v1183 = vadd.f32 %v1070, %v1182
    %1184 = vmatmul.f32.gmra.mxu0 %v678
    %v1185 = vpop.f32.mrf.mxu0
    %v1186 = vadd.f32 %v1073, %v1185
    %1187 = vmatmul.f32.gmra.mxu0 %v694
    %v1188 = vpop.f32.mrf.mxu0
    %v1189 = vadd.f32 %v1076, %v1188
    %1190 = vdwg.mxu0
    %1191 = vmatpush.msra.mxu0 %v756
    %1192 = vmatpush.msra.mxu0 %v755
    %1193 = vmatpush.msra.mxu0 %v754
    %1194 = vmatpush.msra.mxu0 %v753
    %1195 = vmatpush.msra.mxu0 %v752
    %1196 = vmatpush.msra.mxu0 %v751
    %1197 = vmatpush.msra.mxu0 %v750
    %1198 = vmatpush.msra.mxu0 %v749
    %1199 = vmatpush.msra.mxu0 %v748
    %1200 = vmatpush.msra.mxu0 %v747
    %1201 = vmatpush.msra.mxu0 %v746
    %1202 = vmatpush.msra.mxu0 %v745
    %1203 = vmatpush.msra.mxu0 %v744
    %1204 = vmatpush.msra.mxu0 %v743
    %1205 = vmatpush.msra.mxu0 %v742
    %1206 = vmatpush.msra.mxu0 %v741
    %1207 = vmatmul.f32.gmra.mxu0 %v199
    %v1208 = vpop.f32.mrf.mxu0
    %v1209 = vadd.f32 %v1096, %v1208
    %1210 = vmatmul.f32.gmra.mxu0 %v215
    %v1211 = vpop.f32.mrf.mxu0
    %v1212 = vadd.f32 %v1099, %v1211
    %1213 = vmatmul.f32.gmra.mxu0 %v231
    %v1214 = vpop.f32.mrf.mxu0
    %v1215 = vadd.f32 %v1102, %v1214
    %1216 = vmatmul.f32.gmra.mxu0 %v247
    %v1217 = vpop.f32.mrf.mxu0
    %v1218 = vadd.f32 %v1105, %v1217
    %1219 = vmatmul.f32.gmra.mxu0 %v263
    %v1220 = vpop.f32.mrf.mxu0
    %v1221 = vadd.f32 %v1108, %v1220
    %1222 = vmatmul.f32.gmra.mxu0 %v279
    %v1223 = vpop.f32.mrf.mxu0
    %v1224 = vadd.f32 %v1111, %v1223
    %1225 = vmatmul.f32.gmra.mxu0 %v295
    %v1226 = vpop.f32.mrf.mxu0
    %v1227 = vadd.f32 %v1114, %v1226
    %1228 = vmatmul.f32.gmra.mxu0 %v311
    %v1229 = vpop.f32.mrf.mxu0
    %v1230 = vadd.f32 %v1117, %v1229
    %1231 = vmatmul.f32.gmra.mxu0 %v327
    %v1232 = vpop.f32.mrf.mxu0
    %v1233 = vadd.f32 %v1120, %v1232
    %1234 = vmatmul.f32.gmra.mxu0 %v343
    %v1235 = vpop.f32.mrf.mxu0
    %v1236 = vadd.f32 %v1123, %v1235
    %1237 = vmatmul.f32.gmra.mxu0 %v359
    %v1238 = vpop.f32.mrf.mxu0
    %v1239 = vadd.f32 %v1126, %v1238
    %1240 = vmatmul.f32.gmra.mxu0 %v375
    %v1241 = vpop.f32.mrf.mxu0
    %v1242 = vadd.f32 %v1129, %v1241
    %1243 = vmatmul.f32.gmra.mxu0 %v391
    %v1244 = vpop.f32.mrf.mxu0
    %v1245 = vadd.f32 %v1132, %v1244
    %1246 = vmatmul.f32.gmra.mxu0 %v407
    %v1247 = vpop.f32.mrf.mxu0
    %v1248 = vadd.f32 %v1135, %v1247
    %1249 = vmatmul.f32.gmra.mxu0 %v423
    %v1250 = vpop.f32.mrf.mxu0
    %v1251 = vadd.f32 %v1138, %v1250
    %1252 = vmatmul.f32.gmra.mxu0 %v439
    %v1253 = vpop.f32.mrf.mxu0
    %v1254 = vadd.f32 %v1141, %v1253
    %1255 = vmatmul.f32.gmra.mxu0 %v455
    %v1256 = vpop.f32.mrf.mxu0
    %v1257 = vadd.f32 %v1144, %v1256
    %1258 = vmatmul.f32.gmra.mxu0 %v471
    %v1259 = vpop.f32.mrf.mxu0
    %v1260 = vadd.f32 %v1147, %v1259
    %1261 = vmatmul.f32.gmra.mxu0 %v487
    %v1262 = vpop.f32.mrf.mxu0
    %v1263 = vadd.f32 %v1150, %v1262
    %1264 = vmatmul.f32.gmra.mxu0 %v503
    %v1265 = vpop.f32.mrf.mxu0
    %v1266 = vadd.f32 %v1153, %v1265
    %1267 = vmatmul.f32.gmra.mxu0 %v519
    %v1268 = vpop.f32.mrf.mxu0
    %v1269 = vadd.f32 %v1156, %v1268
    %1270 = vmatmul.f32.gmra.mxu0 %v535
    %v1271 = vpop.f32.mrf.mxu0
    %v1272 = vadd.f32 %v1159, %v1271
    %1273 = vmatmul.f32.gmra.mxu0 %v551
    %v1274 = vpop.f32.mrf.mxu0
    %v1275 = vadd.f32 %v1162, %v1274
    %1276 = vmatmul.f32.gmra.mxu0 %v567
    %v1277 = vpop.f32.mrf.mxu0
    %v1278 = vadd.f32 %v1165, %v1277
    %1279 = vmatmul.f32.gmra.mxu0 %v583
    %v1280 = vpop.f32.mrf.mxu0
    %v1281 = vadd.f32 %v1168, %v1280
    %1282 = vmatmul.f32.gmra.mxu0 %v599
    %v1283 = vpop.f32.mrf.mxu0
    %v1284 = vadd.f32 %v1171, %v1283
    %1285 = vmatmul.f32.gmra.mxu0 %v615
    %v1286 = vpop.f32.mrf.mxu0
    %v1287 = vadd.f32 %v1174, %v1286
    %1288 = vmatmul.f32.gmra.mxu0 %v631
    %v1289 = vpop.f32.mrf.mxu0
    %v1290 = vadd.f32 %v1177, %v1289
    %1291 = vmatmul.f32.gmra.mxu0 %v647
    %v1292 = vpop.f32.mrf.mxu0
    %v1293 = vadd.f32 %v1180, %v1292
    %1294 = vmatmul.f32.gmra.mxu0 %v663
    %v1295 = vpop.f32.mrf.mxu0
    %v1296 = vadd.f32 %v1183, %v1295
    %1297 = vmatmul.f32.gmra.mxu0 %v679
    %v1298 = vpop.f32.mrf.mxu0
    %v1299 = vadd.f32 %v1186, %v1298
    %1300 = vmatmul.f32.gmra.mxu0 %v695
    %v1301 = vpop.f32.mrf.mxu0
    %v1302 = vadd.f32 %v1189, %v1301
    %1303 = vdwg.mxu0
    %1304 = vmatpush.msra.mxu0 %v772
    %1305 = vmatpush.msra.mxu0 %v771
    %1306 = vmatpush.msra.mxu0 %v770
    %1307 = vmatpush.msra.mxu0 %v769
    %1308 = vmatpush.msra.mxu0 %v768
    %1309 = vmatpush.msra.mxu0 %v767
    %1310 = vmatpush.msra.mxu0 %v766
    %1311 = vmatpush.msra.mxu0 %v765
    %1312 = vmatpush.msra.mxu0 %v764
    %1313 = vmatpush.msra.mxu0 %v763
    %1314 = vmatpush.msra.mxu0 %v762
    %1315 = vmatpush.msra.mxu0 %v761
    %1316 = vmatpush.msra.mxu0 %v760
    %1317 = vmatpush.msra.mxu0 %v759
    %1318 = vmatpush.msra.mxu0 %v758
    %1319 = vmatpush.msra.mxu0 %v757
    %1320 = vmatmul.f32.gmra.mxu0 %v200
    %v1321 = vpop.f32.mrf.mxu0
    %v1322 = vadd.f32 %v1209, %v1321
    %1323 = vmatmul.f32.gmra.mxu0 %v216
    %v1324 = vpop.f32.mrf.mxu0
    %v1325 = vadd.f32 %v1212, %v1324
    %1326 = vmatmul.f32.gmra.mxu0 %v232
    %v1327 = vpop.f32.mrf.mxu0
    %v1328 = vadd.f32 %v1215, %v1327
    %1329 = vmatmul.f32.gmra.mxu0 %v248
    %v1330 = vpop.f32.mrf.mxu0
    %v1331 = vadd.f32 %v1218, %v1330
    %1332 = vmatmul.f32.gmra.mxu0 %v264
    %v1333 = vpop.f32.mrf.mxu0
    %v1334 = vadd.f32 %v1221, %v1333
    %1335 = vmatmul.f32.gmra.mxu0 %v280
    %v1336 = vpop.f32.mrf.mxu0
    %v1337 = vadd.f32 %v1224, %v1336
    %1338 = vmatmul.f32.gmra.mxu0 %v296
    %v1339 = vpop.f32.mrf.mxu0
    %v1340 = vadd.f32 %v1227, %v1339
    %1341 = vmatmul.f32.gmra.mxu0 %v312
    %v1342 = vpop.f32.mrf.mxu0
    %v1343 = vadd.f32 %v1230, %v1342
    %1344 = vmatmul.f32.gmra.mxu0 %v328
    %v1345 = vpop.f32.mrf.mxu0
    %v1346 = vadd.f32 %v1233, %v1345
    %1347 = vmatmul.f32.gmra.mxu0 %v344
    %v1348 = vpop.f32.mrf.mxu0
    %v1349 = vadd.f32 %v1236, %v1348
    %1350 = vmatmul.f32.gmra.mxu0 %v360
    %v1351 = vpop.f32.mrf.mxu0
    %v1352 = vadd.f32 %v1239, %v1351
    %1353 = vmatmul.f32.gmra.mxu0 %v376
    %v1354 = vpop.f32.mrf.mxu0
    %v1355 = vadd.f32 %v1242, %v1354
    %1356 = vmatmul.f32.gmra.mxu0 %v392
    %v1357 = vpop.f32.mrf.mxu0
    %v1358 = vadd.f32 %v1245, %v1357
    %1359 = vmatmul.f32.gmra.mxu0 %v408
    %v1360 = vpop.f32.mrf.mxu0
    %v1361 = vadd.f32 %v1248, %v1360
    %1362 = vmatmul.f32.gmra.mxu0 %v424
    %v1363 = vpop.f32.mrf.mxu0
    %v1364 = vadd.f32 %v1251, %v1363
    %1365 = vmatmul.f32.gmra.mxu0 %v440
    %v1366 = vpop.f32.mrf.mxu0
    %v1367 = vadd.f32 %v1254, %v1366
    %1368 = vmatmul.f32.gmra.mxu0 %v456
    %v1369 = vpop.f32.mrf.mxu0
    %v1370 = vadd.f32 %v1257, %v1369
    %1371 = vmatmul.f32.gmra.mxu0 %v472
    %v1372 = vpop.f32.mrf.mxu0
    %v1373 = vadd.f32 %v1260, %v1372
    %1374 = vmatmul.f32.gmra.mxu0 %v488
    %v1375 = vpop.f32.mrf.mxu0
    %v1376 = vadd.f32 %v1263, %v1375
    %1377 = vmatmul.f32.gmra.mxu0 %v504
    %v1378 = vpop.f32.mrf.mxu0
    %v1379 = vadd.f32 %v1266, %v1378
    %1380 = vmatmul.f32.gmra.mxu0 %v520
    %v1381 = vpop.f32.mrf.mxu0
    %v1382 = vadd.f32 %v1269, %v1381
    %1383 = vmatmul.f32.gmra.mxu0 %v536
    %v1384 = vpop.f32.mrf.mxu0
    %v1385 = vadd.f32 %v1272, %v1384
    %1386 = vmatmul.f32.gmra.mxu0 %v552
    %v1387 = vpop.f32.mrf.mxu0
    %v1388 = vadd.f32 %v1275, %v1387
    %1389 = vmatmul.f32.gmra.mxu0 %v568
    %v1390 = vpop.f32.mrf.mxu0
    %v1391 = vadd.f32 %v1278, %v1390
    %1392 = vmatmul.f32.gmra.mxu0 %v584
    %v1393 = vpop.f32.mrf.mxu0
    %v1394 = vadd.f32 %v1281, %v1393
    %1395 = vmatmul.f32.gmra.mxu0 %v600
    %v1396 = vpop.f32.mrf.mxu0
    %v1397 = vadd.f32 %v1284, %v1396
    %1398 = vmatmul.f32.gmra.mxu0 %v616
    %v1399 = vpop.f32.mrf.mxu0
    %v1400 = vadd.f32 %v1287, %v1399
    %1401 = vmatmul.f32.gmra.mxu0 %v632
    %v1402 = vpop.f32.mrf.mxu0
    %v1403 = vadd.f32 %v1290, %v1402
    %1404 = vmatmul.f32.gmra.mxu0 %v648
    %v1405 = vpop.f32.mrf.mxu0
    %v1406 = vadd.f32 %v1293, %v1405
    %1407 = vmatmul.f32.gmra.mxu0 %v664
    %v1408 = vpop.f32.mrf.mxu0
    %v1409 = vadd.f32 %v1296, %v1408
    %1410 = vmatmul.f32.gmra.mxu0 %v680
    %v1411 = vpop.f32.mrf.mxu0
    %v1412 = vadd.f32 %v1299, %v1411
    %1413 = vmatmul.f32.gmra.mxu0 %v696
    %v1414 = vpop.f32.mrf.mxu0
    %v1415 = vadd.f32 %v1302, %v1414
    %1416 = vdwg.mxu0
    %1417 = vmatpush.msra.mxu0 %v788
    %1418 = vmatpush.msra.mxu0 %v787
    %1419 = vmatpush.msra.mxu0 %v786
    %1420 = vmatpush.msra.mxu0 %v785
    %1421 = vmatpush.msra.mxu0 %v784
    %1422 = vmatpush.msra.mxu0 %v783
    %1423 = vmatpush.msra.mxu0 %v782
    %1424 = vmatpush.msra.mxu0 %v781
    %1425 = vmatpush.msra.mxu0 %v780
    %1426 = vmatpush.msra.mxu0 %v779
    %1427 = vmatpush.msra.mxu0 %v778
    %1428 = vmatpush.msra.mxu0 %v777
    %1429 = vmatpush.msra.mxu0 %v776
    %1430 = vmatpush.msra.mxu0 %v775
    %1431 = vmatpush.msra.mxu0 %v774
    %1432 = vmatpush.msra.mxu0 %v773
    %1433 = vmatmul.f32.gmra.mxu0 %v201
    %v1434 = vpop.f32.mrf.mxu0
    %v1435 = vadd.f32 %v1322, %v1434
    %1436 = vmatmul.f32.gmra.mxu0 %v217
    %v1437 = vpop.f32.mrf.mxu0
    %v1438 = vadd.f32 %v1325, %v1437
    %1439 = vmatmul.f32.gmra.mxu0 %v233
    %v1440 = vpop.f32.mrf.mxu0
    %v1441 = vadd.f32 %v1328, %v1440
    %1442 = vmatmul.f32.gmra.mxu0 %v249
    %v1443 = vpop.f32.mrf.mxu0
    %v1444 = vadd.f32 %v1331, %v1443
    %1445 = vmatmul.f32.gmra.mxu0 %v265
    %v1446 = vpop.f32.mrf.mxu0
    %v1447 = vadd.f32 %v1334, %v1446
    %1448 = vmatmul.f32.gmra.mxu0 %v281
    %v1449 = vpop.f32.mrf.mxu0
    %v1450 = vadd.f32 %v1337, %v1449
    %1451 = vmatmul.f32.gmra.mxu0 %v297
    %v1452 = vpop.f32.mrf.mxu0
    %v1453 = vadd.f32 %v1340, %v1452
    %1454 = vmatmul.f32.gmra.mxu0 %v313
    %v1455 = vpop.f32.mrf.mxu0
    %v1456 = vadd.f32 %v1343, %v1455
    %1457 = vmatmul.f32.gmra.mxu0 %v329
    %v1458 = vpop.f32.mrf.mxu0
    %v1459 = vadd.f32 %v1346, %v1458
    %1460 = vmatmul.f32.gmra.mxu0 %v345
    %v1461 = vpop.f32.mrf.mxu0
    %v1462 = vadd.f32 %v1349, %v1461
    %1463 = vmatmul.f32.gmra.mxu0 %v361
    %v1464 = vpop.f32.mrf.mxu0
    %v1465 = vadd.f32 %v1352, %v1464
    %1466 = vmatmul.f32.gmra.mxu0 %v377
    %v1467 = vpop.f32.mrf.mxu0
    %v1468 = vadd.f32 %v1355, %v1467
    %1469 = vmatmul.f32.gmra.mxu0 %v393
    %v1470 = vpop.f32.mrf.mxu0
    %v1471 = vadd.f32 %v1358, %v1470
    %1472 = vmatmul.f32.gmra.mxu0 %v409
    %v1473 = vpop.f32.mrf.mxu0
    %v1474 = vadd.f32 %v1361, %v1473
    %1475 = vmatmul.f32.gmra.mxu0 %v425
    %v1476 = vpop.f32.mrf.mxu0
    %v1477 = vadd.f32 %v1364, %v1476
    %1478 = vmatmul.f32.gmra.mxu0 %v441
    %v1479 = vpop.f32.mrf.mxu0
    %v1480 = vadd.f32 %v1367, %v1479
    %1481 = vmatmul.f32.gmra.mxu0 %v457
    %v1482 = vpop.f32.mrf.mxu0
    %v1483 = vadd.f32 %v1370, %v1482
    %1484 = vmatmul.f32.gmra.mxu0 %v473
    %v1485 = vpop.f32.mrf.mxu0
    %v1486 = vadd.f32 %v1373, %v1485
    %1487 = vmatmul.f32.gmra.mxu0 %v489
    %v1488 = vpop.f32.mrf.mxu0
    %v1489 = vadd.f32 %v1376, %v1488
    %1490 = vmatmul.f32.gmra.mxu0 %v505
    %v1491 = vpop.f32.mrf.mxu0
    %v1492 = vadd.f32 %v1379, %v1491
    %1493 = vmatmul.f32.gmra.mxu0 %v521
    %v1494 = vpop.f32.mrf.mxu0
    %v1495 = vadd.f32 %v1382, %v1494
    %1496 = vmatmul.f32.gmra.mxu0 %v537
    %v1497 = vpop.f32.mrf.mxu0
    %v1498 = vadd.f32 %v1385, %v1497
    %1499 = vmatmul.f32.gmra.mxu0 %v553
    %v1500 = vpop.f32.mrf.mxu0
    %v1501 = vadd.f32 %v1388, %v1500
    %1502 = vmatmul.f32.gmra.mxu0 %v569
    %v1503 = vpop.f32.mrf.mxu0
    %v1504 = vadd.f32 %v1391, %v1503
    %1505 = vmatmul.f32.gmra.mxu0 %v585
    %v1506 = vpop.f32.mrf.mxu0
    %v1507 = vadd.f32 %v1394, %v1506
    %1508 = vmatmul.f32.gmra.mxu0 %v601
    %v1509 = vpop.f32.mrf.mxu0
    %v1510 = vadd.f32 %v1397, %v1509
    %1511 = vmatmul.f32.gmra.mxu0 %v617
    %v1512 = vpop.f32.mrf.mxu0
    %v1513 = vadd.f32 %v1400, %v1512
    %1514 = vmatmul.f32.gmra.mxu0 %v633
    %v1515 = vpop.f32.mrf.mxu0
    %v1516 = vadd.f32 %v1403, %v1515
    %1517 = vmatmul.f32.gmra.mxu0 %v649
    %v1518 = vpop.f32.mrf.mxu0
    %v1519 = vadd.f32 %v1406, %v1518
    %1520 = vmatmul.f32.gmra.mxu0 %v665
    %v1521 = vpop.f32.mrf.mxu0
    %v1522 = vadd.f32 %v1409, %v1521
    %1523 = vmatmul.f32.gmra.mxu0 %v681
    %v1524 = vpop.f32.mrf.mxu0
    %v1525 = vadd.f32 %v1412, %v1524
    %1526 = vmatmul.f32.gmra.mxu0 %v697
    %v1527 = vpop.f32.mrf.mxu0
    %v1528 = vadd.f32 %v1415, %v1527
    %1529 = vdwg.mxu0
    %1530 = vmatpush.msra.mxu0 %v804
    %1531 = vmatpush.msra.mxu0 %v803
    %1532 = vmatpush.msra.mxu0 %v802
    %1533 = vmatpush.msra.mxu0 %v801
    %1534 = vmatpush.msra.mxu0 %v800
    %1535 = vmatpush.msra.mxu0 %v799
    %1536 = vmatpush.msra.mxu0 %v798
    %1537 = vmatpush.msra.mxu0 %v797
    %1538 = vmatpush.msra.mxu0 %v796
    %1539 = vmatpush.msra.mxu0 %v795
    %1540 = vmatpush.msra.mxu0 %v794
    %1541 = vmatpush.msra.mxu0 %v793
    %1542 = vmatpush.msra.mxu0 %v792
    %1543 = vmatpush.msra.mxu0 %v791
    %1544 = vmatpush.msra.mxu0 %v790
    %1545 = vmatpush.msra.mxu0 %v789
    %1546 = vmatmul.f32.gmra.mxu0 %v202
    %v1547 = vpop.f32.mrf.mxu0
    %v1548 = vadd.f32 %v1435, %v1547
    %1549 = vmatmul.f32.gmra.mxu0 %v218
    %v1550 = vpop.f32.mrf.mxu0
    %v1551 = vadd.f32 %v1438, %v1550
    %1552 = vmatmul.f32.gmra.mxu0 %v234
    %v1553 = vpop.f32.mrf.mxu0
    %v1554 = vadd.f32 %v1441, %v1553
    %1555 = vmatmul.f32.gmra.mxu0 %v250
    %v1556 = vpop.f32.mrf.mxu0
    %v1557 = vadd.f32 %v1444, %v1556
    %1558 = vmatmul.f32.gmra.mxu0 %v266
    %v1559 = vpop.f32.mrf.mxu0
    %v1560 = vadd.f32 %v1447, %v1559
    %1561 = vmatmul.f32.gmra.mxu0 %v282
    %v1562 = vpop.f32.mrf.mxu0
    %v1563 = vadd.f32 %v1450, %v1562
    %1564 = vmatmul.f32.gmra.mxu0 %v298
    %v1565 = vpop.f32.mrf.mxu0
    %v1566 = vadd.f32 %v1453, %v1565
    %1567 = vmatmul.f32.gmra.mxu0 %v314
    %v1568 = vpop.f32.mrf.mxu0
    %v1569 = vadd.f32 %v1456, %v1568
    %1570 = vmatmul.f32.gmra.mxu0 %v330
    %v1571 = vpop.f32.mrf.mxu0
    %v1572 = vadd.f32 %v1459, %v1571
    %1573 = vmatmul.f32.gmra.mxu0 %v346
    %v1574 = vpop.f32.mrf.mxu0
    %v1575 = vadd.f32 %v1462, %v1574
    %1576 = vmatmul.f32.gmra.mxu0 %v362
    %v1577 = vpop.f32.mrf.mxu0
    %v1578 = vadd.f32 %v1465, %v1577
    %1579 = vmatmul.f32.gmra.mxu0 %v378
    %v1580 = vpop.f32.mrf.mxu0
    %v1581 = vadd.f32 %v1468, %v1580
    %1582 = vmatmul.f32.gmra.mxu0 %v394
    %v1583 = vpop.f32.mrf.mxu0
    %v1584 = vadd.f32 %v1471, %v1583
    %1585 = vmatmul.f32.gmra.mxu0 %v410
    %v1586 = vpop.f32.mrf.mxu0
    %v1587 = vadd.f32 %v1474, %v1586
    %1588 = vmatmul.f32.gmra.mxu0 %v426
    %v1589 = vpop.f32.mrf.mxu0
    %v1590 = vadd.f32 %v1477, %v1589
    %1591 = vmatmul.f32.gmra.mxu0 %v442
    %v1592 = vpop.f32.mrf.mxu0
    %v1593 = vadd.f32 %v1480, %v1592
    %1594 = vmatmul.f32.gmra.mxu0 %v458
    %v1595 = vpop.f32.mrf.mxu0
    %v1596 = vadd.f32 %v1483, %v1595
    %1597 = vmatmul.f32.gmra.mxu0 %v474
    %v1598 = vpop.f32.mrf.mxu0
    %v1599 = vadd.f32 %v1486, %v1598
    %1600 = vmatmul.f32.gmra.mxu0 %v490
    %v1601 = vpop.f32.mrf.mxu0
    %v1602 = vadd.f32 %v1489, %v1601
    %1603 = vmatmul.f32.gmra.mxu0 %v506
    %v1604 = vpop.f32.mrf.mxu0
    %v1605 = vadd.f32 %v1492, %v1604
    %1606 = vmatmul.f32.gmra.mxu0 %v522
    %v1607 = vpop.f32.mrf.mxu0
    %v1608 = vadd.f32 %v1495, %v1607
    %1609 = vmatmul.f32.gmra.mxu0 %v538
    %v1610 = vpop.f32.mrf.mxu0
    %v1611 = vadd.f32 %v1498, %v1610
    %1612 = vmatmul.f32.gmra.mxu0 %v554
    %v1613 = vpop.f32.mrf.mxu0
    %v1614 = vadd.f32 %v1501, %v1613
    %1615 = vmatmul.f32.gmra.mxu0 %v570
    %v1616 = vpop.f32.mrf.mxu0
    %v1617 = vadd.f32 %v1504, %v1616
    %1618 = vmatmul.f32.gmra.mxu0 %v586
    %v1619 = vpop.f32.mrf.mxu0
    %v1620 = vadd.f32 %v1507, %v1619
    %1621 = vmatmul.f32.gmra.mxu0 %v602
    %v1622 = vpop.f32.mrf.mxu0
    %v1623 = vadd.f32 %v1510, %v1622
    %1624 = vmatmul.f32.gmra.mxu0 %v618
    %v1625 = vpop.f32.mrf.mxu0
    %v1626 = vadd.f32 %v1513, %v1625
    %1627 = vmatmul.f32.gmra.mxu0 %v634
    %v1628 = vpop.f32.mrf.mxu0
    %v1629 = vadd.f32 %v1516, %v1628
    %1630 = vmatmul.f32.gmra.mxu0 %v650
    %v1631 = vpop.f32.mrf.mxu0
    %v1632 = vadd.f32 %v1519, %v1631
    %1633 = vmatmul.f32.gmra.mxu0 %v666
    %v1634 = vpop.f32.mrf.mxu0
    %v1635 = vadd.f32 %v1522, %v1634
    %1636 = vmatmul.f32.gmra.mxu0 %v682
    %v1637 = vpop.f32.mrf.mxu0
    %v1638 = vadd.f32 %v1525, %v1637
    %1639 = vmatmul.f32.gmra.mxu0 %v698
    %v1640 = vpop.f32.mrf.mxu0
    %v1641 = vadd.f32 %v1528, %v1640
    %1642 = vdwg.mxu0
    %1643 = vmatpush.msra.mxu0 %v820
    %1644 = vmatpush.msra.mxu0 %v819
    %1645 = vmatpush.msra.mxu0 %v818
    %1646 = vmatpush.msra.mxu0 %v817
    %1647 = vmatpush.msra.mxu0 %v816
    %1648 = vmatpush.msra.mxu0 %v815
    %1649 = vmatpush.msra.mxu0 %v814
    %1650 = vmatpush.msra.mxu0 %v813
    %1651 = vmatpush.msra.mxu0 %v812
    %1652 = vmatpush.msra.mxu0 %v811
    %1653 = vmatpush.msra.mxu0 %v810
    %1654 = vmatpush.msra.mxu0 %v809
    %1655 = vmatpush.msra.mxu0 %v808
    %1656 = vmatpush.msra.mxu0 %v807
    %1657 = vmatpush.msra.mxu0 %v806
    %1658 = vmatpush.msra.mxu0 %v805
    %1659 = vmatmul.f32.gmra.mxu0 %v203
    %v1660 = vpop.f32.mrf.mxu0
    %v1661 = vadd.f32 %v1548, %v1660
    %1662 = vmatmul.f32.gmra.mxu0 %v219
    %v1663 = vpop.f32.mrf.mxu0
    %v1664 = vadd.f32 %v1551, %v1663
    %1665 = vmatmul.f32.gmra.mxu0 %v235
    %v1666 = vpop.f32.mrf.mxu0
    %v1667 = vadd.f32 %v1554, %v1666
    %1668 = vmatmul.f32.gmra.mxu0 %v251
    %v1669 = vpop.f32.mrf.mxu0
    %v1670 = vadd.f32 %v1557, %v1669
    %1671 = vmatmul.f32.gmra.mxu0 %v267
    %v1672 = vpop.f32.mrf.mxu0
    %v1673 = vadd.f32 %v1560, %v1672
    %1674 = vmatmul.f32.gmra.mxu0 %v283
    %v1675 = vpop.f32.mrf.mxu0
    %v1676 = vadd.f32 %v1563, %v1675
    %1677 = vmatmul.f32.gmra.mxu0 %v299
    %v1678 = vpop.f32.mrf.mxu0
    %v1679 = vadd.f32 %v1566, %v1678
    %1680 = vmatmul.f32.gmra.mxu0 %v315
    %v1681 = vpop.f32.mrf.mxu0
    %v1682 = vadd.f32 %v1569, %v1681
    %1683 = vmatmul.f32.gmra.mxu0 %v331
    %v1684 = vpop.f32.mrf.mxu0
    %v1685 = vadd.f32 %v1572, %v1684
    %1686 = vmatmul.f32.gmra.mxu0 %v347
    %v1687 = vpop.f32.mrf.mxu0
    %v1688 = vadd.f32 %v1575, %v1687
    %1689 = vmatmul.f32.gmra.mxu0 %v363
    %v1690 = vpop.f32.mrf.mxu0
    %v1691 = vadd.f32 %v1578, %v1690
    %1692 = vmatmul.f32.gmra.mxu0 %v379
    %v1693 = vpop.f32.mrf.mxu0
    %v1694 = vadd.f32 %v1581, %v1693
    %1695 = vmatmul.f32.gmra.mxu0 %v395
    %v1696 = vpop.f32.mrf.mxu0
    %v1697 = vadd.f32 %v1584, %v1696
    %1698 = vmatmul.f32.gmra.mxu0 %v411
    %v1699 = vpop.f32.mrf.mxu0
    %v1700 = vadd.f32 %v1587, %v1699
    %1701 = vmatmul.f32.gmra.mxu0 %v427
    %v1702 = vpop.f32.mrf.mxu0
    %v1703 = vadd.f32 %v1590, %v1702
    %1704 = vmatmul.f32.gmra.mxu0 %v443
    %v1705 = vpop.f32.mrf.mxu0
    %v1706 = vadd.f32 %v1593, %v1705
    %1707 = vmatmul.f32.gmra.mxu0 %v459
    %v1708 = vpop.f32.mrf.mxu0
    %v1709 = vadd.f32 %v1596, %v1708
    %1710 = vmatmul.f32.gmra.mxu0 %v475
    %v1711 = vpop.f32.mrf.mxu0
    %v1712 = vadd.f32 %v1599, %v1711
    %1713 = vmatmul.f32.gmra.mxu0 %v491
    %v1714 = vpop.f32.mrf.mxu0
    %v1715 = vadd.f32 %v1602, %v1714
    %1716 = vmatmul.f32.gmra.mxu0 %v507
    %v1717 = vpop.f32.mrf.mxu0
    %v1718 = vadd.f32 %v1605, %v1717
    %1719 = vmatmul.f32.gmra.mxu0 %v523
    %v1720 = vpop.f32.mrf.mxu0
    %v1721 = vadd.f32 %v1608, %v1720
    %1722 = vmatmul.f32.gmra.mxu0 %v539
    %v1723 = vpop.f32.mrf.mxu0
    %v1724 = vadd.f32 %v1611, %v1723
    %1725 = vmatmul.f32.gmra.mxu0 %v555
    %v1726 = vpop.f32.mrf.mxu0
    %v1727 = vadd.f32 %v1614, %v1726
    %1728 = vmatmul.f32.gmra.mxu0 %v571
    %v1729 = vpop.f32.mrf.mxu0
    %v1730 = vadd.f32 %v1617, %v1729
    %1731 = vmatmul.f32.gmra.mxu0 %v587
    %v1732 = vpop.f32.mrf.mxu0
    %v1733 = vadd.f32 %v1620, %v1732
    %1734 = vmatmul.f32.gmra.mxu0 %v603
    %v1735 = vpop.f32.mrf.mxu0
    %v1736 = vadd.f32 %v1623, %v1735
    %1737 = vmatmul.f32.gmra.mxu0 %v619
    %v1738 = vpop.f32.mrf.mxu0
    %v1739 = vadd.f32 %v1626, %v1738
    %1740 = vmatmul.f32.gmra.mxu0 %v635
    %v1741 = vpop.f32.mrf.mxu0
    %v1742 = vadd.f32 %v1629, %v1741
    %1743 = vmatmul.f32.gmra.mxu0 %v651
    %v1744 = vpop.f32.mrf.mxu0
    %v1745 = vadd.f32 %v1632, %v1744
    %1746 = vmatmul.f32.gmra.mxu0 %v667
    %v1747 = vpop.f32.mrf.mxu0
    %v1748 = vadd.f32 %v1635, %v1747
    %1749 = vmatmul.f32.gmra.mxu0 %v683
    %v1750 = vpop.f32.mrf.mxu0
    %v1751 = vadd.f32 %v1638, %v1750
    %1752 = vmatmul.f32.gmra.mxu0 %v699
    %v1753 = vpop.f32.mrf.mxu0
    %v1754 = vadd.f32 %v1641, %v1753
    %1755 = vdwg.mxu0
    %1756 = vmatpush.msra.mxu0 %v836
    %1757 = vmatpush.msra.mxu0 %v835
    %1758 = vmatpush.msra.mxu0 %v834
    %1759 = vmatpush.msra.mxu0 %v833
    %1760 = vmatpush.msra.mxu0 %v832
    %1761 = vmatpush.msra.mxu0 %v831
    %1762 = vmatpush.msra.mxu0 %v830
    %1763 = vmatpush.msra.mxu0 %v829
    %1764 = vmatpush.msra.mxu0 %v828
    %1765 = vmatpush.msra.mxu0 %v827
    %1766 = vmatpush.msra.mxu0 %v826
    %1767 = vmatpush.msra.mxu0 %v825
    %1768 = vmatpush.msra.mxu0 %v824
    %1769 = vmatpush.msra.mxu0 %v823
    %1770 = vmatpush.msra.mxu0 %v822
    %1771 = vmatpush.msra.mxu0 %v821
    %1772 = vmatmul.f32.gmra.mxu0 %v204
    %v1773 = vpop.f32.mrf.mxu0
    %v1774 = vadd.f32 %v1661, %v1773
    %1775 = vmatmul.f32.gmra.mxu0 %v220
    %v1776 = vpop.f32.mrf.mxu0
    %v1777 = vadd.f32 %v1664, %v1776
    %1778 = vmatmul.f32.gmra.mxu0 %v236
    %v1779 = vpop.f32.mrf.mxu0
    %v1780 = vadd.f32 %v1667, %v1779
    %1781 = vmatmul.f32.gmra.mxu0 %v252
    %v1782 = vpop.f32.mrf.mxu0
    %v1783 = vadd.f32 %v1670, %v1782
    %1784 = vmatmul.f32.gmra.mxu0 %v268
    %v1785 = vpop.f32.mrf.mxu0
    %v1786 = vadd.f32 %v1673, %v1785
    %1787 = vmatmul.f32.gmra.mxu0 %v284
    %v1788 = vpop.f32.mrf.mxu0
    %v1789 = vadd.f32 %v1676, %v1788
    %1790 = vmatmul.f32.gmra.mxu0 %v300
    %v1791 = vpop.f32.mrf.mxu0
    %v1792 = vadd.f32 %v1679, %v1791
    %1793 = vmatmul.f32.gmra.mxu0 %v316
    %v1794 = vpop.f32.mrf.mxu0
    %v1795 = vadd.f32 %v1682, %v1794
    %1796 = vmatmul.f32.gmra.mxu0 %v332
    %v1797 = vpop.f32.mrf.mxu0
    %v1798 = vadd.f32 %v1685, %v1797
    %1799 = vmatmul.f32.gmra.mxu0 %v348
    %v1800 = vpop.f32.mrf.mxu0
    %v1801 = vadd.f32 %v1688, %v1800
    %1802 = vmatmul.f32.gmra.mxu0 %v364
    %v1803 = vpop.f32.mrf.mxu0
    %v1804 = vadd.f32 %v1691, %v1803
    %1805 = vmatmul.f32.gmra.mxu0 %v380
    %v1806 = vpop.f32.mrf.mxu0
    %v1807 = vadd.f32 %v1694, %v1806
    %1808 = vmatmul.f32.gmra.mxu0 %v396
    %v1809 = vpop.f32.mrf.mxu0
    %v1810 = vadd.f32 %v1697, %v1809
    %1811 = vmatmul.f32.gmra.mxu0 %v412
    %v1812 = vpop.f32.mrf.mxu0
    %v1813 = vadd.f32 %v1700, %v1812
    %1814 = vmatmul.f32.gmra.mxu0 %v428
    %v1815 = vpop.f32.mrf.mxu0
    %v1816 = vadd.f32 %v1703, %v1815
    %1817 = vmatmul.f32.gmra.mxu0 %v444
    %v1818 = vpop.f32.mrf.mxu0
    %v1819 = vadd.f32 %v1706, %v1818
    %1820 = vmatmul.f32.gmra.mxu0 %v460
    %v1821 = vpop.f32.mrf.mxu0
    %v1822 = vadd.f32 %v1709, %v1821
    %1823 = vmatmul.f32.gmra.mxu0 %v476
    %v1824 = vpop.f32.mrf.mxu0
    %v1825 = vadd.f32 %v1712, %v1824
    %1826 = vmatmul.f32.gmra.mxu0 %v492
    %v1827 = vpop.f32.mrf.mxu0
    %v1828 = vadd.f32 %v1715, %v1827
    %1829 = vmatmul.f32.gmra.mxu0 %v508
    %v1830 = vpop.f32.mrf.mxu0
    %v1831 = vadd.f32 %v1718, %v1830
    %1832 = vmatmul.f32.gmra.mxu0 %v524
    %v1833 = vpop.f32.mrf.mxu0
    %v1834 = vadd.f32 %v1721, %v1833
    %1835 = vmatmul.f32.gmra.mxu0 %v540
    %v1836 = vpop.f32.mrf.mxu0
    %v1837 = vadd.f32 %v1724, %v1836
    %1838 = vmatmul.f32.gmra.mxu0 %v556
    %v1839 = vpop.f32.mrf.mxu0
    %v1840 = vadd.f32 %v1727, %v1839
    %1841 = vmatmul.f32.gmra.mxu0 %v572
    %v1842 = vpop.f32.mrf.mxu0
    %v1843 = vadd.f32 %v1730, %v1842
    %1844 = vmatmul.f32.gmra.mxu0 %v588
    %v1845 = vpop.f32.mrf.mxu0
    %v1846 = vadd.f32 %v1733, %v1845
    %1847 = vmatmul.f32.gmra.mxu0 %v604
    %v1848 = vpop.f32.mrf.mxu0
    %v1849 = vadd.f32 %v1736, %v1848
    %1850 = vmatmul.f32.gmra.mxu0 %v620
    %v1851 = vpop.f32.mrf.mxu0
    %v1852 = vadd.f32 %v1739, %v1851
    %1853 = vmatmul.f32.gmra.mxu0 %v636
    %v1854 = vpop.f32.mrf.mxu0
    %v1855 = vadd.f32 %v1742, %v1854
    %1856 = vmatmul.f32.gmra.mxu0 %v652
    %v1857 = vpop.f32.mrf.mxu0
    %v1858 = vadd.f32 %v1745, %v1857
    %1859 = vmatmul.f32.gmra.mxu0 %v668
    %v1860 = vpop.f32.mrf.mxu0
    %v1861 = vadd.f32 %v1748, %v1860
    %1862 = vmatmul.f32.gmra.mxu0 %v684
    %v1863 = vpop.f32.mrf.mxu0
    %v1864 = vadd.f32 %v1751, %v1863
    %1865 = vmatmul.f32.gmra.mxu0 %v700
    %v1866 = vpop.f32.mrf.mxu0
    %v1867 = vadd.f32 %v1754, %v1866
    %1868 = vdwg.mxu0
    %1869 = vmatpush.msra.mxu0 %v852
    %1870 = vmatpush.msra.mxu0 %v851
    %1871 = vmatpush.msra.mxu0 %v850
    %1872 = vmatpush.msra.mxu0 %v849
    %1873 = vmatpush.msra.mxu0 %v848
    %1874 = vmatpush.msra.mxu0 %v847
    %1875 = vmatpush.msra.mxu0 %v846
    %1876 = vmatpush.msra.mxu0 %v845
    %1877 = vmatpush.msra.mxu0 %v844
    %1878 = vmatpush.msra.mxu0 %v843
    %1879 = vmatpush.msra.mxu0 %v842
    %1880 = vmatpush.msra.mxu0 %v841
    %1881 = vmatpush.msra.mxu0 %v840
    %1882 = vmatpush.msra.mxu0 %v839
    %1883 = vmatpush.msra.mxu0 %v838
    %1884 = vmatpush.msra.mxu0 %v837
    %1885 = vmatmul.f32.gmra.mxu0 %v205
    %v1886 = vpop.f32.mrf.mxu0
    %v1887 = vadd.f32 %v1774, %v1886
    %1888 = vmatmul.f32.gmra.mxu0 %v221
    %v1889 = vpop.f32.mrf.mxu0
    %v1890 = vadd.f32 %v1777, %v1889
    %1891 = vmatmul.f32.gmra.mxu0 %v237
    %v1892 = vpop.f32.mrf.mxu0
    %v1893 = vadd.f32 %v1780, %v1892
    %1894 = vmatmul.f32.gmra.mxu0 %v253
    %v1895 = vpop.f32.mrf.mxu0
    %v1896 = vadd.f32 %v1783, %v1895
    %1897 = vmatmul.f32.gmra.mxu0 %v269
    %v1898 = vpop.f32.mrf.mxu0
    %v1899 = vadd.f32 %v1786, %v1898
    %1900 = vmatmul.f32.gmra.mxu0 %v285
    %v1901 = vpop.f32.mrf.mxu0
    %v1902 = vadd.f32 %v1789, %v1901
    %1903 = vmatmul.f32.gmra.mxu0 %v301
    %v1904 = vpop.f32.mrf.mxu0
    %v1905 = vadd.f32 %v1792, %v1904
    %1906 = vmatmul.f32.gmra.mxu0 %v317
    %v1907 = vpop.f32.mrf.mxu0
    %v1908 = vadd.f32 %v1795, %v1907
    %1909 = vmatmul.f32.gmra.mxu0 %v333
    %v1910 = vpop.f32.mrf.mxu0
    %v1911 = vadd.f32 %v1798, %v1910
    %1912 = vmatmul.f32.gmra.mxu0 %v349
    %v1913 = vpop.f32.mrf.mxu0
    %v1914 = vadd.f32 %v1801, %v1913
    %1915 = vmatmul.f32.gmra.mxu0 %v365
    %v1916 = vpop.f32.mrf.mxu0
    %v1917 = vadd.f32 %v1804, %v1916
    %1918 = vmatmul.f32.gmra.mxu0 %v381
    %v1919 = vpop.f32.mrf.mxu0
    %v1920 = vadd.f32 %v1807, %v1919
    %1921 = vmatmul.f32.gmra.mxu0 %v397
    %v1922 = vpop.f32.mrf.mxu0
    %v1923 = vadd.f32 %v1810, %v1922
    %1924 = vmatmul.f32.gmra.mxu0 %v413
    %v1925 = vpop.f32.mrf.mxu0
    %v1926 = vadd.f32 %v1813, %v1925
    %1927 = vmatmul.f32.gmra.mxu0 %v429
    %v1928 = vpop.f32.mrf.mxu0
    %v1929 = vadd.f32 %v1816, %v1928
    %1930 = vmatmul.f32.gmra.mxu0 %v445
    %v1931 = vpop.f32.mrf.mxu0
    %v1932 = vadd.f32 %v1819, %v1931
    %1933 = vmatmul.f32.gmra.mxu0 %v461
    %v1934 = vpop.f32.mrf.mxu0
    %v1935 = vadd.f32 %v1822, %v1934
    %1936 = vmatmul.f32.gmra.mxu0 %v477
    %v1937 = vpop.f32.mrf.mxu0
    %v1938 = vadd.f32 %v1825, %v1937
    %1939 = vmatmul.f32.gmra.mxu0 %v493
    %v1940 = vpop.f32.mrf.mxu0
    %v1941 = vadd.f32 %v1828, %v1940
    %1942 = vmatmul.f32.gmra.mxu0 %v509
    %v1943 = vpop.f32.mrf.mxu0
    %v1944 = vadd.f32 %v1831, %v1943
    %1945 = vmatmul.f32.gmra.mxu0 %v525
    %v1946 = vpop.f32.mrf.mxu0
    %v1947 = vadd.f32 %v1834, %v1946
    %1948 = vmatmul.f32.gmra.mxu0 %v541
    %v1949 = vpop.f32.mrf.mxu0
    %v1950 = vadd.f32 %v1837, %v1949
    %1951 = vmatmul.f32.gmra.mxu0 %v557
    %v1952 = vpop.f32.mrf.mxu0
    %v1953 = vadd.f32 %v1840, %v1952
    %1954 = vmatmul.f32.gmra.mxu0 %v573
    %v1955 = vpop.f32.mrf.mxu0
    %v1956 = vadd.f32 %v1843, %v1955
    %1957 = vmatmul.f32.gmra.mxu0 %v589
    %v1958 = vpop.f32.mrf.mxu0
    %v1959 = vadd.f32 %v1846, %v1958
    %1960 = vmatmul.f32.gmra.mxu0 %v605
    %v1961 = vpop.f32.mrf.mxu0
    %v1962 = vadd.f32 %v1849, %v1961
    %1963 = vmatmul.f32.gmra.mxu0 %v621
    %v1964 = vpop.f32.mrf.mxu0
    %v1965 = vadd.f32 %v1852, %v1964
    %1966 = vmatmul.f32.gmra.mxu0 %v637
    %v1967 = vpop.f32.mrf.mxu0
    %v1968 = vadd.f32 %v1855, %v1967
    %1969 = vmatmul.f32.gmra.mxu0 %v653
    %v1970 = vpop.f32.mrf.mxu0
    %v1971 = vadd.f32 %v1858, %v1970
    %1972 = vmatmul.f32.gmra.mxu0 %v669
    %v1973 = vpop.f32.mrf.mxu0
    %v1974 = vadd.f32 %v1861, %v1973
    %1975 = vmatmul.f32.gmra.mxu0 %v685
    %v1976 = vpop.f32.mrf.mxu0
    %v1977 = vadd.f32 %v1864, %v1976
    %1978 = vmatmul.f32.gmra.mxu0 %v701
    %v1979 = vpop.f32.mrf.mxu0
    %v1980 = vadd.f32 %v1867, %v1979
    %1981 = vdwg.mxu0
    %1982 = vmatpush.msra.mxu0 %v868
    %1983 = vmatpush.msra.mxu0 %v867
    %1984 = vmatpush.msra.mxu0 %v866
    %1985 = vmatpush.msra.mxu0 %v865
    %1986 = vmatpush.msra.mxu0 %v864
    %1987 = vmatpush.msra.mxu0 %v863
    %1988 = vmatpush.msra.mxu0 %v862
    %1989 = vmatpush.msra.mxu0 %v861
    %1990 = vmatpush.msra.mxu0 %v860
    %1991 = vmatpush.msra.mxu0 %v859
    %1992 = vmatpush.msra.mxu0 %v858
    %1993 = vmatpush.msra.mxu0 %v857
    %1994 = vmatpush.msra.mxu0 %v856
    %1995 = vmatpush.msra.mxu0 %v855
    %1996 = vmatpush.msra.mxu0 %v854
    %1997 = vmatpush.msra.mxu0 %v853
    %1998 = vmatmul.f32.gmra.mxu0 %v206
    %v1999 = vpop.f32.mrf.mxu0
    %v2000 = vadd.f32 %v1887, %v1999
    %2001 = vmatmul.f32.gmra.mxu0 %v222
    %v2002 = vpop.f32.mrf.mxu0
    %v2003 = vadd.f32 %v1890, %v2002
    %2004 = vmatmul.f32.gmra.mxu0 %v238
    %v2005 = vpop.f32.mrf.mxu0
    %v2006 = vadd.f32 %v1893, %v2005
    %2007 = vmatmul.f32.gmra.mxu0 %v254
    %v2008 = vpop.f32.mrf.mxu0
    %v2009 = vadd.f32 %v1896, %v2008
    %2010 = vmatmul.f32.gmra.mxu0 %v270
    %v2011 = vpop.f32.mrf.mxu0
    %v2012 = vadd.f32 %v1899, %v2011
    %2013 = vmatmul.f32.gmra.mxu0 %v286
    %v2014 = vpop.f32.mrf.mxu0
    %v2015 = vadd.f32 %v1902, %v2014
    %2016 = vmatmul.f32.gmra.mxu0 %v302
    %v2017 = vpop.f32.mrf.mxu0
    %v2018 = vadd.f32 %v1905, %v2017
    %2019 = vmatmul.f32.gmra.mxu0 %v318
    %v2020 = vpop.f32.mrf.mxu0
    %v2021 = vadd.f32 %v1908, %v2020
    %2022 = vmatmul.f32.gmra.mxu0 %v334
    %v2023 = vpop.f32.mrf.mxu0
    %v2024 = vadd.f32 %v1911, %v2023
    %2025 = vmatmul.f32.gmra.mxu0 %v350
    %v2026 = vpop.f32.mrf.mxu0
    %v2027 = vadd.f32 %v1914, %v2026
    %2028 = vmatmul.f32.gmra.mxu0 %v366
    %v2029 = vpop.f32.mrf.mxu0
    %v2030 = vadd.f32 %v1917, %v2029
    %2031 = vmatmul.f32.gmra.mxu0 %v382
    %v2032 = vpop.f32.mrf.mxu0
    %v2033 = vadd.f32 %v1920, %v2032
    %2034 = vmatmul.f32.gmra.mxu0 %v398
    %v2035 = vpop.f32.mrf.mxu0
    %v2036 = vadd.f32 %v1923, %v2035
    %2037 = vmatmul.f32.gmra.mxu0 %v414
    %v2038 = vpop.f32.mrf.mxu0
    %v2039 = vadd.f32 %v1926, %v2038
    %2040 = vmatmul.f32.gmra.mxu0 %v430
    %v2041 = vpop.f32.mrf.mxu0
    %v2042 = vadd.f32 %v1929, %v2041
    %2043 = vmatmul.f32.gmra.mxu0 %v446
    %v2044 = vpop.f32.mrf.mxu0
    %v2045 = vadd.f32 %v1932, %v2044
    %2046 = vmatmul.f32.gmra.mxu0 %v462
    %v2047 = vpop.f32.mrf.mxu0
    %v2048 = vadd.f32 %v1935, %v2047
    %2049 = vmatmul.f32.gmra.mxu0 %v478
    %v2050 = vpop.f32.mrf.mxu0
    %v2051 = vadd.f32 %v1938, %v2050
    %2052 = vmatmul.f32.gmra.mxu0 %v494
    %v2053 = vpop.f32.mrf.mxu0
    %v2054 = vadd.f32 %v1941, %v2053
    %2055 = vmatmul.f32.gmra.mxu0 %v510
    %v2056 = vpop.f32.mrf.mxu0
    %v2057 = vadd.f32 %v1944, %v2056
    %2058 = vmatmul.f32.gmra.mxu0 %v526
    %v2059 = vpop.f32.mrf.mxu0
    %v2060 = vadd.f32 %v1947, %v2059
    %2061 = vmatmul.f32.gmra.mxu0 %v542
    %v2062 = vpop.f32.mrf.mxu0
    %v2063 = vadd.f32 %v1950, %v2062
    %2064 = vmatmul.f32.gmra.mxu0 %v558
    %v2065 = vpop.f32.mrf.mxu0
    %v2066 = vadd.f32 %v1953, %v2065
    %2067 = vmatmul.f32.gmra.mxu0 %v574
    %v2068 = vpop.f32.mrf.mxu0
    %v2069 = vadd.f32 %v1956, %v2068
    %2070 = vmatmul.f32.gmra.mxu0 %v590
    %v2071 = vpop.f32.mrf.mxu0
    %v2072 = vadd.f32 %v1959, %v2071
    %2073 = vmatmul.f32.gmra.mxu0 %v606
    %v2074 = vpop.f32.mrf.mxu0
    %v2075 = vadd.f32 %v1962, %v2074
    %2076 = vmatmul.f32.gmra.mxu0 %v622
    %v2077 = vpop.f32.mrf.mxu0
    %v2078 = vadd.f32 %v1965, %v2077
    %2079 = vmatmul.f32.gmra.mxu0 %v638
    %v2080 = vpop.f32.mrf.mxu0
    %v2081 = vadd.f32 %v1968, %v2080
    %2082 = vmatmul.f32.gmra.mxu0 %v654
    %v2083 = vpop.f32.mrf.mxu0
    %v2084 = vadd.f32 %v1971, %v2083
    %2085 = vmatmul.f32.gmra.mxu0 %v670
    %v2086 = vpop.f32.mrf.mxu0
    %v2087 = vadd.f32 %v1974, %v2086
    %2088 = vmatmul.f32.gmra.mxu0 %v686
    %v2089 = vpop.f32.mrf.mxu0
    %v2090 = vadd.f32 %v1977, %v2089
    %2091 = vmatmul.f32.gmra.mxu0 %v702
    %v2092 = vpop.f32.mrf.mxu0
    %v2093 = vadd.f32 %v1980, %v2092
    %2094 = vdwg.mxu0
    %2095 = vmatpush.msra.mxu0 %v884
    %2096 = vmatpush.msra.mxu0 %v883
    %2097 = vmatpush.msra.mxu0 %v882
    %2098 = vmatpush.msra.mxu0 %v881
    %2099 = vmatpush.msra.mxu0 %v880
    %2100 = vmatpush.msra.mxu0 %v879
    %2101 = vmatpush.msra.mxu0 %v878
    %2102 = vmatpush.msra.mxu0 %v877
    %2103 = vmatpush.msra.mxu0 %v876
    %2104 = vmatpush.msra.mxu0 %v875
    %2105 = vmatpush.msra.mxu0 %v874
    %2106 = vmatpush.msra.mxu0 %v873
    %2107 = vmatpush.msra.mxu0 %v872
    %2108 = vmatpush.msra.mxu0 %v871
    %2109 = vmatpush.msra.mxu0 %v870
    %2110 = vmatpush.msra.mxu0 %v869
    %2111 = vmatmul.f32.gmra.mxu0 %v207
    %v2112 = vpop.f32.mrf.mxu0
    %v2113 = vadd.f32 %v2000, %v2112
    %2114 = vmatmul.f32.gmra.mxu0 %v223
    %v2115 = vpop.f32.mrf.mxu0
    %v2116 = vadd.f32 %v2003, %v2115
    %2117 = vmatmul.f32.gmra.mxu0 %v239
    %v2118 = vpop.f32.mrf.mxu0
    %v2119 = vadd.f32 %v2006, %v2118
    %2120 = vmatmul.f32.gmra.mxu0 %v255
    %v2121 = vpop.f32.mrf.mxu0
    %v2122 = vadd.f32 %v2009, %v2121
    %2123 = vmatmul.f32.gmra.mxu0 %v271
    %v2124 = vpop.f32.mrf.mxu0
    %v2125 = vadd.f32 %v2012, %v2124
    %2126 = vmatmul.f32.gmra.mxu0 %v287
    %v2127 = vpop.f32.mrf.mxu0
    %v2128 = vadd.f32 %v2015, %v2127
    %2129 = vmatmul.f32.gmra.mxu0 %v303
    %v2130 = vpop.f32.mrf.mxu0
    %v2131 = vadd.f32 %v2018, %v2130
    %2132 = vmatmul.f32.gmra.mxu0 %v319
    %v2133 = vpop.f32.mrf.mxu0
    %v2134 = vadd.f32 %v2021, %v2133
    %2135 = vmatmul.f32.gmra.mxu0 %v335
    %v2136 = vpop.f32.mrf.mxu0
    %v2137 = vadd.f32 %v2024, %v2136
    %2138 = vmatmul.f32.gmra.mxu0 %v351
    %v2139 = vpop.f32.mrf.mxu0
    %v2140 = vadd.f32 %v2027, %v2139
    %2141 = vmatmul.f32.gmra.mxu0 %v367
    %v2142 = vpop.f32.mrf.mxu0
    %v2143 = vadd.f32 %v2030, %v2142
    %2144 = vmatmul.f32.gmra.mxu0 %v383
    %v2145 = vpop.f32.mrf.mxu0
    %v2146 = vadd.f32 %v2033, %v2145
    %2147 = vmatmul.f32.gmra.mxu0 %v399
    %v2148 = vpop.f32.mrf.mxu0
    %v2149 = vadd.f32 %v2036, %v2148
    %2150 = vmatmul.f32.gmra.mxu0 %v415
    %v2151 = vpop.f32.mrf.mxu0
    %v2152 = vadd.f32 %v2039, %v2151
    %2153 = vmatmul.f32.gmra.mxu0 %v431
    %v2154 = vpop.f32.mrf.mxu0
    %v2155 = vadd.f32 %v2042, %v2154
    %2156 = vmatmul.f32.gmra.mxu0 %v447
    %v2157 = vpop.f32.mrf.mxu0
    %v2158 = vadd.f32 %v2045, %v2157
    %2159 = vmatmul.f32.gmra.mxu0 %v463
    %v2160 = vpop.f32.mrf.mxu0
    %v2161 = vadd.f32 %v2048, %v2160
    %2162 = vmatmul.f32.gmra.mxu0 %v479
    %v2163 = vpop.f32.mrf.mxu0
    %v2164 = vadd.f32 %v2051, %v2163
    %2165 = vmatmul.f32.gmra.mxu0 %v495
    %v2166 = vpop.f32.mrf.mxu0
    %v2167 = vadd.f32 %v2054, %v2166
    %2168 = vmatmul.f32.gmra.mxu0 %v511
    %v2169 = vpop.f32.mrf.mxu0
    %v2170 = vadd.f32 %v2057, %v2169
    %2171 = vmatmul.f32.gmra.mxu0 %v527
    %v2172 = vpop.f32.mrf.mxu0
    %v2173 = vadd.f32 %v2060, %v2172
    %2174 = vmatmul.f32.gmra.mxu0 %v543
    %v2175 = vpop.f32.mrf.mxu0
    %v2176 = vadd.f32 %v2063, %v2175
    %2177 = vmatmul.f32.gmra.mxu0 %v559
    %v2178 = vpop.f32.mrf.mxu0
    %v2179 = vadd.f32 %v2066, %v2178
    %2180 = vmatmul.f32.gmra.mxu0 %v575
    %v2181 = vpop.f32.mrf.mxu0
    %v2182 = vadd.f32 %v2069, %v2181
    %2183 = vmatmul.f32.gmra.mxu0 %v591
    %v2184 = vpop.f32.mrf.mxu0
    %v2185 = vadd.f32 %v2072, %v2184
    %2186 = vmatmul.f32.gmra.mxu0 %v607
    %v2187 = vpop.f32.mrf.mxu0
    %v2188 = vadd.f32 %v2075, %v2187
    %2189 = vmatmul.f32.gmra.mxu0 %v623
    %v2190 = vpop.f32.mrf.mxu0
    %v2191 = vadd.f32 %v2078, %v2190
    %2192 = vmatmul.f32.gmra.mxu0 %v639
    %v2193 = vpop.f32.mrf.mxu0
    %v2194 = vadd.f32 %v2081, %v2193
    %2195 = vmatmul.f32.gmra.mxu0 %v655
    %v2196 = vpop.f32.mrf.mxu0
    %v2197 = vadd.f32 %v2084, %v2196
    %2198 = vmatmul.f32.gmra.mxu0 %v671
    %v2199 = vpop.f32.mrf.mxu0
    %v2200 = vadd.f32 %v2087, %v2199
    %2201 = vmatmul.f32.gmra.mxu0 %v687
    %v2202 = vpop.f32.mrf.mxu0
    %v2203 = vadd.f32 %v2090, %v2202
    %2204 = vmatmul.f32.gmra.mxu0 %v703
    %v2205 = vpop.f32.mrf.mxu0
    %v2206 = vadd.f32 %v2093, %v2205
    %2207 = vdwg.mxu0
    %2208 = vmatpush.msra.mxu0 %v900
    %2209 = vmatpush.msra.mxu0 %v899
    %2210 = vmatpush.msra.mxu0 %v898
    %2211 = vmatpush.msra.mxu0 %v897
    %2212 = vmatpush.msra.mxu0 %v896
    %2213 = vmatpush.msra.mxu0 %v895
    %2214 = vmatpush.msra.mxu0 %v894
    %2215 = vmatpush.msra.mxu0 %v893
    %2216 = vmatpush.msra.mxu0 %v892
    %2217 = vmatpush.msra.mxu0 %v891
    %2218 = vmatpush.msra.mxu0 %v890
    %2219 = vmatpush.msra.mxu0 %v889
    %2220 = vmatpush.msra.mxu0 %v888
    %2221 = vmatpush.msra.mxu0 %v887
    %2222 = vmatpush.msra.mxu0 %v886
    %2223 = vmatpush.msra.mxu0 %v885
    %2224 = vmatmul.f32.gmra.mxu0 %v208
    %v2225 = vpop.f32.mrf.mxu0
    %v2226 = vadd.f32 %v2113, %v2225
    %2227 = vmatmul.f32.gmra.mxu0 %v224
    %v2228 = vpop.f32.mrf.mxu0
    %v2229 = vadd.f32 %v2116, %v2228
    %2230 = vmatmul.f32.gmra.mxu0 %v240
    %v2231 = vpop.f32.mrf.mxu0
    %v2232 = vadd.f32 %v2119, %v2231
    %2233 = vmatmul.f32.gmra.mxu0 %v256
    %v2234 = vpop.f32.mrf.mxu0
    %v2235 = vadd.f32 %v2122, %v2234
    %2236 = vmatmul.f32.gmra.mxu0 %v272
    %v2237 = vpop.f32.mrf.mxu0
    %v2238 = vadd.f32 %v2125, %v2237
    %2239 = vmatmul.f32.gmra.mxu0 %v288
    %v2240 = vpop.f32.mrf.mxu0
    %v2241 = vadd.f32 %v2128, %v2240
    %2242 = vmatmul.f32.gmra.mxu0 %v304
    %v2243 = vpop.f32.mrf.mxu0
    %v2244 = vadd.f32 %v2131, %v2243
    %2245 = vmatmul.f32.gmra.mxu0 %v320
    %v2246 = vpop.f32.mrf.mxu0
    %v2247 = vadd.f32 %v2134, %v2246
    %2248 = vmatmul.f32.gmra.mxu0 %v336
    %v2249 = vpop.f32.mrf.mxu0
    %v2250 = vadd.f32 %v2137, %v2249
    %2251 = vmatmul.f32.gmra.mxu0 %v352
    %v2252 = vpop.f32.mrf.mxu0
    %v2253 = vadd.f32 %v2140, %v2252
    %2254 = vmatmul.f32.gmra.mxu0 %v368
    %v2255 = vpop.f32.mrf.mxu0
    %v2256 = vadd.f32 %v2143, %v2255
    %2257 = vmatmul.f32.gmra.mxu0 %v384
    %v2258 = vpop.f32.mrf.mxu0
    %v2259 = vadd.f32 %v2146, %v2258
    %2260 = vmatmul.f32.gmra.mxu0 %v400
    %v2261 = vpop.f32.mrf.mxu0
    %v2262 = vadd.f32 %v2149, %v2261
    %2263 = vmatmul.f32.gmra.mxu0 %v416
    %v2264 = vpop.f32.mrf.mxu0
    %v2265 = vadd.f32 %v2152, %v2264
    %2266 = vmatmul.f32.gmra.mxu0 %v432
    %v2267 = vpop.f32.mrf.mxu0
    %v2268 = vadd.f32 %v2155, %v2267
    %2269 = vmatmul.f32.gmra.mxu0 %v448
    %v2270 = vpop.f32.mrf.mxu0
    %v2271 = vadd.f32 %v2158, %v2270
    %2272 = vmatmul.f32.gmra.mxu0 %v464
    %v2273 = vpop.f32.mrf.mxu0
    %v2274 = vadd.f32 %v2161, %v2273
    %2275 = vmatmul.f32.gmra.mxu0 %v480
    %v2276 = vpop.f32.mrf.mxu0
    %v2277 = vadd.f32 %v2164, %v2276
    %2278 = vmatmul.f32.gmra.mxu0 %v496
    %v2279 = vpop.f32.mrf.mxu0
    %v2280 = vadd.f32 %v2167, %v2279
    %2281 = vmatmul.f32.gmra.mxu0 %v512
    %v2282 = vpop.f32.mrf.mxu0
    %v2283 = vadd.f32 %v2170, %v2282
    %2284 = vmatmul.f32.gmra.mxu0 %v528
    %v2285 = vpop.f32.mrf.mxu0
    %v2286 = vadd.f32 %v2173, %v2285
    %2287 = vmatmul.f32.gmra.mxu0 %v544
    %v2288 = vpop.f32.mrf.mxu0
    %v2289 = vadd.f32 %v2176, %v2288
    %2290 = vmatmul.f32.gmra.mxu0 %v560
    %v2291 = vpop.f32.mrf.mxu0
    %v2292 = vadd.f32 %v2179, %v2291
    %2293 = vmatmul.f32.gmra.mxu0 %v576
    %v2294 = vpop.f32.mrf.mxu0
    %v2295 = vadd.f32 %v2182, %v2294
    %2296 = vmatmul.f32.gmra.mxu0 %v592
    %v2297 = vpop.f32.mrf.mxu0
    %v2298 = vadd.f32 %v2185, %v2297
    %2299 = vmatmul.f32.gmra.mxu0 %v608
    %v2300 = vpop.f32.mrf.mxu0
    %v2301 = vadd.f32 %v2188, %v2300
    %2302 = vmatmul.f32.gmra.mxu0 %v624
    %v2303 = vpop.f32.mrf.mxu0
    %v2304 = vadd.f32 %v2191, %v2303
    %2305 = vmatmul.f32.gmra.mxu0 %v640
    %v2306 = vpop.f32.mrf.mxu0
    %v2307 = vadd.f32 %v2194, %v2306
    %2308 = vmatmul.f32.gmra.mxu0 %v656
    %v2309 = vpop.f32.mrf.mxu0
    %v2310 = vadd.f32 %v2197, %v2309
    %2311 = vmatmul.f32.gmra.mxu0 %v672
    %v2312 = vpop.f32.mrf.mxu0
    %v2313 = vadd.f32 %v2200, %v2312
    %2314 = vmatmul.f32.gmra.mxu0 %v688
    %v2315 = vpop.f32.mrf.mxu0
    %v2316 = vadd.f32 %v2203, %v2315
    %2317 = vmatmul.f32.gmra.mxu0 %v704
    %v2318 = vpop.f32.mrf.mxu0
    %v2319 = vadd.f32 %v2206, %v2318
    %2320 = vdwg.mxu0
    %2321 = vmatpush.msra.mxu0 %v916
    %2322 = vmatpush.msra.mxu0 %v915
    %2323 = vmatpush.msra.mxu0 %v914
    %2324 = vmatpush.msra.mxu0 %v913
    %2325 = vmatpush.msra.mxu0 %v912
    %2326 = vmatpush.msra.mxu0 %v911
    %2327 = vmatpush.msra.mxu0 %v910
    %2328 = vmatpush.msra.mxu0 %v909
    %2329 = vmatpush.msra.mxu0 %v908
    %2330 = vmatpush.msra.mxu0 %v907
    %2331 = vmatpush.msra.mxu0 %v906
    %2332 = vmatpush.msra.mxu0 %v905
    %2333 = vmatpush.msra.mxu0 %v904
    %2334 = vmatpush.msra.mxu0 %v903
    %2335 = vmatpush.msra.mxu0 %v902
    %2336 = vmatpush.msra.mxu0 %v901
    %2337 = vmatmul.f32.gmra.mxu0 %v209
    %v2338 = vpop.f32.mrf.mxu0
    %v2339 = vadd.f32 %v2226, %v2338
    %2340 = vmatmul.f32.gmra.mxu0 %v225
    %v2341 = vpop.f32.mrf.mxu0
    %v2342 = vadd.f32 %v2229, %v2341
    %2343 = vmatmul.f32.gmra.mxu0 %v241
    %v2344 = vpop.f32.mrf.mxu0
    %v2345 = vadd.f32 %v2232, %v2344
    %2346 = vmatmul.f32.gmra.mxu0 %v257
    %v2347 = vpop.f32.mrf.mxu0
    %v2348 = vadd.f32 %v2235, %v2347
    %2349 = vmatmul.f32.gmra.mxu0 %v273
    %v2350 = vpop.f32.mrf.mxu0
    %v2351 = vadd.f32 %v2238, %v2350
    %2352 = vmatmul.f32.gmra.mxu0 %v289
    %v2353 = vpop.f32.mrf.mxu0
    %v2354 = vadd.f32 %v2241, %v2353
    %2355 = vmatmul.f32.gmra.mxu0 %v305
    %v2356 = vpop.f32.mrf.mxu0
    %v2357 = vadd.f32 %v2244, %v2356
    %2358 = vmatmul.f32.gmra.mxu0 %v321
    %v2359 = vpop.f32.mrf.mxu0
    %v2360 = vadd.f32 %v2247, %v2359
    %2361 = vmatmul.f32.gmra.mxu0 %v337
    %v2362 = vpop.f32.mrf.mxu0
    %v2363 = vadd.f32 %v2250, %v2362
    %2364 = vmatmul.f32.gmra.mxu0 %v353
    %v2365 = vpop.f32.mrf.mxu0
    %v2366 = vadd.f32 %v2253, %v2365
    %2367 = vmatmul.f32.gmra.mxu0 %v369
    %v2368 = vpop.f32.mrf.mxu0
    %v2369 = vadd.f32 %v2256, %v2368
    %2370 = vmatmul.f32.gmra.mxu0 %v385
    %v2371 = vpop.f32.mrf.mxu0
    %v2372 = vadd.f32 %v2259, %v2371
    %2373 = vmatmul.f32.gmra.mxu0 %v401
    %v2374 = vpop.f32.mrf.mxu0
    %v2375 = vadd.f32 %v2262, %v2374
    %2376 = vmatmul.f32.gmra.mxu0 %v417
    %v2377 = vpop.f32.mrf.mxu0
    %v2378 = vadd.f32 %v2265, %v2377
    %2379 = vmatmul.f32.gmra.mxu0 %v433
    %v2380 = vpop.f32.mrf.mxu0
    %v2381 = vadd.f32 %v2268, %v2380
    %2382 = vmatmul.f32.gmra.mxu0 %v449
    %v2383 = vpop.f32.mrf.mxu0
    %v2384 = vadd.f32 %v2271, %v2383
    %2385 = vmatmul.f32.gmra.mxu0 %v465
    %v2386 = vpop.f32.mrf.mxu0
    %v2387 = vadd.f32 %v2274, %v2386
    %2388 = vmatmul.f32.gmra.mxu0 %v481
    %v2389 = vpop.f32.mrf.mxu0
    %v2390 = vadd.f32 %v2277, %v2389
    %2391 = vmatmul.f32.gmra.mxu0 %v497
    %v2392 = vpop.f32.mrf.mxu0
    %v2393 = vadd.f32 %v2280, %v2392
    %2394 = vmatmul.f32.gmra.mxu0 %v513
    %v2395 = vpop.f32.mrf.mxu0
    %v2396 = vadd.f32 %v2283, %v2395
    %2397 = vmatmul.f32.gmra.mxu0 %v529
    %v2398 = vpop.f32.mrf.mxu0
    %v2399 = vadd.f32 %v2286, %v2398
    %2400 = vmatmul.f32.gmra.mxu0 %v545
    %v2401 = vpop.f32.mrf.mxu0
    %v2402 = vadd.f32 %v2289, %v2401
    %2403 = vmatmul.f32.gmra.mxu0 %v561
    %v2404 = vpop.f32.mrf.mxu0
    %v2405 = vadd.f32 %v2292, %v2404
    %2406 = vmatmul.f32.gmra.mxu0 %v577
    %v2407 = vpop.f32.mrf.mxu0
    %v2408 = vadd.f32 %v2295, %v2407
    %2409 = vmatmul.f32.gmra.mxu0 %v593
    %v2410 = vpop.f32.mrf.mxu0
    %v2411 = vadd.f32 %v2298, %v2410
    %2412 = vmatmul.f32.gmra.mxu0 %v609
    %v2413 = vpop.f32.mrf.mxu0
    %v2414 = vadd.f32 %v2301, %v2413
    %2415 = vmatmul.f32.gmra.mxu0 %v625
    %v2416 = vpop.f32.mrf.mxu0
    %v2417 = vadd.f32 %v2304, %v2416
    %2418 = vmatmul.f32.gmra.mxu0 %v641
    %v2419 = vpop.f32.mrf.mxu0
    %v2420 = vadd.f32 %v2307, %v2419
    %2421 = vmatmul.f32.gmra.mxu0 %v657
    %v2422 = vpop.f32.mrf.mxu0
    %v2423 = vadd.f32 %v2310, %v2422
    %2424 = vmatmul.f32.gmra.mxu0 %v673
    %v2425 = vpop.f32.mrf.mxu0
    %v2426 = vadd.f32 %v2313, %v2425
    %2427 = vmatmul.f32.gmra.mxu0 %v689
    %v2428 = vpop.f32.mrf.mxu0
    %v2429 = vadd.f32 %v2316, %v2428
    %2430 = vmatmul.f32.gmra.mxu0 %v705
    %v2431 = vpop.f32.mrf.mxu0
    %v2432 = vadd.f32 %v2319, %v2431
    %2433 = vdwg.mxu0
    %2434 = vmatpush.msra.mxu0 %v932
    %2435 = vmatpush.msra.mxu0 %v931
    %2436 = vmatpush.msra.mxu0 %v930
    %2437 = vmatpush.msra.mxu0 %v929
    %2438 = vmatpush.msra.mxu0 %v928
    %2439 = vmatpush.msra.mxu0 %v927
    %2440 = vmatpush.msra.mxu0 %v926
    %2441 = vmatpush.msra.mxu0 %v925
    %2442 = vmatpush.msra.mxu0 %v924
    %2443 = vmatpush.msra.mxu0 %v923
    %2444 = vmatpush.msra.mxu0 %v922
    %2445 = vmatpush.msra.mxu0 %v921
    %2446 = vmatpush.msra.mxu0 %v920
    %2447 = vmatpush.msra.mxu0 %v919
    %2448 = vmatpush.msra.mxu0 %v918
    %2449 = vmatpush.msra.mxu0 %v917
    %2450 = vmatmul.f32.gmra.mxu0 %v210
    %v2451 = vpop.f32.mrf.mxu0
    %v2452 = vadd.f32 %v2339, %v2451
    %2453 = vmatmul.f32.gmra.mxu0 %v226
    %v2454 = vpop.f32.mrf.mxu0
    %v2455 = vadd.f32 %v2342, %v2454
    %2456 = vmatmul.f32.gmra.mxu0 %v242
    %v2457 = vpop.f32.mrf.mxu0
    %v2458 = vadd.f32 %v2345, %v2457
    %2459 = vmatmul.f32.gmra.mxu0 %v258
    %v2460 = vpop.f32.mrf.mxu0
    %v2461 = vadd.f32 %v2348, %v2460
    %2462 = vmatmul.f32.gmra.mxu0 %v274
    %v2463 = vpop.f32.mrf.mxu0
    %v2464 = vadd.f32 %v2351, %v2463
    %2465 = vmatmul.f32.gmra.mxu0 %v290
    %v2466 = vpop.f32.mrf.mxu0
    %v2467 = vadd.f32 %v2354, %v2466
    %2468 = vmatmul.f32.gmra.mxu0 %v306
    %v2469 = vpop.f32.mrf.mxu0
    %v2470 = vadd.f32 %v2357, %v2469
    %2471 = vmatmul.f32.gmra.mxu0 %v322
    %v2472 = vpop.f32.mrf.mxu0
    %v2473 = vadd.f32 %v2360, %v2472
    %2474 = vmatmul.f32.gmra.mxu0 %v338
    %v2475 = vpop.f32.mrf.mxu0
    %v2476 = vadd.f32 %v2363, %v2475
    %2477 = vmatmul.f32.gmra.mxu0 %v354
    %v2478 = vpop.f32.mrf.mxu0
    %v2479 = vadd.f32 %v2366, %v2478
    %2480 = vmatmul.f32.gmra.mxu0 %v370
    %v2481 = vpop.f32.mrf.mxu0
    %v2482 = vadd.f32 %v2369, %v2481
    %2483 = vmatmul.f32.gmra.mxu0 %v386
    %v2484 = vpop.f32.mrf.mxu0
    %v2485 = vadd.f32 %v2372, %v2484
    %2486 = vmatmul.f32.gmra.mxu0 %v402
    %v2487 = vpop.f32.mrf.mxu0
    %v2488 = vadd.f32 %v2375, %v2487
    %2489 = vmatmul.f32.gmra.mxu0 %v418
    %v2490 = vpop.f32.mrf.mxu0
    %v2491 = vadd.f32 %v2378, %v2490
    %2492 = vmatmul.f32.gmra.mxu0 %v434
    %v2493 = vpop.f32.mrf.mxu0
    %v2494 = vadd.f32 %v2381, %v2493
    %2495 = vmatmul.f32.gmra.mxu0 %v450
    %v2496 = vpop.f32.mrf.mxu0
    %v2497 = vadd.f32 %v2384, %v2496
    %2498 = vmatmul.f32.gmra.mxu0 %v466
    %v2499 = vpop.f32.mrf.mxu0
    %v2500 = vadd.f32 %v2387, %v2499
    %2501 = vmatmul.f32.gmra.mxu0 %v482
    %v2502 = vpop.f32.mrf.mxu0
    %v2503 = vadd.f32 %v2390, %v2502
    %2504 = vmatmul.f32.gmra.mxu0 %v498
    %v2505 = vpop.f32.mrf.mxu0
    %v2506 = vadd.f32 %v2393, %v2505
    %2507 = vmatmul.f32.gmra.mxu0 %v514
    %v2508 = vpop.f32.mrf.mxu0
    %v2509 = vadd.f32 %v2396, %v2508
    %2510 = vmatmul.f32.gmra.mxu0 %v530
    %v2511 = vpop.f32.mrf.mxu0
    %v2512 = vadd.f32 %v2399, %v2511
    %2513 = vmatmul.f32.gmra.mxu0 %v546
    %v2514 = vpop.f32.mrf.mxu0
    %v2515 = vadd.f32 %v2402, %v2514
    %2516 = vmatmul.f32.gmra.mxu0 %v562
    %v2517 = vpop.f32.mrf.mxu0
    %v2518 = vadd.f32 %v2405, %v2517
    %2519 = vmatmul.f32.gmra.mxu0 %v578
    %v2520 = vpop.f32.mrf.mxu0
    %v2521 = vadd.f32 %v2408, %v2520
    %2522 = vmatmul.f32.gmra.mxu0 %v594
    %v2523 = vpop.f32.mrf.mxu0
    %v2524 = vadd.f32 %v2411, %v2523
    %2525 = vmatmul.f32.gmra.mxu0 %v610
    %v2526 = vpop.f32.mrf.mxu0
    %v2527 = vadd.f32 %v2414, %v2526
    %2528 = vmatmul.f32.gmra.mxu0 %v626
    %v2529 = vpop.f32.mrf.mxu0
    %v2530 = vadd.f32 %v2417, %v2529
    %2531 = vmatmul.f32.gmra.mxu0 %v642
    %v2532 = vpop.f32.mrf.mxu0
    %v2533 = vadd.f32 %v2420, %v2532
    %2534 = vmatmul.f32.gmra.mxu0 %v658
    %v2535 = vpop.f32.mrf.mxu0
    %v2536 = vadd.f32 %v2423, %v2535
    %2537 = vmatmul.f32.gmra.mxu0 %v674
    %v2538 = vpop.f32.mrf.mxu0
    %v2539 = vadd.f32 %v2426, %v2538
    %2540 = vmatmul.f32.gmra.mxu0 %v690
    %v2541 = vpop.f32.mrf.mxu0
    %v2542 = vadd.f32 %v2429, %v2541
    %2543 = vmatmul.f32.gmra.mxu0 %v706
    %v2544 = vpop.f32.mrf.mxu0
    %v2545 = vadd.f32 %v2432, %v2544
    %2546 = vdwg.mxu0
    %2547 = vmatpush.msra.mxu0 %v948
    %2548 = vmatpush.msra.mxu0 %v947
    %2549 = vmatpush.msra.mxu0 %v946
    %2550 = vmatpush.msra.mxu0 %v945
    %2551 = vmatpush.msra.mxu0 %v944
    %2552 = vmatpush.msra.mxu0 %v943
    %2553 = vmatpush.msra.mxu0 %v942
    %2554 = vmatpush.msra.mxu0 %v941
    %2555 = vmatpush.msra.mxu0 %v940
    %2556 = vmatpush.msra.mxu0 %v939
    %2557 = vmatpush.msra.mxu0 %v938
    %2558 = vmatpush.msra.mxu0 %v937
    %2559 = vmatpush.msra.mxu0 %v936
    %2560 = vmatpush.msra.mxu0 %v935
    %2561 = vmatpush.msra.mxu0 %v934
    %2562 = vmatpush.msra.mxu0 %v933
    %2563 = vmatmul.f32.gmra.mxu0 %v211
    %v2564 = vpop.f32.mrf.mxu0
    %v2565 = vadd.f32 %v2452, %v2564
    %2566 = vmatmul.f32.gmra.mxu0 %v227
    %v2567 = vpop.f32.mrf.mxu0
    %v2568 = vadd.f32 %v2455, %v2567
    %2569 = vmatmul.f32.gmra.mxu0 %v243
    %v2570 = vpop.f32.mrf.mxu0
    %v2571 = vadd.f32 %v2458, %v2570
    %2572 = vmatmul.f32.gmra.mxu0 %v259
    %v2573 = vpop.f32.mrf.mxu0
    %v2574 = vadd.f32 %v2461, %v2573
    %2575 = vmatmul.f32.gmra.mxu0 %v275
    %v2576 = vpop.f32.mrf.mxu0
    %v2577 = vadd.f32 %v2464, %v2576
    %2578 = vmatmul.f32.gmra.mxu0 %v291
    %v2579 = vpop.f32.mrf.mxu0
    %v2580 = vadd.f32 %v2467, %v2579
    %2581 = vmatmul.f32.gmra.mxu0 %v307
    %v2582 = vpop.f32.mrf.mxu0
    %v2583 = vadd.f32 %v2470, %v2582
    %2584 = vmatmul.f32.gmra.mxu0 %v323
    %v2585 = vpop.f32.mrf.mxu0
    %v2586 = vadd.f32 %v2473, %v2585
    %2587 = vmatmul.f32.gmra.mxu0 %v339
    %v2588 = vpop.f32.mrf.mxu0
    %v2589 = vadd.f32 %v2476, %v2588
    %2590 = vmatmul.f32.gmra.mxu0 %v355
    %v2591 = vpop.f32.mrf.mxu0
    %v2592 = vadd.f32 %v2479, %v2591
    %2593 = vmatmul.f32.gmra.mxu0 %v371
    %v2594 = vpop.f32.mrf.mxu0
    %v2595 = vadd.f32 %v2482, %v2594
    %2596 = vmatmul.f32.gmra.mxu0 %v387
    %v2597 = vpop.f32.mrf.mxu0
    %v2598 = vadd.f32 %v2485, %v2597
    %2599 = vmatmul.f32.gmra.mxu0 %v403
    %v2600 = vpop.f32.mrf.mxu0
    %v2601 = vadd.f32 %v2488, %v2600
    %2602 = vmatmul.f32.gmra.mxu0 %v419
    %v2603 = vpop.f32.mrf.mxu0
    %v2604 = vadd.f32 %v2491, %v2603
    %2605 = vmatmul.f32.gmra.mxu0 %v435
    %v2606 = vpop.f32.mrf.mxu0
    %v2607 = vadd.f32 %v2494, %v2606
    %2608 = vmatmul.f32.gmra.mxu0 %v451
    %v2609 = vpop.f32.mrf.mxu0
    %v2610 = vadd.f32 %v2497, %v2609
    %2611 = vmatmul.f32.gmra.mxu0 %v467
    %v2612 = vpop.f32.mrf.mxu0
    %v2613 = vadd.f32 %v2500, %v2612
    %2614 = vmatmul.f32.gmra.mxu0 %v483
    %v2615 = vpop.f32.mrf.mxu0
    %v2616 = vadd.f32 %v2503, %v2615
    %2617 = vmatmul.f32.gmra.mxu0 %v499
    %v2618 = vpop.f32.mrf.mxu0
    %v2619 = vadd.f32 %v2506, %v2618
    %2620 = vmatmul.f32.gmra.mxu0 %v515
    %v2621 = vpop.f32.mrf.mxu0
    %v2622 = vadd.f32 %v2509, %v2621
    %2623 = vmatmul.f32.gmra.mxu0 %v531
    %v2624 = vpop.f32.mrf.mxu0
    %v2625 = vadd.f32 %v2512, %v2624
    %2626 = vmatmul.f32.gmra.mxu0 %v547
    %v2627 = vpop.f32.mrf.mxu0
    %v2628 = vadd.f32 %v2515, %v2627
    %2629 = vmatmul.f32.gmra.mxu0 %v563
    %v2630 = vpop.f32.mrf.mxu0
    %v2631 = vadd.f32 %v2518, %v2630
    %2632 = vmatmul.f32.gmra.mxu0 %v579
    %v2633 = vpop.f32.mrf.mxu0
    %v2634 = vadd.f32 %v2521, %v2633
    %2635 = vmatmul.f32.gmra.mxu0 %v595
    %v2636 = vpop.f32.mrf.mxu0
    %v2637 = vadd.f32 %v2524, %v2636
    %2638 = vmatmul.f32.gmra.mxu0 %v611
    %v2639 = vpop.f32.mrf.mxu0
    %v2640 = vadd.f32 %v2527, %v2639
    %2641 = vmatmul.f32.gmra.mxu0 %v627
    %v2642 = vpop.f32.mrf.mxu0
    %v2643 = vadd.f32 %v2530, %v2642
    %2644 = vmatmul.f32.gmra.mxu0 %v643
    %v2645 = vpop.f32.mrf.mxu0
    %v2646 = vadd.f32 %v2533, %v2645
    %2647 = vmatmul.f32.gmra.mxu0 %v659
    %v2648 = vpop.f32.mrf.mxu0
    %v2649 = vadd.f32 %v2536, %v2648
    %2650 = vmatmul.f32.gmra.mxu0 %v675
    %v2651 = vpop.f32.mrf.mxu0
    %v2652 = vadd.f32 %v2539, %v2651
    %2653 = vmatmul.f32.gmra.mxu0 %v691
    %v2654 = vpop.f32.mrf.mxu0
    %v2655 = vadd.f32 %v2542, %v2654
    %2656 = vmatmul.f32.gmra.mxu0 %v707
    %v2657 = vpop.f32.mrf.mxu0
    %v2658 = vadd.f32 %v2545, %v2657
    %2659 = vdwg.mxu0
    %2660 = vmatpush.msra.mxu0 %v964
    %2661 = vmatpush.msra.mxu0 %v963
    %2662 = vmatpush.msra.mxu0 %v962
    %2663 = vmatpush.msra.mxu0 %v961
    %2664 = vmatpush.msra.mxu0 %v960
    %2665 = vmatpush.msra.mxu0 %v959
    %2666 = vmatpush.msra.mxu0 %v958
    %2667 = vmatpush.msra.mxu0 %v957
    %2668 = vmatpush.msra.mxu0 %v956
    %2669 = vmatpush.msra.mxu0 %v955
    %2670 = vmatpush.msra.mxu0 %v954
    %2671 = vmatpush.msra.mxu0 %v953
    %2672 = vmatpush.msra.mxu0 %v952
    %2673 = vmatpush.msra.mxu0 %v951
    %2674 = vmatpush.msra.mxu0 %v950
    %2675 = vmatpush.msra.mxu0 %v949
    %2676 = vmatmul.f32.gmra.mxu0 %v212
    %v2677 = vpop.f32.mrf.mxu0
    %v2678 = vadd.f32 %v2565, %v2677
    %2679 = vmatmul.f32.gmra.mxu0 %v228
    %v2680 = vpop.f32.mrf.mxu0
    %v2681 = vadd.f32 %v2568, %v2680
    %2682 = vmatmul.f32.gmra.mxu0 %v244
    %v2683 = vpop.f32.mrf.mxu0
    %v2684 = vadd.f32 %v2571, %v2683
    %2685 = vmatmul.f32.gmra.mxu0 %v260
    %v2686 = vpop.f32.mrf.mxu0
    %v2687 = vadd.f32 %v2574, %v2686
    %2688 = vmatmul.f32.gmra.mxu0 %v276
    %v2689 = vpop.f32.mrf.mxu0
    %v2690 = vadd.f32 %v2577, %v2689
    %2691 = vmatmul.f32.gmra.mxu0 %v292
    %v2692 = vpop.f32.mrf.mxu0
    %v2693 = vadd.f32 %v2580, %v2692
    %2694 = vmatmul.f32.gmra.mxu0 %v308
    %v2695 = vpop.f32.mrf.mxu0
    %v2696 = vadd.f32 %v2583, %v2695
    %2697 = vmatmul.f32.gmra.mxu0 %v324
    %v2698 = vpop.f32.mrf.mxu0
    %v2699 = vadd.f32 %v2586, %v2698
    %2700 = vmatmul.f32.gmra.mxu0 %v340
    %v2701 = vpop.f32.mrf.mxu0
    %v2702 = vadd.f32 %v2589, %v2701
    %2703 = vmatmul.f32.gmra.mxu0 %v356
    %v2704 = vpop.f32.mrf.mxu0
    %v2705 = vadd.f32 %v2592, %v2704
    %2706 = vmatmul.f32.gmra.mxu0 %v372
    %v2707 = vpop.f32.mrf.mxu0
    %v2708 = vadd.f32 %v2595, %v2707
    %2709 = vmatmul.f32.gmra.mxu0 %v388
    %v2710 = vpop.f32.mrf.mxu0
    %v2711 = vadd.f32 %v2598, %v2710
    %2712 = vmatmul.f32.gmra.mxu0 %v404
    %v2713 = vpop.f32.mrf.mxu0
    %v2714 = vadd.f32 %v2601, %v2713
    %2715 = vmatmul.f32.gmra.mxu0 %v420
    %v2716 = vpop.f32.mrf.mxu0
    %v2717 = vadd.f32 %v2604, %v2716
    %2718 = vmatmul.f32.gmra.mxu0 %v436
    %v2719 = vpop.f32.mrf.mxu0
    %v2720 = vadd.f32 %v2607, %v2719
    %2721 = vmatmul.f32.gmra.mxu0 %v452
    %v2722 = vpop.f32.mrf.mxu0
    %v2723 = vadd.f32 %v2610, %v2722
    %2724 = vmatmul.f32.gmra.mxu0 %v468
    %v2725 = vpop.f32.mrf.mxu0
    %v2726 = vadd.f32 %v2613, %v2725
    %2727 = vmatmul.f32.gmra.mxu0 %v484
    %v2728 = vpop.f32.mrf.mxu0
    %v2729 = vadd.f32 %v2616, %v2728
    %2730 = vmatmul.f32.gmra.mxu0 %v500
    %v2731 = vpop.f32.mrf.mxu0
    %v2732 = vadd.f32 %v2619, %v2731
    %2733 = vmatmul.f32.gmra.mxu0 %v516
    %v2734 = vpop.f32.mrf.mxu0
    %v2735 = vadd.f32 %v2622, %v2734
    %2736 = vmatmul.f32.gmra.mxu0 %v532
    %v2737 = vpop.f32.mrf.mxu0
    %v2738 = vadd.f32 %v2625, %v2737
    %2739 = vmatmul.f32.gmra.mxu0 %v548
    %v2740 = vpop.f32.mrf.mxu0
    %v2741 = vadd.f32 %v2628, %v2740
    %2742 = vmatmul.f32.gmra.mxu0 %v564
    %v2743 = vpop.f32.mrf.mxu0
    %v2744 = vadd.f32 %v2631, %v2743
    %2745 = vmatmul.f32.gmra.mxu0 %v580
    %v2746 = vpop.f32.mrf.mxu0
    %v2747 = vadd.f32 %v2634, %v2746
    %2748 = vmatmul.f32.gmra.mxu0 %v596
    %v2749 = vpop.f32.mrf.mxu0
    %v2750 = vadd.f32 %v2637, %v2749
    %2751 = vmatmul.f32.gmra.mxu0 %v612
    %v2752 = vpop.f32.mrf.mxu0
    %v2753 = vadd.f32 %v2640, %v2752
    %2754 = vmatmul.f32.gmra.mxu0 %v628
    %v2755 = vpop.f32.mrf.mxu0
    %v2756 = vadd.f32 %v2643, %v2755
    %2757 = vmatmul.f32.gmra.mxu0 %v644
    %v2758 = vpop.f32.mrf.mxu0
    %v2759 = vadd.f32 %v2646, %v2758
    %2760 = vmatmul.f32.gmra.mxu0 %v660
    %v2761 = vpop.f32.mrf.mxu0
    %v2762 = vadd.f32 %v2649, %v2761
    %2763 = vmatmul.f32.gmra.mxu0 %v676
    %v2764 = vpop.f32.mrf.mxu0
    %v2765 = vadd.f32 %v2652, %v2764
    %2766 = vmatmul.f32.gmra.mxu0 %v692
    %v2767 = vpop.f32.mrf.mxu0
    %v2768 = vadd.f32 %v2655, %v2767
    %2769 = vmatmul.f32.gmra.mxu0 %v708
    %v2770 = vpop.f32.mrf.mxu0
    %v2771 = vadd.f32 %v2658, %v2770
    %2772 = vdwg.mxu0
    %v2773 = vadd.f32 %v165, %v2678
    %v2774 = vadd.f32 %v166, %v2681
    %v2775 = vadd.f32 %v167, %v2684
    %v2776 = vadd.f32 %v168, %v2687
    %v2777 = vadd.f32 %v169, %v2690
    %v2778 = vadd.f32 %v170, %v2693
    %v2779 = vadd.f32 %v171, %v2696
    %v2780 = vadd.f32 %v172, %v2699
    %v2781 = vadd.f32 %v173, %v2702
    %v2782 = vadd.f32 %v174, %v2705
    %v2783 = vadd.f32 %v175, %v2708
    %v2784 = vadd.f32 %v176, %v2711
    %v2785 = vadd.f32 %v177, %v2714
    %v2786 = vadd.f32 %v178, %v2717
    %v2787 = vadd.f32 %v179, %v2720
    %v2788 = vadd.f32 %v180, %v2723
    %v2789 = vadd.f32 %v181, %v2726
    %v2790 = vadd.f32 %v182, %v2729
    %v2791 = vadd.f32 %v183, %v2732
    %v2792 = vadd.f32 %v184, %v2735
    %v2793 = vadd.f32 %v185, %v2738
    %v2794 = vadd.f32 %v186, %v2741
    %v2795 = vadd.f32 %v187, %v2744
    %v2796 = vadd.f32 %v188, %v2747
    %v2797 = vadd.f32 %v189, %v2750
    %v2798 = vadd.f32 %v190, %v2753
    %v2799 = vadd.f32 %v191, %v2756
    %v2800 = vadd.f32 %v192, %v2759
    %v2801 = vadd.f32 %v193, %v2762
    %v2802 = vadd.f32 %v194, %v2765
    %v2803 = vadd.f32 %v195, %v2768
    %v2804 = vadd.f32 %v196, %v2771
    %2805 = vst [vmem:[#allocation2] sm:$0xff] %v2773
    %2806 = vst [vmem:[#allocation2 + $0x8] sm:$0xff] %v2774
    %2807 = vst [vmem:[#allocation2 + $0x10] sm:$0xff] %v2775
    %2808 = vst [vmem:[#allocation2 + $0x18] sm:$0xff] %v2776
    %2809 = vst [vmem:[#allocation2 + $0x20] sm:$0xff] %v2777
    %2810 = vst [vmem:[#allocation2 + $0x28] sm:$0xff] %v2778
    %2811 = vst [vmem:[#allocation2 + $0x30] sm:$0xff] %v2779
    %2812 = vst [vmem:[#allocation2 + $0x38] sm:$0xff] %v2780
    %2813 = vst [vmem:[#allocation2 + $0x40] sm:$0xff] %v2781
    %2814 = vst [vmem:[#allocation2 + $0x48] sm:$0xff] %v2782
    %2815 = vst [vmem:[#allocation2 + $0x50] sm:$0xff] %v2783
    %2816 = vst [vmem:[#allocation2 + $0x58] sm:$0xff] %v2784
    %2817 = vst [vmem:[#allocation2 + $0x60] sm:$0xff] %v2785
    %2818 = vst [vmem:[#allocation2 + $0x68] sm:$0xff] %v2786
    %2819 = vst [vmem:[#allocation2 + $0x70] sm:$0xff] %v2787
    %2820 = vst [vmem:[#allocation2 + $0x78] sm:$0xff] %v2788
    %2821 = vst [vmem:[#allocation2 + $0x80] sm:$0xff] %v2789
    %2822 = vst [vmem:[#allocation2 + $0x88] sm:$0xff] %v2790
    %2823 = vst [vmem:[#allocation2 + $0x90] sm:$0xff] %v2791
    %2824 = vst [vmem:[#allocation2 + $0x98] sm:$0xff] %v2792
    %2825 = vst [vmem:[#allocation2 + $0xa0] sm:$0xff] %v2793
    %2826 = vst [vmem:[#allocation2 + $0xa8] sm:$0xff] %v2794
    %2827 = vst [vmem:[#allocation2 + $0xb0] sm:$0xff] %v2795
    %2828 = vst [vmem:[#allocation2 + $0xb8] sm:$0xff] %v2796
    %2829 = vst [vmem:[#allocation2 + $0xc0] sm:$0xff] %v2797
    %2830 = vst [vmem:[#allocation2 + $0xc8] sm:$0xff] %v2798
    %2831 = vst [vmem:[#allocation2 + $0xd0] sm:$0xff] %v2799
    %2832 = vst [vmem:[#allocation2 + $0xd8] sm:$0xff] %v2800
    %2833 = vst [vmem:[#allocation2 + $0xe0] sm:$0xff] %v2801
    %2834 = vst [vmem:[#allocation2 + $0xe8] sm:$0xff] %v2802
    %2835 = vst [vmem:[#allocation2 + $0xf0] sm:$0xff] %v2803
    %2836 = vst [vmem:[#allocation2 + $0xf8] sm:$0xff] %v2804
    // Predicated region
    $region62: #{ae_forward.2} parent=1 // pred_check
      %p2837 = pneg %p129
    $region63: #{ae_forward.2} parent=1 // pred_check_branch
      %2839 = sbr.rel (%p2837) target = $region65
    $region64: #{ae_forward.2} parent=1 // pred_region
      %v2840 = vld [vmem:[#allocation2] sm:$0xff]
      %v2841 = vld [vmem:[#allocation2 + $0x8] sm:$0xff]
      %v2842 = vld [vmem:[#allocation2 + $0x10] sm:$0xff]
      %v2843 = vld [vmem:[#allocation2 + $0x18] sm:$0xff]
      %v2844 = vld [vmem:[#allocation2 + $0x20] sm:$0xff]
      %v2845 = vld [vmem:[#allocation2 + $0x28] sm:$0xff]
      %v2846 = vld [vmem:[#allocation2 + $0x30] sm:$0xff]
      %v2847 = vld [vmem:[#allocation2 + $0x38] sm:$0xff]
      %v2848 = vld [vmem:[#allocation2 + $0x40] sm:$0xff]
      %v2849 = vld [vmem:[#allocation2 + $0x48] sm:$0xff]
      %v2850 = vld [vmem:[#allocation2 + $0x50] sm:$0xff]
      %v2851 = vld [vmem:[#allocation2 + $0x58] sm:$0xff]
      %v2852 = vld [vmem:[#allocation2 + $0x60] sm:$0xff]
      %v2853 = vld [vmem:[#allocation2 + $0x68] sm:$0xff]
      %v2854 = vld [vmem:[#allocation2 + $0x70] sm:$0xff]
      %v2855 = vld [vmem:[#allocation2 + $0x78] sm:$0xff]
      %v2856 = vld [vmem:[#allocation2 + $0x80] sm:$0xff]
      %v2857 = vld [vmem:[#allocation2 + $0x88] sm:$0xff]
      %v2858 = vld [vmem:[#allocation2 + $0x90] sm:$0xff]
      %v2859 = vld [vmem:[#allocation2 + $0x98] sm:$0xff]
      %v2860 = vld [vmem:[#allocation2 + $0xa0] sm:$0xff]
      %v2861 = vld [vmem:[#allocation2 + $0xa8] sm:$0xff]
      %v2862 = vld [vmem:[#allocation2 + $0xb0] sm:$0xff]
      %v2863 = vld [vmem:[#allocation2 + $0xb8] sm:$0xff]
      %v2864 = vld [vmem:[#allocation2 + $0xc0] sm:$0xff]
      %v2865 = vld [vmem:[#allocation2 + $0xc8] sm:$0xff]
      %v2866 = vld [vmem:[#allocation2 + $0xd0] sm:$0xff]
      %v2867 = vld [vmem:[#allocation2 + $0xd8] sm:$0xff]
      %v2868 = vld [vmem:[#allocation2 + $0xe0] sm:$0xff]
      %v2869 = vld [vmem:[#allocation2 + $0xe8] sm:$0xff]
      %v2870 = vld [vmem:[#allocation2 + $0xf0] sm:$0xff]
      %v2871 = vld [vmem:[#allocation2 + $0xf8] sm:$0xff]
      %v2872 = vld [vmem:[#allocation7] sm:$0x1]
      %v2874 = vperm.slane %v2872, 0
      %v2876 = vadd.f32 %v2840, %v2874
      %v2877 = vadd.f32 %v2841, %v2874
      %v2878 = vadd.f32 %v2842, %v2874
      %v2879 = vadd.f32 %v2843, %v2874
      %v2880 = vadd.f32 %v2844, %v2874
      %v2881 = vadd.f32 %v2845, %v2874
      %v2882 = vadd.f32 %v2846, %v2874
      %v2883 = vadd.f32 %v2847, %v2874
      %v2884 = vadd.f32 %v2848, %v2874
      %v2885 = vadd.f32 %v2849, %v2874
      %v2886 = vadd.f32 %v2850, %v2874
      %v2887 = vadd.f32 %v2851, %v2874
      %v2888 = vadd.f32 %v2852, %v2874
      %v2889 = vadd.f32 %v2853, %v2874
      %v2890 = vadd.f32 %v2854, %v2874
      %v2891 = vadd.f32 %v2855, %v2874
      %v2892 = vadd.f32 %v2856, %v2874
      %v2893 = vadd.f32 %v2857, %v2874
      %v2894 = vadd.f32 %v2858, %v2874
      %v2895 = vadd.f32 %v2859, %v2874
      %v2896 = vadd.f32 %v2860, %v2874
      %v2897 = vadd.f32 %v2861, %v2874
      %v2898 = vadd.f32 %v2862, %v2874
      %v2899 = vadd.f32 %v2863, %v2874
      %v2900 = vadd.f32 %v2864, %v2874
      %v2901 = vadd.f32 %v2865, %v2874
      %v2902 = vadd.f32 %v2866, %v2874
      %v2903 = vadd.f32 %v2867, %v2874
      %v2904 = vadd.f32 %v2868, %v2874
      %v2905 = vadd.f32 %v2869, %v2874
      %v2906 = vadd.f32 %v2870, %v2874
      %v2907 = vadd.f32 %v2871, %v2874
      %v2908 = vmax.f32 %v2876, 0.0
      %v2909 = vmax.f32 %v2877, 0.0
      %v2910 = vmax.f32 %v2878, 0.0
      %v2911 = vmax.f32 %v2879, 0.0
      %v2912 = vmax.f32 %v2880, 0.0
      %v2913 = vmax.f32 %v2881, 0.0
      %v2914 = vmax.f32 %v2882, 0.0
      %v2915 = vmax.f32 %v2883, 0.0
      %v2916 = vmax.f32 %v2884, 0.0
      %v2917 = vmax.f32 %v2885, 0.0
      %v2918 = vmax.f32 %v2886, 0.0
      %v2919 = vmax.f32 %v2887, 0.0
      %v2920 = vmax.f32 %v2888, 0.0
      %v2921 = vmax.f32 %v2889, 0.0
      %v2922 = vmax.f32 %v2890, 0.0
      %v2923 = vmax.f32 %v2891, 0.0
      %v2924 = vmax.f32 %v2892, 0.0
      %v2925 = vmax.f32 %v2893, 0.0
      %v2926 = vmax.f32 %v2894, 0.0
      %v2927 = vmax.f32 %v2895, 0.0
      %v2928 = vmax.f32 %v2896, 0.0
      %v2929 = vmax.f32 %v2897, 0.0
      %v2930 = vmax.f32 %v2898, 0.0
      %v2931 = vmax.f32 %v2899, 0.0
      %v2932 = vmax.f32 %v2900, 0.0
      %v2933 = vmax.f32 %v2901, 0.0
      %v2934 = vmax.f32 %v2902, 0.0
      %v2935 = vmax.f32 %v2903, 0.0
      %v2936 = vmax.f32 %v2904, 0.0
      %v2937 = vmax.f32 %v2905, 0.0
      %v2938 = vmax.f32 %v2906, 0.0
      %v2939 = vmax.f32 %v2907, 0.0
      %v2940 = vld [vmem:[#allocation8] sm:$0xff]
      %v2941 = vld [vmem:[#allocation8 + $0x8] sm:$0xff]
      %v2942 = vld [vmem:[#allocation8 + $0x10] sm:$0xff]
      %v2943 = vld [vmem:[#allocation8 + $0x18] sm:$0xff]
      %v2944 = vld [vmem:[#allocation8 + $0x20] sm:$0xff]
      %v2945 = vld [vmem:[#allocation8 + $0x28] sm:$0xff]
      %v2946 = vld [vmem:[#allocation8 + $0x30] sm:$0xff]
      %v2947 = vld [vmem:[#allocation8 + $0x38] sm:$0xff]
      %v2948 = vld [vmem:[#allocation8 + $0x40] sm:$0xff]
      %v2949 = vld [vmem:[#allocation8 + $0x48] sm:$0xff]
      %v2950 = vld [vmem:[#allocation8 + $0x50] sm:$0xff]
      %v2951 = vld [vmem:[#allocation8 + $0x58] sm:$0xff]
      %v2952 = vld [vmem:[#allocation8 + $0x60] sm:$0xff]
      %v2953 = vld [vmem:[#allocation8 + $0x68] sm:$0xff]
      %v2954 = vld [vmem:[#allocation8 + $0x70] sm:$0xff]
      %v2955 = vld [vmem:[#allocation8 + $0x78] sm:$0xff]
      %v2956 = vld [vmem:[#allocation10] sm:$0x1]
      %v2958 = vperm.slane %v2956, 0
      %2960 = vmatpush.msra.mxu0 %v2955
      %2961 = vmatpush.msra.mxu0 %v2954
      %2962 = vmatpush.msra.mxu0 %v2953
      %2963 = vmatpush.msra.mxu0 %v2952
      %2964 = vmatpush.msra.mxu0 %v2951
      %2965 = vmatpush.msra.mxu0 %v2950
      %2966 = vmatpush.msra.mxu0 %v2949
      %2967 = vmatpush.msra.mxu0 %v2948
      %2968 = vmatpush.msra.mxu0 %v2947
      %2969 = vmatpush.msra.mxu0 %v2946
      %2970 = vmatpush.msra.mxu0 %v2945
      %2971 = vmatpush.msra.mxu0 %v2944
      %2972 = vmatpush.msra.mxu0 %v2943
      %2973 = vmatpush.msra.mxu0 %v2942
      %2974 = vmatpush.msra.mxu0 %v2941
      %2975 = vmatpush.msra.mxu0 %v2940
      %2976 = vmatmul.f32.gmra.mxu0 %v2908
      %v2977 = vpop.f32.mrf.mxu0
      %v2978 = vadd.f32 %v2958, %v2977
      %2979 = vmatmul.f32.gmra.mxu0 %v2909
      %v2980 = vpop.f32.mrf.mxu0
      %v2981 = vadd.f32 %v2958, %v2980
      %2982 = vmatmul.f32.gmra.mxu0 %v2910
      %v2983 = vpop.f32.mrf.mxu0
      %v2984 = vadd.f32 %v2958, %v2983
      %2985 = vmatmul.f32.gmra.mxu0 %v2911
      %v2986 = vpop.f32.mrf.mxu0
      %v2987 = vadd.f32 %v2958, %v2986
      %2988 = vmatmul.f32.gmra.mxu0 %v2912
      %v2989 = vpop.f32.mrf.mxu0
      %v2990 = vadd.f32 %v2958, %v2989
      %2991 = vmatmul.f32.gmra.mxu0 %v2913
      %v2992 = vpop.f32.mrf.mxu0
      %v2993 = vadd.f32 %v2958, %v2992
      %2994 = vmatmul.f32.gmra.mxu0 %v2914
      %v2995 = vpop.f32.mrf.mxu0
      %v2996 = vadd.f32 %v2958, %v2995
      %2997 = vmatmul.f32.gmra.mxu0 %v2915
      %v2998 = vpop.f32.mrf.mxu0
      %v2999 = vadd.f32 %v2958, %v2998
      %3000 = vmatmul.f32.gmra.mxu0 %v2916
      %v3001 = vpop.f32.mrf.mxu0
      %v3002 = vadd.f32 %v2958, %v3001
      %3003 = vmatmul.f32.gmra.mxu0 %v2917
      %v3004 = vpop.f32.mrf.mxu0
      %v3005 = vadd.f32 %v2958, %v3004
      %3006 = vmatmul.f32.gmra.mxu0 %v2918
      %v3007 = vpop.f32.mrf.mxu0
      %v3008 = vadd.f32 %v2958, %v3007
      %3009 = vmatmul.f32.gmra.mxu0 %v2919
      %v3010 = vpop.f32.mrf.mxu0
      %v3011 = vadd.f32 %v2958, %v3010
      %3012 = vmatmul.f32.gmra.mxu0 %v2920
      %v3013 = vpop.f32.mrf.mxu0
      %v3014 = vadd.f32 %v2958, %v3013
      %3015 = vmatmul.f32.gmra.mxu0 %v2921
      %v3016 = vpop.f32.mrf.mxu0
      %v3017 = vadd.f32 %v2958, %v3016
      %3018 = vmatmul.f32.gmra.mxu0 %v2922
      %v3019 = vpop.f32.mrf.mxu0
      %v3020 = vadd.f32 %v2958, %v3019
      %3021 = vmatmul.f32.gmra.mxu0 %v2923
      %v3022 = vpop.f32.mrf.mxu0
      %v3023 = vadd.f32 %v2958, %v3022
      %3024 = vmatmul.f32.gmra.mxu0 %v2924
      %v3025 = vpop.f32.mrf.mxu0
      %v3026 = vadd.f32 %v2958, %v3025
      %3027 = vmatmul.f32.gmra.mxu0 %v2925
      %v3028 = vpop.f32.mrf.mxu0
      %v3029 = vadd.f32 %v2958, %v3028
      %3030 = vmatmul.f32.gmra.mxu0 %v2926
      %v3031 = vpop.f32.mrf.mxu0
      %v3032 = vadd.f32 %v2958, %v3031
      %3033 = vmatmul.f32.gmra.mxu0 %v2927
      %v3034 = vpop.f32.mrf.mxu0
      %v3035 = vadd.f32 %v2958, %v3034
      %3036 = vmatmul.f32.gmra.mxu0 %v2928
      %v3037 = vpop.f32.mrf.mxu0
      %v3038 = vadd.f32 %v2958, %v3037
      %3039 = vmatmul.f32.gmra.mxu0 %v2929
      %v3040 = vpop.f32.mrf.mxu0
      %v3041 = vadd.f32 %v2958, %v3040
      %3042 = vmatmul.f32.gmra.mxu0 %v2930
      %v3043 = vpop.f32.mrf.mxu0
      %v3044 = vadd.f32 %v2958, %v3043
      %3045 = vmatmul.f32.gmra.mxu0 %v2931
      %v3046 = vpop.f32.mrf.mxu0
      %v3047 = vadd.f32 %v2958, %v3046
      %3048 = vmatmul.f32.gmra.mxu0 %v2932
      %v3049 = vpop.f32.mrf.mxu0
      %v3050 = vadd.f32 %v2958, %v3049
      %3051 = vmatmul.f32.gmra.mxu0 %v2933
      %v3052 = vpop.f32.mrf.mxu0
      %v3053 = vadd.f32 %v2958, %v3052
      %3054 = vmatmul.f32.gmra.mxu0 %v2934
      %v3055 = vpop.f32.mrf.mxu0
      %v3056 = vadd.f32 %v2958, %v3055
      %3057 = vmatmul.f32.gmra.mxu0 %v2935
      %v3058 = vpop.f32.mrf.mxu0
      %v3059 = vadd.f32 %v2958, %v3058
      %3060 = vmatmul.f32.gmra.mxu0 %v2936
      %v3061 = vpop.f32.mrf.mxu0
      %v3062 = vadd.f32 %v2958, %v3061
      %3063 = vmatmul.f32.gmra.mxu0 %v2937
      %v3064 = vpop.f32.mrf.mxu0
      %v3065 = vadd.f32 %v2958, %v3064
      %3066 = vmatmul.f32.gmra.mxu0 %v2938
      %v3067 = vpop.f32.mrf.mxu0
      %v3068 = vadd.f32 %v2958, %v3067
      %3069 = vmatmul.f32.gmra.mxu0 %v2939
      %v3070 = vpop.f32.mrf.mxu0
      %v3071 = vadd.f32 %v2958, %v3070
      %3072 = vdwg.mxu0
      %v3073 = vmax.f32 %v2978, 0.0
      %v3074 = vmax.f32 %v2981, 0.0
      %v3075 = vmax.f32 %v2984, 0.0
      %v3076 = vmax.f32 %v2987, 0.0
      %v3077 = vmax.f32 %v2990, 0.0
      %v3078 = vmax.f32 %v2993, 0.0
      %v3079 = vmax.f32 %v2996, 0.0
      %v3080 = vmax.f32 %v2999, 0.0
      %v3081 = vmax.f32 %v3002, 0.0
      %v3082 = vmax.f32 %v3005, 0.0
      %v3083 = vmax.f32 %v3008, 0.0
      %v3084 = vmax.f32 %v3011, 0.0
      %v3085 = vmax.f32 %v3014, 0.0
      %v3086 = vmax.f32 %v3017, 0.0
      %v3087 = vmax.f32 %v3020, 0.0
      %v3088 = vmax.f32 %v3023, 0.0
      %v3089 = vmax.f32 %v3026, 0.0
      %v3090 = vmax.f32 %v3029, 0.0
      %v3091 = vmax.f32 %v3032, 0.0
      %v3092 = vmax.f32 %v3035, 0.0
      %v3093 = vmax.f32 %v3038, 0.0
      %v3094 = vmax.f32 %v3041, 0.0
      %v3095 = vmax.f32 %v3044, 0.0
      %v3096 = vmax.f32 %v3047, 0.0
      %v3097 = vmax.f32 %v3050, 0.0
      %v3098 = vmax.f32 %v3053, 0.0
      %v3099 = vmax.f32 %v3056, 0.0
      %v3100 = vmax.f32 %v3059, 0.0
      %v3101 = vmax.f32 %v3062, 0.0
      %v3102 = vmax.f32 %v3065, 0.0
      %v3103 = vmax.f32 %v3068, 0.0
      %v3104 = vmax.f32 %v3071, 0.0
      %v3105 = vld [vmem:[#allocation11] sm:$0xff]
      %v3106 = vld [vmem:[#allocation11 + $0x8] sm:$0xff]
      %v3107 = vld [vmem:[#allocation11 + $0x10] sm:$0xff]
      %v3108 = vld [vmem:[#allocation11 + $0x18] sm:$0xff]
      %v3109 = vld [vmem:[#allocation11 + $0x20] sm:$0xff]
      %v3110 = vld [vmem:[#allocation11 + $0x28] sm:$0xff]
      %v3111 = vld [vmem:[#allocation11 + $0x30] sm:$0xff]
      %v3112 = vld [vmem:[#allocation11 + $0x38] sm:$0xff]
      %v3113 = vld [vmem:[#allocation11 + $0x40] sm:$0xff]
      %v3114 = vld [vmem:[#allocation11 + $0x48] sm:$0xff]
      %v3115 = vld [vmem:[#allocation11 + $0x50] sm:$0xff]
      %v3116 = vld [vmem:[#allocation11 + $0x58] sm:$0xff]
      %v3117 = vld [vmem:[#allocation11 + $0x60] sm:$0xff]
      %v3118 = vld [vmem:[#allocation11 + $0x68] sm:$0xff]
      %v3119 = vld [vmem:[#allocation11 + $0x70] sm:$0xff]
      %v3120 = vld [vmem:[#allocation11 + $0x78] sm:$0xff]
      %v3121 = vld [vmem:[#allocation13] sm:$0x1]
      %v3123 = vperm.slane %v3121, 0
      %3125 = vmatpush.msra.mxu0 %v3120
      %3126 = vmatpush.msra.mxu0 %v3119
      %3127 = vmatpush.msra.mxu0 %v3118
      %3128 = vmatpush.msra.mxu0 %v3117
      %3129 = vmatpush.msra.mxu0 %v3116
      %3130 = vmatpush.msra.mxu0 %v3115
      %3131 = vmatpush.msra.mxu0 %v3114
      %3132 = vmatpush.msra.mxu0 %v3113
      %3133 = vmatpush.msra.mxu0 %v3112
      %3134 = vmatpush.msra.mxu0 %v3111
      %3135 = vmatpush.msra.mxu0 %v3110
      %3136 = vmatpush.msra.mxu0 %v3109
      %3137 = vmatpush.msra.mxu0 %v3108
      %3138 = vmatpush.msra.mxu0 %v3107
      %3139 = vmatpush.msra.mxu0 %v3106
      %3140 = vmatpush.msra.mxu0 %v3105
      %3141 = vmatmul.f32.gmra.mxu0 %v3073
      %v3142 = vpop.f32.mrf.mxu0
      %v3143 = vadd.f32 %v3123, %v3142
      %3144 = vmatmul.f32.gmra.mxu0 %v3074
      %v3145 = vpop.f32.mrf.mxu0
      %v3146 = vadd.f32 %v3123, %v3145
      %3147 = vmatmul.f32.gmra.mxu0 %v3075
      %v3148 = vpop.f32.mrf.mxu0
      %v3149 = vadd.f32 %v3123, %v3148
      %3150 = vmatmul.f32.gmra.mxu0 %v3076
      %v3151 = vpop.f32.mrf.mxu0
      %v3152 = vadd.f32 %v3123, %v3151
      %3153 = vmatmul.f32.gmra.mxu0 %v3077
      %v3154 = vpop.f32.mrf.mxu0
      %v3155 = vadd.f32 %v3123, %v3154
      %3156 = vmatmul.f32.gmra.mxu0 %v3078
      %v3157 = vpop.f32.mrf.mxu0
      %v3158 = vadd.f32 %v3123, %v3157
      %3159 = vmatmul.f32.gmra.mxu0 %v3079
      %v3160 = vpop.f32.mrf.mxu0
      %v3161 = vadd.f32 %v3123, %v3160
      %3162 = vmatmul.f32.gmra.mxu0 %v3080
      %v3163 = vpop.f32.mrf.mxu0
      %v3164 = vadd.f32 %v3123, %v3163
      %3165 = vmatmul.f32.gmra.mxu0 %v3081
      %v3166 = vpop.f32.mrf.mxu0
      %v3167 = vadd.f32 %v3123, %v3166
      %3168 = vmatmul.f32.gmra.mxu0 %v3082
      %v3169 = vpop.f32.mrf.mxu0
      %v3170 = vadd.f32 %v3123, %v3169
      %3171 = vmatmul.f32.gmra.mxu0 %v3083
      %v3172 = vpop.f32.mrf.mxu0
      %v3173 = vadd.f32 %v3123, %v3172
      %3174 = vmatmul.f32.gmra.mxu0 %v3084
      %v3175 = vpop.f32.mrf.mxu0
      %v3176 = vadd.f32 %v3123, %v3175
      %3177 = vmatmul.f32.gmra.mxu0 %v3085
      %v3178 = vpop.f32.mrf.mxu0
      %v3179 = vadd.f32 %v3123, %v3178
      %3180 = vmatmul.f32.gmra.mxu0 %v3086
      %v3181 = vpop.f32.mrf.mxu0
      %v3182 = vadd.f32 %v3123, %v3181
      %3183 = vmatmul.f32.gmra.mxu0 %v3087
      %v3184 = vpop.f32.mrf.mxu0
      %v3185 = vadd.f32 %v3123, %v3184
      %3186 = vmatmul.f32.gmra.mxu0 %v3088
      %v3187 = vpop.f32.mrf.mxu0
      %v3188 = vadd.f32 %v3123, %v3187
      %3189 = vmatmul.f32.gmra.mxu0 %v3089
      %v3190 = vpop.f32.mrf.mxu0
      %v3191 = vadd.f32 %v3123, %v3190
      %3192 = vmatmul.f32.gmra.mxu0 %v3090
      %v3193 = vpop.f32.mrf.mxu0
      %v3194 = vadd.f32 %v3123, %v3193
      %3195 = vmatmul.f32.gmra.mxu0 %v3091
      %v3196 = vpop.f32.mrf.mxu0
      %v3197 = vadd.f32 %v3123, %v3196
      %3198 = vmatmul.f32.gmra.mxu0 %v3092
      %v3199 = vpop.f32.mrf.mxu0
      %v3200 = vadd.f32 %v3123, %v3199
      %3201 = vmatmul.f32.gmra.mxu0 %v3093
      %v3202 = vpop.f32.mrf.mxu0
      %v3203 = vadd.f32 %v3123, %v3202
      %3204 = vmatmul.f32.gmra.mxu0 %v3094
      %v3205 = vpop.f32.mrf.mxu0
      %v3206 = vadd.f32 %v3123, %v3205
      %3207 = vmatmul.f32.gmra.mxu0 %v3095
      %v3208 = vpop.f32.mrf.mxu0
      %v3209 = vadd.f32 %v3123, %v3208
      %3210 = vmatmul.f32.gmra.mxu0 %v3096
      %v3211 = vpop.f32.mrf.mxu0
      %v3212 = vadd.f32 %v3123, %v3211
      %3213 = vmatmul.f32.gmra.mxu0 %v3097
      %v3214 = vpop.f32.mrf.mxu0
      %v3215 = vadd.f32 %v3123, %v3214
      %3216 = vmatmul.f32.gmra.mxu0 %v3098
      %v3217 = vpop.f32.mrf.mxu0
      %v3218 = vadd.f32 %v3123, %v3217
      %3219 = vmatmul.f32.gmra.mxu0 %v3099
      %v3220 = vpop.f32.mrf.mxu0
      %v3221 = vadd.f32 %v3123, %v3220
      %3222 = vmatmul.f32.gmra.mxu0 %v3100
      %v3223 = vpop.f32.mrf.mxu0
      %v3224 = vadd.f32 %v3123, %v3223
      %3225 = vmatmul.f32.gmra.mxu0 %v3101
      %v3226 = vpop.f32.mrf.mxu0
      %v3227 = vadd.f32 %v3123, %v3226
      %3228 = vmatmul.f32.gmra.mxu0 %v3102
      %v3229 = vpop.f32.mrf.mxu0
      %v3230 = vadd.f32 %v3123, %v3229
      %3231 = vmatmul.f32.gmra.mxu0 %v3103
      %v3232 = vpop.f32.mrf.mxu0
      %v3233 = vadd.f32 %v3123, %v3232
      %3234 = vmatmul.f32.gmra.mxu0 %v3104
      %v3235 = vpop.f32.mrf.mxu0
      %v3236 = vadd.f32 %v3123, %v3235
      %3237 = vdwg.mxu0
      %v3238 = vmax.f32 %v3143, 0.0
      %v3239 = vmax.f32 %v3146, 0.0
      %v3240 = vmax.f32 %v3149, 0.0
      %v3241 = vmax.f32 %v3152, 0.0
      %v3242 = vmax.f32 %v3155, 0.0
      %v3243 = vmax.f32 %v3158, 0.0
      %v3244 = vmax.f32 %v3161, 0.0
      %v3245 = vmax.f32 %v3164, 0.0
      %v3246 = vmax.f32 %v3167, 0.0
      %v3247 = vmax.f32 %v3170, 0.0
      %v3248 = vmax.f32 %v3173, 0.0
      %v3249 = vmax.f32 %v3176, 0.0
      %v3250 = vmax.f32 %v3179, 0.0
      %v3251 = vmax.f32 %v3182, 0.0
      %v3252 = vmax.f32 %v3185, 0.0
      %v3253 = vmax.f32 %v3188, 0.0
      %v3254 = vmax.f32 %v3191, 0.0
      %v3255 = vmax.f32 %v3194, 0.0
      %v3256 = vmax.f32 %v3197, 0.0
      %v3257 = vmax.f32 %v3200, 0.0
      %v3258 = vmax.f32 %v3203, 0.0
      %v3259 = vmax.f32 %v3206, 0.0
      %v3260 = vmax.f32 %v3209, 0.0
      %v3261 = vmax.f32 %v3212, 0.0
      %v3262 = vmax.f32 %v3215, 0.0
      %v3263 = vmax.f32 %v3218, 0.0
      %v3264 = vmax.f32 %v3221, 0.0
      %v3265 = vmax.f32 %v3224, 0.0
      %v3266 = vmax.f32 %v3227, 0.0
      %v3267 = vmax.f32 %v3230, 0.0
      %v3268 = vmax.f32 %v3233, 0.0
      %v3269 = vmax.f32 %v3236, 0.0
      %3270 = vst [vmem:[%s7] sm:$0xff] %v3238
      %3271 = vst [vmem:[%s7 + $0x8] sm:$0xff] %v3239
      %3272 = vst [vmem:[%s7 + $0x10] sm:$0xff] %v3240
      %3273 = vst [vmem:[%s7 + $0x18] sm:$0xff] %v3241
      %3274 = vst [vmem:[%s7 + $0x20] sm:$0xff] %v3242
      %3275 = vst [vmem:[%s7 + $0x28] sm:$0xff] %v3243
      %3276 = vst [vmem:[%s7 + $0x30] sm:$0xff] %v3244
      %3277 = vst [vmem:[%s7 + $0x38] sm:$0xff] %v3245
      %3278 = vst [vmem:[%s7 + $0x40] sm:$0xff] %v3246
      %3279 = vst [vmem:[%s7 + $0x48] sm:$0xff] %v3247
      %3280 = vst [vmem:[%s7 + $0x50] sm:$0xff] %v3248
      %3281 = vst [vmem:[%s7 + $0x58] sm:$0xff] %v3249
      %3282 = vst [vmem:[%s7 + $0x60] sm:$0xff] %v3250
      %3283 = vst [vmem:[%s7 + $0x68] sm:$0xff] %v3251
      %3284 = vst [vmem:[%s7 + $0x70] sm:$0xff] %v3252
      %3285 = vst [vmem:[%s7 + $0x78] sm:$0xff] %v3253
      %3286 = vst [vmem:[%s7 + $0x80] sm:$0xff] %v3254
      %3287 = vst [vmem:[%s7 + $0x88] sm:$0xff] %v3255
      %3288 = vst [vmem:[%s7 + $0x90] sm:$0xff] %v3256
      %3289 = vst [vmem:[%s7 + $0x98] sm:$0xff] %v3257
      %3290 = vst [vmem:[%s7 + $0xa0] sm:$0xff] %v3258
      %3291 = vst [vmem:[%s7 + $0xa8] sm:$0xff] %v3259
      %3292 = vst [vmem:[%s7 + $0xb0] sm:$0xff] %v3260
      %3293 = vst [vmem:[%s7 + $0xb8] sm:$0xff] %v3261
      %3294 = vst [vmem:[%s7 + $0xc0] sm:$0xff] %v3262
      %3295 = vst [vmem:[%s7 + $0xc8] sm:$0xff] %v3263
      %3296 = vst [vmem:[%s7 + $0xd0] sm:$0xff] %v3264
      %3297 = vst [vmem:[%s7 + $0xd8] sm:$0xff] %v3265
      %3298 = vst [vmem:[%s7 + $0xe0] sm:$0xff] %v3266
      %3299 = vst [vmem:[%s7 + $0xe8] sm:$0xff] %v3267
      %3300 = vst [vmem:[%s7 + $0xf0] sm:$0xff] %v3268
      %3301 = vst [vmem:[%s7 + $0xf8] sm:$0xff] %v3269
    $region65: #{ae_forward.2} parent=1 // pred_fallthru
      _
    // Predicated region
    $region66: #{ae_forward.2} parent=1 // pred_check
      _
    $region67: #{ae_forward.2} parent=1 // pred_check_branch
      %3303 = sbr.rel (0) target = $region69
    $region68: #{ae_forward.2} parent=1 // pred_region
      _
    $region69: #{ae_forward.2} parent=1 // pred_fallthru
      _
    // Predicated region
    $region70: #{ae_forward.2} parent=1 // pred_check
      _
    $region71: #{ae_forward.2} parent=1 // pred_check_branch
      %3305 = sbr.rel (0) target = $region73
    $region72: #{ae_forward.2} parent=1 // pred_region
      _
    $region73: #{ae_forward.2} parent=1 // pred_fallthru
      _
    %3306 = vsyncpa [#allocation4], 1
    %3307 = vsyncpa [#allocation6], 1
    %3308 = vsyncpa [#allocation9], 1
    %3309 = vsyncpa [#allocation12], 1

// kernel: ae_forward.3
$region0: #{ae_forward.3}
  #allocation0 [shape = 'u32[]', space=smem, size = 0x4, offset = 0x4, fixed_abs, tag = 'smem constant byte address 0x4 - core index']
  #allocation1 [shape = 'u32[72,128]{1,0:T(1,128)}', space=vmem, size = 0x9000, scoped, tag = 'internal scratch']
  %s0 = inlined_call_operand.vmem [shape: f32[256,128], index: 0, kind: input, shape index: {}]
  %s1 = inlined_call_operand.hbm [shape: f32[128,2048], index: 1, kind: input, shape index: {}]
  %s2 = inlined_call_operand.hbm [shape: f32[1,2048], index: 2, kind: input, shape index: {}]
  %s3 = inlined_call_operand.hbm [shape: f32[256,2048], index: 3, kind: output, shape index: {}]
  %s4 = sld [smem:[#allocation0]]
  $region30: #{ae_forward.3} parent=0
    _
  %s6 = ssub.s32 1, %s4
  %s7 = scalar_select 0, %s6, %s4
  $region1: #{ae_forward.3} parent=0
    #allocation2 [shape = 'u8[1048576]{0}', space=vmem, size = 0x100000, scoped, tag = 'input window, operand 1, single buffered']
    #allocation3 [shape = 's32[1]{0}', space=sflag, size = 0x4, scoped, tag = 'scoped memory for ae_forward.3']
    #allocation4 [shape = 's32[1]{0}', space=sflag, size = 0x4, scoped, tag = 'scoped memory for ae_forward.3']
    #allocation5 [shape = 'u8[8192]{0}', space=vmem, size = 0x2000, scoped, tag = 'input window, operand 2, single buffered']
    #allocation6 [shape = 's32[1]{0}', space=sflag, size = 0x4, scoped, tag = 'scoped memory for ae_forward.3']
    #allocation7 [shape = 'u8[2097152]{0}', space=vmem, size = 0x200000, scoped, tag = 'output window, operand 0, single buffered']
    %8 = vsyncpa [#allocation3], 0
    %9 = vsyncpa [#allocation6], 0
    %10 = vsyncpa [#allocation4], 0
    // Predicated region
    $region2: #{ae_forward.3} parent=1 // pred_check
      _
    $region3: #{ae_forward.3} parent=1 // pred_check_branch
      %12 = sbr.rel (0) target = $region5
    $region4: #{ae_forward.3} parent=1 // pred_region
      _
    $region5: #{ae_forward.3} parent=1 // pred_fallthru
      _
    // Predicated region
    $region6: #{ae_forward.3} parent=1 // pred_check
      _
    $region7: #{ae_forward.3} parent=1 // pred_check_branch
      %14 = sbr.rel (0) target = $region9
    $region8: #{ae_forward.3} parent=1 // pred_region
      %16 = vsyncadd [#allocation3], 0
      %s17 = sshll.u32 %s1, 4
      %s18 = int_to_ptr.hbm [resolvable:$true] %s17
      %s19 = sshll.u32 [#allocation2], 4
      %s20 = int_to_ptr.vmem [resolvable:$true] %s19
      %25 = dma.hbm_to_vmem [thread:$0]  %s18, 32768, %s20, [#allocation3], 2048, 2048, 128
    $region9: #{ae_forward.3} parent=1 // pred_fallthru
      _
    // Predicated region
    $region10: #{ae_forward.3} parent=1 // pred_check
      _
    $region11: #{ae_forward.3} parent=1 // pred_check_branch
      %27 = sbr.rel (0) target = $region13
    $region12: #{ae_forward.3} parent=1 // pred_region
      %29 = vsyncadd [#allocation6], 0
      %s31 = sshll.u32 %s2, 4
      %s32 = int_to_ptr.hbm [resolvable:$true] %s31
      %s33 = sshll.u32 [#allocation5], 4
      %s34 = int_to_ptr.vmem [resolvable:$true] %s33
      %36 = dma.hbm_to_vmem [thread:$0]  %s32, 256, %s34, [#allocation6]
    $region13: #{ae_forward.3} parent=1 // pred_fallthru
      _
    // Predicated region
    $region14: #{ae_forward.3} parent=1 // pred_check
      _
    $region15: #{ae_forward.3} parent=1 // pred_check_branch
      %38 = sbr.rel (0) target = $region17
    $region16: #{ae_forward.3} parent=1 // pred_region
      %40 = dma.done [#allocation3], 32768
    $region17: #{ae_forward.3} parent=1 // pred_fallthru
      _
    // Predicated region
    $region18: #{ae_forward.3} parent=1 // pred_check
      _
    $region19: #{ae_forward.3} parent=1 // pred_check_branch
      %42 = sbr.rel (0) target = $region21
    $region20: #{ae_forward.3} parent=1 // pred_region
      %44 = dma.done [#allocation6], 256
    $region21: #{ae_forward.3} parent=1 // pred_fallthru
      _
    %v45 = vld [vmem:[%s0] sm:$0xff]
    %v46 = vld [vmem:[%s0 + $0x8] sm:$0xff]
    %v47 = vld [vmem:[%s0 + $0x10] sm:$0xff]
    %v48 = vld [vmem:[%s0 + $0x18] sm:$0xff]
    %v49 = vld [vmem:[%s0 + $0x20] sm:$0xff]
    %v50 = vld [vmem:[%s0 + $0x28] sm:$0xff]
    %v51 = vld [vmem:[%s0 + $0x30] sm:$0xff]
    %v52 = vld [vmem:[%s0 + $0x38] sm:$0xff]
    %v53 = vld [vmem:[%s0 + $0x40] sm:$0xff]
    %v54 = vld [vmem:[%s0 + $0x48] sm:$0xff]
    %v55 = vld [vmem:[%s0 + $0x50] sm:$0xff]
    %v56 = vld [vmem:[%s0 + $0x58] sm:$0xff]
    %v57 = vld [vmem:[%s0 + $0x60] sm:$0xff]
    %v58 = vld [vmem:[%s0 + $0x68] sm:$0xff]
    %v59 = vld [vmem:[%s0 + $0x70] sm:$0xff]
    %v60 = vld [vmem:[%s0 + $0x78] sm:$0xff]
    %v61 = vld [vmem:[%s0 + $0x80] sm:$0xff]
    %v62 = vld [vmem:[%s0 + $0x88] sm:$0xff]
    %v63 = vld [vmem:[%s0 + $0x90] sm:$0xff]
    %v64 = vld [vmem:[%s0 + $0x98] sm:$0xff]
    %v65 = vld [vmem:[%s0 + $0xa0] sm:$0xff]
    %v66 = vld [vmem:[%s0 + $0xa8] sm:$0xff]
    %v67 = vld [vmem:[%s0 + $0xb0] sm:$0xff]
    %v68 = vld [vmem:[%s0 + $0xb8] sm:$0xff]
    %v69 = vld [vmem:[%s0 + $0xc0] sm:$0xff]
    %v70 = vld [vmem:[%s0 + $0xc8] sm:$0xff]
    %v71 = vld [vmem:[%s0 + $0xd0] sm:$0xff]
    %v72 = vld [vmem:[%s0 + $0xd8] sm:$0xff]
    %v73 = vld [vmem:[%s0 + $0xe0] sm:$0xff]
    %v74 = vld [vmem:[%s0 + $0xe8] sm:$0xff]
    %v75 = vld [vmem:[%s0 + $0xf0] sm:$0xff]
    %v76 = vld [vmem:[%s0 + $0xf8] sm:$0xff]
    %v77 = vld [vmem:[#allocation2] sm:$0xff]
    %v78 = vld [vmem:[#allocation2 + $0x8] sm:$0xff]
    %v79 = vld [vmem:[#allocation2 + $0x10] sm:$0xff]
    %v80 = vld [vmem:[#allocation2 + $0x18] sm:$0xff]
    %v81 = vld [vmem:[#allocation2 + $0x20] sm:$0xff]
    %v82 = vld [vmem:[#allocation2 + $0x28] sm:$0xff]
    %v83 = vld [vmem:[#allocation2 + $0x30] sm:$0xff]
    %v84 = vld [vmem:[#allocation2 + $0x38] sm:$0xff]
    %v85 = vld [vmem:[#allocation2 + $0x40] sm:$0xff]
    %v86 = vld [vmem:[#allocation2 + $0x48] sm:$0xff]
    %v87 = vld [vmem:[#allocation2 + $0x50] sm:$0xff]
    %v88 = vld [vmem:[#allocation2 + $0x58] sm:$0xff]
    %v89 = vld [vmem:[#allocation2 + $0x60] sm:$0xff]
    %v90 = vld [vmem:[#allocation2 + $0x68] sm:$0xff]
    %v91 = vld [vmem:[#allocation2 + $0x70] sm:$0xff]
    %v92 = vld [vmem:[#allocation2 + $0x78] sm:$0xff]
    %v93 = vld [vmem:[#allocation2 + $0x80] sm:$0xff]
    %v94 = vld [vmem:[#allocation2 + $0x88] sm:$0xff]
    %v95 = vld [vmem:[#allocation2 + $0x90] sm:$0xff]
    %v96 = vld [vmem:[#allocation2 + $0x98] sm:$0xff]
    %v97 = vld [vmem:[#allocation2 + $0xa0] sm:$0xff]
    %v98 = vld [vmem:[#allocation2 + $0xa8] sm:$0xff]
    %v99 = vld [vmem:[#allocation2 + $0xb0] sm:$0xff]
    %v100 = vld [vmem:[#allocation2 + $0xb8] sm:$0xff]
    %v101 = vld [vmem:[#allocation2 + $0xc0] sm:$0xff]
    %v102 = vld [vmem:[#allocation2 + $0xc8] sm:$0xff]
    %v103 = vld [vmem:[#allocation2 + $0xd0] sm:$0xff]
    %v104 = vld [vmem:[#allocation2 + $0xd8] sm:$0xff]
    %v105 = vld [vmem:[#allocation2 + $0xe0] sm:$0xff]
    %v106 = vld [vmem:[#allocation2 + $0xe8] sm:$0xff]
    %v107 = vld [vmem:[#allocation2 + $0xf0] sm:$0xff]
    %v108 = vld [vmem:[#allocation2 + $0xf8] sm:$0xff]
    %v109 = vld [vmem:[#allocation2 + $0x100] sm:$0xff]
    %v110 = vld [vmem:[#allocation2 + $0x108] sm:$0xff]
    %v111 = vld [vmem:[#allocation2 + $0x110] sm:$0xff]
    %v112 = vld [vmem:[#allocation2 + $0x118] sm:$0xff]
    %v113 = vld [vmem:[#allocation2 + $0x120] sm:$0xff]
    %v114 = vld [vmem:[#allocation2 + $0x128] sm:$0xff]
    %v115 = vld [vmem:[#allocation2 + $0x130] sm:$0xff]
    %v116 = vld [vmem:[#allocation2 + $0x138] sm:$0xff]
    %v117 = vld [vmem:[#allocation2 + $0x140] sm:$0xff]
    %v118 = vld [vmem:[#allocation2 + $0x148] sm:$0xff]
    %v119 = vld [vmem:[#allocation2 + $0x150] sm:$0xff]
    %v120 = vld [vmem:[#allocation2 + $0x158] sm:$0xff]
    %v121 = vld [vmem:[#allocation2 + $0x160] sm:$0xff]
    %v122 = vld [vmem:[#allocation2 + $0x168] sm:$0xff]
    %v123 = vld [vmem:[#allocation2 + $0x170] sm:$0xff]
    %v124 = vld [vmem:[#allocation2 + $0x178] sm:$0xff]
    %v125 = vld [vmem:[#allocation2 + $0x180] sm:$0xff]
    %v126 = vld [vmem:[#allocation2 + $0x188] sm:$0xff]
    %v127 = vld [vmem:[#allocation2 + $0x190] sm:$0xff]
    %v128 = vld [vmem:[#allocation2 + $0x198] sm:$0xff]
    %v129 = vld [vmem:[#allocation2 + $0x1a0] sm:$0xff]
    %v130 = vld [vmem:[#allocation2 + $0x1a8] sm:$0xff]
    %v131 = vld [vmem:[#allocation2 + $0x1b0] sm:$0xff]
    %v132 = vld [vmem:[#allocation2 + $0x1b8] sm:$0xff]
    %v133 = vld [vmem:[#allocation2 + $0x1c0] sm:$0xff]
    %v134 = vld [vmem:[#allocation2 + $0x1c8] sm:$0xff]
    %v135 = vld [vmem:[#allocation2 + $0x1d0] sm:$0xff]
    %v136 = vld [vmem:[#allocation2 + $0x1d8] sm:$0xff]
    %v137 = vld [vmem:[#allocation2 + $0x1e0] sm:$0xff]
    %v138 = vld [vmem:[#allocation2 + $0x1e8] sm:$0xff]
    %v139 = vld [vmem:[#allocation2 + $0x1f0] sm:$0xff]
    %v140 = vld [vmem:[#allocation2 + $0x1f8] sm:$0xff]
    %v141 = vld [vmem:[#allocation2 + $0x200] sm:$0xff]
    %v142 = vld [vmem:[#allocation2 + $0x208] sm:$0xff]
    %v143 = vld [vmem:[#allocation2 + $0x210] sm:$0xff]
    %v144 = vld [vmem:[#allocation2 + $0x218] sm:$0xff]
    %v145 = vld [vmem:[#allocation2 + $0x220] sm:$0xff]
    %v146 = vld [vmem:[#allocation2 + $0x228] sm:$0xff]
    %v147 = vld [vmem:[#allocation2 + $0x230] sm:$0xff]
    %v148 = vld [vmem:[#allocation2 + $0x238] sm:$0xff]
    %v149 = vld [vmem:[#allocation2 + $0x240] sm:$0xff]
    %v150 = vld [vmem:[#allocation2 + $0x248] sm:$0xff]
    %v151 = vld [vmem:[#allocation2 + $0x250] sm:$0xff]
    %v152 = vld [vmem:[#allocation2 + $0x258] sm:$0xff]
    %v153 = vld [vmem:[#allocation2 + $0x260] sm:$0xff]
    %v154 = vld [vmem:[#allocation2 + $0x268] sm:$0xff]
    %v155 = vld [vmem:[#allocation2 + $0x270] sm:$0xff]
    %v156 = vld [vmem:[#allocation2 + $0x278] sm:$0xff]
    %v157 = vld [vmem:[#allocation2 + $0x280] sm:$0xff]
    %v158 = vld [vmem:[#allocation2 + $0x288] sm:$0xff]
    %v159 = vld [vmem:[#allocation2 + $0x290] sm:$0xff]
    %v160 = vld [vmem:[#allocation2 + $0x298] sm:$0xff]
    %v161 = vld [vmem:[#allocation2 + $0x2a0] sm:$0xff]
    %v162 = vld [vmem:[#allocation2 + $0x2a8] sm:$0xff]
    %v163 = vld [vmem:[#allocation2 + $0x2b0] sm:$0xff]
    %v164 = vld [vmem:[#allocation2 + $0x2b8] sm:$0xff]
    %v165 = vld [vmem:[#allocation2 + $0x2c0] sm:$0xff]
    %v166 = vld [vmem:[#allocation2 + $0x2c8] sm:$0xff]
    %v167 = vld [vmem:[#allocation2 + $0x2d0] sm:$0xff]
    %v168 = vld [vmem:[#allocation2 + $0x2d8] sm:$0xff]
    %v169 = vld [vmem:[#allocation2 + $0x2e0] sm:$0xff]
    %v170 = vld [vmem:[#allocation2 + $0x2e8] sm:$0xff]
    %v171 = vld [vmem:[#allocation2 + $0x2f0] sm:$0xff]
    %v172 = vld [vmem:[#allocation2 + $0x2f8] sm:$0xff]
    %v173 = vld [vmem:[#allocation2 + $0x300] sm:$0xff]
    %v174 = vld [vmem:[#allocation2 + $0x308] sm:$0xff]
    %v175 = vld [vmem:[#allocation2 + $0x310] sm:$0xff]
    %v176 = vld [vmem:[#allocation2 + $0x318] sm:$0xff]
    %v177 = vld [vmem:[#allocation2 + $0x320] sm:$0xff]
    %v178 = vld [vmem:[#allocation2 + $0x328] sm:$0xff]
    %v179 = vld [vmem:[#allocation2 + $0x330] sm:$0xff]
    %v180 = vld [vmem:[#allocation2 + $0x338] sm:$0xff]
    %v181 = vld [vmem:[#allocation2 + $0x340] sm:$0xff]
    %v182 = vld [vmem:[#allocation2 + $0x348] sm:$0xff]
    %v183 = vld [vmem:[#allocation2 + $0x350] sm:$0xff]
    %v184 = vld [vmem:[#allocation2 + $0x358] sm:$0xff]
    %v185 = vld [vmem:[#allocation2 + $0x360] sm:$0xff]
    %v186 = vld [vmem:[#allocation2 + $0x368] sm:$0xff]
    %v187 = vld [vmem:[#allocation2 + $0x370] sm:$0xff]
    %v188 = vld [vmem:[#allocation2 + $0x378] sm:$0xff]
    %v189 = vld [vmem:[#allocation2 + $0x380] sm:$0xff]
    %v190 = vld [vmem:[#allocation2 + $0x388] sm:$0xff]
    %v191 = vld [vmem:[#allocation2 + $0x390] sm:$0xff]
    %v192 = vld [vmem:[#allocation2 + $0x398] sm:$0xff]
    %v193 = vld [vmem:[#allocation2 + $0x3a0] sm:$0xff]
    %v194 = vld [vmem:[#allocation2 + $0x3a8] sm:$0xff]
    %v195 = vld [vmem:[#allocation2 + $0x3b0] sm:$0xff]
    %v196 = vld [vmem:[#allocation2 + $0x3b8] sm:$0xff]
    %v197 = vld [vmem:[#allocation2 + $0x3c0] sm:$0xff]
    %v198 = vld [vmem:[#allocation2 + $0x3c8] sm:$0xff]
    %v199 = vld [vmem:[#allocation2 + $0x3d0] sm:$0xff]
    %v200 = vld [vmem:[#allocation2 + $0x3d8] sm:$0xff]
    %v201 = vld [vmem:[#allocation2 + $0x3e0] sm:$0xff]
    %v202 = vld [vmem:[#allocation2 + $0x3e8] sm:$0xff]
    %v203 = vld [vmem:[#allocation2 + $0x3f0] sm:$0xff]
    %v204 = vld [vmem:[#allocation2 + $0x3f8] sm:$0xff]
    %v205 = vld [vmem:[#allocation2 + $0x400] sm:$0xff]
    %v206 = vld [vmem:[#allocation2 + $0x408] sm:$0xff]
    %v207 = vld [vmem:[#allocation2 + $0x410] sm:$0xff]
    %v208 = vld [vmem:[#allocation2 + $0x418] sm:$0xff]
    %v209 = vld [vmem:[#allocation2 + $0x420] sm:$0xff]
    %v210 = vld [vmem:[#allocation2 + $0x428] sm:$0xff]
    %v211 = vld [vmem:[#allocation2 + $0x430] sm:$0xff]
    %v212 = vld [vmem:[#allocation2 + $0x438] sm:$0xff]
    %v213 = vld [vmem:[#allocation2 + $0x440] sm:$0xff]
    %v214 = vld [vmem:[#allocation2 + $0x448] sm:$0xff]
    %v215 = vld [vmem:[#allocation2 + $0x450] sm:$0xff]
    %v216 = vld [vmem:[#allocation2 + $0x458] sm:$0xff]
    %v217 = vld [vmem:[#allocation2 + $0x460] sm:$0xff]
    %v218 = vld [vmem:[#allocation2 + $0x468] sm:$0xff]
    %v219 = vld [vmem:[#allocation2 + $0x470] sm:$0xff]
    %v220 = vld [vmem:[#allocation2 + $0x478] sm:$0xff]
    %v221 = vld [vmem:[#allocation2 + $0x480] sm:$0xff]
    %v222 = vld [vmem:[#allocation2 + $0x488] sm:$0xff]
    %v223 = vld [vmem:[#allocation2 + $0x490] sm:$0xff]
    %v224 = vld [vmem:[#allocation2 + $0x498] sm:$0xff]
    %v225 = vld [vmem:[#allocation2 + $0x4a0] sm:$0xff]
    %v226 = vld [vmem:[#allocation2 + $0x4a8] sm:$0xff]
    %v227 = vld [vmem:[#allocation2 + $0x4b0] sm:$0xff]
    %v228 = vld [vmem:[#allocation2 + $0x4b8] sm:$0xff]
    %v229 = vld [vmem:[#allocation2 + $0x4c0] sm:$0xff]
    %v230 = vld [vmem:[#allocation2 + $0x4c8] sm:$0xff]
    %v231 = vld [vmem:[#allocation2 + $0x4d0] sm:$0xff]
    %v232 = vld [vmem:[#allocation2 + $0x4d8] sm:$0xff]
    %v233 = vld [vmem:[#allocation2 + $0x4e0] sm:$0xff]
    %v234 = vld [vmem:[#allocation2 + $0x4e8] sm:$0xff]
    %v235 = vld [vmem:[#allocation2 + $0x4f0] sm:$0xff]
    %v236 = vld [vmem:[#allocation2 + $0x4f8] sm:$0xff]
    %v237 = vld [vmem:[#allocation2 + $0x500] sm:$0xff]
    %v238 = vld [vmem:[#allocation2 + $0x508] sm:$0xff]
    %v239 = vld [vmem:[#allocation2 + $0x510] sm:$0xff]
    %v240 = vld [vmem:[#allocation2 + $0x518] sm:$0xff]
    %v241 = vld [vmem:[#allocation2 + $0x520] sm:$0xff]
    %v242 = vld [vmem:[#allocation2 + $0x528] sm:$0xff]
    %v243 = vld [vmem:[#allocation2 + $0x530] sm:$0xff]
    %v244 = vld [vmem:[#allocation2 + $0x538] sm:$0xff]
    %v245 = vld [vmem:[#allocation2 + $0x540] sm:$0xff]
    %v246 = vld [vmem:[#allocation2 + $0x548] sm:$0xff]
    %v247 = vld [vmem:[#allocation2 + $0x550] sm:$0xff]
    %v248 = vld [vmem:[#allocation2 + $0x558] sm:$0xff]
    %v249 = vld [vmem:[#allocation2 + $0x560] sm:$0xff]
    %v250 = vld [vmem:[#allocation2 + $0x568] sm:$0xff]
    %v251 = vld [vmem:[#allocation2 + $0x570] sm:$0xff]
    %v252 = vld [vmem:[#allocation2 + $0x578] sm:$0xff]
    %v253 = vld [vmem:[#allocation2 + $0x580] sm:$0xff]
    %v254 = vld [vmem:[#allocation2 + $0x588] sm:$0xff]
    %v255 = vld [vmem:[#allocation2 + $0x590] sm:$0xff]
    %v256 = vld [vmem:[#allocation2 + $0x598] sm:$0xff]
    %v257 = vld [vmem:[#allocation2 + $0x5a0] sm:$0xff]
    %v258 = vld [vmem:[#allocation2 + $0x5a8] sm:$0xff]
    %v259 = vld [vmem:[#allocation2 + $0x5b0] sm:$0xff]
    %v260 = vld [vmem:[#allocation2 + $0x5b8] sm:$0xff]
    %v261 = vld [vmem:[#allocation2 + $0x5c0] sm:$0xff]
    %v262 = vld [vmem:[#allocation2 + $0x5c8] sm:$0xff]
    %v263 = vld [vmem:[#allocation2 + $0x5d0] sm:$0xff]
    %v264 = vld [vmem:[#allocation2 + $0x5d8] sm:$0xff]
    %v265 = vld [vmem:[#allocation2 + $0x5e0] sm:$0xff]
    %v266 = vld [vmem:[#allocation2 + $0x5e8] sm:$0xff]
    %v267 = vld [vmem:[#allocation2 + $0x5f0] sm:$0xff]
    %v268 = vld [vmem:[#allocation2 + $0x5f8] sm:$0xff]
    %v269 = vld [vmem:[#allocation2 + $0x600] sm:$0xff]
    %v270 = vld [vmem:[#allocation2 + $0x608] sm:$0xff]
    %v271 = vld [vmem:[#allocation2 + $0x610] sm:$0xff]
    %v272 = vld [vmem:[#allocation2 + $0x618] sm:$0xff]
    %v273 = vld [vmem:[#allocation2 + $0x620] sm:$0xff]
    %v274 = vld [vmem:[#allocation2 + $0x628] sm:$0xff]
    %v275 = vld [vmem:[#allocation2 + $0x630] sm:$0xff]
    %v276 = vld [vmem:[#allocation2 + $0x638] sm:$0xff]
    %v277 = vld [vmem:[#allocation2 + $0x640] sm:$0xff]
    %v278 = vld [vmem:[#allocation2 + $0x648] sm:$0xff]
    %v279 = vld [vmem:[#allocation2 + $0x650] sm:$0xff]
    %v280 = vld [vmem:[#allocation2 + $0x658] sm:$0xff]
    %v281 = vld [vmem:[#allocation2 + $0x660] sm:$0xff]
    %v282 = vld [vmem:[#allocation2 + $0x668] sm:$0xff]
    %v283 = vld [vmem:[#allocation2 + $0x670] sm:$0xff]
    %v284 = vld [vmem:[#allocation2 + $0x678] sm:$0xff]
    %v285 = vld [vmem:[#allocation2 + $0x680] sm:$0xff]
    %v286 = vld [vmem:[#allocation2 + $0x688] sm:$0xff]
    %v287 = vld [vmem:[#allocation2 + $0x690] sm:$0xff]
    %v288 = vld [vmem:[#allocation2 + $0x698] sm:$0xff]
    %v289 = vld [vmem:[#allocation2 + $0x6a0] sm:$0xff]
    %v290 = vld [vmem:[#allocation2 + $0x6a8] sm:$0xff]
    %v291 = vld [vmem:[#allocation2 + $0x6b0] sm:$0xff]
    %v292 = vld [vmem:[#allocation2 + $0x6b8] sm:$0xff]
    %v293 = vld [vmem:[#allocation2 + $0x6c0] sm:$0xff]
    %v294 = vld [vmem:[#allocation2 + $0x6c8] sm:$0xff]
    %v295 = vld [vmem:[#allocation2 + $0x6d0] sm:$0xff]
    %v296 = vld [vmem:[#allocation2 + $0x6d8] sm:$0xff]
    %v297 = vld [vmem:[#allocation2 + $0x6e0] sm:$0xff]
    %v298 = vld [vmem:[#allocation2 + $0x6e8] sm:$0xff]
    %v299 = vld [vmem:[#allocation2 + $0x6f0] sm:$0xff]
    %v300 = vld [vmem:[#allocation2 + $0x6f8] sm:$0xff]
    %v301 = vld [vmem:[#allocation2 + $0x700] sm:$0xff]
    %v302 = vld [vmem:[#allocation2 + $0x708] sm:$0xff]
    %v303 = vld [vmem:[#allocation2 + $0x710] sm:$0xff]
    %v304 = vld [vmem:[#allocation2 + $0x718] sm:$0xff]
    %v305 = vld [vmem:[#allocation2 + $0x720] sm:$0xff]
    %v306 = vld [vmem:[#allocation2 + $0x728] sm:$0xff]
    %v307 = vld [vmem:[#allocation2 + $0x730] sm:$0xff]
    %v308 = vld [vmem:[#allocation2 + $0x738] sm:$0xff]
    %v309 = vld [vmem:[#allocation2 + $0x740] sm:$0xff]
    %v310 = vld [vmem:[#allocation2 + $0x748] sm:$0xff]
    %v311 = vld [vmem:[#allocation2 + $0x750] sm:$0xff]
    %v312 = vld [vmem:[#allocation2 + $0x758] sm:$0xff]
    %v313 = vld [vmem:[#allocation2 + $0x760] sm:$0xff]
    %v314 = vld [vmem:[#allocation2 + $0x768] sm:$0xff]
    %v315 = vld [vmem:[#allocation2 + $0x770] sm:$0xff]
    %v316 = vld [vmem:[#allocation2 + $0x778] sm:$0xff]
    %v317 = vld [vmem:[#allocation2 + $0x780] sm:$0xff]
    %v318 = vld [vmem:[#allocation2 + $0x788] sm:$0xff]
    %v319 = vld [vmem:[#allocation2 + $0x790] sm:$0xff]
    %v320 = vld [vmem:[#allocation2 + $0x798] sm:$0xff]
    %v321 = vld [vmem:[#allocation2 + $0x7a0] sm:$0xff]
    %v322 = vld [vmem:[#allocation2 + $0x7a8] sm:$0xff]
    %v323 = vld [vmem:[#allocation2 + $0x7b0] sm:$0xff]
    %v324 = vld [vmem:[#allocation2 + $0x7b8] sm:$0xff]
    %v325 = vld [vmem:[#allocation2 + $0x7c0] sm:$0xff]
    %v326 = vld [vmem:[#allocation2 + $0x7c8] sm:$0xff]
    %v327 = vld [vmem:[#allocation2 + $0x7d0] sm:$0xff]
    %v328 = vld [vmem:[#allocation2 + $0x7d8] sm:$0xff]
    %v329 = vld [vmem:[#allocation2 + $0x7e0] sm:$0xff]
    %v330 = vld [vmem:[#allocation2 + $0x7e8] sm:$0xff]
    %v331 = vld [vmem:[#allocation2 + $0x7f0] sm:$0xff]
    %v332 = vld [vmem:[#allocation2 + $0x7f8] sm:$0xff]
    %v333 = vld [vmem:[#allocation5] sm:$0xff]
    %v334 = vld [vmem:[#allocation5 + $0x8] sm:$0xff]
    %v337 = vperm.slane %v333, 0
    %v338 = vperm.slane %v333, 1
    %v339 = vperm.slane %v333, 2
    %v340 = vperm.slane %v333, 3
    %v341 = vperm.slane %v333, 4
    %v342 = vperm.slane %v333, 5
    %v343 = vperm.slane %v333, 6
    %v344 = vperm.slane %v333, 7
    %v345 = vperm.slane %v334, 0
    %v346 = vperm.slane %v334, 1
    %v347 = vperm.slane %v334, 2
    %v348 = vperm.slane %v334, 3
    %v349 = vperm.slane %v334, 4
    %v350 = vperm.slane %v334, 5
    %v351 = vperm.slane %v334, 6
    %v352 = vperm.slane %v334, 7
    %369 = vmatpush.msra.mxu0 %v317
    %370 = vmatpush.msra.mxu0 %v301
    %371 = vmatpush.msra.mxu0 %v285
    %372 = vmatpush.msra.mxu0 %v269
    %373 = vmatpush.msra.mxu0 %v253
    %374 = vmatpush.msra.mxu0 %v237
    %375 = vmatpush.msra.mxu0 %v221
    %376 = vmatpush.msra.mxu0 %v205
    %377 = vmatpush.msra.mxu0 %v189
    %378 = vmatpush.msra.mxu0 %v173
    %379 = vmatpush.msra.mxu0 %v157
    %380 = vmatpush.msra.mxu0 %v141
    %381 = vmatpush.msra.mxu0 %v125
    %382 = vmatpush.msra.mxu0 %v109
    %383 = vmatpush.msra.mxu0 %v93
    %384 = vmatpush.msra.mxu0 %v77
    %385 = vmatmul.f32.gmra.mxu0 %v45
    %v386 = vpop.f32.mrf.mxu0
    %v387 = vadd.f32 %v337, %v386
    %388 = vmatmul.f32.gmra.mxu0 %v46
    %v389 = vpop.f32.mrf.mxu0
    %v390 = vadd.f32 %v337, %v389
    %391 = vmatmul.f32.gmra.mxu0 %v47
    %v392 = vpop.f32.mrf.mxu0
    %v393 = vadd.f32 %v337, %v392
    %394 = vmatmul.f32.gmra.mxu0 %v48
    %v395 = vpop.f32.mrf.mxu0
    %v396 = vadd.f32 %v337, %v395
    %397 = vmatmul.f32.gmra.mxu0 %v49
    %v398 = vpop.f32.mrf.mxu0
    %v399 = vadd.f32 %v337, %v398
    %400 = vmatmul.f32.gmra.mxu0 %v50
    %v401 = vpop.f32.mrf.mxu0
    %v402 = vadd.f32 %v337, %v401
    %403 = vmatmul.f32.gmra.mxu0 %v51
    %v404 = vpop.f32.mrf.mxu0
    %v405 = vadd.f32 %v337, %v404
    %406 = vmatmul.f32.gmra.mxu0 %v52
    %v407 = vpop.f32.mrf.mxu0
    %v408 = vadd.f32 %v337, %v407
    %409 = vmatmul.f32.gmra.mxu0 %v53
    %v410 = vpop.f32.mrf.mxu0
    %v411 = vadd.f32 %v337, %v410
    %412 = vmatmul.f32.gmra.mxu0 %v54
    %v413 = vpop.f32.mrf.mxu0
    %v414 = vadd.f32 %v337, %v413
    %415 = vmatmul.f32.gmra.mxu0 %v55
    %v416 = vpop.f32.mrf.mxu0
    %v417 = vadd.f32 %v337, %v416
    %418 = vmatmul.f32.gmra.mxu0 %v56
    %v419 = vpop.f32.mrf.mxu0
    %v420 = vadd.f32 %v337, %v419
    %421 = vmatmul.f32.gmra.mxu0 %v57
    %v422 = vpop.f32.mrf.mxu0
    %v423 = vadd.f32 %v337, %v422
    %424 = vmatmul.f32.gmra.mxu0 %v58
    %v425 = vpop.f32.mrf.mxu0
    %v426 = vadd.f32 %v337, %v425
    %427 = vmatmul.f32.gmra.mxu0 %v59
    %v428 = vpop.f32.mrf.mxu0
    %v429 = vadd.f32 %v337, %v428
    %430 = vmatmul.f32.gmra.mxu0 %v60
    %v431 = vpop.f32.mrf.mxu0
    %v432 = vadd.f32 %v337, %v431
    %433 = vmatmul.f32.gmra.mxu0 %v61
    %v434 = vpop.f32.mrf.mxu0
    %v435 = vadd.f32 %v337, %v434
    %436 = vmatmul.f32.gmra.mxu0 %v62
    %v437 = vpop.f32.mrf.mxu0
    %v438 = vadd.f32 %v337, %v437
    %439 = vmatmul.f32.gmra.mxu0 %v63
    %v440 = vpop.f32.mrf.mxu0
    %v441 = vadd.f32 %v337, %v440
    %442 = vmatmul.f32.gmra.mxu0 %v64
    %v443 = vpop.f32.mrf.mxu0
    %v444 = vadd.f32 %v337, %v443
    %445 = vmatmul.f32.gmra.mxu0 %v65
    %v446 = vpop.f32.mrf.mxu0
    %v447 = vadd.f32 %v337, %v446
    %448 = vmatmul.f32.gmra.mxu0 %v66
    %v449 = vpop.f32.mrf.mxu0
    %v450 = vadd.f32 %v337, %v449
    %451 = vmatmul.f32.gmra.mxu0 %v67
    %v452 = vpop.f32.mrf.mxu0
    %v453 = vadd.f32 %v337, %v452
    %454 = vmatmul.f32.gmra.mxu0 %v68
    %v455 = vpop.f32.mrf.mxu0
    %v456 = vadd.f32 %v337, %v455
    %457 = vmatmul.f32.gmra.mxu0 %v69
    %v458 = vpop.f32.mrf.mxu0
    %v459 = vadd.f32 %v337, %v458
    %460 = vmatmul.f32.gmra.mxu0 %v70
    %v461 = vpop.f32.mrf.mxu0
    %v462 = vadd.f32 %v337, %v461
    %463 = vmatmul.f32.gmra.mxu0 %v71
    %v464 = vpop.f32.mrf.mxu0
    %v465 = vadd.f32 %v337, %v464
    %466 = vmatmul.f32.gmra.mxu0 %v72
    %v467 = vpop.f32.mrf.mxu0
    %v468 = vadd.f32 %v337, %v467
    %469 = vmatmul.f32.gmra.mxu0 %v73
    %v470 = vpop.f32.mrf.mxu0
    %v471 = vadd.f32 %v337, %v470
    %472 = vmatmul.f32.gmra.mxu0 %v74
    %v473 = vpop.f32.mrf.mxu0
    %v474 = vadd.f32 %v337, %v473
    %475 = vmatmul.f32.gmra.mxu0 %v75
    %v476 = vpop.f32.mrf.mxu0
    %v477 = vadd.f32 %v337, %v476
    %478 = vmatmul.f32.gmra.mxu0 %v76
    %v479 = vpop.f32.mrf.mxu0
    %v480 = vadd.f32 %v337, %v479
    %481 = vdwg.mxu0
    %482 = vmatpush.msra.mxu0 %v318
    %483 = vmatpush.msra.mxu0 %v302
    %484 = vmatpush.msra.mxu0 %v286
    %485 = vmatpush.msra.mxu0 %v270
    %486 = vmatpush.msra.mxu0 %v254
    %487 = vmatpush.msra.mxu0 %v238
    %488 = vmatpush.msra.mxu0 %v222
    %489 = vmatpush.msra.mxu0 %v206
    %490 = vmatpush.msra.mxu0 %v190
    %491 = vmatpush.msra.mxu0 %v174
    %492 = vmatpush.msra.mxu0 %v158
    %493 = vmatpush.msra.mxu0 %v142
    %494 = vmatpush.msra.mxu0 %v126
    %495 = vmatpush.msra.mxu0 %v110
    %496 = vmatpush.msra.mxu0 %v94
    %497 = vmatpush.msra.mxu0 %v78
    %498 = vmatmul.f32.gmra.mxu0 %v45
    %v499 = vpop.f32.mrf.mxu0
    %v500 = vadd.f32 %v338, %v499
    %501 = vmatmul.f32.gmra.mxu0 %v46
    %v502 = vpop.f32.mrf.mxu0
    %v503 = vadd.f32 %v338, %v502
    %504 = vmatmul.f32.gmra.mxu0 %v47
    %v505 = vpop.f32.mrf.mxu0
    %v506 = vadd.f32 %v338, %v505
    %507 = vmatmul.f32.gmra.mxu0 %v48
    %v508 = vpop.f32.mrf.mxu0
    %v509 = vadd.f32 %v338, %v508
    %510 = vmatmul.f32.gmra.mxu0 %v49
    %v511 = vpop.f32.mrf.mxu0
    %v512 = vadd.f32 %v338, %v511
    %513 = vmatmul.f32.gmra.mxu0 %v50
    %v514 = vpop.f32.mrf.mxu0
    %v515 = vadd.f32 %v338, %v514
    %516 = vmatmul.f32.gmra.mxu0 %v51
    %v517 = vpop.f32.mrf.mxu0
    %v518 = vadd.f32 %v338, %v517
    %519 = vmatmul.f32.gmra.mxu0 %v52
    %v520 = vpop.f32.mrf.mxu0
    %v521 = vadd.f32 %v338, %v520
    %522 = vmatmul.f32.gmra.mxu0 %v53
    %v523 = vpop.f32.mrf.mxu0
    %v524 = vadd.f32 %v338, %v523
    %525 = vmatmul.f32.gmra.mxu0 %v54
    %v526 = vpop.f32.mrf.mxu0
    %v527 = vadd.f32 %v338, %v526
    %528 = vmatmul.f32.gmra.mxu0 %v55
    %v529 = vpop.f32.mrf.mxu0
    %v530 = vadd.f32 %v338, %v529
    %531 = vmatmul.f32.gmra.mxu0 %v56
    %v532 = vpop.f32.mrf.mxu0
    %v533 = vadd.f32 %v338, %v532
    %534 = vmatmul.f32.gmra.mxu0 %v57
    %v535 = vpop.f32.mrf.mxu0
    %v536 = vadd.f32 %v338, %v535
    %537 = vmatmul.f32.gmra.mxu0 %v58
    %v538 = vpop.f32.mrf.mxu0
    %v539 = vadd.f32 %v338, %v538
    %540 = vmatmul.f32.gmra.mxu0 %v59
    %v541 = vpop.f32.mrf.mxu0
    %v542 = vadd.f32 %v338, %v541
    %543 = vmatmul.f32.gmra.mxu0 %v60
    %v544 = vpop.f32.mrf.mxu0
    %v545 = vadd.f32 %v338, %v544
    %546 = vmatmul.f32.gmra.mxu0 %v61
    %v547 = vpop.f32.mrf.mxu0
    %v548 = vadd.f32 %v338, %v547
    %549 = vmatmul.f32.gmra.mxu0 %v62
    %v550 = vpop.f32.mrf.mxu0
    %v551 = vadd.f32 %v338, %v550
    %552 = vmatmul.f32.gmra.mxu0 %v63
    %v553 = vpop.f32.mrf.mxu0
    %v554 = vadd.f32 %v338, %v553
    %555 = vmatmul.f32.gmra.mxu0 %v64
    %v556 = vpop.f32.mrf.mxu0
    %v557 = vadd.f32 %v338, %v556
    %558 = vmatmul.f32.gmra.mxu0 %v65
    %v559 = vpop.f32.mrf.mxu0
    %v560 = vadd.f32 %v338, %v559
    %561 = vmatmul.f32.gmra.mxu0 %v66
    %v562 = vpop.f32.mrf.mxu0
    %v563 = vadd.f32 %v338, %v562
    %564 = vmatmul.f32.gmra.mxu0 %v67
    %v565 = vpop.f32.mrf.mxu0
    %v566 = vadd.f32 %v338, %v565
    %567 = vmatmul.f32.gmra.mxu0 %v68
    %v568 = vpop.f32.mrf.mxu0
    %v569 = vadd.f32 %v338, %v568
    %570 = vmatmul.f32.gmra.mxu0 %v69
    %v571 = vpop.f32.mrf.mxu0
    %v572 = vadd.f32 %v338, %v571
    %573 = vmatmul.f32.gmra.mxu0 %v70
    %v574 = vpop.f32.mrf.mxu0
    %v575 = vadd.f32 %v338, %v574
    %576 = vmatmul.f32.gmra.mxu0 %v71
    %v577 = vpop.f32.mrf.mxu0
    %v578 = vadd.f32 %v338, %v577
    %579 = vmatmul.f32.gmra.mxu0 %v72
    %v580 = vpop.f32.mrf.mxu0
    %v581 = vadd.f32 %v338, %v580
    %582 = vmatmul.f32.gmra.mxu0 %v73
    %v583 = vpop.f32.mrf.mxu0
    %v584 = vadd.f32 %v338, %v583
    %585 = vmatmul.f32.gmra.mxu0 %v74
    %v586 = vpop.f32.mrf.mxu0
    %v587 = vadd.f32 %v338, %v586
    %588 = vmatmul.f32.gmra.mxu0 %v75
    %v589 = vpop.f32.mrf.mxu0
    %v590 = vadd.f32 %v338, %v589
    %591 = vmatmul.f32.gmra.mxu0 %v76
    %v592 = vpop.f32.mrf.mxu0
    %v593 = vadd.f32 %v338, %v592
    %594 = vdwg.mxu0
    %595 = vmatpush.msra.mxu0 %v319
    %596 = vmatpush.msra.mxu0 %v303
    %597 = vmatpush.msra.mxu0 %v287
    %598 = vmatpush.msra.mxu0 %v271
    %599 = vmatpush.msra.mxu0 %v255
    %600 = vmatpush.msra.mxu0 %v239
    %601 = vmatpush.msra.mxu0 %v223
    %602 = vmatpush.msra.mxu0 %v207
    %603 = vmatpush.msra.mxu0 %v191
    %604 = vmatpush.msra.mxu0 %v175
    %605 = vmatpush.msra.mxu0 %v159
    %606 = vmatpush.msra.mxu0 %v143
    %607 = vmatpush.msra.mxu0 %v127
    %608 = vmatpush.msra.mxu0 %v111
    %609 = vmatpush.msra.mxu0 %v95
    %610 = vmatpush.msra.mxu0 %v79
    %611 = vmatmul.f32.gmra.mxu0 %v45
    %v612 = vpop.f32.mrf.mxu0
    %v613 = vadd.f32 %v339, %v612
    %614 = vmatmul.f32.gmra.mxu0 %v46
    %v615 = vpop.f32.mrf.mxu0
    %v616 = vadd.f32 %v339, %v615
    %617 = vmatmul.f32.gmra.mxu0 %v47
    %v618 = vpop.f32.mrf.mxu0
    %v619 = vadd.f32 %v339, %v618
    %620 = vmatmul.f32.gmra.mxu0 %v48
    %v621 = vpop.f32.mrf.mxu0
    %v622 = vadd.f32 %v339, %v621
    %623 = vmatmul.f32.gmra.mxu0 %v49
    %v624 = vpop.f32.mrf.mxu0
    %v625 = vadd.f32 %v339, %v624
    %626 = vmatmul.f32.gmra.mxu0 %v50
    %v627 = vpop.f32.mrf.mxu0
    %v628 = vadd.f32 %v339, %v627
    %629 = vmatmul.f32.gmra.mxu0 %v51
    %v630 = vpop.f32.mrf.mxu0
    %v631 = vadd.f32 %v339, %v630
    %632 = vmatmul.f32.gmra.mxu0 %v52
    %v633 = vpop.f32.mrf.mxu0
    %v634 = vadd.f32 %v339, %v633
    %635 = vmatmul.f32.gmra.mxu0 %v53
    %v636 = vpop.f32.mrf.mxu0
    %v637 = vadd.f32 %v339, %v636
    %638 = vmatmul.f32.gmra.mxu0 %v54
    %v639 = vpop.f32.mrf.mxu0
    %v640 = vadd.f32 %v339, %v639
    %641 = vmatmul.f32.gmra.mxu0 %v55
    %v642 = vpop.f32.mrf.mxu0
    %v643 = vadd.f32 %v339, %v642
    %644 = vmatmul.f32.gmra.mxu0 %v56
    %v645 = vpop.f32.mrf.mxu0
    %v646 = vadd.f32 %v339, %v645
    %647 = vmatmul.f32.gmra.mxu0 %v57
    %v648 = vpop.f32.mrf.mxu0
    %v649 = vadd.f32 %v339, %v648
    %650 = vmatmul.f32.gmra.mxu0 %v58
    %v651 = vpop.f32.mrf.mxu0
    %v652 = vadd.f32 %v339, %v651
    %653 = vmatmul.f32.gmra.mxu0 %v59
    %v654 = vpop.f32.mrf.mxu0
    %v655 = vadd.f32 %v339, %v654
    %656 = vmatmul.f32.gmra.mxu0 %v60
    %v657 = vpop.f32.mrf.mxu0
    %v658 = vadd.f32 %v339, %v657
    %659 = vmatmul.f32.gmra.mxu0 %v61
    %v660 = vpop.f32.mrf.mxu0
    %v661 = vadd.f32 %v339, %v660
    %662 = vmatmul.f32.gmra.mxu0 %v62
    %v663 = vpop.f32.mrf.mxu0
    %v664 = vadd.f32 %v339, %v663
    %665 = vmatmul.f32.gmra.mxu0 %v63
    %v666 = vpop.f32.mrf.mxu0
    %v667 = vadd.f32 %v339, %v666
    %668 = vmatmul.f32.gmra.mxu0 %v64
    %v669 = vpop.f32.mrf.mxu0
    %v670 = vadd.f32 %v339, %v669
    %671 = vmatmul.f32.gmra.mxu0 %v65
    %v672 = vpop.f32.mrf.mxu0
    %v673 = vadd.f32 %v339, %v672
    %674 = vmatmul.f32.gmra.mxu0 %v66
    %v675 = vpop.f32.mrf.mxu0
    %v676 = vadd.f32 %v339, %v675
    %677 = vmatmul.f32.gmra.mxu0 %v67
    %v678 = vpop.f32.mrf.mxu0
    %v679 = vadd.f32 %v339, %v678
    %680 = vmatmul.f32.gmra.mxu0 %v68
    %v681 = vpop.f32.mrf.mxu0
    %v682 = vadd.f32 %v339, %v681
    %683 = vmatmul.f32.gmra.mxu0 %v69
    %v684 = vpop.f32.mrf.mxu0
    %v685 = vadd.f32 %v339, %v684
    %686 = vmatmul.f32.gmra.mxu0 %v70
    %v687 = vpop.f32.mrf.mxu0
    %v688 = vadd.f32 %v339, %v687
    %689 = vmatmul.f32.gmra.mxu0 %v71
    %v690 = vpop.f32.mrf.mxu0
    %v691 = vadd.f32 %v339, %v690
    %692 = vmatmul.f32.gmra.mxu0 %v72
    %v693 = vpop.f32.mrf.mxu0
    %v694 = vadd.f32 %v339, %v693
    %695 = vmatmul.f32.gmra.mxu0 %v73
    %v696 = vpop.f32.mrf.mxu0
    %v697 = vadd.f32 %v339, %v696
    %698 = vmatmul.f32.gmra.mxu0 %v74
    %v699 = vpop.f32.mrf.mxu0
    %v700 = vadd.f32 %v339, %v699
    %701 = vmatmul.f32.gmra.mxu0 %v75
    %v702 = vpop.f32.mrf.mxu0
    %v703 = vadd.f32 %v339, %v702
    %704 = vmatmul.f32.gmra.mxu0 %v76
    %v705 = vpop.f32.mrf.mxu0
    %v706 = vadd.f32 %v339, %v705
    %707 = vdwg.mxu0
    %708 = vmatpush.msra.mxu0 %v320
    %709 = vmatpush.msra.mxu0 %v304
    %710 = vmatpush.msra.mxu0 %v288
    %711 = vmatpush.msra.mxu0 %v272
    %712 = vmatpush.msra.mxu0 %v256
    %713 = vmatpush.msra.mxu0 %v240
    %714 = vmatpush.msra.mxu0 %v224
    %715 = vmatpush.msra.mxu0 %v208
    %716 = vmatpush.msra.mxu0 %v192
    %717 = vmatpush.msra.mxu0 %v176
    %718 = vmatpush.msra.mxu0 %v160
    %719 = vmatpush.msra.mxu0 %v144
    %720 = vmatpush.msra.mxu0 %v128
    %721 = vmatpush.msra.mxu0 %v112
    %722 = vmatpush.msra.mxu0 %v96
    %723 = vmatpush.msra.mxu0 %v80
    %724 = vmatmul.f32.gmra.mxu0 %v45
    %v725 = vpop.f32.mrf.mxu0
    %v726 = vadd.f32 %v340, %v725
    %727 = vmatmul.f32.gmra.mxu0 %v46
    %v728 = vpop.f32.mrf.mxu0
    %v729 = vadd.f32 %v340, %v728
    %730 = vmatmul.f32.gmra.mxu0 %v47
    %v731 = vpop.f32.mrf.mxu0
    %v732 = vadd.f32 %v340, %v731
    %733 = vmatmul.f32.gmra.mxu0 %v48
    %v734 = vpop.f32.mrf.mxu0
    %v735 = vadd.f32 %v340, %v734
    %736 = vmatmul.f32.gmra.mxu0 %v49
    %v737 = vpop.f32.mrf.mxu0
    %v738 = vadd.f32 %v340, %v737
    %739 = vmatmul.f32.gmra.mxu0 %v50
    %v740 = vpop.f32.mrf.mxu0
    %v741 = vadd.f32 %v340, %v740
    %742 = vmatmul.f32.gmra.mxu0 %v51
    %v743 = vpop.f32.mrf.mxu0
    %v744 = vadd.f32 %v340, %v743
    %745 = vmatmul.f32.gmra.mxu0 %v52
    %v746 = vpop.f32.mrf.mxu0
    %v747 = vadd.f32 %v340, %v746
    %748 = vmatmul.f32.gmra.mxu0 %v53
    %v749 = vpop.f32.mrf.mxu0
    %v750 = vadd.f32 %v340, %v749
    %751 = vmatmul.f32.gmra.mxu0 %v54
    %v752 = vpop.f32.mrf.mxu0
    %v753 = vadd.f32 %v340, %v752
    %754 = vmatmul.f32.gmra.mxu0 %v55
    %v755 = vpop.f32.mrf.mxu0
    %v756 = vadd.f32 %v340, %v755
    %757 = vmatmul.f32.gmra.mxu0 %v56
    %v758 = vpop.f32.mrf.mxu0
    %v759 = vadd.f32 %v340, %v758
    %760 = vmatmul.f32.gmra.mxu0 %v57
    %v761 = vpop.f32.mrf.mxu0
    %v762 = vadd.f32 %v340, %v761
    %763 = vmatmul.f32.gmra.mxu0 %v58
    %v764 = vpop.f32.mrf.mxu0
    %v765 = vadd.f32 %v340, %v764
    %766 = vmatmul.f32.gmra.mxu0 %v59
    %v767 = vpop.f32.mrf.mxu0
    %v768 = vadd.f32 %v340, %v767
    %769 = vmatmul.f32.gmra.mxu0 %v60
    %v770 = vpop.f32.mrf.mxu0
    %v771 = vadd.f32 %v340, %v770
    %772 = vmatmul.f32.gmra.mxu0 %v61
    %v773 = vpop.f32.mrf.mxu0
    %v774 = vadd.f32 %v340, %v773
    %775 = vmatmul.f32.gmra.mxu0 %v62
    %v776 = vpop.f32.mrf.mxu0
    %v777 = vadd.f32 %v340, %v776
    %778 = vmatmul.f32.gmra.mxu0 %v63
    %v779 = vpop.f32.mrf.mxu0
    %v780 = vadd.f32 %v340, %v779
    %781 = vmatmul.f32.gmra.mxu0 %v64
    %v782 = vpop.f32.mrf.mxu0
    %v783 = vadd.f32 %v340, %v782
    %784 = vmatmul.f32.gmra.mxu0 %v65
    %v785 = vpop.f32.mrf.mxu0
    %v786 = vadd.f32 %v340, %v785
    %787 = vmatmul.f32.gmra.mxu0 %v66
    %v788 = vpop.f32.mrf.mxu0
    %v789 = vadd.f32 %v340, %v788
    %790 = vmatmul.f32.gmra.mxu0 %v67
    %v791 = vpop.f32.mrf.mxu0
    %v792 = vadd.f32 %v340, %v791
    %793 = vmatmul.f32.gmra.mxu0 %v68
    %v794 = vpop.f32.mrf.mxu0
    %v795 = vadd.f32 %v340, %v794
    %796 = vmatmul.f32.gmra.mxu0 %v69
    %v797 = vpop.f32.mrf.mxu0
    %v798 = vadd.f32 %v340, %v797
    %799 = vmatmul.f32.gmra.mxu0 %v70
    %v800 = vpop.f32.mrf.mxu0
    %v801 = vadd.f32 %v340, %v800
    %802 = vmatmul.f32.gmra.mxu0 %v71
    %v803 = vpop.f32.mrf.mxu0
    %v804 = vadd.f32 %v340, %v803
    %805 = vmatmul.f32.gmra.mxu0 %v72
    %v806 = vpop.f32.mrf.mxu0
    %v807 = vadd.f32 %v340, %v806
    %808 = vmatmul.f32.gmra.mxu0 %v73
    %v809 = vpop.f32.mrf.mxu0
    %v810 = vadd.f32 %v340, %v809
    %811 = vmatmul.f32.gmra.mxu0 %v74
    %v812 = vpop.f32.mrf.mxu0
    %v813 = vadd.f32 %v340, %v812
    %814 = vmatmul.f32.gmra.mxu0 %v75
    %v815 = vpop.f32.mrf.mxu0
    %v816 = vadd.f32 %v340, %v815
    %817 = vmatmul.f32.gmra.mxu0 %v76
    %v818 = vpop.f32.mrf.mxu0
    %v819 = vadd.f32 %v340, %v818
    %820 = vdwg.mxu0
    %821 = vmatpush.msra.mxu0 %v321
    %822 = vmatpush.msra.mxu0 %v305
    %823 = vmatpush.msra.mxu0 %v289
    %824 = vmatpush.msra.mxu0 %v273
    %825 = vmatpush.msra.mxu0 %v257
    %826 = vmatpush.msra.mxu0 %v241
    %827 = vmatpush.msra.mxu0 %v225
    %828 = vmatpush.msra.mxu0 %v209
    %829 = vmatpush.msra.mxu0 %v193
    %830 = vmatpush.msra.mxu0 %v177
    %831 = vmatpush.msra.mxu0 %v161
    %832 = vmatpush.msra.mxu0 %v145
    %833 = vmatpush.msra.mxu0 %v129
    %834 = vmatpush.msra.mxu0 %v113
    %835 = vmatpush.msra.mxu0 %v97
    %836 = vmatpush.msra.mxu0 %v81
    %837 = vmatmul.f32.gmra.mxu0 %v45
    %v838 = vpop.f32.mrf.mxu0
    %v839 = vadd.f32 %v341, %v838
    %840 = vmatmul.f32.gmra.mxu0 %v46
    %v841 = vpop.f32.mrf.mxu0
    %v842 = vadd.f32 %v341, %v841
    %843 = vmatmul.f32.gmra.mxu0 %v47
    %v844 = vpop.f32.mrf.mxu0
    %v845 = vadd.f32 %v341, %v844
    %846 = vmatmul.f32.gmra.mxu0 %v48
    %v847 = vpop.f32.mrf.mxu0
    %v848 = vadd.f32 %v341, %v847
    %849 = vmatmul.f32.gmra.mxu0 %v49
    %v850 = vpop.f32.mrf.mxu0
    %v851 = vadd.f32 %v341, %v850
    %852 = vmatmul.f32.gmra.mxu0 %v50
    %v853 = vpop.f32.mrf.mxu0
    %v854 = vadd.f32 %v341, %v853
    %855 = vmatmul.f32.gmra.mxu0 %v51
    %v856 = vpop.f32.mrf.mxu0
    %v857 = vadd.f32 %v341, %v856
    %858 = vmatmul.f32.gmra.mxu0 %v52
    %v859 = vpop.f32.mrf.mxu0
    %v860 = vadd.f32 %v341, %v859
    %861 = vmatmul.f32.gmra.mxu0 %v53
    %v862 = vpop.f32.mrf.mxu0
    %v863 = vadd.f32 %v341, %v862
    %864 = vmatmul.f32.gmra.mxu0 %v54
    %v865 = vpop.f32.mrf.mxu0
    %v866 = vadd.f32 %v341, %v865
    %867 = vmatmul.f32.gmra.mxu0 %v55
    %v868 = vpop.f32.mrf.mxu0
    %v869 = vadd.f32 %v341, %v868
    %870 = vmatmul.f32.gmra.mxu0 %v56
    %v871 = vpop.f32.mrf.mxu0
    %v872 = vadd.f32 %v341, %v871
    %873 = vmatmul.f32.gmra.mxu0 %v57
    %v874 = vpop.f32.mrf.mxu0
    %v875 = vadd.f32 %v341, %v874
    %876 = vmatmul.f32.gmra.mxu0 %v58
    %v877 = vpop.f32.mrf.mxu0
    %v878 = vadd.f32 %v341, %v877
    %879 = vmatmul.f32.gmra.mxu0 %v59
    %v880 = vpop.f32.mrf.mxu0
    %v881 = vadd.f32 %v341, %v880
    %882 = vmatmul.f32.gmra.mxu0 %v60
    %v883 = vpop.f32.mrf.mxu0
    %v884 = vadd.f32 %v341, %v883
    %885 = vmatmul.f32.gmra.mxu0 %v61
    %v886 = vpop.f32.mrf.mxu0
    %v887 = vadd.f32 %v341, %v886
    %888 = vmatmul.f32.gmra.mxu0 %v62
    %v889 = vpop.f32.mrf.mxu0
    %v890 = vadd.f32 %v341, %v889
    %891 = vmatmul.f32.gmra.mxu0 %v63
    %v892 = vpop.f32.mrf.mxu0
    %v893 = vadd.f32 %v341, %v892
    %894 = vmatmul.f32.gmra.mxu0 %v64
    %v895 = vpop.f32.mrf.mxu0
    %v896 = vadd.f32 %v341, %v895
    %897 = vmatmul.f32.gmra.mxu0 %v65
    %v898 = vpop.f32.mrf.mxu0
    %v899 = vadd.f32 %v341, %v898
    %900 = vmatmul.f32.gmra.mxu0 %v66
    %v901 = vpop.f32.mrf.mxu0
    %v902 = vadd.f32 %v341, %v901
    %903 = vmatmul.f32.gmra.mxu0 %v67
    %v904 = vpop.f32.mrf.mxu0
    %v905 = vadd.f32 %v341, %v904
    %906 = vmatmul.f32.gmra.mxu0 %v68
    %v907 = vpop.f32.mrf.mxu0
    %v908 = vadd.f32 %v341, %v907
    %909 = vmatmul.f32.gmra.mxu0 %v69
    %v910 = vpop.f32.mrf.mxu0
    %v911 = vadd.f32 %v341, %v910
    %912 = vmatmul.f32.gmra.mxu0 %v70
    %v913 = vpop.f32.mrf.mxu0
    %v914 = vadd.f32 %v341, %v913
    %915 = vmatmul.f32.gmra.mxu0 %v71
    %v916 = vpop.f32.mrf.mxu0
    %v917 = vadd.f32 %v341, %v916
    %918 = vmatmul.f32.gmra.mxu0 %v72
    %v919 = vpop.f32.mrf.mxu0
    %v920 = vadd.f32 %v341, %v919
    %921 = vmatmul.f32.gmra.mxu0 %v73
    %v922 = vpop.f32.mrf.mxu0
    %v923 = vadd.f32 %v341, %v922
    %924 = vmatmul.f32.gmra.mxu0 %v74
    %v925 = vpop.f32.mrf.mxu0
    %v926 = vadd.f32 %v341, %v925
    %927 = vmatmul.f32.gmra.mxu0 %v75
    %v928 = vpop.f32.mrf.mxu0
    %v929 = vadd.f32 %v341, %v928
    %930 = vmatmul.f32.gmra.mxu0 %v76
    %v931 = vpop.f32.mrf.mxu0
    %v932 = vadd.f32 %v341, %v931
    %933 = vdwg.mxu0
    %934 = vmatpush.msra.mxu0 %v322
    %935 = vmatpush.msra.mxu0 %v306
    %936 = vmatpush.msra.mxu0 %v290
    %937 = vmatpush.msra.mxu0 %v274
    %938 = vmatpush.msra.mxu0 %v258
    %939 = vmatpush.msra.mxu0 %v242
    %940 = vmatpush.msra.mxu0 %v226
    %941 = vmatpush.msra.mxu0 %v210
    %942 = vmatpush.msra.mxu0 %v194
    %943 = vmatpush.msra.mxu0 %v178
    %944 = vmatpush.msra.mxu0 %v162
    %945 = vmatpush.msra.mxu0 %v146
    %946 = vmatpush.msra.mxu0 %v130
    %947 = vmatpush.msra.mxu0 %v114
    %948 = vmatpush.msra.mxu0 %v98
    %949 = vmatpush.msra.mxu0 %v82
    %950 = vmatmul.f32.gmra.mxu0 %v45
    %v951 = vpop.f32.mrf.mxu0
    %v952 = vadd.f32 %v342, %v951
    %953 = vmatmul.f32.gmra.mxu0 %v46
    %v954 = vpop.f32.mrf.mxu0
    %v955 = vadd.f32 %v342, %v954
    %956 = vmatmul.f32.gmra.mxu0 %v47
    %v957 = vpop.f32.mrf.mxu0
    %v958 = vadd.f32 %v342, %v957
    %959 = vmatmul.f32.gmra.mxu0 %v48
    %v960 = vpop.f32.mrf.mxu0
    %v961 = vadd.f32 %v342, %v960
    %962 = vmatmul.f32.gmra.mxu0 %v49
    %v963 = vpop.f32.mrf.mxu0
    %v964 = vadd.f32 %v342, %v963
    %965 = vmatmul.f32.gmra.mxu0 %v50
    %v966 = vpop.f32.mrf.mxu0
    %v967 = vadd.f32 %v342, %v966
    %968 = vmatmul.f32.gmra.mxu0 %v51
    %v969 = vpop.f32.mrf.mxu0
    %v970 = vadd.f32 %v342, %v969
    %971 = vmatmul.f32.gmra.mxu0 %v52
    %v972 = vpop.f32.mrf.mxu0
    %v973 = vadd.f32 %v342, %v972
    %974 = vmatmul.f32.gmra.mxu0 %v53
    %v975 = vpop.f32.mrf.mxu0
    %v976 = vadd.f32 %v342, %v975
    %977 = vmatmul.f32.gmra.mxu0 %v54
    %v978 = vpop.f32.mrf.mxu0
    %v979 = vadd.f32 %v342, %v978
    %980 = vmatmul.f32.gmra.mxu0 %v55
    %v981 = vpop.f32.mrf.mxu0
    %v982 = vadd.f32 %v342, %v981
    %983 = vmatmul.f32.gmra.mxu0 %v56
    %v984 = vpop.f32.mrf.mxu0
    %v985 = vadd.f32 %v342, %v984
    %986 = vmatmul.f32.gmra.mxu0 %v57
    %v987 = vpop.f32.mrf.mxu0
    %v988 = vadd.f32 %v342, %v987
    %989 = vmatmul.f32.gmra.mxu0 %v58
    %v990 = vpop.f32.mrf.mxu0
    %v991 = vadd.f32 %v342, %v990
    %992 = vmatmul.f32.gmra.mxu0 %v59
    %v993 = vpop.f32.mrf.mxu0
    %v994 = vadd.f32 %v342, %v993
    %995 = vmatmul.f32.gmra.mxu0 %v60
    %v996 = vpop.f32.mrf.mxu0
    %v997 = vadd.f32 %v342, %v996
    %998 = vmatmul.f32.gmra.mxu0 %v61
    %v999 = vpop.f32.mrf.mxu0
    %v1000 = vadd.f32 %v342, %v999
    %1001 = vmatmul.f32.gmra.mxu0 %v62
    %v1002 = vpop.f32.mrf.mxu0
    %v1003 = vadd.f32 %v342, %v1002
    %1004 = vmatmul.f32.gmra.mxu0 %v63
    %v1005 = vpop.f32.mrf.mxu0
    %v1006 = vadd.f32 %v342, %v1005
    %1007 = vmatmul.f32.gmra.mxu0 %v64
    %v1008 = vpop.f32.mrf.mxu0
    %v1009 = vadd.f32 %v342, %v1008
    %1010 = vmatmul.f32.gmra.mxu0 %v65
    %v1011 = vpop.f32.mrf.mxu0
    %v1012 = vadd.f32 %v342, %v1011
    %1013 = vmatmul.f32.gmra.mxu0 %v66
    %v1014 = vpop.f32.mrf.mxu0
    %v1015 = vadd.f32 %v342, %v1014
    %1016 = vmatmul.f32.gmra.mxu0 %v67
    %v1017 = vpop.f32.mrf.mxu0
    %v1018 = vadd.f32 %v342, %v1017
    %1019 = vmatmul.f32.gmra.mxu0 %v68
    %v1020 = vpop.f32.mrf.mxu0
    %v1021 = vadd.f32 %v342, %v1020
    %1022 = vmatmul.f32.gmra.mxu0 %v69
    %v1023 = vpop.f32.mrf.mxu0
    %v1024 = vadd.f32 %v342, %v1023
    %1025 = vmatmul.f32.gmra.mxu0 %v70
    %v1026 = vpop.f32.mrf.mxu0
    %v1027 = vadd.f32 %v342, %v1026
    %1028 = vmatmul.f32.gmra.mxu0 %v71
    %v1029 = vpop.f32.mrf.mxu0
    %v1030 = vadd.f32 %v342, %v1029
    %1031 = vmatmul.f32.gmra.mxu0 %v72
    %v1032 = vpop.f32.mrf.mxu0
    %v1033 = vadd.f32 %v342, %v1032
    %1034 = vmatmul.f32.gmra.mxu0 %v73
    %v1035 = vpop.f32.mrf.mxu0
    %v1036 = vadd.f32 %v342, %v1035
    %1037 = vmatmul.f32.gmra.mxu0 %v74
    %v1038 = vpop.f32.mrf.mxu0
    %v1039 = vadd.f32 %v342, %v1038
    %1040 = vmatmul.f32.gmra.mxu0 %v75
    %v1041 = vpop.f32.mrf.mxu0
    %v1042 = vadd.f32 %v342, %v1041
    %1043 = vmatmul.f32.gmra.mxu0 %v76
    %v1044 = vpop.f32.mrf.mxu0
    %v1045 = vadd.f32 %v342, %v1044
    %1046 = vdwg.mxu0
    %1047 = vmatpush.msra.mxu0 %v323
    %1048 = vmatpush.msra.mxu0 %v307
    %1049 = vmatpush.msra.mxu0 %v291
    %1050 = vmatpush.msra.mxu0 %v275
    %1051 = vmatpush.msra.mxu0 %v259
    %1052 = vmatpush.msra.mxu0 %v243
    %1053 = vmatpush.msra.mxu0 %v227
    %1054 = vmatpush.msra.mxu0 %v211
    %1055 = vmatpush.msra.mxu0 %v195
    %1056 = vmatpush.msra.mxu0 %v179
    %1057 = vmatpush.msra.mxu0 %v163
    %1058 = vmatpush.msra.mxu0 %v147
    %1059 = vmatpush.msra.mxu0 %v131
    %1060 = vmatpush.msra.mxu0 %v115
    %1061 = vmatpush.msra.mxu0 %v99
    %1062 = vmatpush.msra.mxu0 %v83
    %1063 = vmatmul.f32.gmra.mxu0 %v45
    %v1064 = vpop.f32.mrf.mxu0
    %v1065 = vadd.f32 %v343, %v1064
    %1066 = vmatmul.f32.gmra.mxu0 %v46
    %v1067 = vpop.f32.mrf.mxu0
    %v1068 = vadd.f32 %v343, %v1067
    %1069 = vmatmul.f32.gmra.mxu0 %v47
    %v1070 = vpop.f32.mrf.mxu0
    %v1071 = vadd.f32 %v343, %v1070
    %1072 = vmatmul.f32.gmra.mxu0 %v48
    %v1073 = vpop.f32.mrf.mxu0
    %v1074 = vadd.f32 %v343, %v1073
    %1075 = vmatmul.f32.gmra.mxu0 %v49
    %v1076 = vpop.f32.mrf.mxu0
    %v1077 = vadd.f32 %v343, %v1076
    %1078 = vmatmul.f32.gmra.mxu0 %v50
    %v1079 = vpop.f32.mrf.mxu0
    %v1080 = vadd.f32 %v343, %v1079
    %1081 = vmatmul.f32.gmra.mxu0 %v51
    %v1082 = vpop.f32.mrf.mxu0
    %v1083 = vadd.f32 %v343, %v1082
    %1084 = vmatmul.f32.gmra.mxu0 %v52
    %v1085 = vpop.f32.mrf.mxu0
    %v1086 = vadd.f32 %v343, %v1085
    %1087 = vmatmul.f32.gmra.mxu0 %v53
    %v1088 = vpop.f32.mrf.mxu0
    %v1089 = vadd.f32 %v343, %v1088
    %1090 = vmatmul.f32.gmra.mxu0 %v54
    %v1091 = vpop.f32.mrf.mxu0
    %v1092 = vadd.f32 %v343, %v1091
    %1093 = vmatmul.f32.gmra.mxu0 %v55
    %v1094 = vpop.f32.mrf.mxu0
    %v1095 = vadd.f32 %v343, %v1094
    %1096 = vmatmul.f32.gmra.mxu0 %v56
    %v1097 = vpop.f32.mrf.mxu0
    %v1098 = vadd.f32 %v343, %v1097
    %1099 = vmatmul.f32.gmra.mxu0 %v57
    %v1100 = vpop.f32.mrf.mxu0
    %v1101 = vadd.f32 %v343, %v1100
    %1102 = vmatmul.f32.gmra.mxu0 %v58
    %v1103 = vpop.f32.mrf.mxu0
    %v1104 = vadd.f32 %v343, %v1103
    %1105 = vmatmul.f32.gmra.mxu0 %v59
    %v1106 = vpop.f32.mrf.mxu0
    %v1107 = vadd.f32 %v343, %v1106
    %1108 = vmatmul.f32.gmra.mxu0 %v60
    %v1109 = vpop.f32.mrf.mxu0
    %v1110 = vadd.f32 %v343, %v1109
    %1111 = vmatmul.f32.gmra.mxu0 %v61
    %v1112 = vpop.f32.mrf.mxu0
    %v1113 = vadd.f32 %v343, %v1112
    %1114 = vmatmul.f32.gmra.mxu0 %v62
    %v1115 = vpop.f32.mrf.mxu0
    %v1116 = vadd.f32 %v343, %v1115
    %1117 = vmatmul.f32.gmra.mxu0 %v63
    %v1118 = vpop.f32.mrf.mxu0
    %v1119 = vadd.f32 %v343, %v1118
    %1120 = vmatmul.f32.gmra.mxu0 %v64
    %v1121 = vpop.f32.mrf.mxu0
    %v1122 = vadd.f32 %v343, %v1121
    %1123 = vmatmul.f32.gmra.mxu0 %v65
    %v1124 = vpop.f32.mrf.mxu0
    %v1125 = vadd.f32 %v343, %v1124
    %1126 = vmatmul.f32.gmra.mxu0 %v66
    %v1127 = vpop.f32.mrf.mxu0
    %v1128 = vadd.f32 %v343, %v1127
    %1129 = vmatmul.f32.gmra.mxu0 %v67
    %v1130 = vpop.f32.mrf.mxu0
    %v1131 = vadd.f32 %v343, %v1130
    %1132 = vmatmul.f32.gmra.mxu0 %v68
    %v1133 = vpop.f32.mrf.mxu0
    %v1134 = vadd.f32 %v343, %v1133
    %1135 = vmatmul.f32.gmra.mxu0 %v69
    %v1136 = vpop.f32.mrf.mxu0
    %v1137 = vadd.f32 %v343, %v1136
    %1138 = vmatmul.f32.gmra.mxu0 %v70
    %v1139 = vpop.f32.mrf.mxu0
    %v1140 = vadd.f32 %v343, %v1139
    %1141 = vmatmul.f32.gmra.mxu0 %v71
    %v1142 = vpop.f32.mrf.mxu0
    %v1143 = vadd.f32 %v343, %v1142
    %1144 = vmatmul.f32.gmra.mxu0 %v72
    %v1145 = vpop.f32.mrf.mxu0
    %v1146 = vadd.f32 %v343, %v1145
    %1147 = vmatmul.f32.gmra.mxu0 %v73
    %v1148 = vpop.f32.mrf.mxu0
    %v1149 = vadd.f32 %v343, %v1148
    %1150 = vmatmul.f32.gmra.mxu0 %v74
    %v1151 = vpop.f32.mrf.mxu0
    %v1152 = vadd.f32 %v343, %v1151
    %1153 = vmatmul.f32.gmra.mxu0 %v75
    %v1154 = vpop.f32.mrf.mxu0
    %v1155 = vadd.f32 %v343, %v1154
    %1156 = vmatmul.f32.gmra.mxu0 %v76
    %v1157 = vpop.f32.mrf.mxu0
    %v1158 = vadd.f32 %v343, %v1157
    %1159 = vdwg.mxu0
    %1160 = vmatpush.msra.mxu0 %v324
    %1161 = vmatpush.msra.mxu0 %v308
    %1162 = vmatpush.msra.mxu0 %v292
    %1163 = vmatpush.msra.mxu0 %v276
    %1164 = vmatpush.msra.mxu0 %v260
    %1165 = vmatpush.msra.mxu0 %v244
    %1166 = vmatpush.msra.mxu0 %v228
    %1167 = vmatpush.msra.mxu0 %v212
    %1168 = vmatpush.msra.mxu0 %v196
    %1169 = vmatpush.msra.mxu0 %v180
    %1170 = vmatpush.msra.mxu0 %v164
    %1171 = vmatpush.msra.mxu0 %v148
    %1172 = vmatpush.msra.mxu0 %v132
    %1173 = vmatpush.msra.mxu0 %v116
    %1174 = vmatpush.msra.mxu0 %v100
    %1175 = vmatpush.msra.mxu0 %v84
    %1176 = vmatmul.f32.gmra.mxu0 %v45
    %v1177 = vpop.f32.mrf.mxu0
    %v1178 = vadd.f32 %v344, %v1177
    %1179 = vmatmul.f32.gmra.mxu0 %v46
    %v1180 = vpop.f32.mrf.mxu0
    %v1181 = vadd.f32 %v344, %v1180
    %1182 = vmatmul.f32.gmra.mxu0 %v47
    %v1183 = vpop.f32.mrf.mxu0
    %v1184 = vadd.f32 %v344, %v1183
    %1185 = vmatmul.f32.gmra.mxu0 %v48
    %v1186 = vpop.f32.mrf.mxu0
    %v1187 = vadd.f32 %v344, %v1186
    %1188 = vmatmul.f32.gmra.mxu0 %v49
    %v1189 = vpop.f32.mrf.mxu0
    %v1190 = vadd.f32 %v344, %v1189
    %1191 = vmatmul.f32.gmra.mxu0 %v50
    %v1192 = vpop.f32.mrf.mxu0
    %v1193 = vadd.f32 %v344, %v1192
    %1194 = vmatmul.f32.gmra.mxu0 %v51
    %v1195 = vpop.f32.mrf.mxu0
    %v1196 = vadd.f32 %v344, %v1195
    %1197 = vmatmul.f32.gmra.mxu0 %v52
    %v1198 = vpop.f32.mrf.mxu0
    %v1199 = vadd.f32 %v344, %v1198
    %1200 = vmatmul.f32.gmra.mxu0 %v53
    %v1201 = vpop.f32.mrf.mxu0
    %v1202 = vadd.f32 %v344, %v1201
    %1203 = vmatmul.f32.gmra.mxu0 %v54
    %v1204 = vpop.f32.mrf.mxu0
    %v1205 = vadd.f32 %v344, %v1204
    %1206 = vmatmul.f32.gmra.mxu0 %v55
    %v1207 = vpop.f32.mrf.mxu0
    %v1208 = vadd.f32 %v344, %v1207
    %1209 = vmatmul.f32.gmra.mxu0 %v56
    %v1210 = vpop.f32.mrf.mxu0
    %v1211 = vadd.f32 %v344, %v1210
    %1212 = vmatmul.f32.gmra.mxu0 %v57
    %v1213 = vpop.f32.mrf.mxu0
    %v1214 = vadd.f32 %v344, %v1213
    %1215 = vmatmul.f32.gmra.mxu0 %v58
    %v1216 = vpop.f32.mrf.mxu0
    %v1217 = vadd.f32 %v344, %v1216
    %1218 = vmatmul.f32.gmra.mxu0 %v59
    %v1219 = vpop.f32.mrf.mxu0
    %v1220 = vadd.f32 %v344, %v1219
    %1221 = vmatmul.f32.gmra.mxu0 %v60
    %v1222 = vpop.f32.mrf.mxu0
    %v1223 = vadd.f32 %v344, %v1222
    %1224 = vmatmul.f32.gmra.mxu0 %v61
    %v1225 = vpop.f32.mrf.mxu0
    %v1226 = vadd.f32 %v344, %v1225
    %1227 = vmatmul.f32.gmra.mxu0 %v62
    %v1228 = vpop.f32.mrf.mxu0
    %v1229 = vadd.f32 %v344, %v1228
    %1230 = vmatmul.f32.gmra.mxu0 %v63
    %v1231 = vpop.f32.mrf.mxu0
    %v1232 = vadd.f32 %v344, %v1231
    %1233 = vmatmul.f32.gmra.mxu0 %v64
    %v1234 = vpop.f32.mrf.mxu0
    %v1235 = vadd.f32 %v344, %v1234
    %1236 = vmatmul.f32.gmra.mxu0 %v65
    %v1237 = vpop.f32.mrf.mxu0
    %v1238 = vadd.f32 %v344, %v1237
    %1239 = vmatmul.f32.gmra.mxu0 %v66
    %v1240 = vpop.f32.mrf.mxu0
    %v1241 = vadd.f32 %v344, %v1240
    %1242 = vmatmul.f32.gmra.mxu0 %v67
    %v1243 = vpop.f32.mrf.mxu0
    %v1244 = vadd.f32 %v344, %v1243
    %1245 = vmatmul.f32.gmra.mxu0 %v68
    %v1246 = vpop.f32.mrf.mxu0
    %v1247 = vadd.f32 %v344, %v1246
    %1248 = vmatmul.f32.gmra.mxu0 %v69
    %v1249 = vpop.f32.mrf.mxu0
    %v1250 = vadd.f32 %v344, %v1249
    %1251 = vmatmul.f32.gmra.mxu0 %v70
    %v1252 = vpop.f32.mrf.mxu0
    %v1253 = vadd.f32 %v344, %v1252
    %1254 = vmatmul.f32.gmra.mxu0 %v71
    %v1255 = vpop.f32.mrf.mxu0
    %v1256 = vadd.f32 %v344, %v1255
    %1257 = vmatmul.f32.gmra.mxu0 %v72
    %v1258 = vpop.f32.mrf.mxu0
    %v1259 = vadd.f32 %v344, %v1258
    %1260 = vmatmul.f32.gmra.mxu0 %v73
    %v1261 = vpop.f32.mrf.mxu0
    %v1262 = vadd.f32 %v344, %v1261
    %1263 = vmatmul.f32.gmra.mxu0 %v74
    %v1264 = vpop.f32.mrf.mxu0
    %v1265 = vadd.f32 %v344, %v1264
    %1266 = vmatmul.f32.gmra.mxu0 %v75
    %v1267 = vpop.f32.mrf.mxu0
    %v1268 = vadd.f32 %v344, %v1267
    %1269 = vmatmul.f32.gmra.mxu0 %v76
    %v1270 = vpop.f32.mrf.mxu0
    %v1271 = vadd.f32 %v344, %v1270
    %1272 = vdwg.mxu0
    %1273 = vmatpush.msra.mxu0 %v325
    %1274 = vmatpush.msra.mxu0 %v309
    %1275 = vmatpush.msra.mxu0 %v293
    %1276 = vmatpush.msra.mxu0 %v277
    %1277 = vmatpush.msra.mxu0 %v261
    %1278 = vmatpush.msra.mxu0 %v245
    %1279 = vmatpush.msra.mxu0 %v229
    %1280 = vmatpush.msra.mxu0 %v213
    %1281 = vmatpush.msra.mxu0 %v197
    %1282 = vmatpush.msra.mxu0 %v181
    %1283 = vmatpush.msra.mxu0 %v165
    %1284 = vmatpush.msra.mxu0 %v149
    %1285 = vmatpush.msra.mxu0 %v133
    %1286 = vmatpush.msra.mxu0 %v117
    %1287 = vmatpush.msra.mxu0 %v101
    %1288 = vmatpush.msra.mxu0 %v85
    %1289 = vmatmul.f32.gmra.mxu0 %v45
    %v1290 = vpop.f32.mrf.mxu0
    %v1291 = vadd.f32 %v345, %v1290
    %1292 = vmatmul.f32.gmra.mxu0 %v46
    %v1293 = vpop.f32.mrf.mxu0
    %v1294 = vadd.f32 %v345, %v1293
    %1295 = vmatmul.f32.gmra.mxu0 %v47
    %v1296 = vpop.f32.mrf.mxu0
    %v1297 = vadd.f32 %v345, %v1296
    %1298 = vmatmul.f32.gmra.mxu0 %v48
    %v1299 = vpop.f32.mrf.mxu0
    %v1300 = vadd.f32 %v345, %v1299
    %1301 = vmatmul.f32.gmra.mxu0 %v49
    %v1302 = vpop.f32.mrf.mxu0
    %v1303 = vadd.f32 %v345, %v1302
    %1304 = vmatmul.f32.gmra.mxu0 %v50
    %v1305 = vpop.f32.mrf.mxu0
    %v1306 = vadd.f32 %v345, %v1305
    %1307 = vmatmul.f32.gmra.mxu0 %v51
    %v1308 = vpop.f32.mrf.mxu0
    %v1309 = vadd.f32 %v345, %v1308
    %1310 = vmatmul.f32.gmra.mxu0 %v52
    %v1311 = vpop.f32.mrf.mxu0
    %v1312 = vadd.f32 %v345, %v1311
    %1313 = vmatmul.f32.gmra.mxu0 %v53
    %v1314 = vpop.f32.mrf.mxu0
    %v1315 = vadd.f32 %v345, %v1314
    %1316 = vmatmul.f32.gmra.mxu0 %v54
    %v1317 = vpop.f32.mrf.mxu0
    %v1318 = vadd.f32 %v345, %v1317
    %1319 = vmatmul.f32.gmra.mxu0 %v55
    %v1320 = vpop.f32.mrf.mxu0
    %v1321 = vadd.f32 %v345, %v1320
    %1322 = vmatmul.f32.gmra.mxu0 %v56
    %v1323 = vpop.f32.mrf.mxu0
    %v1324 = vadd.f32 %v345, %v1323
    %1325 = vmatmul.f32.gmra.mxu0 %v57
    %v1326 = vpop.f32.mrf.mxu0
    %v1327 = vadd.f32 %v345, %v1326
    %1328 = vmatmul.f32.gmra.mxu0 %v58
    %v1329 = vpop.f32.mrf.mxu0
    %v1330 = vadd.f32 %v345, %v1329
    %1331 = vmatmul.f32.gmra.mxu0 %v59
    %v1332 = vpop.f32.mrf.mxu0
    %v1333 = vadd.f32 %v345, %v1332
    %1334 = vmatmul.f32.gmra.mxu0 %v60
    %v1335 = vpop.f32.mrf.mxu0
    %v1336 = vadd.f32 %v345, %v1335
    %1337 = vmatmul.f32.gmra.mxu0 %v61
    %v1338 = vpop.f32.mrf.mxu0
    %v1339 = vadd.f32 %v345, %v1338
    %1340 = vmatmul.f32.gmra.mxu0 %v62
    %v1341 = vpop.f32.mrf.mxu0
    %v1342 = vadd.f32 %v345, %v1341
    %1343 = vmatmul.f32.gmra.mxu0 %v63
    %v1344 = vpop.f32.mrf.mxu0
    %v1345 = vadd.f32 %v345, %v1344
    %1346 = vmatmul.f32.gmra.mxu0 %v64
    %v1347 = vpop.f32.mrf.mxu0
    %v1348 = vadd.f32 %v345, %v1347
    %1349 = vmatmul.f32.gmra.mxu0 %v65
    %v1350 = vpop.f32.mrf.mxu0
    %v1351 = vadd.f32 %v345, %v1350
    %1352 = vmatmul.f32.gmra.mxu0 %v66
    %v1353 = vpop.f32.mrf.mxu0
    %v1354 = vadd.f32 %v345, %v1353
    %1355 = vmatmul.f32.gmra.mxu0 %v67
    %v1356 = vpop.f32.mrf.mxu0
    %v1357 = vadd.f32 %v345, %v1356
    %1358 = vmatmul.f32.gmra.mxu0 %v68
    %v1359 = vpop.f32.mrf.mxu0
    %v1360 = vadd.f32 %v345, %v1359
    %1361 = vmatmul.f32.gmra.mxu0 %v69
    %v1362 = vpop.f32.mrf.mxu0
    %v1363 = vadd.f32 %v345, %v1362
    %1364 = vmatmul.f32.gmra.mxu0 %v70
    %v1365 = vpop.f32.mrf.mxu0
    %v1366 = vadd.f32 %v345, %v1365
    %1367 = vmatmul.f32.gmra.mxu0 %v71
    %v1368 = vpop.f32.mrf.mxu0
    %v1369 = vadd.f32 %v345, %v1368
    %1370 = vmatmul.f32.gmra.mxu0 %v72
    %v1371 = vpop.f32.mrf.mxu0
    %v1372 = vadd.f32 %v345, %v1371
    %1373 = vmatmul.f32.gmra.mxu0 %v73
    %v1374 = vpop.f32.mrf.mxu0
    %v1375 = vadd.f32 %v345, %v1374
    %1376 = vmatmul.f32.gmra.mxu0 %v74
    %v1377 = vpop.f32.mrf.mxu0
    %v1378 = vadd.f32 %v345, %v1377
    %1379 = vmatmul.f32.gmra.mxu0 %v75
    %v1380 = vpop.f32.mrf.mxu0
    %v1381 = vadd.f32 %v345, %v1380
    %1382 = vmatmul.f32.gmra.mxu0 %v76
    %v1383 = vpop.f32.mrf.mxu0
    %v1384 = vadd.f32 %v345, %v1383
    %1385 = vdwg.mxu0
    %1386 = vmatpush.msra.mxu0 %v326
    %1387 = vmatpush.msra.mxu0 %v310
    %1388 = vmatpush.msra.mxu0 %v294
    %1389 = vmatpush.msra.mxu0 %v278
    %1390 = vmatpush.msra.mxu0 %v262
    %1391 = vmatpush.msra.mxu0 %v246
    %1392 = vmatpush.msra.mxu0 %v230
    %1393 = vmatpush.msra.mxu0 %v214
    %1394 = vmatpush.msra.mxu0 %v198
    %1395 = vmatpush.msra.mxu0 %v182
    %1396 = vmatpush.msra.mxu0 %v166
    %1397 = vmatpush.msra.mxu0 %v150
    %1398 = vmatpush.msra.mxu0 %v134
    %1399 = vmatpush.msra.mxu0 %v118
    %1400 = vmatpush.msra.mxu0 %v102
    %1401 = vmatpush.msra.mxu0 %v86
    %1402 = vmatmul.f32.gmra.mxu0 %v45
    %v1403 = vpop.f32.mrf.mxu0
    %v1404 = vadd.f32 %v346, %v1403
    %1405 = vmatmul.f32.gmra.mxu0 %v46
    %v1406 = vpop.f32.mrf.mxu0
    %v1407 = vadd.f32 %v346, %v1406
    %1408 = vmatmul.f32.gmra.mxu0 %v47
    %v1409 = vpop.f32.mrf.mxu0
    %v1410 = vadd.f32 %v346, %v1409
    %1411 = vmatmul.f32.gmra.mxu0 %v48
    %v1412 = vpop.f32.mrf.mxu0
    %v1413 = vadd.f32 %v346, %v1412
    %1414 = vmatmul.f32.gmra.mxu0 %v49
    %v1415 = vpop.f32.mrf.mxu0
    %v1416 = vadd.f32 %v346, %v1415
    %1417 = vmatmul.f32.gmra.mxu0 %v50
    %v1418 = vpop.f32.mrf.mxu0
    %v1419 = vadd.f32 %v346, %v1418
    %1420 = vmatmul.f32.gmra.mxu0 %v51
    %v1421 = vpop.f32.mrf.mxu0
    %v1422 = vadd.f32 %v346, %v1421
    %1423 = vmatmul.f32.gmra.mxu0 %v52
    %v1424 = vpop.f32.mrf.mxu0
    %v1425 = vadd.f32 %v346, %v1424
    %1426 = vmatmul.f32.gmra.mxu0 %v53
    %v1427 = vpop.f32.mrf.mxu0
    %v1428 = vadd.f32 %v346, %v1427
    %1429 = vmatmul.f32.gmra.mxu0 %v54
    %v1430 = vpop.f32.mrf.mxu0
    %v1431 = vadd.f32 %v346, %v1430
    %1432 = vmatmul.f32.gmra.mxu0 %v55
    %v1433 = vpop.f32.mrf.mxu0
    %v1434 = vadd.f32 %v346, %v1433
    %1435 = vmatmul.f32.gmra.mxu0 %v56
    %v1436 = vpop.f32.mrf.mxu0
    %v1437 = vadd.f32 %v346, %v1436
    %1438 = vmatmul.f32.gmra.mxu0 %v57
    %v1439 = vpop.f32.mrf.mxu0
    %v1440 = vadd.f32 %v346, %v1439
    %1441 = vmatmul.f32.gmra.mxu0 %v58
    %v1442 = vpop.f32.mrf.mxu0
    %v1443 = vadd.f32 %v346, %v1442
    %1444 = vmatmul.f32.gmra.mxu0 %v59
    %v1445 = vpop.f32.mrf.mxu0
    %v1446 = vadd.f32 %v346, %v1445
    %1447 = vmatmul.f32.gmra.mxu0 %v60
    %v1448 = vpop.f32.mrf.mxu0
    %v1449 = vadd.f32 %v346, %v1448
    %1450 = vmatmul.f32.gmra.mxu0 %v61
    %v1451 = vpop.f32.mrf.mxu0
    %v1452 = vadd.f32 %v346, %v1451
    %1453 = vmatmul.f32.gmra.mxu0 %v62
    %v1454 = vpop.f32.mrf.mxu0
    %v1455 = vadd.f32 %v346, %v1454
    %1456 = vmatmul.f32.gmra.mxu0 %v63
    %v1457 = vpop.f32.mrf.mxu0
    %v1458 = vadd.f32 %v346, %v1457
    %1459 = vmatmul.f32.gmra.mxu0 %v64
    %v1460 = vpop.f32.mrf.mxu0
    %v1461 = vadd.f32 %v346, %v1460
    %1462 = vmatmul.f32.gmra.mxu0 %v65
    %v1463 = vpop.f32.mrf.mxu0
    %v1464 = vadd.f32 %v346, %v1463
    %1465 = vmatmul.f32.gmra.mxu0 %v66
    %v1466 = vpop.f32.mrf.mxu0
    %v1467 = vadd.f32 %v346, %v1466
    %1468 = vmatmul.f32.gmra.mxu0 %v67
    %v1469 = vpop.f32.mrf.mxu0
    %v1470 = vadd.f32 %v346, %v1469
    %1471 = vmatmul.f32.gmra.mxu0 %v68
    %v1472 = vpop.f32.mrf.mxu0
    %v1473 = vadd.f32 %v346, %v1472
    %1474 = vmatmul.f32.gmra.mxu0 %v69
    %v1475 = vpop.f32.mrf.mxu0
    %v1476 = vadd.f32 %v346, %v1475
    %1477 = vmatmul.f32.gmra.mxu0 %v70
    %v1478 = vpop.f32.mrf.mxu0
    %v1479 = vadd.f32 %v346, %v1478
    %1480 = vmatmul.f32.gmra.mxu0 %v71
    %v1481 = vpop.f32.mrf.mxu0
    %v1482 = vadd.f32 %v346, %v1481
    %1483 = vmatmul.f32.gmra.mxu0 %v72
    %v1484 = vpop.f32.mrf.mxu0
    %v1485 = vadd.f32 %v346, %v1484
    %1486 = vmatmul.f32.gmra.mxu0 %v73
    %v1487 = vpop.f32.mrf.mxu0
    %v1488 = vadd.f32 %v346, %v1487
    %1489 = vmatmul.f32.gmra.mxu0 %v74
    %v1490 = vpop.f32.mrf.mxu0
    %v1491 = vadd.f32 %v346, %v1490
    %1492 = vmatmul.f32.gmra.mxu0 %v75
    %v1493 = vpop.f32.mrf.mxu0
    %v1494 = vadd.f32 %v346, %v1493
    %1495 = vmatmul.f32.gmra.mxu0 %v76
    %v1496 = vpop.f32.mrf.mxu0
    %v1497 = vadd.f32 %v346, %v1496
    %1498 = vdwg.mxu0
    %1499 = vmatpush.msra.mxu0 %v327
    %1500 = vmatpush.msra.mxu0 %v311
    %1501 = vmatpush.msra.mxu0 %v295
    %1502 = vmatpush.msra.mxu0 %v279
    %1503 = vmatpush.msra.mxu0 %v263
    %1504 = vmatpush.msra.mxu0 %v247
    %1505 = vmatpush.msra.mxu0 %v231
    %1506 = vmatpush.msra.mxu0 %v215
    %1507 = vmatpush.msra.mxu0 %v199
    %1508 = vmatpush.msra.mxu0 %v183
    %1509 = vmatpush.msra.mxu0 %v167
    %1510 = vmatpush.msra.mxu0 %v151
    %1511 = vmatpush.msra.mxu0 %v135
    %1512 = vmatpush.msra.mxu0 %v119
    %1513 = vmatpush.msra.mxu0 %v103
    %1514 = vmatpush.msra.mxu0 %v87
    %1515 = vmatmul.f32.gmra.mxu0 %v45
    %v1516 = vpop.f32.mrf.mxu0
    %v1517 = vadd.f32 %v347, %v1516
    %1518 = vmatmul.f32.gmra.mxu0 %v46
    %v1519 = vpop.f32.mrf.mxu0
    %v1520 = vadd.f32 %v347, %v1519
    %1521 = vmatmul.f32.gmra.mxu0 %v47
    %v1522 = vpop.f32.mrf.mxu0
    %v1523 = vadd.f32 %v347, %v1522
    %1524 = vmatmul.f32.gmra.mxu0 %v48
    %v1525 = vpop.f32.mrf.mxu0
    %v1526 = vadd.f32 %v347, %v1525
    %1527 = vmatmul.f32.gmra.mxu0 %v49
    %v1528 = vpop.f32.mrf.mxu0
    %v1529 = vadd.f32 %v347, %v1528
    %1530 = vmatmul.f32.gmra.mxu0 %v50
    %v1531 = vpop.f32.mrf.mxu0
    %v1532 = vadd.f32 %v347, %v1531
    %1533 = vmatmul.f32.gmra.mxu0 %v51
    %v1534 = vpop.f32.mrf.mxu0
    %v1535 = vadd.f32 %v347, %v1534
    %1536 = vmatmul.f32.gmra.mxu0 %v52
    %v1537 = vpop.f32.mrf.mxu0
    %v1538 = vadd.f32 %v347, %v1537
    %1539 = vmatmul.f32.gmra.mxu0 %v53
    %v1540 = vpop.f32.mrf.mxu0
    %v1541 = vadd.f32 %v347, %v1540
    %1542 = vmatmul.f32.gmra.mxu0 %v54
    %v1543 = vpop.f32.mrf.mxu0
    %v1544 = vadd.f32 %v347, %v1543
    %1545 = vmatmul.f32.gmra.mxu0 %v55
    %v1546 = vpop.f32.mrf.mxu0
    %v1547 = vadd.f32 %v347, %v1546
    %1548 = vmatmul.f32.gmra.mxu0 %v56
    %v1549 = vpop.f32.mrf.mxu0
    %v1550 = vadd.f32 %v347, %v1549
    %1551 = vmatmul.f32.gmra.mxu0 %v57
    %v1552 = vpop.f32.mrf.mxu0
    %v1553 = vadd.f32 %v347, %v1552
    %1554 = vmatmul.f32.gmra.mxu0 %v58
    %v1555 = vpop.f32.mrf.mxu0
    %v1556 = vadd.f32 %v347, %v1555
    %1557 = vmatmul.f32.gmra.mxu0 %v59
    %v1558 = vpop.f32.mrf.mxu0
    %v1559 = vadd.f32 %v347, %v1558
    %1560 = vmatmul.f32.gmra.mxu0 %v60
    %v1561 = vpop.f32.mrf.mxu0
    %v1562 = vadd.f32 %v347, %v1561
    %1563 = vmatmul.f32.gmra.mxu0 %v61
    %v1564 = vpop.f32.mrf.mxu0
    %v1565 = vadd.f32 %v347, %v1564
    %1566 = vmatmul.f32.gmra.mxu0 %v62
    %v1567 = vpop.f32.mrf.mxu0
    %v1568 = vadd.f32 %v347, %v1567
    %1569 = vmatmul.f32.gmra.mxu0 %v63
    %v1570 = vpop.f32.mrf.mxu0
    %v1571 = vadd.f32 %v347, %v1570
    %1572 = vmatmul.f32.gmra.mxu0 %v64
    %v1573 = vpop.f32.mrf.mxu0
    %v1574 = vadd.f32 %v347, %v1573
    %1575 = vmatmul.f32.gmra.mxu0 %v65
    %v1576 = vpop.f32.mrf.mxu0
    %v1577 = vadd.f32 %v347, %v1576
    %1578 = vmatmul.f32.gmra.mxu0 %v66
    %v1579 = vpop.f32.mrf.mxu0
    %v1580 = vadd.f32 %v347, %v1579
    %1581 = vmatmul.f32.gmra.mxu0 %v67
    %v1582 = vpop.f32.mrf.mxu0
    %v1583 = vadd.f32 %v347, %v1582
    %1584 = vmatmul.f32.gmra.mxu0 %v68
    %v1585 = vpop.f32.mrf.mxu0
    %v1586 = vadd.f32 %v347, %v1585
    %1587 = vmatmul.f32.gmra.mxu0 %v69
    %v1588 = vpop.f32.mrf.mxu0
    %v1589 = vadd.f32 %v347, %v1588
    %1590 = vmatmul.f32.gmra.mxu0 %v70
    %v1591 = vpop.f32.mrf.mxu0
    %v1592 = vadd.f32 %v347, %v1591
    %1593 = vmatmul.f32.gmra.mxu0 %v71
    %v1594 = vpop.f32.mrf.mxu0
    %v1595 = vadd.f32 %v347, %v1594
    %1596 = vmatmul.f32.gmra.mxu0 %v72
    %v1597 = vpop.f32.mrf.mxu0
    %v1598 = vadd.f32 %v347, %v1597
    %1599 = vmatmul.f32.gmra.mxu0 %v73
    %v1600 = vpop.f32.mrf.mxu0
    %v1601 = vadd.f32 %v347, %v1600
    %1602 = vmatmul.f32.gmra.mxu0 %v74
    %v1603 = vpop.f32.mrf.mxu0
    %v1604 = vadd.f32 %v347, %v1603
    %1605 = vmatmul.f32.gmra.mxu0 %v75
    %v1606 = vpop.f32.mrf.mxu0
    %v1607 = vadd.f32 %v347, %v1606
    %1608 = vmatmul.f32.gmra.mxu0 %v76
    %v1609 = vpop.f32.mrf.mxu0
    %v1610 = vadd.f32 %v347, %v1609
    %1611 = vdwg.mxu0
    %1612 = vmatpush.msra.mxu0 %v328
    %1613 = vmatpush.msra.mxu0 %v312
    %1614 = vmatpush.msra.mxu0 %v296
    %1615 = vmatpush.msra.mxu0 %v280
    %1616 = vmatpush.msra.mxu0 %v264
    %1617 = vmatpush.msra.mxu0 %v248
    %1618 = vmatpush.msra.mxu0 %v232
    %1619 = vmatpush.msra.mxu0 %v216
    %1620 = vmatpush.msra.mxu0 %v200
    %1621 = vmatpush.msra.mxu0 %v184
    %1622 = vmatpush.msra.mxu0 %v168
    %1623 = vmatpush.msra.mxu0 %v152
    %1624 = vmatpush.msra.mxu0 %v136
    %1625 = vmatpush.msra.mxu0 %v120
    %1626 = vmatpush.msra.mxu0 %v104
    %1627 = vmatpush.msra.mxu0 %v88
    %1628 = vmatmul.f32.gmra.mxu0 %v45
    %v1629 = vpop.f32.mrf.mxu0
    %v1630 = vadd.f32 %v348, %v1629
    %1631 = vmatmul.f32.gmra.mxu0 %v46
    %v1632 = vpop.f32.mrf.mxu0
    %v1633 = vadd.f32 %v348, %v1632
    %1634 = vmatmul.f32.gmra.mxu0 %v47
    %v1635 = vpop.f32.mrf.mxu0
    %v1636 = vadd.f32 %v348, %v1635
    %1637 = vmatmul.f32.gmra.mxu0 %v48
    %v1638 = vpop.f32.mrf.mxu0
    %v1639 = vadd.f32 %v348, %v1638
    %1640 = vmatmul.f32.gmra.mxu0 %v49
    %v1641 = vpop.f32.mrf.mxu0
    %v1642 = vadd.f32 %v348, %v1641
    %1643 = vmatmul.f32.gmra.mxu0 %v50
    %v1644 = vpop.f32.mrf.mxu0
    %v1645 = vadd.f32 %v348, %v1644
    %1646 = vmatmul.f32.gmra.mxu0 %v51
    %v1647 = vpop.f32.mrf.mxu0
    %v1648 = vadd.f32 %v348, %v1647
    %1649 = vmatmul.f32.gmra.mxu0 %v52
    %v1650 = vpop.f32.mrf.mxu0
    %v1651 = vadd.f32 %v348, %v1650
    %1652 = vmatmul.f32.gmra.mxu0 %v53
    %v1653 = vpop.f32.mrf.mxu0
    %v1654 = vadd.f32 %v348, %v1653
    %1655 = vmatmul.f32.gmra.mxu0 %v54
    %v1656 = vpop.f32.mrf.mxu0
    %v1657 = vadd.f32 %v348, %v1656
    %1658 = vmatmul.f32.gmra.mxu0 %v55
    %v1659 = vpop.f32.mrf.mxu0
    %v1660 = vadd.f32 %v348, %v1659
    %1661 = vmatmul.f32.gmra.mxu0 %v56
    %v1662 = vpop.f32.mrf.mxu0
    %v1663 = vadd.f32 %v348, %v1662
    %1664 = vmatmul.f32.gmra.mxu0 %v57
    %v1665 = vpop.f32.mrf.mxu0
    %v1666 = vadd.f32 %v348, %v1665
    %1667 = vmatmul.f32.gmra.mxu0 %v58
    %v1668 = vpop.f32.mrf.mxu0
    %v1669 = vadd.f32 %v348, %v1668
    %1670 = vmatmul.f32.gmra.mxu0 %v59
    %v1671 = vpop.f32.mrf.mxu0
    %v1672 = vadd.f32 %v348, %v1671
    %1673 = vmatmul.f32.gmra.mxu0 %v60
    %v1674 = vpop.f32.mrf.mxu0
    %v1675 = vadd.f32 %v348, %v1674
    %1676 = vmatmul.f32.gmra.mxu0 %v61
    %v1677 = vpop.f32.mrf.mxu0
    %v1678 = vadd.f32 %v348, %v1677
    %1679 = vmatmul.f32.gmra.mxu0 %v62
    %v1680 = vpop.f32.mrf.mxu0
    %v1681 = vadd.f32 %v348, %v1680
    %1682 = vmatmul.f32.gmra.mxu0 %v63
    %v1683 = vpop.f32.mrf.mxu0
    %v1684 = vadd.f32 %v348, %v1683
    %1685 = vmatmul.f32.gmra.mxu0 %v64
    %v1686 = vpop.f32.mrf.mxu0
    %v1687 = vadd.f32 %v348, %v1686
    %1688 = vmatmul.f32.gmra.mxu0 %v65
    %v1689 = vpop.f32.mrf.mxu0
    %v1690 = vadd.f32 %v348, %v1689
    %1691 = vmatmul.f32.gmra.mxu0 %v66
    %v1692 = vpop.f32.mrf.mxu0
    %v1693 = vadd.f32 %v348, %v1692
    %1694 = vmatmul.f32.gmra.mxu0 %v67
    %v1695 = vpop.f32.mrf.mxu0
    %v1696 = vadd.f32 %v348, %v1695
    %1697 = vmatmul.f32.gmra.mxu0 %v68
    %v1698 = vpop.f32.mrf.mxu0
    %v1699 = vadd.f32 %v348, %v1698
    %1700 = vmatmul.f32.gmra.mxu0 %v69
    %v1701 = vpop.f32.mrf.mxu0
    %v1702 = vadd.f32 %v348, %v1701
    %1703 = vmatmul.f32.gmra.mxu0 %v70
    %v1704 = vpop.f32.mrf.mxu0
    %v1705 = vadd.f32 %v348, %v1704
    %1706 = vmatmul.f32.gmra.mxu0 %v71
    %v1707 = vpop.f32.mrf.mxu0
    %v1708 = vadd.f32 %v348, %v1707
    %1709 = vmatmul.f32.gmra.mxu0 %v72
    %v1710 = vpop.f32.mrf.mxu0
    %v1711 = vadd.f32 %v348, %v1710
    %1712 = vmatmul.f32.gmra.mxu0 %v73
    %v1713 = vpop.f32.mrf.mxu0
    %v1714 = vadd.f32 %v348, %v1713
    %1715 = vmatmul.f32.gmra.mxu0 %v74
    %v1716 = vpop.f32.mrf.mxu0
    %v1717 = vadd.f32 %v348, %v1716
    %1718 = vmatmul.f32.gmra.mxu0 %v75
    %v1719 = vpop.f32.mrf.mxu0
    %v1720 = vadd.f32 %v348, %v1719
    %1721 = vmatmul.f32.gmra.mxu0 %v76
    %v1722 = vpop.f32.mrf.mxu0
    %v1723 = vadd.f32 %v348, %v1722
    %1724 = vdwg.mxu0
    %1725 = vmatpush.msra.mxu0 %v329
    %1726 = vmatpush.msra.mxu0 %v313
    %1727 = vmatpush.msra.mxu0 %v297
    %1728 = vmatpush.msra.mxu0 %v281
    %1729 = vmatpush.msra.mxu0 %v265
    %1730 = vmatpush.msra.mxu0 %v249
    %1731 = vmatpush.msra.mxu0 %v233
    %1732 = vmatpush.msra.mxu0 %v217
    %1733 = vmatpush.msra.mxu0 %v201
    %1734 = vmatpush.msra.mxu0 %v185
    %1735 = vmatpush.msra.mxu0 %v169
    %1736 = vmatpush.msra.mxu0 %v153
    %1737 = vmatpush.msra.mxu0 %v137
    %1738 = vmatpush.msra.mxu0 %v121
    %1739 = vmatpush.msra.mxu0 %v105
    %1740 = vmatpush.msra.mxu0 %v89
    %1741 = vmatmul.f32.gmra.mxu0 %v45
    %v1742 = vpop.f32.mrf.mxu0
    %v1743 = vadd.f32 %v349, %v1742
    %1744 = vmatmul.f32.gmra.mxu0 %v46
    %v1745 = vpop.f32.mrf.mxu0
    %v1746 = vadd.f32 %v349, %v1745
    %1747 = vmatmul.f32.gmra.mxu0 %v47
    %v1748 = vpop.f32.mrf.mxu0
    %v1749 = vadd.f32 %v349, %v1748
    %1750 = vmatmul.f32.gmra.mxu0 %v48
    %v1751 = vpop.f32.mrf.mxu0
    %v1752 = vadd.f32 %v349, %v1751
    %1753 = vmatmul.f32.gmra.mxu0 %v49
    %v1754 = vpop.f32.mrf.mxu0
    %v1755 = vadd.f32 %v349, %v1754
    %1756 = vmatmul.f32.gmra.mxu0 %v50
    %v1757 = vpop.f32.mrf.mxu0
    %v1758 = vadd.f32 %v349, %v1757
    %1759 = vmatmul.f32.gmra.mxu0 %v51
    %v1760 = vpop.f32.mrf.mxu0
    %v1761 = vadd.f32 %v349, %v1760
    %1762 = vmatmul.f32.gmra.mxu0 %v52
    %v1763 = vpop.f32.mrf.mxu0
    %v1764 = vadd.f32 %v349, %v1763
    %1765 = vmatmul.f32.gmra.mxu0 %v53
    %v1766 = vpop.f32.mrf.mxu0
    %v1767 = vadd.f32 %v349, %v1766
    %1768 = vmatmul.f32.gmra.mxu0 %v54
    %v1769 = vpop.f32.mrf.mxu0
    %v1770 = vadd.f32 %v349, %v1769
    %1771 = vmatmul.f32.gmra.mxu0 %v55
    %v1772 = vpop.f32.mrf.mxu0
    %v1773 = vadd.f32 %v349, %v1772
    %1774 = vmatmul.f32.gmra.mxu0 %v56
    %v1775 = vpop.f32.mrf.mxu0
    %v1776 = vadd.f32 %v349, %v1775
    %1777 = vmatmul.f32.gmra.mxu0 %v57
    %v1778 = vpop.f32.mrf.mxu0
    %v1779 = vadd.f32 %v349, %v1778
    %1780 = vmatmul.f32.gmra.mxu0 %v58
    %v1781 = vpop.f32.mrf.mxu0
    %v1782 = vadd.f32 %v349, %v1781
    %1783 = vmatmul.f32.gmra.mxu0 %v59
    %v1784 = vpop.f32.mrf.mxu0
    %v1785 = vadd.f32 %v349, %v1784
    %1786 = vmatmul.f32.gmra.mxu0 %v60
    %v1787 = vpop.f32.mrf.mxu0
    %v1788 = vadd.f32 %v349, %v1787
    %1789 = vmatmul.f32.gmra.mxu0 %v61
    %v1790 = vpop.f32.mrf.mxu0
    %v1791 = vadd.f32 %v349, %v1790
    %1792 = vmatmul.f32.gmra.mxu0 %v62
    %v1793 = vpop.f32.mrf.mxu0
    %v1794 = vadd.f32 %v349, %v1793
    %1795 = vmatmul.f32.gmra.mxu0 %v63
    %v1796 = vpop.f32.mrf.mxu0
    %v1797 = vadd.f32 %v349, %v1796
    %1798 = vmatmul.f32.gmra.mxu0 %v64
    %v1799 = vpop.f32.mrf.mxu0
    %v1800 = vadd.f32 %v349, %v1799
    %1801 = vmatmul.f32.gmra.mxu0 %v65
    %v1802 = vpop.f32.mrf.mxu0
    %v1803 = vadd.f32 %v349, %v1802
    %1804 = vmatmul.f32.gmra.mxu0 %v66
    %v1805 = vpop.f32.mrf.mxu0
    %v1806 = vadd.f32 %v349, %v1805
    %1807 = vmatmul.f32.gmra.mxu0 %v67
    %v1808 = vpop.f32.mrf.mxu0
    %v1809 = vadd.f32 %v349, %v1808
    %1810 = vmatmul.f32.gmra.mxu0 %v68
    %v1811 = vpop.f32.mrf.mxu0
    %v1812 = vadd.f32 %v349, %v1811
    %1813 = vmatmul.f32.gmra.mxu0 %v69
    %v1814 = vpop.f32.mrf.mxu0
    %v1815 = vadd.f32 %v349, %v1814
    %1816 = vmatmul.f32.gmra.mxu0 %v70
    %v1817 = vpop.f32.mrf.mxu0
    %v1818 = vadd.f32 %v349, %v1817
    %1819 = vmatmul.f32.gmra.mxu0 %v71
    %v1820 = vpop.f32.mrf.mxu0
    %v1821 = vadd.f32 %v349, %v1820
    %1822 = vmatmul.f32.gmra.mxu0 %v72
    %v1823 = vpop.f32.mrf.mxu0
    %v1824 = vadd.f32 %v349, %v1823
    %1825 = vmatmul.f32.gmra.mxu0 %v73
    %v1826 = vpop.f32.mrf.mxu0
    %v1827 = vadd.f32 %v349, %v1826
    %1828 = vmatmul.f32.gmra.mxu0 %v74
    %v1829 = vpop.f32.mrf.mxu0
    %v1830 = vadd.f32 %v349, %v1829
    %1831 = vmatmul.f32.gmra.mxu0 %v75
    %v1832 = vpop.f32.mrf.mxu0
    %v1833 = vadd.f32 %v349, %v1832
    %1834 = vmatmul.f32.gmra.mxu0 %v76
    %v1835 = vpop.f32.mrf.mxu0
    %v1836 = vadd.f32 %v349, %v1835
    %1837 = vdwg.mxu0
    %1838 = vmatpush.msra.mxu0 %v330
    %1839 = vmatpush.msra.mxu0 %v314
    %1840 = vmatpush.msra.mxu0 %v298
    %1841 = vmatpush.msra.mxu0 %v282
    %1842 = vmatpush.msra.mxu0 %v266
    %1843 = vmatpush.msra.mxu0 %v250
    %1844 = vmatpush.msra.mxu0 %v234
    %1845 = vmatpush.msra.mxu0 %v218
    %1846 = vmatpush.msra.mxu0 %v202
    %1847 = vmatpush.msra.mxu0 %v186
    %1848 = vmatpush.msra.mxu0 %v170
    %1849 = vmatpush.msra.mxu0 %v154
    %1850 = vmatpush.msra.mxu0 %v138
    %1851 = vmatpush.msra.mxu0 %v122
    %1852 = vmatpush.msra.mxu0 %v106
    %1853 = vmatpush.msra.mxu0 %v90
    %1854 = vmatmul.f32.gmra.mxu0 %v45
    %v1855 = vpop.f32.mrf.mxu0
    %v1856 = vadd.f32 %v350, %v1855
    %1857 = vmatmul.f32.gmra.mxu0 %v46
    %v1858 = vpop.f32.mrf.mxu0
    %v1859 = vadd.f32 %v350, %v1858
    %1860 = vmatmul.f32.gmra.mxu0 %v47
    %v1861 = vpop.f32.mrf.mxu0
    %v1862 = vadd.f32 %v350, %v1861
    %1863 = vmatmul.f32.gmra.mxu0 %v48
    %v1864 = vpop.f32.mrf.mxu0
    %v1865 = vadd.f32 %v350, %v1864
    %1866 = vmatmul.f32.gmra.mxu0 %v49
    %v1867 = vpop.f32.mrf.mxu0
    %v1868 = vadd.f32 %v350, %v1867
    %1869 = vmatmul.f32.gmra.mxu0 %v50
    %v1870 = vpop.f32.mrf.mxu0
    %v1871 = vadd.f32 %v350, %v1870
    %1872 = vmatmul.f32.gmra.mxu0 %v51
    %v1873 = vpop.f32.mrf.mxu0
    %v1874 = vadd.f32 %v350, %v1873
    %1875 = vmatmul.f32.gmra.mxu0 %v52
    %v1876 = vpop.f32.mrf.mxu0
    %v1877 = vadd.f32 %v350, %v1876
    %1878 = vmatmul.f32.gmra.mxu0 %v53
    %v1879 = vpop.f32.mrf.mxu0
    %v1880 = vadd.f32 %v350, %v1879
    %1881 = vmatmul.f32.gmra.mxu0 %v54
    %v1882 = vpop.f32.mrf.mxu0
    %v1883 = vadd.f32 %v350, %v1882
    %1884 = vmatmul.f32.gmra.mxu0 %v55
    %v1885 = vpop.f32.mrf.mxu0
    %v1886 = vadd.f32 %v350, %v1885
    %1887 = vmatmul.f32.gmra.mxu0 %v56
    %v1888 = vpop.f32.mrf.mxu0
    %v1889 = vadd.f32 %v350, %v1888
    %1890 = vmatmul.f32.gmra.mxu0 %v57
    %v1891 = vpop.f32.mrf.mxu0
    %v1892 = vadd.f32 %v350, %v1891
    %1893 = vmatmul.f32.gmra.mxu0 %v58
    %v1894 = vpop.f32.mrf.mxu0
    %v1895 = vadd.f32 %v350, %v1894
    %1896 = vmatmul.f32.gmra.mxu0 %v59
    %v1897 = vpop.f32.mrf.mxu0
    %v1898 = vadd.f32 %v350, %v1897
    %1899 = vmatmul.f32.gmra.mxu0 %v60
    %v1900 = vpop.f32.mrf.mxu0
    %v1901 = vadd.f32 %v350, %v1900
    %1902 = vmatmul.f32.gmra.mxu0 %v61
    %v1903 = vpop.f32.mrf.mxu0
    %v1904 = vadd.f32 %v350, %v1903
    %1905 = vmatmul.f32.gmra.mxu0 %v62
    %v1906 = vpop.f32.mrf.mxu0
    %v1907 = vadd.f32 %v350, %v1906
    %1908 = vmatmul.f32.gmra.mxu0 %v63
    %v1909 = vpop.f32.mrf.mxu0
    %v1910 = vadd.f32 %v350, %v1909
    %1911 = vmatmul.f32.gmra.mxu0 %v64
    %v1912 = vpop.f32.mrf.mxu0
    %v1913 = vadd.f32 %v350, %v1912
    %1914 = vmatmul.f32.gmra.mxu0 %v65
    %v1915 = vpop.f32.mrf.mxu0
    %v1916 = vadd.f32 %v350, %v1915
    %1917 = vmatmul.f32.gmra.mxu0 %v66
    %v1918 = vpop.f32.mrf.mxu0
    %v1919 = vadd.f32 %v350, %v1918
    %1920 = vmatmul.f32.gmra.mxu0 %v67
    %v1921 = vpop.f32.mrf.mxu0
    %v1922 = vadd.f32 %v350, %v1921
    %1923 = vmatmul.f32.gmra.mxu0 %v68
    %v1924 = vpop.f32.mrf.mxu0
    %v1925 = vadd.f32 %v350, %v1924
    %1926 = vmatmul.f32.gmra.mxu0 %v69
    %v1927 = vpop.f32.mrf.mxu0
    %v1928 = vadd.f32 %v350, %v1927
    %1929 = vmatmul.f32.gmra.mxu0 %v70
    %v1930 = vpop.f32.mrf.mxu0
    %v1931 = vadd.f32 %v350, %v1930
    %1932 = vmatmul.f32.gmra.mxu0 %v71
    %v1933 = vpop.f32.mrf.mxu0
    %v1934 = vadd.f32 %v350, %v1933
    %1935 = vmatmul.f32.gmra.mxu0 %v72
    %v1936 = vpop.f32.mrf.mxu0
    %v1937 = vadd.f32 %v350, %v1936
    %1938 = vmatmul.f32.gmra.mxu0 %v73
    %v1939 = vpop.f32.mrf.mxu0
    %v1940 = vadd.f32 %v350, %v1939
    %1941 = vmatmul.f32.gmra.mxu0 %v74
    %v1942 = vpop.f32.mrf.mxu0
    %v1943 = vadd.f32 %v350, %v1942
    %1944 = vmatmul.f32.gmra.mxu0 %v75
    %v1945 = vpop.f32.mrf.mxu0
    %v1946 = vadd.f32 %v350, %v1945
    %1947 = vmatmul.f32.gmra.mxu0 %v76
    %v1948 = vpop.f32.mrf.mxu0
    %v1949 = vadd.f32 %v350, %v1948
    %1950 = vdwg.mxu0
    %1951 = vmatpush.msra.mxu0 %v331
    %1952 = vmatpush.msra.mxu0 %v315
    %1953 = vmatpush.msra.mxu0 %v299
    %1954 = vmatpush.msra.mxu0 %v283
    %1955 = vmatpush.msra.mxu0 %v267
    %1956 = vmatpush.msra.mxu0 %v251
    %1957 = vmatpush.msra.mxu0 %v235
    %1958 = vmatpush.msra.mxu0 %v219
    %1959 = vmatpush.msra.mxu0 %v203
    %1960 = vmatpush.msra.mxu0 %v187
    %1961 = vmatpush.msra.mxu0 %v171
    %1962 = vmatpush.msra.mxu0 %v155
    %1963 = vmatpush.msra.mxu0 %v139
    %1964 = vmatpush.msra.mxu0 %v123
    %1965 = vmatpush.msra.mxu0 %v107
    %1966 = vmatpush.msra.mxu0 %v91
    %1967 = vmatmul.f32.gmra.mxu0 %v45
    %v1968 = vpop.f32.mrf.mxu0
    %v1969 = vadd.f32 %v351, %v1968
    %1970 = vmatmul.f32.gmra.mxu0 %v46
    %v1971 = vpop.f32.mrf.mxu0
    %v1972 = vadd.f32 %v351, %v1971
    %1973 = vmatmul.f32.gmra.mxu0 %v47
    %v1974 = vpop.f32.mrf.mxu0
    %v1975 = vadd.f32 %v351, %v1974
    %1976 = vmatmul.f32.gmra.mxu0 %v48
    %v1977 = vpop.f32.mrf.mxu0
    %v1978 = vadd.f32 %v351, %v1977
    %1979 = vmatmul.f32.gmra.mxu0 %v49
    %v1980 = vpop.f32.mrf.mxu0
    %v1981 = vadd.f32 %v351, %v1980
    %1982 = vmatmul.f32.gmra.mxu0 %v50
    %v1983 = vpop.f32.mrf.mxu0
    %v1984 = vadd.f32 %v351, %v1983
    %1985 = vmatmul.f32.gmra.mxu0 %v51
    %v1986 = vpop.f32.mrf.mxu0
    %v1987 = vadd.f32 %v351, %v1986
    %1988 = vmatmul.f32.gmra.mxu0 %v52
    %v1989 = vpop.f32.mrf.mxu0
    %v1990 = vadd.f32 %v351, %v1989
    %1991 = vmatmul.f32.gmra.mxu0 %v53
    %v1992 = vpop.f32.mrf.mxu0
    %v1993 = vadd.f32 %v351, %v1992
    %1994 = vmatmul.f32.gmra.mxu0 %v54
    %v1995 = vpop.f32.mrf.mxu0
    %v1996 = vadd.f32 %v351, %v1995
    %1997 = vmatmul.f32.gmra.mxu0 %v55
    %v1998 = vpop.f32.mrf.mxu0
    %v1999 = vadd.f32 %v351, %v1998
    %2000 = vmatmul.f32.gmra.mxu0 %v56
    %v2001 = vpop.f32.mrf.mxu0
    %v2002 = vadd.f32 %v351, %v2001
    %2003 = vmatmul.f32.gmra.mxu0 %v57
    %v2004 = vpop.f32.mrf.mxu0
    %v2005 = vadd.f32 %v351, %v2004
    %2006 = vmatmul.f32.gmra.mxu0 %v58
    %v2007 = vpop.f32.mrf.mxu0
    %v2008 = vadd.f32 %v351, %v2007
    %2009 = vmatmul.f32.gmra.mxu0 %v59
    %v2010 = vpop.f32.mrf.mxu0
    %v2011 = vadd.f32 %v351, %v2010
    %2012 = vmatmul.f32.gmra.mxu0 %v60
    %v2013 = vpop.f32.mrf.mxu0
    %v2014 = vadd.f32 %v351, %v2013
    %2015 = vmatmul.f32.gmra.mxu0 %v61
    %v2016 = vpop.f32.mrf.mxu0
    %v2017 = vadd.f32 %v351, %v2016
    %2018 = vmatmul.f32.gmra.mxu0 %v62
    %v2019 = vpop.f32.mrf.mxu0
    %v2020 = vadd.f32 %v351, %v2019
    %2021 = vmatmul.f32.gmra.mxu0 %v63
    %v2022 = vpop.f32.mrf.mxu0
    %v2023 = vadd.f32 %v351, %v2022
    %2024 = vmatmul.f32.gmra.mxu0 %v64
    %v2025 = vpop.f32.mrf.mxu0
    %v2026 = vadd.f32 %v351, %v2025
    %2027 = vmatmul.f32.gmra.mxu0 %v65
    %v2028 = vpop.f32.mrf.mxu0
    %v2029 = vadd.f32 %v351, %v2028
    %2030 = vmatmul.f32.gmra.mxu0 %v66
    %v2031 = vpop.f32.mrf.mxu0
    %v2032 = vadd.f32 %v351, %v2031
    %2033 = vmatmul.f32.gmra.mxu0 %v67
    %v2034 = vpop.f32.mrf.mxu0
    %v2035 = vadd.f32 %v351, %v2034
    %2036 = vmatmul.f32.gmra.mxu0 %v68
    %v2037 = vpop.f32.mrf.mxu0
    %v2038 = vadd.f32 %v351, %v2037
    %2039 = vmatmul.f32.gmra.mxu0 %v69
    %v2040 = vpop.f32.mrf.mxu0
    %v2041 = vadd.f32 %v351, %v2040
    %2042 = vmatmul.f32.gmra.mxu0 %v70
    %v2043 = vpop.f32.mrf.mxu0
    %v2044 = vadd.f32 %v351, %v2043
    %2045 = vmatmul.f32.gmra.mxu0 %v71
    %v2046 = vpop.f32.mrf.mxu0
    %v2047 = vadd.f32 %v351, %v2046
    %2048 = vmatmul.f32.gmra.mxu0 %v72
    %v2049 = vpop.f32.mrf.mxu0
    %v2050 = vadd.f32 %v351, %v2049
    %2051 = vmatmul.f32.gmra.mxu0 %v73
    %v2052 = vpop.f32.mrf.mxu0
    %v2053 = vadd.f32 %v351, %v2052
    %2054 = vmatmul.f32.gmra.mxu0 %v74
    %v2055 = vpop.f32.mrf.mxu0
    %v2056 = vadd.f32 %v351, %v2055
    %2057 = vmatmul.f32.gmra.mxu0 %v75
    %v2058 = vpop.f32.mrf.mxu0
    %v2059 = vadd.f32 %v351, %v2058
    %2060 = vmatmul.f32.gmra.mxu0 %v76
    %v2061 = vpop.f32.mrf.mxu0
    %v2062 = vadd.f32 %v351, %v2061
    %2063 = vdwg.mxu0
    %2064 = vmatpush.msra.mxu0 %v332
    %2065 = vmatpush.msra.mxu0 %v316
    %2066 = vmatpush.msra.mxu0 %v300
    %2067 = vmatpush.msra.mxu0 %v284
    %2068 = vmatpush.msra.mxu0 %v268
    %2069 = vmatpush.msra.mxu0 %v252
    %2070 = vmatpush.msra.mxu0 %v236
    %2071 = vmatpush.msra.mxu0 %v220
    %2072 = vmatpush.msra.mxu0 %v204
    %2073 = vmatpush.msra.mxu0 %v188
    %2074 = vmatpush.msra.mxu0 %v172
    %2075 = vmatpush.msra.mxu0 %v156
    %2076 = vmatpush.msra.mxu0 %v140
    %2077 = vmatpush.msra.mxu0 %v124
    %2078 = vmatpush.msra.mxu0 %v108
    %2079 = vmatpush.msra.mxu0 %v92
    %2080 = vmatmul.f32.gmra.mxu0 %v45
    %v2081 = vpop.f32.mrf.mxu0
    %v2082 = vadd.f32 %v352, %v2081
    %2083 = vmatmul.f32.gmra.mxu0 %v46
    %v2084 = vpop.f32.mrf.mxu0
    %v2085 = vadd.f32 %v352, %v2084
    %2086 = vmatmul.f32.gmra.mxu0 %v47
    %v2087 = vpop.f32.mrf.mxu0
    %v2088 = vadd.f32 %v352, %v2087
    %2089 = vmatmul.f32.gmra.mxu0 %v48
    %v2090 = vpop.f32.mrf.mxu0
    %v2091 = vadd.f32 %v352, %v2090
    %2092 = vmatmul.f32.gmra.mxu0 %v49
    %v2093 = vpop.f32.mrf.mxu0
    %v2094 = vadd.f32 %v352, %v2093
    %2095 = vmatmul.f32.gmra.mxu0 %v50
    %v2096 = vpop.f32.mrf.mxu0
    %v2097 = vadd.f32 %v352, %v2096
    %2098 = vmatmul.f32.gmra.mxu0 %v51
    %v2099 = vpop.f32.mrf.mxu0
    %v2100 = vadd.f32 %v352, %v2099
    %2101 = vmatmul.f32.gmra.mxu0 %v52
    %v2102 = vpop.f32.mrf.mxu0
    %v2103 = vadd.f32 %v352, %v2102
    %2104 = vmatmul.f32.gmra.mxu0 %v53
    %v2105 = vpop.f32.mrf.mxu0
    %v2106 = vadd.f32 %v352, %v2105
    %2107 = vmatmul.f32.gmra.mxu0 %v54
    %v2108 = vpop.f32.mrf.mxu0
    %v2109 = vadd.f32 %v352, %v2108
    %2110 = vmatmul.f32.gmra.mxu0 %v55
    %v2111 = vpop.f32.mrf.mxu0
    %v2112 = vadd.f32 %v352, %v2111
    %2113 = vmatmul.f32.gmra.mxu0 %v56
    %v2114 = vpop.f32.mrf.mxu0
    %v2115 = vadd.f32 %v352, %v2114
    %2116 = vmatmul.f32.gmra.mxu0 %v57
    %v2117 = vpop.f32.mrf.mxu0
    %v2118 = vadd.f32 %v352, %v2117
    %2119 = vmatmul.f32.gmra.mxu0 %v58
    %v2120 = vpop.f32.mrf.mxu0
    %v2121 = vadd.f32 %v352, %v2120
    %2122 = vmatmul.f32.gmra.mxu0 %v59
    %v2123 = vpop.f32.mrf.mxu0
    %v2124 = vadd.f32 %v352, %v2123
    %2125 = vmatmul.f32.gmra.mxu0 %v60
    %v2126 = vpop.f32.mrf.mxu0
    %v2127 = vadd.f32 %v352, %v2126
    %2128 = vmatmul.f32.gmra.mxu0 %v61
    %v2129 = vpop.f32.mrf.mxu0
    %v2130 = vadd.f32 %v352, %v2129
    %2131 = vmatmul.f32.gmra.mxu0 %v62
    %v2132 = vpop.f32.mrf.mxu0
    %v2133 = vadd.f32 %v352, %v2132
    %2134 = vmatmul.f32.gmra.mxu0 %v63
    %v2135 = vpop.f32.mrf.mxu0
    %v2136 = vadd.f32 %v352, %v2135
    %2137 = vmatmul.f32.gmra.mxu0 %v64
    %v2138 = vpop.f32.mrf.mxu0
    %v2139 = vadd.f32 %v352, %v2138
    %2140 = vmatmul.f32.gmra.mxu0 %v65
    %v2141 = vpop.f32.mrf.mxu0
    %v2142 = vadd.f32 %v352, %v2141
    %2143 = vmatmul.f32.gmra.mxu0 %v66
    %v2144 = vpop.f32.mrf.mxu0
    %v2145 = vadd.f32 %v352, %v2144
    %2146 = vmatmul.f32.gmra.mxu0 %v67
    %v2147 = vpop.f32.mrf.mxu0
    %v2148 = vadd.f32 %v352, %v2147
    %2149 = vmatmul.f32.gmra.mxu0 %v68
    %v2150 = vpop.f32.mrf.mxu0
    %v2151 = vadd.f32 %v352, %v2150
    %2152 = vmatmul.f32.gmra.mxu0 %v69
    %v2153 = vpop.f32.mrf.mxu0
    %v2154 = vadd.f32 %v352, %v2153
    %2155 = vmatmul.f32.gmra.mxu0 %v70
    %v2156 = vpop.f32.mrf.mxu0
    %v2157 = vadd.f32 %v352, %v2156
    %2158 = vmatmul.f32.gmra.mxu0 %v71
    %v2159 = vpop.f32.mrf.mxu0
    %v2160 = vadd.f32 %v352, %v2159
    %2161 = vmatmul.f32.gmra.mxu0 %v72
    %v2162 = vpop.f32.mrf.mxu0
    %v2163 = vadd.f32 %v352, %v2162
    %2164 = vmatmul.f32.gmra.mxu0 %v73
    %v2165 = vpop.f32.mrf.mxu0
    %v2166 = vadd.f32 %v352, %v2165
    %2167 = vmatmul.f32.gmra.mxu0 %v74
    %v2168 = vpop.f32.mrf.mxu0
    %v2169 = vadd.f32 %v352, %v2168
    %2170 = vmatmul.f32.gmra.mxu0 %v75
    %v2171 = vpop.f32.mrf.mxu0
    %v2172 = vadd.f32 %v352, %v2171
    %2173 = vmatmul.f32.gmra.mxu0 %v76
    %v2174 = vpop.f32.mrf.mxu0
    %v2175 = vadd.f32 %v352, %v2174
    %2176 = vdwg.mxu0
    %v2177 = vmax.f32 %v387, 0.0
    %v2178 = vmax.f32 %v500, 0.0
    %v2179 = vmax.f32 %v613, 0.0
    %v2180 = vmax.f32 %v726, 0.0
    %v2181 = vmax.f32 %v839, 0.0
    %v2182 = vmax.f32 %v952, 0.0
    %v2183 = vmax.f32 %v1065, 0.0
    %v2184 = vmax.f32 %v1178, 0.0
    %v2185 = vmax.f32 %v1291, 0.0
    %v2186 = vmax.f32 %v1404, 0.0
    %v2187 = vmax.f32 %v1517, 0.0
    %v2188 = vmax.f32 %v1630, 0.0
    %v2189 = vmax.f32 %v1743, 0.0
    %v2190 = vmax.f32 %v1856, 0.0
    %v2191 = vmax.f32 %v1969, 0.0
    %v2192 = vmax.f32 %v2082, 0.0
    %v2193 = vmax.f32 %v390, 0.0
    %v2194 = vmax.f32 %v503, 0.0
    %v2195 = vmax.f32 %v616, 0.0
    %v2196 = vmax.f32 %v729, 0.0
    %v2197 = vmax.f32 %v842, 0.0
    %v2198 = vmax.f32 %v955, 0.0
    %v2199 = vmax.f32 %v1068, 0.0
    %v2200 = vmax.f32 %v1181, 0.0
    %v2201 = vmax.f32 %v1294, 0.0
    %v2202 = vmax.f32 %v1407, 0.0
    %v2203 = vmax.f32 %v1520, 0.0
    %v2204 = vmax.f32 %v1633, 0.0
    %v2205 = vmax.f32 %v1746, 0.0
    %v2206 = vmax.f32 %v1859, 0.0
    %v2207 = vmax.f32 %v1972, 0.0
    %v2208 = vmax.f32 %v2085, 0.0
    %v2209 = vmax.f32 %v393, 0.0
    %v2210 = vmax.f32 %v506, 0.0
    %v2211 = vmax.f32 %v619, 0.0
    %v2212 = vmax.f32 %v732, 0.0
    %v2213 = vmax.f32 %v845, 0.0
    %v2214 = vmax.f32 %v958, 0.0
    %v2215 = vmax.f32 %v1071, 0.0
    %v2216 = vmax.f32 %v1184, 0.0
    %v2217 = vmax.f32 %v1297, 0.0
    %v2218 = vmax.f32 %v1410, 0.0
    %v2219 = vmax.f32 %v1523, 0.0
    %v2220 = vmax.f32 %v1636, 0.0
    %v2221 = vmax.f32 %v1749, 0.0
    %v2222 = vmax.f32 %v1862, 0.0
    %v2223 = vmax.f32 %v1975, 0.0
    %v2224 = vmax.f32 %v2088, 0.0
    %v2225 = vmax.f32 %v396, 0.0
    %v2226 = vmax.f32 %v509, 0.0
    %v2227 = vmax.f32 %v622, 0.0
    %v2228 = vmax.f32 %v735, 0.0
    %v2229 = vmax.f32 %v848, 0.0
    %v2230 = vmax.f32 %v961, 0.0
    %v2231 = vmax.f32 %v1074, 0.0
    %v2232 = vmax.f32 %v1187, 0.0
    %v2233 = vmax.f32 %v1300, 0.0
    %v2234 = vmax.f32 %v1413, 0.0
    %v2235 = vmax.f32 %v1526, 0.0
    %v2236 = vmax.f32 %v1639, 0.0
    %v2237 = vmax.f32 %v1752, 0.0
    %v2238 = vmax.f32 %v1865, 0.0
    %v2239 = vmax.f32 %v1978, 0.0
    %v2240 = vmax.f32 %v2091, 0.0
    %v2241 = vmax.f32 %v399, 0.0
    %v2242 = vmax.f32 %v512, 0.0
    %v2243 = vmax.f32 %v625, 0.0
    %v2244 = vmax.f32 %v738, 0.0
    %v2245 = vmax.f32 %v851, 0.0
    %v2246 = vmax.f32 %v964, 0.0
    %v2247 = vmax.f32 %v1077, 0.0
    %v2248 = vmax.f32 %v1190, 0.0
    %v2249 = vmax.f32 %v1303, 0.0
    %v2250 = vmax.f32 %v1416, 0.0
    %v2251 = vmax.f32 %v1529, 0.0
    %v2252 = vmax.f32 %v1642, 0.0
    %v2253 = vmax.f32 %v1755, 0.0
    %v2254 = vmax.f32 %v1868, 0.0
    %v2255 = vmax.f32 %v1981, 0.0
    %v2256 = vmax.f32 %v2094, 0.0
    %v2257 = vmax.f32 %v402, 0.0
    %v2258 = vmax.f32 %v515, 0.0
    %v2259 = vmax.f32 %v628, 0.0
    %v2260 = vmax.f32 %v741, 0.0
    %v2261 = vmax.f32 %v854, 0.0
    %v2262 = vmax.f32 %v967, 0.0
    %v2263 = vmax.f32 %v1080, 0.0
    %v2264 = vmax.f32 %v1193, 0.0
    %v2265 = vmax.f32 %v1306, 0.0
    %v2266 = vmax.f32 %v1419, 0.0
    %v2267 = vmax.f32 %v1532, 0.0
    %v2268 = vmax.f32 %v1645, 0.0
    %v2269 = vmax.f32 %v1758, 0.0
    %v2270 = vmax.f32 %v1871, 0.0
    %v2271 = vmax.f32 %v1984, 0.0
    %v2272 = vmax.f32 %v2097, 0.0
    %v2273 = vmax.f32 %v405, 0.0
    %v2274 = vmax.f32 %v518, 0.0
    %v2275 = vmax.f32 %v631, 0.0
    %v2276 = vmax.f32 %v744, 0.0
    %v2277 = vmax.f32 %v857, 0.0
    %v2278 = vmax.f32 %v970, 0.0
    %v2279 = vmax.f32 %v1083, 0.0
    %v2280 = vmax.f32 %v1196, 0.0
    %v2281 = vmax.f32 %v1309, 0.0
    %v2282 = vmax.f32 %v1422, 0.0
    %v2283 = vmax.f32 %v1535, 0.0
    %v2284 = vmax.f32 %v1648, 0.0
    %v2285 = vmax.f32 %v1761, 0.0
    %v2286 = vmax.f32 %v1874, 0.0
    %v2287 = vmax.f32 %v1987, 0.0
    %v2288 = vmax.f32 %v2100, 0.0
    %v2289 = vmax.f32 %v408, 0.0
    %v2290 = vmax.f32 %v521, 0.0
    %v2291 = vmax.f32 %v634, 0.0
    %v2292 = vmax.f32 %v747, 0.0
    %v2293 = vmax.f32 %v860, 0.0
    %v2294 = vmax.f32 %v973, 0.0
    %v2295 = vmax.f32 %v1086, 0.0
    %v2296 = vmax.f32 %v1199, 0.0
    %v2297 = vmax.f32 %v1312, 0.0
    %v2298 = vmax.f32 %v1425, 0.0
    %v2299 = vmax.f32 %v1538, 0.0
    %v2300 = vmax.f32 %v1651, 0.0
    %v2301 = vmax.f32 %v1764, 0.0
    %v2302 = vmax.f32 %v1877, 0.0
    %v2303 = vmax.f32 %v1990, 0.0
    %v2304 = vmax.f32 %v2103, 0.0
    %v2305 = vmax.f32 %v411, 0.0
    %v2306 = vmax.f32 %v524, 0.0
    %v2307 = vmax.f32 %v637, 0.0
    %v2308 = vmax.f32 %v750, 0.0
    %v2309 = vmax.f32 %v863, 0.0
    %v2310 = vmax.f32 %v976, 0.0
    %v2311 = vmax.f32 %v1089, 0.0
    %v2312 = vmax.f32 %v1202, 0.0
    %v2313 = vmax.f32 %v1315, 0.0
    %v2314 = vmax.f32 %v1428, 0.0
    %v2315 = vmax.f32 %v1541, 0.0
    %v2316 = vmax.f32 %v1654, 0.0
    %v2317 = vmax.f32 %v1767, 0.0
    %v2318 = vmax.f32 %v1880, 0.0
    %v2319 = vmax.f32 %v1993, 0.0
    %v2320 = vmax.f32 %v2106, 0.0
    %v2321 = vmax.f32 %v414, 0.0
    %v2322 = vmax.f32 %v527, 0.0
    %v2323 = vmax.f32 %v640, 0.0
    %v2324 = vmax.f32 %v753, 0.0
    %v2325 = vmax.f32 %v866, 0.0
    %v2326 = vmax.f32 %v979, 0.0
    %v2327 = vmax.f32 %v1092, 0.0
    %v2328 = vmax.f32 %v1205, 0.0
    %v2329 = vmax.f32 %v1318, 0.0
    %v2330 = vmax.f32 %v1431, 0.0
    %v2331 = vmax.f32 %v1544, 0.0
    %v2332 = vmax.f32 %v1657, 0.0
    %v2333 = vmax.f32 %v1770, 0.0
    %v2334 = vmax.f32 %v1883, 0.0
    %v2335 = vmax.f32 %v1996, 0.0
    %v2336 = vmax.f32 %v2109, 0.0
    %v2337 = vmax.f32 %v417, 0.0
    %v2338 = vmax.f32 %v530, 0.0
    %v2339 = vmax.f32 %v643, 0.0
    %v2340 = vmax.f32 %v756, 0.0
    %v2341 = vmax.f32 %v869, 0.0
    %v2342 = vmax.f32 %v982, 0.0
    %v2343 = vmax.f32 %v1095, 0.0
    %v2344 = vmax.f32 %v1208, 0.0
    %v2345 = vmax.f32 %v1321, 0.0
    %v2346 = vmax.f32 %v1434, 0.0
    %v2347 = vmax.f32 %v1547, 0.0
    %v2348 = vmax.f32 %v1660, 0.0
    %v2349 = vmax.f32 %v1773, 0.0
    %v2350 = vmax.f32 %v1886, 0.0
    %v2351 = vmax.f32 %v1999, 0.0
    %v2352 = vmax.f32 %v2112, 0.0
    %v2353 = vmax.f32 %v420, 0.0
    %v2354 = vmax.f32 %v533, 0.0
    %v2355 = vmax.f32 %v646, 0.0
    %v2356 = vmax.f32 %v759, 0.0
    %v2357 = vmax.f32 %v872, 0.0
    %v2358 = vmax.f32 %v985, 0.0
    %v2359 = vmax.f32 %v1098, 0.0
    %v2360 = vmax.f32 %v1211, 0.0
    %v2361 = vmax.f32 %v1324, 0.0
    %v2362 = vmax.f32 %v1437, 0.0
    %v2363 = vmax.f32 %v1550, 0.0
    %v2364 = vmax.f32 %v1663, 0.0
    %v2365 = vmax.f32 %v1776, 0.0
    %v2366 = vmax.f32 %v1889, 0.0
    %v2367 = vmax.f32 %v2002, 0.0
    %v2368 = vmax.f32 %v2115, 0.0
    %v2369 = vmax.f32 %v423, 0.0
    %v2370 = vmax.f32 %v536, 0.0
    %v2371 = vmax.f32 %v649, 0.0
    %v2372 = vmax.f32 %v762, 0.0
    %v2373 = vmax.f32 %v875, 0.0
    %v2374 = vmax.f32 %v988, 0.0
    %v2375 = vmax.f32 %v1101, 0.0
    %v2376 = vmax.f32 %v1214, 0.0
    %v2377 = vmax.f32 %v1327, 0.0
    %v2378 = vmax.f32 %v1440, 0.0
    %v2379 = vmax.f32 %v1553, 0.0
    %v2380 = vmax.f32 %v1666, 0.0
    %v2381 = vmax.f32 %v1779, 0.0
    %v2382 = vmax.f32 %v1892, 0.0
    %v2383 = vmax.f32 %v2005, 0.0
    %v2384 = vmax.f32 %v2118, 0.0
    %v2385 = vmax.f32 %v426, 0.0
    %v2386 = vmax.f32 %v539, 0.0
    %v2387 = vmax.f32 %v652, 0.0
    %v2388 = vmax.f32 %v765, 0.0
    %v2389 = vmax.f32 %v878, 0.0
    %v2390 = vmax.f32 %v991, 0.0
    %v2391 = vmax.f32 %v1104, 0.0
    %v2392 = vmax.f32 %v1217, 0.0
    %v2393 = vmax.f32 %v1330, 0.0
    %v2394 = vmax.f32 %v1443, 0.0
    %v2395 = vmax.f32 %v1556, 0.0
    %v2396 = vmax.f32 %v1669, 0.0
    %v2397 = vmax.f32 %v1782, 0.0
    %v2398 = vmax.f32 %v1895, 0.0
    %v2399 = vmax.f32 %v2008, 0.0
    %v2400 = vmax.f32 %v2121, 0.0
    %v2401 = vmax.f32 %v429, 0.0
    %v2402 = vmax.f32 %v542, 0.0
    %v2403 = vmax.f32 %v655, 0.0
    %v2404 = vmax.f32 %v768, 0.0
    %v2405 = vmax.f32 %v881, 0.0
    %v2406 = vmax.f32 %v994, 0.0
    %v2407 = vmax.f32 %v1107, 0.0
    %v2408 = vmax.f32 %v1220, 0.0
    %v2409 = vmax.f32 %v1333, 0.0
    %v2410 = vmax.f32 %v1446, 0.0
    %v2411 = vmax.f32 %v1559, 0.0
    %v2412 = vmax.f32 %v1672, 0.0
    %v2413 = vmax.f32 %v1785, 0.0
    %v2414 = vmax.f32 %v1898, 0.0
    %v2415 = vmax.f32 %v2011, 0.0
    %v2416 = vmax.f32 %v2124, 0.0
    %v2417 = vmax.f32 %v432, 0.0
    %v2418 = vmax.f32 %v545, 0.0
    %v2419 = vmax.f32 %v658, 0.0
    %v2420 = vmax.f32 %v771, 0.0
    %v2421 = vmax.f32 %v884, 0.0
    %v2422 = vmax.f32 %v997, 0.0
    %v2423 = vmax.f32 %v1110, 0.0
    %v2424 = vmax.f32 %v1223, 0.0
    %v2425 = vmax.f32 %v1336, 0.0
    %v2426 = vmax.f32 %v1449, 0.0
    %v2427 = vmax.f32 %v1562, 0.0
    %v2428 = vmax.f32 %v1675, 0.0
    %v2429 = vmax.f32 %v1788, 0.0
    %v2430 = vmax.f32 %v1901, 0.0
    %v2431 = vmax.f32 %v2014, 0.0
    %v2432 = vmax.f32 %v2127, 0.0
    %v2433 = vmax.f32 %v435, 0.0
    %v2434 = vmax.f32 %v548, 0.0
    %v2435 = vmax.f32 %v661, 0.0
    %v2436 = vmax.f32 %v774, 0.0
    %v2437 = vmax.f32 %v887, 0.0
    %v2438 = vmax.f32 %v1000, 0.0
    %v2439 = vmax.f32 %v1113, 0.0
    %v2440 = vmax.f32 %v1226, 0.0
    %v2441 = vmax.f32 %v1339, 0.0
    %v2442 = vmax.f32 %v1452, 0.0
    %v2443 = vmax.f32 %v1565, 0.0
    %v2444 = vmax.f32 %v1678, 0.0
    %v2445 = vmax.f32 %v1791, 0.0
    %v2446 = vmax.f32 %v1904, 0.0
    %v2447 = vmax.f32 %v2017, 0.0
    %v2448 = vmax.f32 %v2130, 0.0
    %v2449 = vmax.f32 %v438, 0.0
    %v2450 = vmax.f32 %v551, 0.0
    %v2451 = vmax.f32 %v664, 0.0
    %v2452 = vmax.f32 %v777, 0.0
    %v2453 = vmax.f32 %v890, 0.0
    %v2454 = vmax.f32 %v1003, 0.0
    %v2455 = vmax.f32 %v1116, 0.0
    %v2456 = vmax.f32 %v1229, 0.0
    %v2457 = vmax.f32 %v1342, 0.0
    %v2458 = vmax.f32 %v1455, 0.0
    %v2459 = vmax.f32 %v1568, 0.0
    %v2460 = vmax.f32 %v1681, 0.0
    %v2461 = vmax.f32 %v1794, 0.0
    %v2462 = vmax.f32 %v1907, 0.0
    %v2463 = vmax.f32 %v2020, 0.0
    %v2464 = vmax.f32 %v2133, 0.0
    %v2465 = vmax.f32 %v441, 0.0
    %v2466 = vmax.f32 %v554, 0.0
    %v2467 = vmax.f32 %v667, 0.0
    %v2468 = vmax.f32 %v780, 0.0
    %v2469 = vmax.f32 %v893, 0.0
    %v2470 = vmax.f32 %v1006, 0.0
    %v2471 = vmax.f32 %v1119, 0.0
    %v2472 = vmax.f32 %v1232, 0.0
    %v2473 = vmax.f32 %v1345, 0.0
    %v2474 = vmax.f32 %v1458, 0.0
    %v2475 = vmax.f32 %v1571, 0.0
    %v2476 = vmax.f32 %v1684, 0.0
    %v2477 = vmax.f32 %v1797, 0.0
    %v2478 = vmax.f32 %v1910, 0.0
    %v2479 = vmax.f32 %v2023, 0.0
    %v2480 = vmax.f32 %v2136, 0.0
    %v2481 = vmax.f32 %v444, 0.0
    %v2482 = vmax.f32 %v557, 0.0
    %v2483 = vmax.f32 %v670, 0.0
    %v2484 = vmax.f32 %v783, 0.0
    %v2485 = vmax.f32 %v896, 0.0
    %v2486 = vmax.f32 %v1009, 0.0
    %v2487 = vmax.f32 %v1122, 0.0
    %v2488 = vmax.f32 %v1235, 0.0
    %v2489 = vmax.f32 %v1348, 0.0
    %v2490 = vmax.f32 %v1461, 0.0
    %v2491 = vmax.f32 %v1574, 0.0
    %v2492 = vmax.f32 %v1687, 0.0
    %v2493 = vmax.f32 %v1800, 0.0
    %v2494 = vmax.f32 %v1913, 0.0
    %v2495 = vmax.f32 %v2026, 0.0
    %v2496 = vmax.f32 %v2139, 0.0
    %v2497 = vmax.f32 %v447, 0.0
    %v2498 = vmax.f32 %v560, 0.0
    %v2499 = vmax.f32 %v673, 0.0
    %v2500 = vmax.f32 %v786, 0.0
    %v2501 = vmax.f32 %v899, 0.0
    %v2502 = vmax.f32 %v1012, 0.0
    %v2503 = vmax.f32 %v1125, 0.0
    %v2504 = vmax.f32 %v1238, 0.0
    %v2505 = vmax.f32 %v1351, 0.0
    %v2506 = vmax.f32 %v1464, 0.0
    %v2507 = vmax.f32 %v1577, 0.0
    %v2508 = vmax.f32 %v1690, 0.0
    %v2509 = vmax.f32 %v1803, 0.0
    %v2510 = vmax.f32 %v1916, 0.0
    %v2511 = vmax.f32 %v2029, 0.0
    %v2512 = vmax.f32 %v2142, 0.0
    %v2513 = vmax.f32 %v450, 0.0
    %v2514 = vmax.f32 %v563, 0.0
    %v2515 = vmax.f32 %v676, 0.0
    %v2516 = vmax.f32 %v789, 0.0
    %v2517 = vmax.f32 %v902, 0.0
    %v2518 = vmax.f32 %v1015, 0.0
    %v2519 = vmax.f32 %v1128, 0.0
    %v2520 = vmax.f32 %v1241, 0.0
    %v2521 = vmax.f32 %v1354, 0.0
    %v2522 = vmax.f32 %v1467, 0.0
    %v2523 = vmax.f32 %v1580, 0.0
    %v2524 = vmax.f32 %v1693, 0.0
    %v2525 = vmax.f32 %v1806, 0.0
    %v2526 = vmax.f32 %v1919, 0.0
    %v2527 = vmax.f32 %v2032, 0.0
    %v2528 = vmax.f32 %v2145, 0.0
    %v2529 = vmax.f32 %v453, 0.0
    %v2530 = vmax.f32 %v566, 0.0
    %v2531 = vmax.f32 %v679, 0.0
    %v2532 = vmax.f32 %v792, 0.0
    %v2533 = vmax.f32 %v905, 0.0
    %v2534 = vmax.f32 %v1018, 0.0
    %v2535 = vmax.f32 %v1131, 0.0
    %v2536 = vmax.f32 %v1244, 0.0
    %v2537 = vmax.f32 %v1357, 0.0
    %v2538 = vmax.f32 %v1470, 0.0
    %v2539 = vmax.f32 %v1583, 0.0
    %v2540 = vmax.f32 %v1696, 0.0
    %v2541 = vmax.f32 %v1809, 0.0
    %v2542 = vmax.f32 %v1922, 0.0
    %v2543 = vmax.f32 %v2035, 0.0
    %v2544 = vmax.f32 %v2148, 0.0
    %v2545 = vmax.f32 %v456, 0.0
    %v2546 = vmax.f32 %v569, 0.0
    %v2547 = vmax.f32 %v682, 0.0
    %v2548 = vmax.f32 %v795, 0.0
    %v2549 = vmax.f32 %v908, 0.0
    %v2550 = vmax.f32 %v1021, 0.0
    %v2551 = vmax.f32 %v1134, 0.0
    %v2552 = vmax.f32 %v1247, 0.0
    %v2553 = vmax.f32 %v1360, 0.0
    %v2554 = vmax.f32 %v1473, 0.0
    %v2555 = vmax.f32 %v1586, 0.0
    %v2556 = vmax.f32 %v1699, 0.0
    %v2557 = vmax.f32 %v1812, 0.0
    %v2558 = vmax.f32 %v1925, 0.0
    %v2559 = vmax.f32 %v2038, 0.0
    %v2560 = vmax.f32 %v2151, 0.0
    %v2561 = vmax.f32 %v459, 0.0
    %v2562 = vmax.f32 %v572, 0.0
    %v2563 = vmax.f32 %v685, 0.0
    %v2564 = vmax.f32 %v798, 0.0
    %v2565 = vmax.f32 %v911, 0.0
    %v2566 = vmax.f32 %v1024, 0.0
    %v2567 = vmax.f32 %v1137, 0.0
    %v2568 = vmax.f32 %v1250, 0.0
    %v2569 = vmax.f32 %v1363, 0.0
    %v2570 = vmax.f32 %v1476, 0.0
    %v2571 = vmax.f32 %v1589, 0.0
    %v2572 = vmax.f32 %v1702, 0.0
    %v2573 = vmax.f32 %v1815, 0.0
    %v2574 = vmax.f32 %v1928, 0.0
    %v2575 = vmax.f32 %v2041, 0.0
    %v2576 = vmax.f32 %v2154, 0.0
    %v2577 = vmax.f32 %v462, 0.0
    %v2578 = vmax.f32 %v575, 0.0
    %v2579 = vmax.f32 %v688, 0.0
    %v2580 = vmax.f32 %v801, 0.0
    %v2581 = vmax.f32 %v914, 0.0
    %v2582 = vmax.f32 %v1027, 0.0
    %v2583 = vmax.f32 %v1140, 0.0
    %v2584 = vmax.f32 %v1253, 0.0
    %v2585 = vmax.f32 %v1366, 0.0
    %v2586 = vmax.f32 %v1479, 0.0
    %v2587 = vmax.f32 %v1592, 0.0
    %v2588 = vmax.f32 %v1705, 0.0
    %v2589 = vmax.f32 %v1818, 0.0
    %v2590 = vmax.f32 %v1931, 0.0
    %v2591 = vmax.f32 %v2044, 0.0
    %v2592 = vmax.f32 %v2157, 0.0
    %v2593 = vmax.f32 %v465, 0.0
    %v2594 = vmax.f32 %v578, 0.0
    %v2595 = vmax.f32 %v691, 0.0
    %v2596 = vmax.f32 %v804, 0.0
    %v2597 = vmax.f32 %v917, 0.0
    %v2598 = vmax.f32 %v1030, 0.0
    %v2599 = vmax.f32 %v1143, 0.0
    %v2600 = vmax.f32 %v1256, 0.0
    %v2601 = vmax.f32 %v1369, 0.0
    %v2602 = vmax.f32 %v1482, 0.0
    %v2603 = vmax.f32 %v1595, 0.0
    %v2604 = vmax.f32 %v1708, 0.0
    %v2605 = vmax.f32 %v1821, 0.0
    %v2606 = vmax.f32 %v1934, 0.0
    %v2607 = vmax.f32 %v2047, 0.0
    %v2608 = vmax.f32 %v2160, 0.0
    %v2609 = vmax.f32 %v468, 0.0
    %v2610 = vmax.f32 %v581, 0.0
    %v2611 = vmax.f32 %v694, 0.0
    %v2612 = vmax.f32 %v807, 0.0
    %v2613 = vmax.f32 %v920, 0.0
    %v2614 = vmax.f32 %v1033, 0.0
    %v2615 = vmax.f32 %v1146, 0.0
    %v2616 = vmax.f32 %v1259, 0.0
    %v2617 = vmax.f32 %v1372, 0.0
    %v2618 = vmax.f32 %v1485, 0.0
    %v2619 = vmax.f32 %v1598, 0.0
    %v2620 = vmax.f32 %v1711, 0.0
    %v2621 = vmax.f32 %v1824, 0.0
    %v2622 = vmax.f32 %v1937, 0.0
    %v2623 = vmax.f32 %v2050, 0.0
    %v2624 = vmax.f32 %v2163, 0.0
    %v2625 = vmax.f32 %v471, 0.0
    %v2626 = vmax.f32 %v584, 0.0
    %v2627 = vmax.f32 %v697, 0.0
    %v2628 = vmax.f32 %v810, 0.0
    %v2629 = vmax.f32 %v923, 0.0
    %v2630 = vmax.f32 %v1036, 0.0
    %v2631 = vmax.f32 %v1149, 0.0
    %v2632 = vmax.f32 %v1262, 0.0
    %v2633 = vmax.f32 %v1375, 0.0
    %v2634 = vmax.f32 %v1488, 0.0
    %v2635 = vmax.f32 %v1601, 0.0
    %v2636 = vmax.f32 %v1714, 0.0
    %v2637 = vmax.f32 %v1827, 0.0
    %v2638 = vmax.f32 %v1940, 0.0
    %v2639 = vmax.f32 %v2053, 0.0
    %v2640 = vmax.f32 %v2166, 0.0
    %v2641 = vmax.f32 %v474, 0.0
    %v2642 = vmax.f32 %v587, 0.0
    %v2643 = vmax.f32 %v700, 0.0
    %v2644 = vmax.f32 %v813, 0.0
    %v2645 = vmax.f32 %v926, 0.0
    %v2646 = vmax.f32 %v1039, 0.0
    %v2647 = vmax.f32 %v1152, 0.0
    %v2648 = vmax.f32 %v1265, 0.0
    %v2649 = vmax.f32 %v1378, 0.0
    %v2650 = vmax.f32 %v1491, 0.0
    %v2651 = vmax.f32 %v1604, 0.0
    %v2652 = vmax.f32 %v1717, 0.0
    %v2653 = vmax.f32 %v1830, 0.0
    %v2654 = vmax.f32 %v1943, 0.0
    %v2655 = vmax.f32 %v2056, 0.0
    %v2656 = vmax.f32 %v2169, 0.0
    %v2657 = vmax.f32 %v477, 0.0
    %v2658 = vmax.f32 %v590, 0.0
    %v2659 = vmax.f32 %v703, 0.0
    %v2660 = vmax.f32 %v816, 0.0
    %v2661 = vmax.f32 %v929, 0.0
    %v2662 = vmax.f32 %v1042, 0.0
    %v2663 = vmax.f32 %v1155, 0.0
    %v2664 = vmax.f32 %v1268, 0.0
    %v2665 = vmax.f32 %v1381, 0.0
    %v2666 = vmax.f32 %v1494, 0.0
    %v2667 = vmax.f32 %v1607, 0.0
    %v2668 = vmax.f32 %v1720, 0.0
    %v2669 = vmax.f32 %v1833, 0.0
    %v2670 = vmax.f32 %v1946, 0.0
    %v2671 = vmax.f32 %v2059, 0.0
    %v2672 = vmax.f32 %v2172, 0.0
    %v2673 = vmax.f32 %v480, 0.0
    %v2674 = vmax.f32 %v593, 0.0
    %v2675 = vmax.f32 %v706, 0.0
    %v2676 = vmax.f32 %v819, 0.0
    %v2677 = vmax.f32 %v932, 0.0
    %v2678 = vmax.f32 %v1045, 0.0
    %v2679 = vmax.f32 %v1158, 0.0
    %v2680 = vmax.f32 %v1271, 0.0
    %v2681 = vmax.f32 %v1384, 0.0
    %v2682 = vmax.f32 %v1497, 0.0
    %v2683 = vmax.f32 %v1610, 0.0
    %v2684 = vmax.f32 %v1723, 0.0
    %v2685 = vmax.f32 %v1836, 0.0
    %v2686 = vmax.f32 %v1949, 0.0
    %v2687 = vmax.f32 %v2062, 0.0
    %v2688 = vmax.f32 %v2175, 0.0
    %2689 = vst [vmem:[#allocation7] sm:$0xff] %v2177
    %2690 = vst [vmem:[#allocation7 + $0x8] sm:$0xff] %v2178
    %2691 = vst [vmem:[#allocation7 + $0x10] sm:$0xff] %v2179
    %2692 = vst [vmem:[#allocation7 + $0x18] sm:$0xff] %v2180
    %2693 = vst [vmem:[#allocation7 + $0x20] sm:$0xff] %v2181
    %2694 = vst [vmem:[#allocation7 + $0x28] sm:$0xff] %v2182
    %2695 = vst [vmem:[#allocation7 + $0x30] sm:$0xff] %v2183
    %2696 = vst [vmem:[#allocation7 + $0x38] sm:$0xff] %v2184
    %2697 = vst [vmem:[#allocation7 + $0x40] sm:$0xff] %v2185
    %2698 = vst [vmem:[#allocation7 + $0x48] sm:$0xff] %v2186
    %2699 = vst [vmem:[#allocation7 + $0x50] sm:$0xff] %v2187
    %2700 = vst [vmem:[#allocation7 + $0x58] sm:$0xff] %v2188
    %2701 = vst [vmem:[#allocation7 + $0x60] sm:$0xff] %v2189
    %2702 = vst [vmem:[#allocation7 + $0x68] sm:$0xff] %v2190
    %2703 = vst [vmem:[#allocation7 + $0x70] sm:$0xff] %v2191
    %2704 = vst [vmem:[#allocation7 + $0x78] sm:$0xff] %v2192
    %2705 = vst [vmem:[#allocation7 + $0x80] sm:$0xff] %v2193
    %2706 = vst [vmem:[#allocation7 + $0x88] sm:$0xff] %v2194
    %2707 = vst [vmem:[#allocation7 + $0x90] sm:$0xff] %v2195
    %2708 = vst [vmem:[#allocation7 + $0x98] sm:$0xff] %v2196
    %2709 = vst [vmem:[#allocation7 + $0xa0] sm:$0xff] %v2197
    %2710 = vst [vmem:[#allocation7 + $0xa8] sm:$0xff] %v2198
    %2711 = vst [vmem:[#allocation7 + $0xb0] sm:$0xff] %v2199
    %2712 = vst [vmem:[#allocation7 + $0xb8] sm:$0xff] %v2200
    %2713 = vst [vmem:[#allocation7 + $0xc0] sm:$0xff] %v2201
    %2714 = vst [vmem:[#allocation7 + $0xc8] sm:$0xff] %v2202
    %2715 = vst [vmem:[#allocation7 + $0xd0] sm:$0xff] %v2203
    %2716 = vst [vmem:[#allocation7 + $0xd8] sm:$0xff] %v2204
    %2717 = vst [vmem:[#allocation7 + $0xe0] sm:$0xff] %v2205
    %2718 = vst [vmem:[#allocation7 + $0xe8] sm:$0xff] %v2206
    %2719 = vst [vmem:[#allocation7 + $0xf0] sm:$0xff] %v2207
    %2720 = vst [vmem:[#allocation7 + $0xf8] sm:$0xff] %v2208
    %2721 = vst [vmem:[#allocation7 + $0x100] sm:$0xff] %v2209
    %2722 = vst [vmem:[#allocation7 + $0x108] sm:$0xff] %v2210
    %2723 = vst [vmem:[#allocation7 + $0x110] sm:$0xff] %v2211
    %2724 = vst [vmem:[#allocation7 + $0x118] sm:$0xff] %v2212
    %2725 = vst [vmem:[#allocation7 + $0x120] sm:$0xff] %v2213
    %2726 = vst [vmem:[#allocation7 + $0x128] sm:$0xff] %v2214
    %2727 = vst [vmem:[#allocation7 + $0x130] sm:$0xff] %v2215
    %2728 = vst [vmem:[#allocation7 + $0x138] sm:$0xff] %v2216
    %2729 = vst [vmem:[#allocation7 + $0x140] sm:$0xff] %v2217
    %2730 = vst [vmem:[#allocation7 + $0x148] sm:$0xff] %v2218
    %2731 = vst [vmem:[#allocation7 + $0x150] sm:$0xff] %v2219
    %2732 = vst [vmem:[#allocation7 + $0x158] sm:$0xff] %v2220
    %2733 = vst [vmem:[#allocation7 + $0x160] sm:$0xff] %v2221
    %2734 = vst [vmem:[#allocation7 + $0x168] sm:$0xff] %v2222
    %2735 = vst [vmem:[#allocation7 + $0x170] sm:$0xff] %v2223
    %2736 = vst [vmem:[#allocation7 + $0x178] sm:$0xff] %v2224
    %2737 = vst [vmem:[#allocation7 + $0x180] sm:$0xff] %v2225
    %2738 = vst [vmem:[#allocation7 + $0x188] sm:$0xff] %v2226
    %2739 = vst [vmem:[#allocation7 + $0x190] sm:$0xff] %v2227
    %2740 = vst [vmem:[#allocation7 + $0x198] sm:$0xff] %v2228
    %2741 = vst [vmem:[#allocation7 + $0x1a0] sm:$0xff] %v2229
    %2742 = vst [vmem:[#allocation7 + $0x1a8] sm:$0xff] %v2230
    %2743 = vst [vmem:[#allocation7 + $0x1b0] sm:$0xff] %v2231
    %2744 = vst [vmem:[#allocation7 + $0x1b8] sm:$0xff] %v2232
    %2745 = vst [vmem:[#allocation7 + $0x1c0] sm:$0xff] %v2233
    %2746 = vst [vmem:[#allocation7 + $0x1c8] sm:$0xff] %v2234
    %2747 = vst [vmem:[#allocation7 + $0x1d0] sm:$0xff] %v2235
    %2748 = vst [vmem:[#allocation7 + $0x1d8] sm:$0xff] %v2236
    %2749 = vst [vmem:[#allocation7 + $0x1e0] sm:$0xff] %v2237
    %2750 = vst [vmem:[#allocation7 + $0x1e8] sm:$0xff] %v2238
    %2751 = vst [vmem:[#allocation7 + $0x1f0] sm:$0xff] %v2239
    %2752 = vst [vmem:[#allocation7 + $0x1f8] sm:$0xff] %v2240
    %2753 = vst [vmem:[#allocation7 + $0x200] sm:$0xff] %v2241
    %2754 = vst [vmem:[#allocation7 + $0x208] sm:$0xff] %v2242
    %2755 = vst [vmem:[#allocation7 + $0x210] sm:$0xff] %v2243
    %2756 = vst [vmem:[#allocation7 + $0x218] sm:$0xff] %v2244
    %2757 = vst [vmem:[#allocation7 + $0x220] sm:$0xff] %v2245
    %2758 = vst [vmem:[#allocation7 + $0x228] sm:$0xff] %v2246
    %2759 = vst [vmem:[#allocation7 + $0x230] sm:$0xff] %v2247
    %2760 = vst [vmem:[#allocation7 + $0x238] sm:$0xff] %v2248
    %2761 = vst [vmem:[#allocation7 + $0x240] sm:$0xff] %v2249
    %2762 = vst [vmem:[#allocation7 + $0x248] sm:$0xff] %v2250
    %2763 = vst [vmem:[#allocation7 + $0x250] sm:$0xff] %v2251
    %2764 = vst [vmem:[#allocation7 + $0x258] sm:$0xff] %v2252
    %2765 = vst [vmem:[#allocation7 + $0x260] sm:$0xff] %v2253
    %2766 = vst [vmem:[#allocation7 + $0x268] sm:$0xff] %v2254
    %2767 = vst [vmem:[#allocation7 + $0x270] sm:$0xff] %v2255
    %2768 = vst [vmem:[#allocation7 + $0x278] sm:$0xff] %v2256
    %2769 = vst [vmem:[#allocation7 + $0x280] sm:$0xff] %v2257
    %2770 = vst [vmem:[#allocation7 + $0x288] sm:$0xff] %v2258
    %2771 = vst [vmem:[#allocation7 + $0x290] sm:$0xff] %v2259
    %2772 = vst [vmem:[#allocation7 + $0x298] sm:$0xff] %v2260
    %2773 = vst [vmem:[#allocation7 + $0x2a0] sm:$0xff] %v2261
    %2774 = vst [vmem:[#allocation7 + $0x2a8] sm:$0xff] %v2262
    %2775 = vst [vmem:[#allocation7 + $0x2b0] sm:$0xff] %v2263
    %2776 = vst [vmem:[#allocation7 + $0x2b8] sm:$0xff] %v2264
    %2777 = vst [vmem:[#allocation7 + $0x2c0] sm:$0xff] %v2265
    %2778 = vst [vmem:[#allocation7 + $0x2c8] sm:$0xff] %v2266
    %2779 = vst [vmem:[#allocation7 + $0x2d0] sm:$0xff] %v2267
    %2780 = vst [vmem:[#allocation7 + $0x2d8] sm:$0xff] %v2268
    %2781 = vst [vmem:[#allocation7 + $0x2e0] sm:$0xff] %v2269
    %2782 = vst [vmem:[#allocation7 + $0x2e8] sm:$0xff] %v2270
    %2783 = vst [vmem:[#allocation7 + $0x2f0] sm:$0xff] %v2271
    %2784 = vst [vmem:[#allocation7 + $0x2f8] sm:$0xff] %v2272
    %2785 = vst [vmem:[#allocation7 + $0x300] sm:$0xff] %v2273
    %2786 = vst [vmem:[#allocation7 + $0x308] sm:$0xff] %v2274
    %2787 = vst [vmem:[#allocation7 + $0x310] sm:$0xff] %v2275
    %2788 = vst [vmem:[#allocation7 + $0x318] sm:$0xff] %v2276
    %2789 = vst [vmem:[#allocation7 + $0x320] sm:$0xff] %v2277
    %2790 = vst [vmem:[#allocation7 + $0x328] sm:$0xff] %v2278
    %2791 = vst [vmem:[#allocation7 + $0x330] sm:$0xff] %v2279
    %2792 = vst [vmem:[#allocation7 + $0x338] sm:$0xff] %v2280
    %2793 = vst [vmem:[#allocation7 + $0x340] sm:$0xff] %v2281
    %2794 = vst [vmem:[#allocation7 + $0x348] sm:$0xff] %v2282
    %2795 = vst [vmem:[#allocation7 + $0x350] sm:$0xff] %v2283
    %2796 = vst [vmem:[#allocation7 + $0x358] sm:$0xff] %v2284
    %2797 = vst [vmem:[#allocation7 + $0x360] sm:$0xff] %v2285
    %2798 = vst [vmem:[#allocation7 + $0x368] sm:$0xff] %v2286
    %2799 = vst [vmem:[#allocation7 + $0x370] sm:$0xff] %v2287
    %2800 = vst [vmem:[#allocation7 + $0x378] sm:$0xff] %v2288
    %2801 = vst [vmem:[#allocation7 + $0x380] sm:$0xff] %v2289
    %2802 = vst [vmem:[#allocation7 + $0x388] sm:$0xff] %v2290
    %2803 = vst [vmem:[#allocation7 + $0x390] sm:$0xff] %v2291
    %2804 = vst [vmem:[#allocation7 + $0x398] sm:$0xff] %v2292
    %2805 = vst [vmem:[#allocation7 + $0x3a0] sm:$0xff] %v2293
    %2806 = vst [vmem:[#allocation7 + $0x3a8] sm:$0xff] %v2294
    %2807 = vst [vmem:[#allocation7 + $0x3b0] sm:$0xff] %v2295
    %2808 = vst [vmem:[#allocation7 + $0x3b8] sm:$0xff] %v2296
    %2809 = vst [vmem:[#allocation7 + $0x3c0] sm:$0xff] %v2297
    %2810 = vst [vmem:[#allocation7 + $0x3c8] sm:$0xff] %v2298
    %2811 = vst [vmem:[#allocation7 + $0x3d0] sm:$0xff] %v2299
    %2812 = vst [vmem:[#allocation7 + $0x3d8] sm:$0xff] %v2300
    %2813 = vst [vmem:[#allocation7 + $0x3e0] sm:$0xff] %v2301
    %2814 = vst [vmem:[#allocation7 + $0x3e8] sm:$0xff] %v2302
    %2815 = vst [vmem:[#allocation7 + $0x3f0] sm:$0xff] %v2303
    %2816 = vst [vmem:[#allocation7 + $0x3f8] sm:$0xff] %v2304
    %2817 = vst [vmem:[#allocation7 + $0x400] sm:$0xff] %v2305
    %2818 = vst [vmem:[#allocation7 + $0x408] sm:$0xff] %v2306
    %2819 = vst [vmem:[#allocation7 + $0x410] sm:$0xff] %v2307
    %2820 = vst [vmem:[#allocation7 + $0x418] sm:$0xff] %v2308
    %2821 = vst [vmem:[#allocation7 + $0x420] sm:$0xff] %v2309
    %2822 = vst [vmem:[#allocation7 + $0x428] sm:$0xff] %v2310
    %2823 = vst [vmem:[#allocation7 + $0x430] sm:$0xff] %v2311
    %2824 = vst [vmem:[#allocation7 + $0x438] sm:$0xff] %v2312
    %2825 = vst [vmem:[#allocation7 + $0x440] sm:$0xff] %v2313
    %2826 = vst [vmem:[#allocation7 + $0x448] sm:$0xff] %v2314
    %2827 = vst [vmem:[#allocation7 + $0x450] sm:$0xff] %v2315
    %2828 = vst [vmem:[#allocation7 + $0x458] sm:$0xff] %v2316
    %2829 = vst [vmem:[#allocation7 + $0x460] sm:$0xff] %v2317
    %2830 = vst [vmem:[#allocation7 + $0x468] sm:$0xff] %v2318
    %2831 = vst [vmem:[#allocation7 + $0x470] sm:$0xff] %v2319
    %2832 = vst [vmem:[#allocation7 + $0x478] sm:$0xff] %v2320
    %2833 = vst [vmem:[#allocation7 + $0x480] sm:$0xff] %v2321
    %2834 = vst [vmem:[#allocation7 + $0x488] sm:$0xff] %v2322
    %2835 = vst [vmem:[#allocation7 + $0x490] sm:$0xff] %v2323
    %2836 = vst [vmem:[#allocation7 + $0x498] sm:$0xff] %v2324
    %2837 = vst [vmem:[#allocation7 + $0x4a0] sm:$0xff] %v2325
    %2838 = vst [vmem:[#allocation7 + $0x4a8] sm:$0xff] %v2326
    %2839 = vst [vmem:[#allocation7 + $0x4b0] sm:$0xff] %v2327
    %2840 = vst [vmem:[#allocation7 + $0x4b8] sm:$0xff] %v2328
    %2841 = vst [vmem:[#allocation7 + $0x4c0] sm:$0xff] %v2329
    %2842 = vst [vmem:[#allocation7 + $0x4c8] sm:$0xff] %v2330
    %2843 = vst [vmem:[#allocation7 + $0x4d0] sm:$0xff] %v2331
    %2844 = vst [vmem:[#allocation7 + $0x4d8] sm:$0xff] %v2332
    %2845 = vst [vmem:[#allocation7 + $0x4e0] sm:$0xff] %v2333
    %2846 = vst [vmem:[#allocation7 + $0x4e8] sm:$0xff] %v2334
    %2847 = vst [vmem:[#allocation7 + $0x4f0] sm:$0xff] %v2335
    %2848 = vst [vmem:[#allocation7 + $0x4f8] sm:$0xff] %v2336
    %2849 = vst [vmem:[#allocation7 + $0x500] sm:$0xff] %v2337
    %2850 = vst [vmem:[#allocation7 + $0x508] sm:$0xff] %v2338
    %2851 = vst [vmem:[#allocation7 + $0x510] sm:$0xff] %v2339
    %2852 = vst [vmem:[#allocation7 + $0x518] sm:$0xff] %v2340
    %2853 = vst [vmem:[#allocation7 + $0x520] sm:$0xff] %v2341
    %2854 = vst [vmem:[#allocation7 + $0x528] sm:$0xff] %v2342
    %2855 = vst [vmem:[#allocation7 + $0x530] sm:$0xff] %v2343
    %2856 = vst [vmem:[#allocation7 + $0x538] sm:$0xff] %v2344
    %2857 = vst [vmem:[#allocation7 + $0x540] sm:$0xff] %v2345
    %2858 = vst [vmem:[#allocation7 + $0x548] sm:$0xff] %v2346
    %2859 = vst [vmem:[#allocation7 + $0x550] sm:$0xff] %v2347
    %2860 = vst [vmem:[#allocation7 + $0x558] sm:$0xff] %v2348
    %2861 = vst [vmem:[#allocation7 + $0x560] sm:$0xff] %v2349
    %2862 = vst [vmem:[#allocation7 + $0x568] sm:$0xff] %v2350
    %2863 = vst [vmem:[#allocation7 + $0x570] sm:$0xff] %v2351
    %2864 = vst [vmem:[#allocation7 + $0x578] sm:$0xff] %v2352
    %2865 = vst [vmem:[#allocation7 + $0x580] sm:$0xff] %v2353
    %2866 = vst [vmem:[#allocation7 + $0x588] sm:$0xff] %v2354
    %2867 = vst [vmem:[#allocation7 + $0x590] sm:$0xff] %v2355
    %2868 = vst [vmem:[#allocation7 + $0x598] sm:$0xff] %v2356
    %2869 = vst [vmem:[#allocation7 + $0x5a0] sm:$0xff] %v2357
    %2870 = vst [vmem:[#allocation7 + $0x5a8] sm:$0xff] %v2358
    %2871 = vst [vmem:[#allocation7 + $0x5b0] sm:$0xff] %v2359
    %2872 = vst [vmem:[#allocation7 + $0x5b8] sm:$0xff] %v2360
    %2873 = vst [vmem:[#allocation7 + $0x5c0] sm:$0xff] %v2361
    %2874 = vst [vmem:[#allocation7 + $0x5c8] sm:$0xff] %v2362
    %2875 = vst [vmem:[#allocation7 + $0x5d0] sm:$0xff] %v2363
    %2876 = vst [vmem:[#allocation7 + $0x5d8] sm:$0xff] %v2364
    %2877 = vst [vmem:[#allocation7 + $0x5e0] sm:$0xff] %v2365
    %2878 = vst [vmem:[#allocation7 + $0x5e8] sm:$0xff] %v2366
    %2879 = vst [vmem:[#allocation7 + $0x5f0] sm:$0xff] %v2367
    %2880 = vst [vmem:[#allocation7 + $0x5f8] sm:$0xff] %v2368
    %2881 = vst [vmem:[#allocation7 + $0x600] sm:$0xff] %v2369
    %2882 = vst [vmem:[#allocation7 + $0x608] sm:$0xff] %v2370
    %2883 = vst [vmem:[#allocation7 + $0x610] sm:$0xff] %v2371
    %2884 = vst [vmem:[#allocation7 + $0x618] sm:$0xff] %v2372
    %2885 = vst [vmem:[#allocation7 + $0x620] sm:$0xff] %v2373
    %2886 = vst [vmem:[#allocation7 + $0x628] sm:$0xff] %v2374
    %2887 = vst [vmem:[#allocation7 + $0x630] sm:$0xff] %v2375
    %2888 = vst [vmem:[#allocation7 + $0x638] sm:$0xff] %v2376
    %2889 = vst [vmem:[#allocation7 + $0x640] sm:$0xff] %v2377
    %2890 = vst [vmem:[#allocation7 + $0x648] sm:$0xff] %v2378
    %2891 = vst [vmem:[#allocation7 + $0x650] sm:$0xff] %v2379
    %2892 = vst [vmem:[#allocation7 + $0x658] sm:$0xff] %v2380
    %2893 = vst [vmem:[#allocation7 + $0x660] sm:$0xff] %v2381
    %2894 = vst [vmem:[#allocation7 + $0x668] sm:$0xff] %v2382
    %2895 = vst [vmem:[#allocation7 + $0x670] sm:$0xff] %v2383
    %2896 = vst [vmem:[#allocation7 + $0x678] sm:$0xff] %v2384
    %2897 = vst [vmem:[#allocation7 + $0x680] sm:$0xff] %v2385
    %2898 = vst [vmem:[#allocation7 + $0x688] sm:$0xff] %v2386
    %2899 = vst [vmem:[#allocation7 + $0x690] sm:$0xff] %v2387
    %2900 = vst [vmem:[#allocation7 + $0x698] sm:$0xff] %v2388
    %2901 = vst [vmem:[#allocation7 + $0x6a0] sm:$0xff] %v2389
    %2902 = vst [vmem:[#allocation7 + $0x6a8] sm:$0xff] %v2390
    %2903 = vst [vmem:[#allocation7 + $0x6b0] sm:$0xff] %v2391
    %2904 = vst [vmem:[#allocation7 + $0x6b8] sm:$0xff] %v2392
    %2905 = vst [vmem:[#allocation7 + $0x6c0] sm:$0xff] %v2393
    %2906 = vst [vmem:[#allocation7 + $0x6c8] sm:$0xff] %v2394
    %2907 = vst [vmem:[#allocation7 + $0x6d0] sm:$0xff] %v2395
    %2908 = vst [vmem:[#allocation7 + $0x6d8] sm:$0xff] %v2396
    %2909 = vst [vmem:[#allocation7 + $0x6e0] sm:$0xff] %v2397
    %2910 = vst [vmem:[#allocation7 + $0x6e8] sm:$0xff] %v2398
    %2911 = vst [vmem:[#allocation7 + $0x6f0] sm:$0xff] %v2399
    %2912 = vst [vmem:[#allocation7 + $0x6f8] sm:$0xff] %v2400
    %2913 = vst [vmem:[#allocation7 + $0x700] sm:$0xff] %v2401
    %2914 = vst [vmem:[#allocation7 + $0x708] sm:$0xff] %v2402
    %2915 = vst [vmem:[#allocation7 + $0x710] sm:$0xff] %v2403
    %2916 = vst [vmem:[#allocation7 + $0x718] sm:$0xff] %v2404
    %2917 = vst [vmem:[#allocation7 + $0x720] sm:$0xff] %v2405
    %2918 = vst [vmem:[#allocation7 + $0x728] sm:$0xff] %v2406
    %2919 = vst [vmem:[#allocation7 + $0x730] sm:$0xff] %v2407
    %2920 = vst [vmem:[#allocation7 + $0x738] sm:$0xff] %v2408
    %2921 = vst [vmem:[#allocation7 + $0x740] sm:$0xff] %v2409
    %2922 = vst [vmem:[#allocation7 + $0x748] sm:$0xff] %v2410
    %2923 = vst [vmem:[#allocation7 + $0x750] sm:$0xff] %v2411
    %2924 = vst [vmem:[#allocation7 + $0x758] sm:$0xff] %v2412
    %2925 = vst [vmem:[#allocation7 + $0x760] sm:$0xff] %v2413
    %2926 = vst [vmem:[#allocation7 + $0x768] sm:$0xff] %v2414
    %2927 = vst [vmem:[#allocation7 + $0x770] sm:$0xff] %v2415
    %2928 = vst [vmem:[#allocation7 + $0x778] sm:$0xff] %v2416
    %2929 = vst [vmem:[#allocation7 + $0x780] sm:$0xff] %v2417
    %2930 = vst [vmem:[#allocation7 + $0x788] sm:$0xff] %v2418
    %2931 = vst [vmem:[#allocation7 + $0x790] sm:$0xff] %v2419
    %2932 = vst [vmem:[#allocation7 + $0x798] sm:$0xff] %v2420
    %2933 = vst [vmem:[#allocation7 + $0x7a0] sm:$0xff] %v2421
    %2934 = vst [vmem:[#allocation7 + $0x7a8] sm:$0xff] %v2422
    %2935 = vst [vmem:[#allocation7 + $0x7b0] sm:$0xff] %v2423
    %2936 = vst [vmem:[#allocation7 + $0x7b8] sm:$0xff] %v2424
    %2937 = vst [vmem:[#allocation7 + $0x7c0] sm:$0xff] %v2425
    %2938 = vst [vmem:[#allocation7 + $0x7c8] sm:$0xff] %v2426
    %2939 = vst [vmem:[#allocation7 + $0x7d0] sm:$0xff] %v2427
    %2940 = vst [vmem:[#allocation7 + $0x7d8] sm:$0xff] %v2428
    %2941 = vst [vmem:[#allocation7 + $0x7e0] sm:$0xff] %v2429
    %2942 = vst [vmem:[#allocation7 + $0x7e8] sm:$0xff] %v2430
    %2943 = vst [vmem:[#allocation7 + $0x7f0] sm:$0xff] %v2431
    %2944 = vst [vmem:[#allocation7 + $0x7f8] sm:$0xff] %v2432
    %2945 = vst [vmem:[#allocation7 + $0x800] sm:$0xff] %v2433
    %2946 = vst [vmem:[#allocation7 + $0x808] sm:$0xff] %v2434
    %2947 = vst [vmem:[#allocation7 + $0x810] sm:$0xff] %v2435
    %2948 = vst [vmem:[#allocation7 + $0x818] sm:$0xff] %v2436
    %2949 = vst [vmem:[#allocation7 + $0x820] sm:$0xff] %v2437
    %2950 = vst [vmem:[#allocation7 + $0x828] sm:$0xff] %v2438
    %2951 = vst [vmem:[#allocation7 + $0x830] sm:$0xff] %v2439
    %2952 = vst [vmem:[#allocation7 + $0x838] sm:$0xff] %v2440
    %2953 = vst [vmem:[#allocation7 + $0x840] sm:$0xff] %v2441
    %2954 = vst [vmem:[#allocation7 + $0x848] sm:$0xff] %v2442
    %2955 = vst [vmem:[#allocation7 + $0x850] sm:$0xff] %v2443
    %2956 = vst [vmem:[#allocation7 + $0x858] sm:$0xff] %v2444
    %2957 = vst [vmem:[#allocation7 + $0x860] sm:$0xff] %v2445
    %2958 = vst [vmem:[#allocation7 + $0x868] sm:$0xff] %v2446
    %2959 = vst [vmem:[#allocation7 + $0x870] sm:$0xff] %v2447
    %2960 = vst [vmem:[#allocation7 + $0x878] sm:$0xff] %v2448
    %2961 = vst [vmem:[#allocation7 + $0x880] sm:$0xff] %v2449
    %2962 = vst [vmem:[#allocation7 + $0x888] sm:$0xff] %v2450
    %2963 = vst [vmem:[#allocation7 + $0x890] sm:$0xff] %v2451
    %2964 = vst [vmem:[#allocation7 + $0x898] sm:$0xff] %v2452
    %2965 = vst [vmem:[#allocation7 + $0x8a0] sm:$0xff] %v2453
    %2966 = vst [vmem:[#allocation7 + $0x8a8] sm:$0xff] %v2454
    %2967 = vst [vmem:[#allocation7 + $0x8b0] sm:$0xff] %v2455
    %2968 = vst [vmem:[#allocation7 + $0x8b8] sm:$0xff] %v2456
    %2969 = vst [vmem:[#allocation7 + $0x8c0] sm:$0xff] %v2457
    %2970 = vst [vmem:[#allocation7 + $0x8c8] sm:$0xff] %v2458
    %2971 = vst [vmem:[#allocation7 + $0x8d0] sm:$0xff] %v2459
    %2972 = vst [vmem:[#allocation7 + $0x8d8] sm:$0xff] %v2460
    %2973 = vst [vmem:[#allocation7 + $0x8e0] sm:$0xff] %v2461
    %2974 = vst [vmem:[#allocation7 + $0x8e8] sm:$0xff] %v2462
    %2975 = vst [vmem:[#allocation7 + $0x8f0] sm:$0xff] %v2463
    %2976 = vst [vmem:[#allocation7 + $0x8f8] sm:$0xff] %v2464
    %2977 = vst [vmem:[#allocation7 + $0x900] sm:$0xff] %v2465
    %2978 = vst [vmem:[#allocation7 + $0x908] sm:$0xff] %v2466
    %2979 = vst [vmem:[#allocation7 + $0x910] sm:$0xff] %v2467
    %2980 = vst [vmem:[#allocation7 + $0x918] sm:$0xff] %v2468
    %2981 = vst [vmem:[#allocation7 + $0x920] sm:$0xff] %v2469
    %2982 = vst [vmem:[#allocation7 + $0x928] sm:$0xff] %v2470
    %2983 = vst [vmem:[#allocation7 + $0x930] sm:$0xff] %v2471
    %2984 = vst [vmem:[#allocation7 + $0x938] sm:$0xff] %v2472
    %2985 = vst [vmem:[#allocation7 + $0x940] sm:$0xff] %v2473
    %2986 = vst [vmem:[#allocation7 + $0x948] sm:$0xff] %v2474
    %2987 = vst [vmem:[#allocation7 + $0x950] sm:$0xff] %v2475
    %2988 = vst [vmem:[#allocation7 + $0x958] sm:$0xff] %v2476
    %2989 = vst [vmem:[#allocation7 + $0x960] sm:$0xff] %v2477
    %2990 = vst [vmem:[#allocation7 + $0x968] sm:$0xff] %v2478
    %2991 = vst [vmem:[#allocation7 + $0x970] sm:$0xff] %v2479
    %2992 = vst [vmem:[#allocation7 + $0x978] sm:$0xff] %v2480
    %2993 = vst [vmem:[#allocation7 + $0x980] sm:$0xff] %v2481
    %2994 = vst [vmem:[#allocation7 + $0x988] sm:$0xff] %v2482
    %2995 = vst [vmem:[#allocation7 + $0x990] sm:$0xff] %v2483
    %2996 = vst [vmem:[#allocation7 + $0x998] sm:$0xff] %v2484
    %2997 = vst [vmem:[#allocation7 + $0x9a0] sm:$0xff] %v2485
    %2998 = vst [vmem:[#allocation7 + $0x9a8] sm:$0xff] %v2486
    %2999 = vst [vmem:[#allocation7 + $0x9b0] sm:$0xff] %v2487
    %3000 = vst [vmem:[#allocation7 + $0x9b8] sm:$0xff] %v2488
    %3001 = vst [vmem:[#allocation7 + $0x9c0] sm:$0xff] %v2489
    %3002 = vst [vmem:[#allocation7 + $0x9c8] sm:$0xff] %v2490
    %3003 = vst [vmem:[#allocation7 + $0x9d0] sm:$0xff] %v2491
    %3004 = vst [vmem:[#allocation7 + $0x9d8] sm:$0xff] %v2492
    %3005 = vst [vmem:[#allocation7 + $0x9e0] sm:$0xff] %v2493
    %3006 = vst [vmem:[#allocation7 + $0x9e8] sm:$0xff] %v2494
    %3007 = vst [vmem:[#allocation7 + $0x9f0] sm:$0xff] %v2495
    %3008 = vst [vmem:[#allocation7 + $0x9f8] sm:$0xff] %v2496
    %3009 = vst [vmem:[#allocation7 + $0xa00] sm:$0xff] %v2497
    %3010 = vst [vmem:[#allocation7 + $0xa08] sm:$0xff] %v2498
    %3011 = vst [vmem:[#allocation7 + $0xa10] sm:$0xff] %v2499
    %3012 = vst [vmem:[#allocation7 + $0xa18] sm:$0xff] %v2500
    %3013 = vst [vmem:[#allocation7 + $0xa20] sm:$0xff] %v2501
    %3014 = vst [vmem:[#allocation7 + $0xa28] sm:$0xff] %v2502
    %3015 = vst [vmem:[#allocation7 + $0xa30] sm:$0xff] %v2503
    %3016 = vst [vmem:[#allocation7 + $0xa38] sm:$0xff] %v2504
    %3017 = vst [vmem:[#allocation7 + $0xa40] sm:$0xff] %v2505
    %3018 = vst [vmem:[#allocation7 + $0xa48] sm:$0xff] %v2506
    %3019 = vst [vmem:[#allocation7 + $0xa50] sm:$0xff] %v2507
    %3020 = vst [vmem:[#allocation7 + $0xa58] sm:$0xff] %v2508
    %3021 = vst [vmem:[#allocation7 + $0xa60] sm:$0xff] %v2509
    %3022 = vst [vmem:[#allocation7 + $0xa68] sm:$0xff] %v2510
    %3023 = vst [vmem:[#allocation7 + $0xa70] sm:$0xff] %v2511
    %3024 = vst [vmem:[#allocation7 + $0xa78] sm:$0xff] %v2512
    %3025 = vst [vmem:[#allocation7 + $0xa80] sm:$0xff] %v2513
    %3026 = vst [vmem:[#allocation7 + $0xa88] sm:$0xff] %v2514
    %3027 = vst [vmem:[#allocation7 + $0xa90] sm:$0xff] %v2515
    %3028 = vst [vmem:[#allocation7 + $0xa98] sm:$0xff] %v2516
    %3029 = vst [vmem:[#allocation7 + $0xaa0] sm:$0xff] %v2517
    %3030 = vst [vmem:[#allocation7 + $0xaa8] sm:$0xff] %v2518
    %3031 = vst [vmem:[#allocation7 + $0xab0] sm:$0xff] %v2519
    %3032 = vst [vmem:[#allocation7 + $0xab8] sm:$0xff] %v2520
    %3033 = vst [vmem:[#allocation7 + $0xac0] sm:$0xff] %v2521
    %3034 = vst [vmem:[#allocation7 + $0xac8] sm:$0xff] %v2522
    %3035 = vst [vmem:[#allocation7 + $0xad0] sm:$0xff] %v2523
    %3036 = vst [vmem:[#allocation7 + $0xad8] sm:$0xff] %v2524
    %3037 = vst [vmem:[#allocation7 + $0xae0] sm:$0xff] %v2525
    %3038 = vst [vmem:[#allocation7 + $0xae8] sm:$0xff] %v2526
    %3039 = vst [vmem:[#allocation7 + $0xaf0] sm:$0xff] %v2527
    %3040 = vst [vmem:[#allocation7 + $0xaf8] sm:$0xff] %v2528
    %3041 = vst [vmem:[#allocation7 + $0xb00] sm:$0xff] %v2529
    %3042 = vst [vmem:[#allocation7 + $0xb08] sm:$0xff] %v2530
    %3043 = vst [vmem:[#allocation7 + $0xb10] sm:$0xff] %v2531
    %3044 = vst [vmem:[#allocation7 + $0xb18] sm:$0xff] %v2532
    %3045 = vst [vmem:[#allocation7 + $0xb20] sm:$0xff] %v2533
    %3046 = vst [vmem:[#allocation7 + $0xb28] sm:$0xff] %v2534
    %3047 = vst [vmem:[#allocation7 + $0xb30] sm:$0xff] %v2535
    %3048 = vst [vmem:[#allocation7 + $0xb38] sm:$0xff] %v2536
    %3049 = vst [vmem:[#allocation7 + $0xb40] sm:$0xff] %v2537
    %3050 = vst [vmem:[#allocation7 + $0xb48] sm:$0xff] %v2538
    %3051 = vst [vmem:[#allocation7 + $0xb50] sm:$0xff] %v2539
    %3052 = vst [vmem:[#allocation7 + $0xb58] sm:$0xff] %v2540
    %3053 = vst [vmem:[#allocation7 + $0xb60] sm:$0xff] %v2541
    %3054 = vst [vmem:[#allocation7 + $0xb68] sm:$0xff] %v2542
    %3055 = vst [vmem:[#allocation7 + $0xb70] sm:$0xff] %v2543
    %3056 = vst [vmem:[#allocation7 + $0xb78] sm:$0xff] %v2544
    %3057 = vst [vmem:[#allocation7 + $0xb80] sm:$0xff] %v2545
    %3058 = vst [vmem:[#allocation7 + $0xb88] sm:$0xff] %v2546
    %3059 = vst [vmem:[#allocation7 + $0xb90] sm:$0xff] %v2547
    %3060 = vst [vmem:[#allocation7 + $0xb98] sm:$0xff] %v2548
    %3061 = vst [vmem:[#allocation7 + $0xba0] sm:$0xff] %v2549
    %3062 = vst [vmem:[#allocation7 + $0xba8] sm:$0xff] %v2550
    %3063 = vst [vmem:[#allocation7 + $0xbb0] sm:$0xff] %v2551
    %3064 = vst [vmem:[#allocation7 + $0xbb8] sm:$0xff] %v2552
    %3065 = vst [vmem:[#allocation7 + $0xbc0] sm:$0xff] %v2553
    %3066 = vst [vmem:[#allocation7 + $0xbc8] sm:$0xff] %v2554
    %3067 = vst [vmem:[#allocation7 + $0xbd0] sm:$0xff] %v2555
    %3068 = vst [vmem:[#allocation7 + $0xbd8] sm:$0xff] %v2556
    %3069 = vst [vmem:[#allocation7 + $0xbe0] sm:$0xff] %v2557
    %3070 = vst [vmem:[#allocation7 + $0xbe8] sm:$0xff] %v2558
    %3071 = vst [vmem:[#allocation7 + $0xbf0] sm:$0xff] %v2559
    %3072 = vst [vmem:[#allocation7 + $0xbf8] sm:$0xff] %v2560
    %3073 = vst [vmem:[#allocation7 + $0xc00] sm:$0xff] %v2561
    %3074 = vst [vmem:[#allocation7 + $0xc08] sm:$0xff] %v2562
    %3075 = vst [vmem:[#allocation7 + $0xc10] sm:$0xff] %v2563
    %3076 = vst [vmem:[#allocation7 + $0xc18] sm:$0xff] %v2564
    %3077 = vst [vmem:[#allocation7 + $0xc20] sm:$0xff] %v2565
    %3078 = vst [vmem:[#allocation7 + $0xc28] sm:$0xff] %v2566
    %3079 = vst [vmem:[#allocation7 + $0xc30] sm:$0xff] %v2567
    %3080 = vst [vmem:[#allocation7 + $0xc38] sm:$0xff] %v2568
    %3081 = vst [vmem:[#allocation7 + $0xc40] sm:$0xff] %v2569
    %3082 = vst [vmem:[#allocation7 + $0xc48] sm:$0xff] %v2570
    %3083 = vst [vmem:[#allocation7 + $0xc50] sm:$0xff] %v2571
    %3084 = vst [vmem:[#allocation7 + $0xc58] sm:$0xff] %v2572
    %3085 = vst [vmem:[#allocation7 + $0xc60] sm:$0xff] %v2573
    %3086 = vst [vmem:[#allocation7 + $0xc68] sm:$0xff] %v2574
    %3087 = vst [vmem:[#allocation7 + $0xc70] sm:$0xff] %v2575
    %3088 = vst [vmem:[#allocation7 + $0xc78] sm:$0xff] %v2576
    %3089 = vst [vmem:[#allocation7 + $0xc80] sm:$0xff] %v2577
    %3090 = vst [vmem:[#allocation7 + $0xc88] sm:$0xff] %v2578
    %3091 = vst [vmem:[#allocation7 + $0xc90] sm:$0xff] %v2579
    %3092 = vst [vmem:[#allocation7 + $0xc98] sm:$0xff] %v2580
    %3093 = vst [vmem:[#allocation7 + $0xca0] sm:$0xff] %v2581
    %3094 = vst [vmem:[#allocation7 + $0xca8] sm:$0xff] %v2582
    %3095 = vst [vmem:[#allocation7 + $0xcb0] sm:$0xff] %v2583
    %3096 = vst [vmem:[#allocation7 + $0xcb8] sm:$0xff] %v2584
    %3097 = vst [vmem:[#allocation7 + $0xcc0] sm:$0xff] %v2585
    %3098 = vst [vmem:[#allocation7 + $0xcc8] sm:$0xff] %v2586
    %3099 = vst [vmem:[#allocation7 + $0xcd0] sm:$0xff] %v2587
    %3100 = vst [vmem:[#allocation7 + $0xcd8] sm:$0xff] %v2588
    %3101 = vst [vmem:[#allocation7 + $0xce0] sm:$0xff] %v2589
    %3102 = vst [vmem:[#allocation7 + $0xce8] sm:$0xff] %v2590
    %3103 = vst [vmem:[#allocation7 + $0xcf0] sm:$0xff] %v2591
    %3104 = vst [vmem:[#allocation7 + $0xcf8] sm:$0xff] %v2592
    %3105 = vst [vmem:[#allocation7 + $0xd00] sm:$0xff] %v2593
    %3106 = vst [vmem:[#allocation7 + $0xd08] sm:$0xff] %v2594
    %3107 = vst [vmem:[#allocation7 + $0xd10] sm:$0xff] %v2595
    %3108 = vst [vmem:[#allocation7 + $0xd18] sm:$0xff] %v2596
    %3109 = vst [vmem:[#allocation7 + $0xd20] sm:$0xff] %v2597
    %3110 = vst [vmem:[#allocation7 + $0xd28] sm:$0xff] %v2598
    %3111 = vst [vmem:[#allocation7 + $0xd30] sm:$0xff] %v2599
    %3112 = vst [vmem:[#allocation7 + $0xd38] sm:$0xff] %v2600
    %3113 = vst [vmem:[#allocation7 + $0xd40] sm:$0xff] %v2601
    %3114 = vst [vmem:[#allocation7 + $0xd48] sm:$0xff] %v2602
    %3115 = vst [vmem:[#allocation7 + $0xd50] sm:$0xff] %v2603
    %3116 = vst [vmem:[#allocation7 + $0xd58] sm:$0xff] %v2604
    %3117 = vst [vmem:[#allocation7 + $0xd60] sm:$0xff] %v2605
    %3118 = vst [vmem:[#allocation7 + $0xd68] sm:$0xff] %v2606
    %3119 = vst [vmem:[#allocation7 + $0xd70] sm:$0xff] %v2607
    %3120 = vst [vmem:[#allocation7 + $0xd78] sm:$0xff] %v2608
    %3121 = vst [vmem:[#allocation7 + $0xd80] sm:$0xff] %v2609
    %3122 = vst [vmem:[#allocation7 + $0xd88] sm:$0xff] %v2610
    %3123 = vst [vmem:[#allocation7 + $0xd90] sm:$0xff] %v2611
    %3124 = vst [vmem:[#allocation7 + $0xd98] sm:$0xff] %v2612
    %3125 = vst [vmem:[#allocation7 + $0xda0] sm:$0xff] %v2613
    %3126 = vst [vmem:[#allocation7 + $0xda8] sm:$0xff] %v2614
    %3127 = vst [vmem:[#allocation7 + $0xdb0] sm:$0xff] %v2615
    %3128 = vst [vmem:[#allocation7 + $0xdb8] sm:$0xff] %v2616
    %3129 = vst [vmem:[#allocation7 + $0xdc0] sm:$0xff] %v2617
    %3130 = vst [vmem:[#allocation7 + $0xdc8] sm:$0xff] %v2618
    %3131 = vst [vmem:[#allocation7 + $0xdd0] sm:$0xff] %v2619
    %3132 = vst [vmem:[#allocation7 + $0xdd8] sm:$0xff] %v2620
    %3133 = vst [vmem:[#allocation7 + $0xde0] sm:$0xff] %v2621
    %3134 = vst [vmem:[#allocation7 + $0xde8] sm:$0xff] %v2622
    %3135 = vst [vmem:[#allocation7 + $0xdf0] sm:$0xff] %v2623
    %3136 = vst [vmem:[#allocation7 + $0xdf8] sm:$0xff] %v2624
    %3137 = vst [vmem:[#allocation7 + $0xe00] sm:$0xff] %v2625
    %3138 = vst [vmem:[#allocation7 + $0xe08] sm:$0xff] %v2626
    %3139 = vst [vmem:[#allocation7 + $0xe10] sm:$0xff] %v2627
    %3140 = vst [vmem:[#allocation7 + $0xe18] sm:$0xff] %v2628
    %3141 = vst [vmem:[#allocation7 + $0xe20] sm:$0xff] %v2629
    %3142 = vst [vmem:[#allocation7 + $0xe28] sm:$0xff] %v2630
    %3143 = vst [vmem:[#allocation7 + $0xe30] sm:$0xff] %v2631
    %3144 = vst [vmem:[#allocation7 + $0xe38] sm:$0xff] %v2632
    %3145 = vst [vmem:[#allocation7 + $0xe40] sm:$0xff] %v2633
    %3146 = vst [vmem:[#allocation7 + $0xe48] sm:$0xff] %v2634
    %3147 = vst [vmem:[#allocation7 + $0xe50] sm:$0xff] %v2635
    %3148 = vst [vmem:[#allocation7 + $0xe58] sm:$0xff] %v2636
    %3149 = vst [vmem:[#allocation7 + $0xe60] sm:$0xff] %v2637
    %3150 = vst [vmem:[#allocation7 + $0xe68] sm:$0xff] %v2638
    %3151 = vst [vmem:[#allocation7 + $0xe70] sm:$0xff] %v2639
    %3152 = vst [vmem:[#allocation7 + $0xe78] sm:$0xff] %v2640
    %3153 = vst [vmem:[#allocation7 + $0xe80] sm:$0xff] %v2641
    %3154 = vst [vmem:[#allocation7 + $0xe88] sm:$0xff] %v2642
    %3155 = vst [vmem:[#allocation7 + $0xe90] sm:$0xff] %v2643
    %3156 = vst [vmem:[#allocation7 + $0xe98] sm:$0xff] %v2644
    %3157 = vst [vmem:[#allocation7 + $0xea0] sm:$0xff] %v2645
    %3158 = vst [vmem:[#allocation7 + $0xea8] sm:$0xff] %v2646
    %3159 = vst [vmem:[#allocation7 + $0xeb0] sm:$0xff] %v2647
    %3160 = vst [vmem:[#allocation7 + $0xeb8] sm:$0xff] %v2648
    %3161 = vst [vmem:[#allocation7 + $0xec0] sm:$0xff] %v2649
    %3162 = vst [vmem:[#allocation7 + $0xec8] sm:$0xff] %v2650
    %3163 = vst [vmem:[#allocation7 + $0xed0] sm:$0xff] %v2651
    %3164 = vst [vmem:[#allocation7 + $0xed8] sm:$0xff] %v2652
    %3165 = vst [vmem:[#allocation7 + $0xee0] sm:$0xff] %v2653
    %3166 = vst [vmem:[#allocation7 + $0xee8] sm:$0xff] %v2654
    %3167 = vst [vmem:[#allocation7 + $0xef0] sm:$0xff] %v2655
    %3168 = vst [vmem:[#allocation7 + $0xef8] sm:$0xff] %v2656
    %3169 = vst [vmem:[#allocation7 + $0xf00] sm:$0xff] %v2657
    %3170 = vst [vmem:[#allocation7 + $0xf08] sm:$0xff] %v2658
    %3171 = vst [vmem:[#allocation7 + $0xf10] sm:$0xff] %v2659
    %3172 = vst [vmem:[#allocation7 + $0xf18] sm:$0xff] %v2660
    %3173 = vst [vmem:[#allocation7 + $0xf20] sm:$0xff] %v2661
    %3174 = vst [vmem:[#allocation7 + $0xf28] sm:$0xff] %v2662
    %3175 = vst [vmem:[#allocation7 + $0xf30] sm:$0xff] %v2663
    %3176 = vst [vmem:[#allocation7 + $0xf38] sm:$0xff] %v2664
    %3177 = vst [vmem:[#allocation7 + $0xf40] sm:$0xff] %v2665
    %3178 = vst [vmem:[#allocation7 + $0xf48] sm:$0xff] %v2666
    %3179 = vst [vmem:[#allocation7 + $0xf50] sm:$0xff] %v2667
    %3180 = vst [vmem:[#allocation7 + $0xf58] sm:$0xff] %v2668
    %3181 = vst [vmem:[#allocation7 + $0xf60] sm:$0xff] %v2669
    %3182 = vst [vmem:[#allocation7 + $0xf68] sm:$0xff] %v2670
    %3183 = vst [vmem:[#allocation7 + $0xf70] sm:$0xff] %v2671
    %3184 = vst [vmem:[#allocation7 + $0xf78] sm:$0xff] %v2672
    %3185 = vst [vmem:[#allocation7 + $0xf80] sm:$0xff] %v2673
    %3186 = vst [vmem:[#allocation7 + $0xf88] sm:$0xff] %v2674
    %3187 = vst [vmem:[#allocation7 + $0xf90] sm:$0xff] %v2675
    %3188 = vst [vmem:[#allocation7 + $0xf98] sm:$0xff] %v2676
    %3189 = vst [vmem:[#allocation7 + $0xfa0] sm:$0xff] %v2677
    %3190 = vst [vmem:[#allocation7 + $0xfa8] sm:$0xff] %v2678
    %3191 = vst [vmem:[#allocation7 + $0xfb0] sm:$0xff] %v2679
    %3192 = vst [vmem:[#allocation7 + $0xfb8] sm:$0xff] %v2680
    %3193 = vst [vmem:[#allocation7 + $0xfc0] sm:$0xff] %v2681
    %3194 = vst [vmem:[#allocation7 + $0xfc8] sm:$0xff] %v2682
    %3195 = vst [vmem:[#allocation7 + $0xfd0] sm:$0xff] %v2683
    %3196 = vst [vmem:[#allocation7 + $0xfd8] sm:$0xff] %v2684
    %3197 = vst [vmem:[#allocation7 + $0xfe0] sm:$0xff] %v2685
    %3198 = vst [vmem:[#allocation7 + $0xfe8] sm:$0xff] %v2686
    %3199 = vst [vmem:[#allocation7 + $0xff0] sm:$0xff] %v2687
    %3200 = vst [vmem:[#allocation7 + $0xff8] sm:$0xff] %v2688
    // Predicated region
    $region22: #{ae_forward.3} parent=1 // pred_check
      _
    $region23: #{ae_forward.3} parent=1 // pred_check_branch
      %3202 = sbr.rel (0) target = $region25
    $region24: #{ae_forward.3} parent=1 // pred_region
      %3204 = vsyncadd [#allocation4], 0
      %s3205 = sshll.u32 [#allocation7], 4
      %s3206 = int_to_ptr.vmem [resolvable:$true] %s3205
      %s3207 = sshll.u32 %s3, 4
      %s3208 = int_to_ptr.hbm [resolvable:$true] %s3207
      %3213 = dma.vmem_to_hbm [thread:$0]  %s3206, 65536, %s3208, [#allocation4], 2048, 2048, 128
    $region25: #{ae_forward.3} parent=1 // pred_fallthru
      _
    // Predicated region
    $region26: #{ae_forward.3} parent=1 // pred_check
      _
    $region27: #{ae_forward.3} parent=1 // pred_check_branch
      %3215 = sbr.rel (0) target = $region29
    $region28: #{ae_forward.3} parent=1 // pred_region
      %3217 = dma.done [#allocation4], 65536
    $region29: #{ae_forward.3} parent=1 // pred_fallthru
      _
    %3218 = vsyncpa [#allocation3], 1
    %3219 = vsyncpa [#allocation6], 1
    %3220 = vsyncpa [#allocation4], 1

</llo_original>
